<compile_context>
chip_gen: v6e
topology: v6e:2x2x1
jax: 0.10.0
libtpu: 0.0.40
codegen_flags: <defaults>
</compile_context>

<pallas_src>
import functools

import jax
import jax.numpy as jnp
from jax import lax
from jax.experimental import pallas as pl
from jax.experimental.pallas import tpu as pltpu

LANE = 128
_BN_EPS = 1e-5
# MXU / HBM-resident dtype for activations and weights.  Accumulation, BN statistics
# and the epilogue stay float32.  Set to jnp.float32 for exact-f32 conv arithmetic.
_MXU_DTYPE = jnp.bfloat16


def _round_up(x, m):
    return (x + m - 1) // m * m


def _divisors_desc(n):
    return [d for d in range(n, 0, -1) if n % d == 0]


@functools.lru_cache(maxsize=None)
def _vmem_budget():
    """(per-step tile budget, vmem_limit_bytes), picked per TPU generation."""
    cap = 64 * 1024 * 1024
    try:
        info = pltpu.get_tpu_info()
        cap = int(getattr(info, "vmem_capacity_bytes", cap))
    except Exception:
        pass
    if cap >= 96 * 1024 * 1024:                   # v5e / v6e: 128 MiB physical VMEM
        return 48 * 1024 * 1024, 96 * 1024 * 1024
    return 20 * 1024 * 1024, 40 * 1024 * 1024     # v7x: 64 MiB physical VMEM


def _pick_conv_row_tile(H, W, cin, cout, budget):
    """Largest row tile TH dividing H whose full per-step footprint fits the budget.
    Counts everything the kernel actually holds (f32 acc, bf16 patches, bn/mask tile)."""
    e = jnp.dtype(_MXU_DTYPE).itemsize
    for th in _divisors_desc(H):
        f = (2 * th * (W + 2) * cin * e            # core input tile, double-buffered
             + 4 * (W + 2) * cin * e               # 2 halo rows, double-buffered
             + 2 * 9 * cin * cout * e              # im2col weights
             + 2 * th * (W + 2) * cout * e         # conv output tile, double-buffered
             + (th + 2) * (W + 2) * cin * (4 + e)  # f32 bn/mask tile + MXU-dtype copy
             + th * W * 9 * cin * e                # im2col patches
             + th * W * cout * 4)                  # f32 accumulator
        if f * 5 // 4 <= budget:                   # 25% slack for compiler temporaries
            return th
    return 1                                       # smallest divisor, never whole image


def _pick_rows(H, per_row_bytes, budget):
    for th in _divisors_desc(H):
        if th * per_row_bytes * 5 // 4 <= budget:
            return th
    return 1


# ----------------------------------------------------------------------------
# In-kernel helpers
# ----------------------------------------------------------------------------
def _conv_acc(x, w_ref, im2col):
    """x: (TH+2, W+2, Cin) in _MXU_DTYPE.  Returns f32 (TH*W, Cout) conv accumulator.
    im2col=True : one MXU contraction with K = 9*Cin (Cin must be lane-aligned).
    im2col=False: 9 per-tap matmuls with K = Cin (small-Cin layer-1 path, no padding)."""
    th, wp2, cin = x.shape
    th -= 2
    w_out = wp2 - 2
    if im2col:
        # NOTE: W a multiple of the sublane tile keeps these flattens free.
        taps = [x[dy:dy + th, dx:dx + w_out, :].reshape(th * w_out, cin)
                for dy in range(3) for dx in range(3)]
        patches = jnp.concatenate(taps, axis=-1)             # (TH*W, 9*Cin), MXU dtype
        return jnp.dot(patches, w_ref[...], preferred_element_type=jnp.float32)
    acc = None
    for dy in range(3):
        for dx in range(3):
            tap = x[dy:dy + th, dx:dx + w_out, :].reshape(th * w_out, cin)
            d = jnp.dot(tap, w_ref[dy * 3 + dx], preferred_element_type=jnp.float32)
            acc = d if acc is None else acc + d
    return acc


def _store_stats(acc, ps_ref):
    # Per-tile (sum, sum_sq) partials for training-mode BatchNorm, in float32,
    # taken from the unrounded accumulator.
    ps_ref[0, 0, 0:1, :] = jnp.sum(acc, axis=0, keepdims=True)
    ps_ref[0, 0, 1:2, :] = jnp.sum(acc * acc, axis=0, keepdims=True)


# ----------------------------------------------------------------------------
# Layer-1 conv: 3x3 conv (natural Cin) + BN partial statistics
# ----------------------------------------------------------------------------
def _conv1_kernel(xc_ref, xb0_ref, xb1_ref, w_ref, o_ref, ps_ref, *, im2col):
    # xc : (1, TH, W+2, Cin)   rows [t*TH, t*TH+TH) of the spatially padded input
    # xb0/xb1: (1, 1, W+2, Cin) the two rows directly below the core block (halo)
    # o  : (1, TH, W+2, Cout)  raw conv output with zero W-borders (feeds conv2)
    # ps : (1, 1, 2, Cout)     per-tile (sum, sum_sq) BN partials
    x = jnp.concatenate([xc_ref[0], xb0_ref[0], xb1_ref[0]], axis=0)
    acc = _conv_acc(x, w_ref, im2col)
    th = xc_ref.shape[1]
    w_out = xc_ref.shape[2] - 2
    cout = o_ref.shape[-1]
    y = acc.reshape(th, w_out, cout).astype(o_ref.dtype)
    o_ref[0, :, 1:w_out + 1, :] = y
    zcol = jnp.zeros((th, 1, cout), o_ref.dtype)
    o_ref[0, :, 0:1, :] = zcol
    o_ref[0, :, w_out + 1:w_out + 2, :] = zcol
    _store_stats(acc, ps_ref)


def _conv1(xp, w, th, H, W, cout_p, im2col, vmem_limit):
    N = xp.shape[0]
    cin = xp.shape[-1]
    nt = H // th
    kernel = functools.partial(_conv1_kernel, im2col=im2col)
    return pl.pallas_call(
        kernel,
        out_shape=(jax.ShapeDtypeStruct((N, H, W + 2, cout_p), _MXU_DTYPE),
                   jax.ShapeDtypeStruct((N, nt, 2, cout_p), jnp.float32)),
        grid_spec=pltpu.PrefetchScalarGridSpec(
            num_scalar_prefetch=0,
            grid=(N, nt),
            in_specs=[
                pl.BlockSpec((1, th, W + 2, cin), lambda n, t: (n, t, 0, 0)),
                pl.BlockSpec((1, 1, W + 2, cin),
                             lambda n, t: (n, t * th + th, 0, 0)),
                pl.BlockSpec((1, 1, W + 2, cin),
                             lambda n, t: (n, t * th + th + 1, 0, 0)),
                pl.BlockSpec(w.shape, lambda n, t: (0,) * w.ndim),
            ],
            out_specs=[
                pl.BlockSpec((1, th, W + 2, cout_p), lambda n, t: (n, t, 0, 0)),
                pl.BlockSpec((1, 1, 2, cout_p), lambda n, t: (n, t, 0, 0)),
            ],
        ),
        compiler_params=pltpu.CompilerParams(
            dimension_semantics=("parallel", "parallel"),
            vmem_limit_bytes=vmem_limit),
    )(xp, xp, xp, w)


# ----------------------------------------------------------------------------
# Layer-2 conv: fused BN1(train)+ReLU -> 3x3 conv (single im2col contraction) + stats
# ----------------------------------------------------------------------------
def _conv2_bn_fused_kernel(yc_ref, yt_ref, yb_ref, w_ref, s_ref, b_ref,
                           o_ref, ps_ref):
    # yc : (1, TH, W+2, C)  core rows of raw conv1 output (bf16, W-borders stored)
    # yt/yb: (1, 1, W+2, C) clamped halo rows (row above / below the core block)
    # w  : (9*C, C2) bf16 im2col weights ; s/b: (1, C) f32 BN1 scale/shift
    # o  : (1, TH, W, C2) raw conv2 output ; ps: (1, 1, 2, C2) BN2 partials
    t = pl.program_id(1)
    nt = pl.num_programs(1)
    yc = yc_ref[0]
    th, wp2, _ = yc.shape
    w_out = wp2 - 2
    h_total = nt * th

    y = jnp.concatenate([yt_ref[0], yc, yb_ref[0]], axis=0)         # (TH+2, W+2, C)
    a = jnp.maximum(y.astype(jnp.float32) * s_ref[...] + b_ref[...], 0.0)
    # Zero positions outside the valid HxW image: the two padded W columns and the
    # halo rows that were fetched with clamped indices at the image border.
    row = t * th - 1 + lax.broadcasted_iota(jnp.int32, (th + 2, wp2, 1), 0)
    col = lax.broadcasted_iota(jnp.int32, (th + 2, wp2, 1), 1)
    valid = (row >= 0) & (row < h_total) & (col >= 1) & (col <= w_out)
    a = jnp.where(valid, a, 0.0).astype(_MXU_DTYPE)

    acc = _conv_acc(a, w_ref, True)                                 # (TH*W, C2) f32
    o_ref[0] = acc.reshape(th, w_out, -1).astype(o_ref.dtype)
    _store_stats(acc, ps_ref)


def _conv2(y1, w, scale1, shift1, th, H, W, cout_p, vmem_limit):
    N = y1.shape[0]
    c = y1.shape[-1]
    nt = H // th
    return pl.pallas_call(
        _conv2_bn_fused_kernel,
        out_shape=(jax.ShapeDtypeStruct((N, H, W, cout_p), _MXU_DTYPE),
                   jax.ShapeDtypeStruct((N, nt, 2, cout_p), jnp.float32)),
        grid_spec=pltpu.PrefetchScalarGridSpec(
            num_scalar_prefetch=0,
            grid=(N, nt),
            in_specs=[
                pl.BlockSpec((1, th, W + 2, c), lambda n, t: (n, t, 0, 0)),
                pl.BlockSpec((1, 1, W + 2, c),
                             lambda n, t: (n, jnp.maximum(t * th - 1, 0), 0, 0)),
                pl.BlockSpec((1, 1, W + 2, c),
                             lambda n, t: (n, jnp.minimum(t * th + th, H - 1), 0, 0)),
                pl.BlockSpec((9 * c, cout_p), lambda n, t: (0, 0)),
                pl.BlockSpec((1, c), lambda n, t: (0, 0)),
                pl.BlockSpec((1, c), lambda n, t: (0, 0)),
            ],
            out_specs=[
                pl.BlockSpec((1, th, W, cout_p), lambda n, t: (n, t, 0, 0)),
                pl.BlockSpec((1, 1, 2, cout_p), lambda n, t: (n, t, 0, 0)),
            ],
        ),
        compiler_params=pltpu.CompilerParams(
            dimension_semantics=("parallel", "parallel"),
            vmem_limit_bytes=vmem_limit),
    )(y1, y1, y1, w, scale1, shift1)


# ----------------------------------------------------------------------------
# Epilogue: BN2 apply + ReLU (+ fused 2x2 max-pool) -- decoupled, big slabs
# ----------------------------------------------------------------------------
def _bn_relu_kernel(y_ref, s_ref, b_ref, o_ref):
    o_ref[0] = jnp.maximum(
        y_ref[0].astype(jnp.float32) * s_ref[...] + b_ref[...], 0.0)


def _bn_relu_pool_kernel(y_ref, s_ref, b_ref, bp_ref, p_ref):
    # y: (1, THp, 2, Wh, 2*C) -- the H-pool pair is a leading dim, the W-pool pair
    # rides the lane axis (free metadata reshape in the wrapper), so the 2x2 max-pool
    # needs no strided sublane gathers and the pooled output stays lane-dense.
    z = jnp.maximum(y_ref[0].astype(jnp.float32) * s_ref[...] + b_ref[...], 0.0)
    bp_ref[0] = z
    zh = jnp.maximum(z[:, 0], z[:, 1])                # pool over the H pair
    c = p_ref.shape[-1]
    p_ref[0] = jnp.maximum(zh[..., :c], zh[..., c:])  # pool over the W pair (lane halves)


def _bn_relu(y, scale, shift, th, vmem_limit):
    N, H, W, c = y.shape
    nt = H // th
    return pl.pallas_call(
        _bn_relu_kernel,
        out_shape=jax.ShapeDtypeStruct((N, H, W, c), jnp.float32),
        grid_spec=pltpu.PrefetchScalarGridSpec(
            num_scalar_prefetch=0,
            grid=(N, nt),
            in_specs=[
                pl.BlockSpec((1, th, W, c), lambda n, i: (n, i, 0, 0)),
                pl.BlockSpec((1, c), lambda n, i: (0, 0)),
                pl.BlockSpec((1, c), lambda n, i: (0, 0)),
            ],
            out_specs=pl.BlockSpec((1, th, W, c), lambda n, i: (n, i, 0, 0)),
        ),
        compiler_params=pltpu.CompilerParams(
            dimension_semantics=("parallel", "parallel"),
            vmem_limit_bytes=vmem_limit),
    )(y, scale, shift)


def _bn_relu_pool(y_pairs, scale2x, shift2x, thp, vmem_limit):
    N, hh, _, wh, c2x = y_pairs.shape
    c = c2x // 2
    nt = hh // thp
    return pl.pallas_call(
        _bn_relu_pool_kernel,
        out_shape=(jax.ShapeDtypeStruct((N, hh, 2, wh, c2x), jnp.float32),
                   jax.ShapeDtypeStruct((N, hh, wh, c), jnp.float32)),
        grid_spec=pltpu.PrefetchScalarGridSpec(
            num_scalar_prefetch=0,
            grid=(N, nt),
            in_specs=[
                pl.BlockSpec((1, thp, 2, wh, c2x), lambda n, i: (n, i, 0, 0, 0)),
                pl.BlockSpec((1, c2x), lambda n, i: (0, 0)),
                pl.BlockSpec((1, c2x), lambda n, i: (0, 0)),
            ],
            out_specs=[
                pl.BlockSpec((1, thp, 2, wh, c2x), lambda n, i: (n, i, 0, 0, 0)),
                pl.BlockSpec((1, thp, wh, c), lambda n, i: (n, i, 0, 0)),
            ],
        ),
        compiler_params=pltpu.CompilerParams(
            dimension_semantics=("parallel", "parallel"),
            vmem_limit_bytes=vmem_limit),
    )(y_pairs, scale2x, shift2x)


# ----------------------------------------------------------------------------
# JAX-side plumbing
# ----------------------------------------------------------------------------
def _prep_w_taps(w_pt, cout_p):
    cout, cin = w_pt.shape[0], w_pt.shape[1]
    w = jnp.transpose(w_pt.astype(jnp.float32), (2, 3, 1, 0))        # (3,3,cin,cout)
    w = jnp.pad(w, ((0, 0), (0, 0), (0, 0), (0, cout_p - cout)))
    return w.reshape(9, cin, cout_p).astype(_MXU_DTYPE)


def _prep_w_im2col(w_pt, cin_p, cout_p):
    cout, cin = w_pt.shape[0], w_pt.shape[1]
    w = jnp.transpose(w_pt.astype(jnp.float32), (2, 3, 1, 0))        # (3,3,cin,cout)
    w = jnp.pad(w, ((0, 0), (0, 0), (0, cin_p - cin), (0, cout_p - cout)))
    return w.reshape(9 * cin_p, cout_p).astype(_MXU_DTYPE)


def _bn_scale_shift(psums, gamma_p, beta_p, count):
    s = jnp.sum(psums.astype(jnp.float32), axis=(0, 1))              # (2, Cp)
    mean = s[0] / count
    var = jnp.maximum(s[1] / count - mean * mean, 0.0)               # biased (train mode)
    inv = lax.rsqrt(var + _BN_EPS)
    scale = gamma_p * inv
    shift = beta_p - mean * scale
    return scale.reshape(1, -1), shift.reshape(1, -1)


def init_downconv_params(key, in_channels, out_channels):
    k1, k2, k3, k4 = jax.random.split(key, 4)

    def conv_init(kw, kb, cin, cout):
        bound = (cin * 9) ** -0.5
        w = jax.random.uniform(kw, (cout, cin, 3, 3), jnp.float32, -bound, bound)
        b = jax.random.uniform(kb, (cout,), jnp.float32, -bound, bound)
        return w, b

    w1, b1 = conv_init(k1, k2, in_channels, out_channels)
    w2, b2 = conv_init(k3, k4, out_channels, out_channels)
    # Conv biases are kept for interface parity but NOT applied: a per-channel
    # constant cancels exactly under training-mode BatchNorm (mean subtraction).
    return dict(
        w1=w1, b1=b1, g1=jnp.ones((out_channels,), jnp.float32),
        be1=jnp.zeros((out_channels,), jnp.float32),
        w2=w2, b2=b2, g2=jnp.ones((out_channels,), jnp.float32),
        be2=jnp.zeros((out_channels,), jnp.float32),
    )


@functools.partial(jax.jit, static_argnames=("pooling",))
def downconv_forward(x_nchw, params, pooling=True):
    N, cin, H, W = x_nchw.shape
    cout = params["g1"].shape[0]
    C = _round_up(cout, LANE)
    budget, vmem_limit = _vmem_budget()
    if pooling:
        assert H % 2 == 0 and W % 2 == 0, "2x2 MaxPool needs even H and W"

    g1 = jnp.pad(params["g1"].astype(jnp.float32), (0, C - cout))
    be1 = jnp.pad(params["be1"].astype(jnp.float32), (0, C - cout))
    g2 = jnp.pad(params["g2"].astype(jnp.float32), (0, C - cout))
    be2 = jnp.pad(params["be2"].astype(jnp.float32), (0, C - cout))
    count = N * H * W
    e = jnp.dtype(_MXU_DTYPE).itemsize

    # ---- layer 1: conv3x3 -> BN(train) statistics ---------------------------
    # NCHW -> NHWC (+1px zero halo) at natural (unpadded) Cin, stored bf16.
    xp = jnp.pad(jnp.transpose(x_nchw, (0, 2, 3, 1)),
                 ((0, 0), (1, 1), (1, 1), (0, 0))).astype(_MXU_DTYPE)
    im2col1 = (cin % LANE == 0)
    w1 = (_prep_w_im2col(params["w1"], cin, C) if im2col1
          else _prep_w_taps(params["w1"], C))
    th1 = _pick_conv_row_tile(H, W, cin, C, budget)
    y1, ps1 = _conv1(xp, w1, th1, H, W, C, im2col1, vmem_limit)
    scale1, shift1 = _bn_scale_shift(ps1, g1, be1, count)

    # ---- layer 2: [fused BN1+ReLU] -> conv3x3 -> BN(train) statistics -------
    w2 = _prep_w_im2col(params["w2"], C, C)
    th2 = _pick_conv_row_tile(H, W, C, C, budget)
    y2, ps2 = _conv2(y1, w2, scale1, shift1, th2, H, W, C, vmem_limit)
    scale2, shift2 = _bn_scale_shift(ps2, g2, be2, count)

    # ---- epilogue: BN2 + ReLU (+ fused 2x2 max-pool) -------------------------
    if pooling:
        hh, wh = H // 2, W // 2
        y2p = y2.reshape(N, hh, 2, wh, 2 * C)          # free metadata reshape
        s2x = jnp.concatenate([scale2, scale2], axis=-1)
        b2x = jnp.concatenate([shift2, shift2], axis=-1)
        per_pair = W * C * (4 * e + 32)
        thp = _pick_rows(hh, per_pair, budget)
        bp, pooled = _bn_relu_pool(y2p, s2x, b2x, thp, vmem_limit)
        before_pool = bp.reshape(N, H, W, C)
        x_out = jnp.transpose(pooled[..., :cout], (0, 3, 1, 2))        # NCHW
        before_pool = jnp.transpose(before_pool[..., :cout], (0, 3, 1, 2))
        return x_out, before_pool

    per_row = W * C * (2 * e + 12)
    th3 = _pick_rows(H, per_row, budget)
    before_pool = _bn_relu(y2, scale2, shift2, th3, vmem_limit)
    before_pool = jnp.transpose(before_pool[..., :cout], (0, 3, 1, 2))
    return before_pool, before_pool


if __name__ == "__main__":
    key = jax.random.PRNGKey(0)
    k_x, k_p = jax.random.split(key)

    in_channels, out_channels = 4, 8
    x = jax.random.normal(k_x, (2, in_channels, 16, 16), dtype=jnp.float32)
    params = init_downconv_params(k_p, in_channels, out_channels)

    x_out, before_pool = downconv_forward(x, params, pooling=True)
    jax.block_until_ready((x_out, before_pool))

    assert x_out.shape == (2, out_channels, 8, 8)
    assert before_pool.shape == (2, out_channels, 16, 16)
    print("KERNEL_OK")
</pallas_src>

<mosaic_0001>
module attributes {stable_mosaic.version = 11 : i64} {
  func.func @_conv1_kernel(%arg0: i32, %arg1: i32, %arg2: memref<1x16x18x4xbf16, #tpu.memory_space<vmem>>, %arg3: memref<1x1x18x4xbf16, #tpu.memory_space<vmem>>, %arg4: memref<1x1x18x4xbf16, #tpu.memory_space<vmem>>, %arg5: memref<9x4x128xbf16, #tpu.memory_space<vmem>>, %arg6: memref<1x16x18x128xbf16, #tpu.memory_space<vmem>>, %arg7: memref<1x1x2x128xf32, #tpu.memory_space<vmem>>) attributes {dimension_semantics = [#tpu.dimension_semantics<parallel>, #tpu.dimension_semantics<parallel>], iteration_bounds = array<i64: 2, 1>, scalar_prefetch = 0 : i64, scratch_operands = 0 : i64, tpu.core_type = #tpu.core_type<tc>, window_params = [{transform_indices = @transform_0, window_bounds = array<i64: 1, 16, 18, 4>}, {transform_indices = @transform_1, window_bounds = array<i64: 1, 1, 18, 4>}, {transform_indices = @transform_2, window_bounds = array<i64: 1, 1, 18, 4>}, {pipeline_mode = #tpu.pipeline_mode<synchronous>, transform_indices = @transform_3, window_bounds = array<i64: 9, 4, 128>}, {transform_indices = @transform_4, window_bounds = array<i64: 1, 16, 18, 128>}, {transform_indices = @transform_5, window_bounds = array<i64: 1, 1, 2, 128>}]} {
    %c0 = arith.constant 0 : index
    %c0_0 = arith.constant 0 : index
    %c0_1 = arith.constant 0 : index
    %c0_2 = arith.constant 0 : index
    %0 = vector.load %arg2[%c0, %c0_0, %c0_1, %c0_2] : memref<1x16x18x4xbf16, #tpu.memory_space<vmem>>, vector<1x16x18x4xbf16>
    %1 = vector.shape_cast %0 : vector<1x16x18x4xbf16> to vector<16x18x4xbf16>
    %c0_3 = arith.constant 0 : index
    %c0_4 = arith.constant 0 : index
    %c0_5 = arith.constant 0 : index
    %c0_6 = arith.constant 0 : index
    %2 = vector.load %arg3[%c0_3, %c0_4, %c0_5, %c0_6] : memref<1x1x18x4xbf16, #tpu.memory_space<vmem>>, vector<1x1x18x4xbf16>
    %3 = vector.shape_cast %2 : vector<1x1x18x4xbf16> to vector<1x18x4xbf16>
    %c0_7 = arith.constant 0 : index
    %c0_8 = arith.constant 0 : index
    %c0_9 = arith.constant 0 : index
    %c0_10 = arith.constant 0 : index
    %4 = vector.load %arg4[%c0_7, %c0_8, %c0_9, %c0_10] : memref<1x1x18x4xbf16, #tpu.memory_space<vmem>>, vector<1x1x18x4xbf16>
    %5 = vector.shape_cast %4 : vector<1x1x18x4xbf16> to vector<1x18x4xbf16>
    %6 = tpu.concatenate %1, %3, %5 in 0 : vector<16x18x4xbf16>, vector<1x18x4xbf16>, vector<1x18x4xbf16> -> vector<18x18x4xbf16>
    %7 = vector.extract_strided_slice %6 {offsets = [0, 0, 0], sizes = [16, 16, 4], strides = [1, 1, 1]} : vector<18x18x4xbf16> to vector<16x16x4xbf16>
    %8 = vector.shape_cast %7 : vector<16x16x4xbf16> to vector<256x4xbf16>
    %c0_11 = arith.constant 0 : index
    %c0_12 = arith.constant 0 : index
    %c0_13 = arith.constant 0 : index
    %9 = vector.load %arg5[%c0_11, %c0_12, %c0_13] : memref<9x4x128xbf16, #tpu.memory_space<vmem>>, vector<1x4x128xbf16>
    %10 = vector.shape_cast %9 : vector<1x4x128xbf16> to vector<4x128xbf16>
    %cst = arith.constant dense<0.000000e+00> : vector<256x128xf32>
    %11 = tpu.matmul %8, %10, %cst {dimension_numbers = #tpu.dot_dimension_numbers<[1], [0], [0], [1], [0, 0, 1, 1], [], []>} : vector<256x4xbf16>, vector<4x128xbf16>, vector<256x128xf32> -> vector<256x128xf32>
    %12 = vector.extract_strided_slice %6 {offsets = [0, 1, 0], sizes = [16, 16, 4], strides = [1, 1, 1]} : vector<18x18x4xbf16> to vector<16x16x4xbf16>
    %13 = vector.shape_cast %12 : vector<16x16x4xbf16> to vector<256x4xbf16>
    %c1 = arith.constant 1 : index
    %c0_14 = arith.constant 0 : index
    %c0_15 = arith.constant 0 : index
    %14 = vector.load %arg5[%c1, %c0_14, %c0_15] : memref<9x4x128xbf16, #tpu.memory_space<vmem>>, vector<1x4x128xbf16>
    %15 = vector.shape_cast %14 : vector<1x4x128xbf16> to vector<4x128xbf16>
    %cst_16 = arith.constant dense<0.000000e+00> : vector<256x128xf32>
    %16 = tpu.matmul %13, %15, %cst_16 {dimension_numbers = #tpu.dot_dimension_numbers<[1], [0], [0], [1], [0, 0, 1, 1], [], []>} : vector<256x4xbf16>, vector<4x128xbf16>, vector<256x128xf32> -> vector<256x128xf32>
    %17 = arith.addf %11, %16 : vector<256x128xf32>
    %18 = vector.extract_strided_slice %6 {offsets = [0, 2, 0], sizes = [16, 16, 4], strides = [1, 1, 1]} : vector<18x18x4xbf16> to vector<16x16x4xbf16>
    %19 = vector.shape_cast %18 : vector<16x16x4xbf16> to vector<256x4xbf16>
    %c2 = arith.constant 2 : index
    %c0_17 = arith.constant 0 : index
    %c0_18 = arith.constant 0 : index
    %20 = vector.load %arg5[%c2, %c0_17, %c0_18] : memref<9x4x128xbf16, #tpu.memory_space<vmem>>, vector<1x4x128xbf16>
    %21 = vector.shape_cast %20 : vector<1x4x128xbf16> to vector<4x128xbf16>
    %cst_19 = arith.constant dense<0.000000e+00> : vector<256x128xf32>
    %22 = tpu.matmul %19, %21, %cst_19 {dimension_numbers = #tpu.dot_dimension_numbers<[1], [0], [0], [1], [0, 0, 1, 1], [], []>} : vector<256x4xbf16>, vector<4x128xbf16>, vector<256x128xf32> -> vector<256x128xf32>
    %23 = arith.addf %17, %22 : vector<256x128xf32>
    %24 = vector.extract_strided_slice %6 {offsets = [1, 0, 0], sizes = [16, 16, 4], strides = [1, 1, 1]} : vector<18x18x4xbf16> to vector<16x16x4xbf16>
    %25 = vector.shape_cast %24 : vector<16x16x4xbf16> to vector<256x4xbf16>
    %c3 = arith.constant 3 : index
    %c0_20 = arith.constant 0 : index
    %c0_21 = arith.constant 0 : index
    %26 = vector.load %arg5[%c3, %c0_20, %c0_21] : memref<9x4x128xbf16, #tpu.memory_space<vmem>>, vector<1x4x128xbf16>
    %27 = vector.shape_cast %26 : vector<1x4x128xbf16> to vector<4x128xbf16>
    %cst_22 = arith.constant dense<0.000000e+00> : vector<256x128xf32>
    %28 = tpu.matmul %25, %27, %cst_22 {dimension_numbers = #tpu.dot_dimension_numbers<[1], [0], [0], [1], [0, 0, 1, 1], [], []>} : vector<256x4xbf16>, vector<4x128xbf16>, vector<256x128xf32> -> vector<256x128xf32>
    %29 = arith.addf %23, %28 : vector<256x128xf32>
    %30 = vector.extract_strided_slice %6 {offsets = [1, 1, 0], sizes = [16, 16, 4], strides = [1, 1, 1]} : vector<18x18x4xbf16> to vector<16x16x4xbf16>
    %31 = vector.shape_cast %30 : vector<16x16x4xbf16> to vector<256x4xbf16>
    %c4 = arith.constant 4 : index
    %c0_23 = arith.constant 0 : index
    %c0_24 = arith.constant 0 : index
    %32 = vector.load %arg5[%c4, %c0_23, %c0_24] : memref<9x4x128xbf16, #tpu.memory_space<vmem>>, vector<1x4x128xbf16>
    %33 = vector.shape_cast %32 : vector<1x4x128xbf16> to vector<4x128xbf16>
    %cst_25 = arith.constant dense<0.000000e+00> : vector<256x128xf32>
    %34 = tpu.matmul %31, %33, %cst_25 {dimension_numbers = #tpu.dot_dimension_numbers<[1], [0], [0], [1], [0, 0, 1, 1], [], []>} : vector<256x4xbf16>, vector<4x128xbf16>, vector<256x128xf32> -> vector<256x128xf32>
    %35 = arith.addf %29, %34 : vector<256x128xf32>
    %36 = vector.extract_strided_slice %6 {offsets = [1, 2, 0], sizes = [16, 16, 4], strides = [1, 1, 1]} : vector<18x18x4xbf16> to vector<16x16x4xbf16>
    %37 = vector.shape_cast %36 : vector<16x16x4xbf16> to vector<256x4xbf16>
    %c5 = arith.constant 5 : index
    %c0_26 = arith.constant 0 : index
    %c0_27 = arith.constant 0 : index
    %38 = vector.load %arg5[%c5, %c0_26, %c0_27] : memref<9x4x128xbf16, #tpu.memory_space<vmem>>, vector<1x4x128xbf16>
    %39 = vector.shape_cast %38 : vector<1x4x128xbf16> to vector<4x128xbf16>
    %cst_28 = arith.constant dense<0.000000e+00> : vector<256x128xf32>
    %40 = tpu.matmul %37, %39, %cst_28 {dimension_numbers = #tpu.dot_dimension_numbers<[1], [0], [0], [1], [0, 0, 1, 1], [], []>} : vector<256x4xbf16>, vector<4x128xbf16>, vector<256x128xf32> -> vector<256x128xf32>
    %41 = arith.addf %35, %40 : vector<256x128xf32>
    %42 = vector.extract_strided_slice %6 {offsets = [2, 0, 0], sizes = [16, 16, 4], strides = [1, 1, 1]} : vector<18x18x4xbf16> to vector<16x16x4xbf16>
    %43 = vector.shape_cast %42 : vector<16x16x4xbf16> to vector<256x4xbf16>
    %c6 = arith.constant 6 : index
    %c0_29 = arith.constant 0 : index
    %c0_30 = arith.constant 0 : index
    %44 = vector.load %arg5[%c6, %c0_29, %c0_30] : memref<9x4x128xbf16, #tpu.memory_space<vmem>>, vector<1x4x128xbf16>
    %45 = vector.shape_cast %44 : vector<1x4x128xbf16> to vector<4x128xbf16>
    %cst_31 = arith.constant dense<0.000000e+00> : vector<256x128xf32>
    %46 = tpu.matmul %43, %45, %cst_31 {dimension_numbers = #tpu.dot_dimension_numbers<[1], [0], [0], [1], [0, 0, 1, 1], [], []>} : vector<256x4xbf16>, vector<4x128xbf16>, vector<256x128xf32> -> vector<256x128xf32>
    %47 = arith.addf %41, %46 : vector<256x128xf32>
    %48 = vector.extract_strided_slice %6 {offsets = [2, 1, 0], sizes = [16, 16, 4], strides = [1, 1, 1]} : vector<18x18x4xbf16> to vector<16x16x4xbf16>
    %49 = vector.shape_cast %48 : vector<16x16x4xbf16> to vector<256x4xbf16>
    %c7 = arith.constant 7 : index
    %c0_32 = arith.constant 0 : index
    %c0_33 = arith.constant 0 : index
    %50 = vector.load %arg5[%c7, %c0_32, %c0_33] : memref<9x4x128xbf16, #tpu.memory_space<vmem>>, vector<1x4x128xbf16>
    %51 = vector.shape_cast %50 : vector<1x4x128xbf16> to vector<4x128xbf16>
    %cst_34 = arith.constant dense<0.000000e+00> : vector<256x128xf32>
    %52 = tpu.matmul %49, %51, %cst_34 {dimension_numbers = #tpu.dot_dimension_numbers<[1], [0], [0], [1], [0, 0, 1, 1], [], []>} : vector<256x4xbf16>, vector<4x128xbf16>, vector<256x128xf32> -> vector<256x128xf32>
    %53 = arith.addf %47, %52 : vector<256x128xf32>
    %54 = vector.extract_strided_slice %6 {offsets = [2, 2, 0], sizes = [16, 16, 4], strides = [1, 1, 1]} : vector<18x18x4xbf16> to vector<16x16x4xbf16>
    %55 = vector.shape_cast %54 : vector<16x16x4xbf16> to vector<256x4xbf16>
    %c8 = arith.constant 8 : index
    %c0_35 = arith.constant 0 : index
    %c0_36 = arith.constant 0 : index
    %56 = vector.load %arg5[%c8, %c0_35, %c0_36] : memref<9x4x128xbf16, #tpu.memory_space<vmem>>, vector<1x4x128xbf16>
    %57 = vector.shape_cast %56 : vector<1x4x128xbf16> to vector<4x128xbf16>
    %cst_37 = arith.constant dense<0.000000e+00> : vector<256x128xf32>
    %58 = tpu.matmul %55, %57, %cst_37 {dimension_numbers = #tpu.dot_dimension_numbers<[1], [0], [0], [1], [0, 0, 1, 1], [], []>} : vector<256x4xbf16>, vector<4x128xbf16>, vector<256x128xf32> -> vector<256x128xf32>
    %59 = arith.addf %53, %58 : vector<256x128xf32>
    %60 = vector.shape_cast %59 : vector<256x128xf32> to vector<16x16x128xf32>
    %61 = arith.truncf %60 : vector<16x16x128xf32> to vector<16x16x128xbf16>
    %c0_38 = arith.constant 0 : index
    %c0_39 = arith.constant 0 : index
    %c1_40 = arith.constant 1 : index
    %c0_41 = arith.constant 0 : index
    %62 = vector.load %arg6[%c0_38, %c0_39, %c1_40, %c0_41] : memref<1x16x18x128xbf16, #tpu.memory_space<vmem>>, vector<1x16x16x128xbf16>
    %63 = vector.shape_cast %62 : vector<1x16x16x128xbf16> to vector<16x16x128xbf16>
    %64 = vector.shape_cast %61 : vector<16x16x128xbf16> to vector<1x16x16x128xbf16>
    tpu.vector_store %arg6[%c0_38, %c0_39, %c1_40, %c0_41], %64 {strides = array<i32>} : memref<1x16x18x128xbf16, #tpu.memory_space<vmem>>, vector<1x16x16x128xbf16>,
    %cst_42 = arith.constant 0.000000e+00 : bf16
    %65 = vector.broadcast %cst_42 : bf16 to vector<16x1x128xbf16>
    %c0_43 = arith.constant 0 : index
    %c0_44 = arith.constant 0 : index
    %c0_45 = arith.constant 0 : index
    %c0_46 = arith.constant 0 : index
    %66 = vector.load %arg6[%c0_43, %c0_44, %c0_45, %c0_46] : memref<1x16x18x128xbf16, #tpu.memory_space<vmem>>, vector<1x16x1x128xbf16>
    %67 = vector.shape_cast %66 : vector<1x16x1x128xbf16> to vector<16x1x128xbf16>
    %68 = vector.shape_cast %65 : vector<16x1x128xbf16> to vector<1x16x1x128xbf16>
    tpu.vector_store %arg6[%c0_43, %c0_44, %c0_45, %c0_46], %68 {strides = array<i32>} : memref<1x16x18x128xbf16, #tpu.memory_space<vmem>>, vector<1x16x1x128xbf16>,
    %c0_47 = arith.constant 0 : index
    %c0_48 = arith.constant 0 : index
    %c17 = arith.constant 17 : index
    %c0_49 = arith.constant 0 : index
    %69 = vector.load %arg6[%c0_47, %c0_48, %c17, %c0_49] : memref<1x16x18x128xbf16, #tpu.memory_space<vmem>>, vector<1x16x1x128xbf16>
    %70 = vector.shape_cast %69 : vector<1x16x1x128xbf16> to vector<16x1x128xbf16>
    %71 = vector.shape_cast %65 : vector<16x1x128xbf16> to vector<1x16x1x128xbf16>
    tpu.vector_store %arg6[%c0_47, %c0_48, %c17, %c0_49], %71 {strides = array<i32>} : memref<1x16x18x128xbf16, #tpu.memory_space<vmem>>, vector<1x16x1x128xbf16>,
    %cst_50 = arith.constant dense<0.000000e+00> : vector<128xf32>
    %72 = vector.multi_reduction <add>, %59, %cst_50 [0] : vector<256x128xf32> to vector<128xf32>
    %73 = vector.shape_cast %72 : vector<128xf32> to vector<1x128xf32>
    %c0_51 = arith.constant 0 : index
    %c0_52 = arith.constant 0 : index
    %c0_53 = arith.constant 0 : index
    %c0_54 = arith.constant 0 : index
    %74 = vector.load %arg7[%c0_51, %c0_52, %c0_53, %c0_54] : memref<1x1x2x128xf32, #tpu.memory_space<vmem>>, vector<1x1x1x128xf32>
    %75 = vector.shape_cast %74 : vector<1x1x1x128xf32> to vector<1x128xf32>
    %76 = vector.shape_cast %73 : vector<1x128xf32> to vector<1x1x1x128xf32>
    tpu.vector_store %arg7[%c0_51, %c0_52, %c0_53, %c0_54], %76 {strides = array<i32>} : memref<1x1x2x128xf32, #tpu.memory_space<vmem>>, vector<1x1x1x128xf32>,
    %77 = arith.mulf %59, %59 : vector<256x128xf32>
    %cst_55 = arith.constant dense<0.000000e+00> : vector<128xf32>
    %78 = vector.multi_reduction <add>, %77, %cst_55 [0] : vector<256x128xf32> to vector<128xf32>
    %79 = vector.shape_cast %78 : vector<128xf32> to vector<1x128xf32>
    %c0_56 = arith.constant 0 : index
    %c0_57 = arith.constant 0 : index
    %c1_58 = arith.constant 1 : index
    %c0_59 = arith.constant 0 : index
    %80 = vector.load %arg7[%c0_56, %c0_57, %c1_58, %c0_59] : memref<1x1x2x128xf32, #tpu.memory_space<vmem>>, vector<1x1x1x128xf32>
    %81 = vector.shape_cast %80 : vector<1x1x1x128xf32> to vector<1x128xf32>
    %82 = vector.shape_cast %79 : vector<1x128xf32> to vector<1x1x1x128xf32>
    tpu.vector_store %arg7[%c0_56, %c0_57, %c1_58, %c0_59], %82 {strides = array<i32>} : memref<1x1x2x128xf32, #tpu.memory_space<vmem>>, vector<1x1x1x128xf32>,
    return
  }
  func.func @transform_0(%arg0: i32, %arg1: i32) -> (i32, i32, i32, i32) {
    %c0_i32 = arith.constant 0 : i32
    %c0_i32_0 = arith.constant 0 : i32
    %c0_i32_1 = arith.constant 0 : i32
    return %arg0, %arg1, %c0_i32, %c0_i32_0 : i32, i32, i32, i32
  }
  func.func @transform_1(%arg0: i32, %arg1: i32) -> (i32, i32, i32, i32) {
    %c16_i32 = arith.constant 16 : i32
    %0 = arith.muli %arg1, %c16_i32 : i32
    %c16_i32_0 = arith.constant 16 : i32
    %1 = arith.addi %0, %c16_i32_0 : i32
    %c0_i32 = arith.constant 0 : i32
    %c0_i32_1 = arith.constant 0 : i32
    %c0_i32_2 = arith.constant 0 : i32
    return %arg0, %1, %c0_i32, %c0_i32_1 : i32, i32, i32, i32
  }
  func.func @transform_2(%arg0: i32, %arg1: i32) -> (i32, i32, i32, i32) {
    %c16_i32 = arith.constant 16 : i32
    %0 = arith.muli %arg1, %c16_i32 : i32
    %c16_i32_0 = arith.constant 16 : i32
    %1 = arith.addi %0, %c16_i32_0 : i32
    %c1_i32 = arith.constant 1 : i32
    %2 = arith.addi %1, %c1_i32 : i32
    %c0_i32 = arith.constant 0 : i32
    %c0_i32_1 = arith.constant 0 : i32
    %c0_i32_2 = arith.constant 0 : i32
    return %arg0, %2, %c0_i32, %c0_i32_1 : i32, i32, i32, i32
  }
  func.func @transform_3(%arg0: i32, %arg1: i32) -> (i32, i32, i32) {
    %c0_i32 = arith.constant 0 : i32
    %c0_i32_0 = arith.constant 0 : i32
    %c0_i32_1 = arith.constant 0 : i32
    %c0_i32_2 = arith.constant 0 : i32
    return %c0_i32, %c0_i32_0, %c0_i32_1 : i32, i32, i32
  }
  func.func @transform_4(%arg0: i32, %arg1: i32) -> (i32, i32, i32, i32) {
    %c0_i32 = arith.constant 0 : i32
    %c0_i32_0 = arith.constant 0 : i32
    %c0_i32_1 = arith.constant 0 : i32
    return %arg0, %arg1, %c0_i32, %c0_i32_0 : i32, i32, i32, i32
  }
  func.func @transform_5(%arg0: i32, %arg1: i32) -> (i32, i32, i32, i32) {
    %c0_i32 = arith.constant 0 : i32
    %c0_i32_0 = arith.constant 0 : i32
    %c0_i32_1 = arith.constant 0 : i32
    return %arg0, %arg1, %c0_i32, %c0_i32_0 : i32, i32, i32, i32
  }
}

module attributes {stable_mosaic.version = 11 : i64} {
  func.func @_conv2_bn_fused_kernel(%arg0: i32, %arg1: i32, %arg2: memref<1x16x18x128xbf16, #tpu.memory_space<vmem>>, %arg3: memref<1x1x18x128xbf16, #tpu.memory_space<vmem>>, %arg4: memref<1x1x18x128xbf16, #tpu.memory_space<vmem>>, %arg5: memref<1152x128xbf16, #tpu.memory_space<vmem>>, %arg6: memref<1x128xf32, #tpu.memory_space<vmem>>, %arg7: memref<1x128xf32, #tpu.memory_space<vmem>>, %arg8: memref<1x16x16x128xbf16, #tpu.memory_space<vmem>>, %arg9: memref<1x1x2x128xf32, #tpu.memory_space<vmem>>) attributes {dimension_semantics = [#tpu.dimension_semantics<parallel>, #tpu.dimension_semantics<parallel>], iteration_bounds = array<i64: 2, 1>, scalar_prefetch = 0 : i64, scratch_operands = 0 : i64, tpu.core_type = #tpu.core_type<tc>, window_params = [{transform_indices = @transform_0, window_bounds = array<i64: 1, 16, 18, 128>}, {transform_indices = @transform_1, window_bounds = array<i64: 1, 1, 18, 128>}, {transform_indices = @transform_2, window_bounds = array<i64: 1, 1, 18, 128>}, {pipeline_mode = #tpu.pipeline_mode<synchronous>, transform_indices = @transform_3, window_bounds = array<i64: 1152, 128>}, {pipeline_mode = #tpu.pipeline_mode<synchronous>, transform_indices = @transform_4, window_bounds = array<i64: 1, 128>}, {pipeline_mode = #tpu.pipeline_mode<synchronous>, transform_indices = @transform_5, window_bounds = array<i64: 1, 128>}, {transform_indices = @transform_6, window_bounds = array<i64: 1, 16, 16, 128>}, {transform_indices = @transform_7, window_bounds = array<i64: 1, 1, 2, 128>}]} {
    %c0 = arith.constant 0 : index
    %c0_0 = arith.constant 0 : index
    %c0_1 = arith.constant 0 : index
    %c0_2 = arith.constant 0 : index
    %0 = vector.load %arg2[%c0, %c0_0, %c0_1, %c0_2] : memref<1x16x18x128xbf16, #tpu.memory_space<vmem>>, vector<1x16x18x128xbf16>
    %1 = vector.shape_cast %0 : vector<1x16x18x128xbf16> to vector<16x18x128xbf16>
    %c0_3 = arith.constant 0 : index
    %c0_4 = arith.constant 0 : index
    %c0_5 = arith.constant 0 : index
    %c0_6 = arith.constant 0 : index
    %2 = vector.load %arg3[%c0_3, %c0_4, %c0_5, %c0_6] : memref<1x1x18x128xbf16, #tpu.memory_space<vmem>>, vector<1x1x18x128xbf16>
    %3 = vector.shape_cast %2 : vector<1x1x18x128xbf16> to vector<1x18x128xbf16>
    %c0_7 = arith.constant 0 : index
    %c0_8 = arith.constant 0 : index
    %c0_9 = arith.constant 0 : index
    %c0_10 = arith.constant 0 : index
    %4 = vector.load %arg4[%c0_7, %c0_8, %c0_9, %c0_10] : memref<1x1x18x128xbf16, #tpu.memory_space<vmem>>, vector<1x1x18x128xbf16>
    %5 = vector.shape_cast %4 : vector<1x1x18x128xbf16> to vector<1x18x128xbf16>
    %6 = tpu.concatenate %3, %1, %5 in 0 : vector<1x18x128xbf16>, vector<16x18x128xbf16>, vector<1x18x128xbf16> -> vector<18x18x128xbf16>
    %7 = arith.extf %6 : vector<18x18x128xbf16> to vector<18x18x128xf32>
    %c0_11 = arith.constant 0 : index
    %c0_12 = arith.constant 0 : index
    %8 = vector.load %arg6[%c0_11, %c0_12] : memref<1x128xf32, #tpu.memory_space<vmem>>, vector<1x128xf32>
    %9 = vector.shape_cast %8 : vector<1x128xf32> to vector<1x1x128xf32>
    %10 = vector.broadcast %9 : vector<1x1x128xf32> to vector<18x18x128xf32>
    %11 = arith.mulf %7, %10 : vector<18x18x128xf32>
    %c0_13 = arith.constant 0 : index
    %c0_14 = arith.constant 0 : index
    %12 = vector.load %arg7[%c0_13, %c0_14] : memref<1x128xf32, #tpu.memory_space<vmem>>, vector<1x128xf32>
    %13 = vector.shape_cast %12 : vector<1x128xf32> to vector<1x1x128xf32>
    %14 = vector.broadcast %13 : vector<1x1x128xf32> to vector<18x18x128xf32>
    %15 = arith.addf %11, %14 : vector<18x18x128xf32>
    %cst = arith.constant 0.000000e+00 : f32
    %16 = vector.broadcast %cst : f32 to vector<18x18x128xf32>
    %17 = arith.maximumf %15, %16 : vector<18x18x128xf32>
    %c16_i32 = arith.constant 16 : i32
    %18 = arith.muli %arg1, %c16_i32 : i32
    %c1_i32 = arith.constant 1 : i32
    %19 = arith.subi %18, %c1_i32 : i32
    %20 = tpu.iota {dimensions = array<i32: 0>} : vector<18x18x1xi32>
    %21 = vector.broadcast %19 : i32 to vector<18x18x1xi32>
    %22 = arith.addi %21, %20 : vector<18x18x1xi32>
    %23 = tpu.iota {dimensions = array<i32: 1>} : vector<18x18x1xi32>
    %c0_i32 = arith.constant 0 : i32
    %24 = vector.broadcast %c0_i32 : i32 to vector<18x18x1xi32>
    %25 = arith.cmpi sge, %22, %24 : vector<18x18x1xi32>
    %c16_i32_15 = arith.constant 16 : i32
    %26 = vector.broadcast %c16_i32_15 : i32 to vector<18x18x1xi32>
    %27 = arith.cmpi slt, %22, %26 : vector<18x18x1xi32>
    %28 = arith.andi %25, %27 : vector<18x18x1xi1>
    %c1_i32_16 = arith.constant 1 : i32
    %29 = vector.broadcast %c1_i32_16 : i32 to vector<18x18x1xi32>
    %30 = arith.cmpi sge, %23, %29 : vector<18x18x1xi32>
    %31 = arith.andi %28, %30 : vector<18x18x1xi1>
    %c16_i32_17 = arith.constant 16 : i32
    %32 = vector.broadcast %c16_i32_17 : i32 to vector<18x18x1xi32>
    %33 = arith.cmpi sle, %23, %32 : vector<18x18x1xi32>
    %34 = arith.andi %31, %33 : vector<18x18x1xi1>
    %cst_18 = arith.constant 0.000000e+00 : f32
    %35 = vector.shape_cast %34 : vector<18x18x1xi1> to vector<18x18x1xi1>
    %36 = vector.broadcast %35 : vector<18x18x1xi1> to vector<18x18x128xi1>
    %37 = vector.broadcast %cst_18 : f32 to vector<18x18x128xf32>
    %38 = arith.select %36, %17, %37 : vector<18x18x128xi1>, vector<18x18x128xf32>
    %39 = arith.truncf %38 : vector<18x18x128xf32> to vector<18x18x128xbf16>
    %40 = vector.extract_strided_slice %39 {offsets = [0, 0, 0], sizes = [16, 16, 128], strides = [1, 1, 1]} : vector<18x18x128xbf16> to vector<16x16x128xbf16>
    %41 = vector.shape_cast %40 : vector<16x16x128xbf16> to vector<256x128xbf16>
    %42 = vector.extract_strided_slice %39 {offsets = [0, 1, 0], sizes = [16, 16, 128], strides = [1, 1, 1]} : vector<18x18x128xbf16> to vector<16x16x128xbf16>
    %43 = vector.shape_cast %42 : vector<16x16x128xbf16> to vector<256x128xbf16>
    %44 = vector.extract_strided_slice %39 {offsets = [0, 2, 0], sizes = [16, 16, 128], strides = [1, 1, 1]} : vector<18x18x128xbf16> to vector<16x16x128xbf16>
    %45 = vector.shape_cast %44 : vector<16x16x128xbf16> to vector<256x128xbf16>
    %46 = vector.extract_strided_slice %39 {offsets = [1, 0, 0], sizes = [16, 16, 128], strides = [1, 1, 1]} : vector<18x18x128xbf16> to vector<16x16x128xbf16>
    %47 = vector.shape_cast %46 : vector<16x16x128xbf16> to vector<256x128xbf16>
    %48 = vector.extract_strided_slice %39 {offsets = [1, 1, 0], sizes = [16, 16, 128], strides = [1, 1, 1]} : vector<18x18x128xbf16> to vector<16x16x128xbf16>
    %49 = vector.shape_cast %48 : vector<16x16x128xbf16> to vector<256x128xbf16>
    %50 = vector.extract_strided_slice %39 {offsets = [1, 2, 0], sizes = [16, 16, 128], strides = [1, 1, 1]} : vector<18x18x128xbf16> to vector<16x16x128xbf16>
    %51 = vector.shape_cast %50 : vector<16x16x128xbf16> to vector<256x128xbf16>
    %52 = vector.extract_strided_slice %39 {offsets = [2, 0, 0], sizes = [16, 16, 128], strides = [1, 1, 1]} : vector<18x18x128xbf16> to vector<16x16x128xbf16>
    %53 = vector.shape_cast %52 : vector<16x16x128xbf16> to vector<256x128xbf16>
    %54 = vector.extract_strided_slice %39 {offsets = [2, 1, 0], sizes = [16, 16, 128], strides = [1, 1, 1]} : vector<18x18x128xbf16> to vector<16x16x128xbf16>
    %55 = vector.shape_cast %54 : vector<16x16x128xbf16> to vector<256x128xbf16>
    %56 = vector.extract_strided_slice %39 {offsets = [2, 2, 0], sizes = [16, 16, 128], strides = [1, 1, 1]} : vector<18x18x128xbf16> to vector<16x16x128xbf16>
    %57 = vector.shape_cast %56 : vector<16x16x128xbf16> to vector<256x128xbf16>
    %58 = tpu.concatenate %41, %43, %45, %47, %49, %51, %53, %55, %57 in 1 : vector<256x128xbf16>, vector<256x128xbf16>, vector<256x128xbf16>, vector<256x128xbf16>, vector<256x128xbf16>, vector<256x128xbf16>, vector<256x128xbf16>, vector<256x128xbf16>, vector<256x128xbf16> -> vector<256x1152xbf16>
    %c0_19 = arith.constant 0 : index
    %c0_20 = arith.constant 0 : index
    %59 = vector.load %arg5[%c0_19, %c0_20] : memref<1152x128xbf16, #tpu.memory_space<vmem>>, vector<1152x128xbf16>
    %cst_21 = arith.constant dense<0.000000e+00> : vector<256x128xf32>
    %60 = tpu.matmul %58, %59, %cst_21 {dimension_numbers = #tpu.dot_dimension_numbers<[1], [0], [0], [1], [0, 0, 1, 1], [], []>} : vector<256x1152xbf16>, vector<1152x128xbf16>, vector<256x128xf32> -> vector<256x128xf32>
    %61 = vector.shape_cast %60 : vector<256x128xf32> to vector<16x16x128xf32>
    %62 = arith.truncf %61 : vector<16x16x128xf32> to vector<16x16x128xbf16>
    %c0_22 = arith.constant 0 : index
    %c0_23 = arith.constant 0 : index
    %c0_24 = arith.constant 0 : index
    %c0_25 = arith.constant 0 : index
    %63 = vector.load %arg8[%c0_22, %c0_23, %c0_24, %c0_25] : memref<1x16x16x128xbf16, #tpu.memory_space<vmem>>, vector<1x16x16x128xbf16>
    %64 = vector.shape_cast %63 : vector<1x16x16x128xbf16> to vector<16x16x128xbf16>
    %65 = vector.shape_cast %62 : vector<16x16x128xbf16> to vector<1x16x16x128xbf16>
    tpu.vector_store %arg8[%c0_22, %c0_23, %c0_24, %c0_25], %65 {strides = array<i32>} : memref<1x16x16x128xbf16, #tpu.memory_space<vmem>>, vector<1x16x16x128xbf16>,
    %cst_26 = arith.constant dense<0.000000e+00> : vector<128xf32>
    %66 = vector.multi_reduction <add>, %60, %cst_26 [0] : vector<256x128xf32> to vector<128xf32>
    %67 = vector.shape_cast %66 : vector<128xf32> to vector<1x128xf32>
    %c0_27 = arith.constant 0 : index
    %c0_28 = arith.constant 0 : index
    %c0_29 = arith.constant 0 : index
    %c0_30 = arith.constant 0 : index
    %68 = vector.load %arg9[%c0_27, %c0_28, %c0_29, %c0_30] : memref<1x1x2x128xf32, #tpu.memory_space<vmem>>, vector<1x1x1x128xf32>
    %69 = vector.shape_cast %68 : vector<1x1x1x128xf32> to vector<1x128xf32>
    %70 = vector.shape_cast %67 : vector<1x128xf32> to vector<1x1x1x128xf32>
    tpu.vector_store %arg9[%c0_27, %c0_28, %c0_29, %c0_30], %70 {strides = array<i32>} : memref<1x1x2x128xf32, #tpu.memory_space<vmem>>, vector<1x1x1x128xf32>,
    %71 = arith.mulf %60, %60 : vector<256x128xf32>
    %cst_31 = arith.constant dense<0.000000e+00> : vector<128xf32>
    %72 = vector.multi_reduction <add>, %71, %cst_31 [0] : vector<256x128xf32> to vector<128xf32>
    %73 = vector.shape_cast %72 : vector<128xf32> to vector<1x128xf32>
    %c0_32 = arith.constant 0 : index
    %c0_33 = arith.constant 0 : index
    %c1 = arith.constant 1 : index
    %c0_34 = arith.constant 0 : index
    %74 = vector.load %arg9[%c0_32, %c0_33, %c1, %c0_34] : memref<1x1x2x128xf32, #tpu.memory_space<vmem>>, vector<1x1x1x128xf32>
    %75 = vector.shape_cast %74 : vector<1x1x1x128xf32> to vector<1x128xf32>
    %76 = vector.shape_cast %73 : vector<1x128xf32> to vector<1x1x1x128xf32>
    tpu.vector_store %arg9[%c0_32, %c0_33, %c1, %c0_34], %76 {strides = array<i32>} : memref<1x1x2x128xf32, #tpu.memory_space<vmem>>, vector<1x1x1x128xf32>,
    return
  }
  func.func @transform_0(%arg0: i32, %arg1: i32) -> (i32, i32, i32, i32) {
    %c0_i32 = arith.constant 0 : i32
    %c0_i32_0 = arith.constant 0 : i32
    %c0_i32_1 = arith.constant 0 : i32
    return %arg0, %arg1, %c0_i32, %c0_i32_0 : i32, i32, i32, i32
  }
  func.func @transform_1(%arg0: i32, %arg1: i32) -> (i32, i32, i32, i32) {
    %c16_i32 = arith.constant 16 : i32
    %0 = arith.muli %arg1, %c16_i32 : i32
    %c1_i32 = arith.constant 1 : i32
    %1 = arith.subi %0, %c1_i32 : i32
    %c0_i32 = arith.constant 0 : i32
    %2 = arith.maxsi %1, %c0_i32 : i32
    %c0_i32_0 = arith.constant 0 : i32
    %c0_i32_1 = arith.constant 0 : i32
    %c0_i32_2 = arith.constant 0 : i32
    return %arg0, %2, %c0_i32_0, %c0_i32_1 : i32, i32, i32, i32
  }
  func.func @transform_2(%arg0: i32, %arg1: i32) -> (i32, i32, i32, i32) {
    %c16_i32 = arith.constant 16 : i32
    %0 = arith.muli %arg1, %c16_i32 : i32
    %c16_i32_0 = arith.constant 16 : i32
    %1 = arith.addi %0, %c16_i32_0 : i32
    %c15_i32 = arith.constant 15 : i32
    %2 = arith.minsi %1, %c15_i32 : i32
    %c0_i32 = arith.constant 0 : i32
    %c0_i32_1 = arith.constant 0 : i32
    %c0_i32_2 = arith.constant 0 : i32
    return %arg0, %2, %c0_i32, %c0_i32_1 : i32, i32, i32, i32
  }
  func.func @transform_3(%arg0: i32, %arg1: i32) -> (i32, i32) {
    %c0_i32 = arith.constant 0 : i32
    %c0_i32_0 = arith.constant 0 : i32
    %c0_i32_1 = arith.constant 0 : i32
    return %c0_i32, %c0_i32_0 : i32, i32
  }
  func.func @transform_4(%arg0: i32, %arg1: i32) -> (i32, i32) {
    %c0_i32 = arith.constant 0 : i32
    %c0_i32_0 = arith.constant 0 : i32
    %c0_i32_1 = arith.constant 0 : i32
    return %c0_i32, %c0_i32_0 : i32, i32
  }
  func.func @transform_5(%arg0: i32, %arg1: i32) -> (i32, i32) {
    %c0_i32 = arith.constant 0 : i32
    %c0_i32_0 = arith.constant 0 : i32
    %c0_i32_1 = arith.constant 0 : i32
    return %c0_i32, %c0_i32_0 : i32, i32
  }
  func.func @transform_6(%arg0: i32, %arg1: i32) -> (i32, i32, i32, i32) {
    %c0_i32 = arith.constant 0 : i32
    %c0_i32_0 = arith.constant 0 : i32
    %c0_i32_1 = arith.constant 0 : i32
    return %arg0, %arg1, %c0_i32, %c0_i32_0 : i32, i32, i32, i32
  }
  func.func @transform_7(%arg0: i32, %arg1: i32) -> (i32, i32, i32, i32) {
    %c0_i32 = arith.constant 0 : i32
    %c0_i32_0 = arith.constant 0 : i32
    %c0_i32_1 = arith.constant 0 : i32
    return %arg0, %arg1, %c0_i32, %c0_i32_0 : i32, i32, i32, i32
  }
}

module attributes {stable_mosaic.version = 11 : i64} {
  func.func @_bn_relu_pool_kernel(%arg0: i32, %arg1: i32, %arg2: memref<1x8x2x8x256xbf16, #tpu.memory_space<vmem>>, %arg3: memref<1x256xf32, #tpu.memory_space<vmem>>, %arg4: memref<1x256xf32, #tpu.memory_space<vmem>>, %arg5: memref<1x8x2x8x256xf32, #tpu.memory_space<vmem>>, %arg6: memref<1x8x8x128xf32, #tpu.memory_space<vmem>>) attributes {dimension_semantics = [#tpu.dimension_semantics<parallel>, #tpu.dimension_semantics<parallel>], iteration_bounds = array<i64: 2, 1>, scalar_prefetch = 0 : i64, scratch_operands = 0 : i64, tpu.core_type = #tpu.core_type<tc>, window_params = [{transform_indices = @transform_0, window_bounds = array<i64: 1, 8, 2, 8, 256>}, {pipeline_mode = #tpu.pipeline_mode<synchronous>, transform_indices = @transform_1, window_bounds = array<i64: 1, 256>}, {pipeline_mode = #tpu.pipeline_mode<synchronous>, transform_indices = @transform_2, window_bounds = array<i64: 1, 256>}, {transform_indices = @transform_3, window_bounds = array<i64: 1, 8, 2, 8, 256>}, {transform_indices = @transform_4, window_bounds = array<i64: 1, 8, 8, 128>}]} {
    %c0 = arith.constant 0 : index
    %c0_0 = arith.constant 0 : index
    %c0_1 = arith.constant 0 : index
    %c0_2 = arith.constant 0 : index
    %c0_3 = arith.constant 0 : index
    %0 = vector.load %arg2[%c0, %c0_0, %c0_1, %c0_2, %c0_3] : memref<1x8x2x8x256xbf16, #tpu.memory_space<vmem>>, vector<1x8x2x8x256xbf16>
    %1 = vector.shape_cast %0 : vector<1x8x2x8x256xbf16> to vector<8x2x8x256xbf16>
    %2 = arith.extf %1 : vector<8x2x8x256xbf16> to vector<8x2x8x256xf32>
    %c0_4 = arith.constant 0 : index
    %c0_5 = arith.constant 0 : index
    %3 = vector.load %arg3[%c0_4, %c0_5] : memref<1x256xf32, #tpu.memory_space<vmem>>, vector<1x256xf32>
    %4 = vector.shape_cast %3 : vector<1x256xf32> to vector<1x1x1x256xf32>
    %5 = vector.broadcast %4 : vector<1x1x1x256xf32> to vector<8x2x8x256xf32>
    %6 = arith.mulf %2, %5 : vector<8x2x8x256xf32>
    %c0_6 = arith.constant 0 : index
    %c0_7 = arith.constant 0 : index
    %7 = vector.load %arg4[%c0_6, %c0_7] : memref<1x256xf32, #tpu.memory_space<vmem>>, vector<1x256xf32>
    %8 = vector.shape_cast %7 : vector<1x256xf32> to vector<1x1x1x256xf32>
    %9 = vector.broadcast %8 : vector<1x1x1x256xf32> to vector<8x2x8x256xf32>
    %10 = arith.addf %6, %9 : vector<8x2x8x256xf32>
    %cst = arith.constant 0.000000e+00 : f32
    %11 = vector.broadcast %cst : f32 to vector<8x2x8x256xf32>
    %12 = arith.maximumf %10, %11 : vector<8x2x8x256xf32>
    %c0_8 = arith.constant 0 : index
    %c0_9 = arith.constant 0 : index
    %c0_10 = arith.constant 0 : index
    %c0_11 = arith.constant 0 : index
    %c0_12 = arith.constant 0 : index
    %13 = vector.load %arg5[%c0_8, %c0_9, %c0_10, %c0_11, %c0_12] : memref<1x8x2x8x256xf32, #tpu.memory_space<vmem>>, vector<1x8x2x8x256xf32>
    %14 = vector.shape_cast %13 : vector<1x8x2x8x256xf32> to vector<8x2x8x256xf32>
    %15 = vector.shape_cast %12 : vector<8x2x8x256xf32> to vector<1x8x2x8x256xf32>
    tpu.vector_store %arg5[%c0_8, %c0_9, %c0_10, %c0_11, %c0_12], %15 {strides = array<i32>} : memref<1x8x2x8x256xf32, #tpu.memory_space<vmem>>, vector<1x8x2x8x256xf32>,
    %16 = vector.extract_strided_slice %12 {offsets = [0, 0, 0, 0], sizes = [8, 1, 8, 256], strides = [1, 1, 1, 1]} : vector<8x2x8x256xf32> to vector<8x1x8x256xf32>
    %17 = vector.shape_cast %16 : vector<8x1x8x256xf32> to vector<8x8x256xf32>
    %18 = vector.extract_strided_slice %12 {offsets = [0, 1, 0, 0], sizes = [8, 1, 8, 256], strides = [1, 1, 1, 1]} : vector<8x2x8x256xf32> to vector<8x1x8x256xf32>
    %19 = vector.shape_cast %18 : vector<8x1x8x256xf32> to vector<8x8x256xf32>
    %20 = arith.maximumf %17, %19 : vector<8x8x256xf32>
    %21 = vector.extract_strided_slice %20 {offsets = [0, 0, 0], sizes = [8, 8, 128], strides = [1, 1, 1]} : vector<8x8x256xf32> to vector<8x8x128xf32>
    %22 = vector.extract_strided_slice %20 {offsets = [0, 0, 128], sizes = [8, 8, 128], strides = [1, 1, 1]} : vector<8x8x256xf32> to vector<8x8x128xf32>
    %23 = arith.maximumf %21, %22 : vector<8x8x128xf32>
    %c0_13 = arith.constant 0 : index
    %c0_14 = arith.constant 0 : index
    %c0_15 = arith.constant 0 : index
    %c0_16 = arith.constant 0 : index
    %24 = vector.load %arg6[%c0_13, %c0_14, %c0_15, %c0_16] : memref<1x8x8x128xf32, #tpu.memory_space<vmem>>, vector<1x8x8x128xf32>
    %25 = vector.shape_cast %24 : vector<1x8x8x128xf32> to vector<8x8x128xf32>
    %26 = vector.shape_cast %23 : vector<8x8x128xf32> to vector<1x8x8x128xf32>
    tpu.vector_store %arg6[%c0_13, %c0_14, %c0_15, %c0_16], %26 {strides = array<i32>} : memref<1x8x8x128xf32, #tpu.memory_space<vmem>>, vector<1x8x8x128xf32>,
    return
  }
  func.func @transform_0(%arg0: i32, %arg1: i32) -> (i32, i32, i32, i32, i32) {
    %c0_i32 = arith.constant 0 : i32
    %c0_i32_0 = arith.constant 0 : i32
    %c0_i32_1 = arith.constant 0 : i32
    %c0_i32_2 = arith.constant 0 : i32
    return %arg0, %arg1, %c0_i32, %c0_i32_0, %c0_i32_1 : i32, i32, i32, i32, i32
  }
  func.func @transform_1(%arg0: i32, %arg1: i32) -> (i32, i32) {
    %c0_i32 = arith.constant 0 : i32
    %c0_i32_0 = arith.constant 0 : i32
    %c0_i32_1 = arith.constant 0 : i32
    return %c0_i32, %c0_i32_0 : i32, i32
  }
  func.func @transform_2(%arg0: i32, %arg1: i32) -> (i32, i32) {
    %c0_i32 = arith.constant 0 : i32
    %c0_i32_0 = arith.constant 0 : i32
    %c0_i32_1 = arith.constant 0 : i32
    return %c0_i32, %c0_i32_0 : i32, i32
  }
  func.func @transform_3(%arg0: i32, %arg1: i32) -> (i32, i32, i32, i32, i32) {
    %c0_i32 = arith.constant 0 : i32
    %c0_i32_0 = arith.constant 0 : i32
    %c0_i32_1 = arith.constant 0 : i32
    %c0_i32_2 = arith.constant 0 : i32
    return %arg0, %arg1, %c0_i32, %c0_i32_0, %c0_i32_1 : i32, i32, i32, i32, i32
  }
  func.func @transform_4(%arg0: i32, %arg1: i32) -> (i32, i32, i32, i32) {
    %c0_i32 = arith.constant 0 : i32
    %c0_i32_0 = arith.constant 0 : i32
    %c0_i32_1 = arith.constant 0 : i32
    return %arg0, %arg1, %c0_i32, %c0_i32_0 : i32, i32, i32, i32
  }
}

</mosaic_0001>

<llo_original>
// kernel: downconv_forward.5
$region0: #{downconv_forward.5}
  #allocation0 [shape = 'u32[]', space=smem, size = 0x4, offset = 0x4, fixed_abs, tag = 'smem constant byte address 0x4 - core index']
  #allocation1 [shape = 'u32[144,128]{1,0:T(1,128)}', space=vmem, size = 0x12000, scoped, tag = 'internal scratch']
  %s0 = inlined_call_operand.vmem [shape: bf16[2,8,2,8,256], index: 0, kind: input, shape index: {}]
  %s1 = inlined_call_operand.vmem [shape: f32[1,256], index: 1, kind: input, shape index: {}]
  %s2 = inlined_call_operand.vmem [shape: f32[1,256], index: 2, kind: input, shape index: {}]
  %s3 = inlined_call_operand.vmem [shape: f32[2,8,2,8,256], index: 3, kind: output, shape index: {0}]
  %s4 = inlined_call_operand.vmem [shape: f32[2,8,8,128], index: 4, kind: output, shape index: {1}]
  %5 = xla_tuple %s3, %s4
  %s6 = sld [smem:[#allocation0]]
  $region53: #{downconv_forward.5} parent=0
    _
  %s8 = ssub.s32 1, %s6
  %s9 = scalar_select 0, %s8, %s6
  loop: start=0, step=1, limit=4
  $region2: #{downconv_forward.5} parent=0 // loop_pre_header
    _
  $region3: #{downconv_forward.5} parent=0 // loop_header
    %s11 = sphi 0, %s15
    %p12 = scmp.ge.s32.totalorder %s11, 4
    %s18 = sphi 0, %s30
    %s19 = sphi 0, %s26
    %s20 = sphi 0, %s18
    %s21 = sphi 0, %s19
    %s22 = sphi 0, %s20
    %s23 = sphi 0, %s21
    %s35 = sphi 0, %s37
    %s38 = sphi 0, %s35
    %s39 = sphi 0, %s38
    %s55 = sphi 0, %s39
    %s59 = sphi 0, %s59
    %s61 = sphi 0, %s59
    %s62 = sphi 0, %s61
    %s76 = sphi 0, %s62
    %s80 = sphi 0, %s80
    %s82 = sphi 0, %s80
    %s83 = sphi 0, %s82
    %s97 = sphi 0, %s83
    %s105 = sphi 0, %s107
    %s108 = sphi 0, %s105
    %s109 = sphi 0, %s108
    %s125 = sphi 0, %s109
    %s133 = sphi 0, %s135
    %s136 = sphi 0, %s133
    %s137 = sphi 0, %s136
    %s153 = sphi 0, %s137
  $region4: #{downconv_forward.5} parent=0 // loop_header_branch
    %14 = sbr.rel (%p12) target = $region8
  $region5: #{downconv_forward.5} parent=0 // loop_body
    %s16 = ssub.s32 %s11, 1
    %s17 = ssub.s32 %s11, 2
    %s24 = sadd.s32 1, %s19
    %p25 = scmp.ge.s32.totalorder %s24, 1
    %s26 = scalar_select %p25, 0, %s24
    %s27 = sadd.s32 1, %s18
    %s28 = scalar_select %p25, %s27, %s18
    %p29 = scmp.ge.s32.totalorder %s28, 2
    %s30 = scalar_select %p29, 0, %s28
    %s31 = ssub.s32 %s18, %s30
    %s32 = ssub.s32 %s19, %s26
    %s33 = sor.u32 %s31, %s32
    %p34 = scmp.eq.s32.totalorder %s33, 0
    %s36 = sadd.s32 %s35, 1
    %s37 = scalar_select %p34, %s35, %s36
    %p40 = pneg %p34
    %p41 = scmp.eq.s32.totalorder %s11, 1
    %p42 = por %p40, %p41
    %p43 = scmp.ne.s32.totalorder %s35, %s38
    %p44 = scmp.eq.s32.totalorder %s11, 0
    %p45 = por %p43, %p44
    %p46 = scmp.ne.s32.totalorder %s35, %s38
    %p47 = scmp.eq.s32.totalorder %s16, 1
    %p48 = por %p46, %p47
    %p49 = scmp.ne.s32.totalorder %s38, %s39
    %p50 = scmp.eq.s32.totalorder %s16, 0
    %p51 = por %p49, %p50
    %p52 = scmp.ne.s32.totalorder %s38, %s39
    %p53 = scmp.eq.s32.totalorder %s17, 1
    %p54 = por %p52, %p53
    %p56 = scmp.ne.s32.totalorder %s39, %s55
    %p57 = scmp.eq.s32.totalorder %s17, 0
    %p58 = por %p56, %p57
    %s60 = sadd.s32 %s59, 1
    %p63 = scmp.eq.s32.totalorder %s11, 1
    %p64 = scmp.ne.s32.totalorder %s59, %s61
    %p65 = scmp.eq.s32.totalorder %s11, 0
    %p66 = por %p64, %p65
    %p67 = scmp.ne.s32.totalorder %s59, %s61
    %p68 = scmp.eq.s32.totalorder %s16, 1
    %p69 = por %p67, %p68
    %p70 = scmp.ne.s32.totalorder %s61, %s62
    %p71 = scmp.eq.s32.totalorder %s16, 0
    %p72 = por %p70, %p71
    %p73 = scmp.ne.s32.totalorder %s61, %s62
    %p74 = scmp.eq.s32.totalorder %s17, 1
    %p75 = por %p73, %p74
    %p77 = scmp.ne.s32.totalorder %s62, %s76
    %p78 = scmp.eq.s32.totalorder %s17, 0
    %p79 = por %p77, %p78
    %s81 = sadd.s32 %s80, 1
    %p84 = scmp.eq.s32.totalorder %s11, 1
    %p85 = scmp.ne.s32.totalorder %s80, %s82
    %p86 = scmp.eq.s32.totalorder %s11, 0
    %p87 = por %p85, %p86
    %p88 = scmp.ne.s32.totalorder %s80, %s82
    %p89 = scmp.eq.s32.totalorder %s16, 1
    %p90 = por %p88, %p89
    %p91 = scmp.ne.s32.totalorder %s82, %s83
    %p92 = scmp.eq.s32.totalorder %s16, 0
    %p93 = por %p91, %p92
    %p94 = scmp.ne.s32.totalorder %s82, %s83
    %p95 = scmp.eq.s32.totalorder %s17, 1
    %p96 = por %p94, %p95
    %p98 = scmp.ne.s32.totalorder %s83, %s97
    %p99 = scmp.eq.s32.totalorder %s17, 0
    %p100 = por %p98, %p99
    %s101 = ssub.s32 %s18, %s30
    %s102 = ssub.s32 %s19, %s26
    %s103 = sor.u32 %s101, %s102
    %p104 = scmp.eq.s32.totalorder %s103, 0
    %s106 = sadd.s32 %s105, 1
    %s107 = scalar_select %p104, %s105, %s106
    %p110 = pneg %p104
    %p111 = scmp.eq.s32.totalorder %s11, 1
    %p112 = por %p110, %p111
    %p113 = scmp.ne.s32.totalorder %s105, %s108
    %p114 = scmp.eq.s32.totalorder %s11, 0
    %p115 = por %p113, %p114
    %p116 = scmp.ne.s32.totalorder %s105, %s108
    %p117 = scmp.eq.s32.totalorder %s16, 1
    %p118 = por %p116, %p117
    %p119 = scmp.ne.s32.totalorder %s108, %s109
    %p120 = scmp.eq.s32.totalorder %s16, 0
    %p121 = por %p119, %p120
    %p122 = scmp.ne.s32.totalorder %s108, %s109
    %p123 = scmp.eq.s32.totalorder %s17, 1
    %p124 = por %p122, %p123
    %p126 = scmp.ne.s32.totalorder %s109, %s125
    %p127 = scmp.eq.s32.totalorder %s17, 0
    %p128 = por %p126, %p127
    %s129 = ssub.s32 %s18, %s30
    %s130 = ssub.s32 %s19, %s26
    %s131 = sor.u32 %s129, %s130
    %p132 = scmp.eq.s32.totalorder %s131, 0
    %s134 = sadd.s32 %s133, 1
    %s135 = scalar_select %p132, %s133, %s134
    %p138 = pneg %p132
    %p139 = scmp.eq.s32.totalorder %s11, 1
    %p140 = por %p138, %p139
    %p141 = scmp.ne.s32.totalorder %s133, %s136
    %p142 = scmp.eq.s32.totalorder %s11, 0
    %p143 = por %p141, %p142
    %p144 = scmp.ne.s32.totalorder %s133, %s136
    %p145 = scmp.eq.s32.totalorder %s16, 1
    %p146 = por %p144, %p145
    %p147 = scmp.ne.s32.totalorder %s136, %s137
    %p148 = scmp.eq.s32.totalorder %s16, 0
    %p149 = por %p147, %p148
    %p150 = scmp.ne.s32.totalorder %s136, %s137
    %p151 = scmp.eq.s32.totalorder %s17, 1
    %p152 = por %p150, %p151
    %p154 = scmp.ne.s32.totalorder %s137, %s153
    %p155 = scmp.eq.s32.totalorder %s17, 0
    %p156 = por %p154, %p155
    %p157 = scmp.le.s32.totalorder 1, %s11
    %p158 = scmp.lt.s32.totalorder %s11, 3
    %p159 = pnand %p157, %p158
    %p160 = pneg %p159
    // Predicated region
    $region9: #{downconv_forward.5} parent=5 // pred_check
      _
    $region10: #{downconv_forward.5} parent=5 // pred_check_branch
      %162 = sbr.rel (%p159) target = $region12
    $region11: #{downconv_forward.5} parent=5 // pred_region
      %s163 = ssub.s32 %s11, 1
      // Predicated region
      $region13: #{downconv_forward.5} parent=11 // pred_check
        %p164 = pneg %p72
      $region14: #{downconv_forward.5} parent=11 // pred_check_branch
        %166 = sbr.rel (%p164) target = $region16
      $region15: #{downconv_forward.5} parent=11 // pred_region
        _
      $region16: #{downconv_forward.5} parent=11 // pred_fallthru
        _
      // Predicated region
      $region17: #{downconv_forward.5} parent=11 // pred_check
        %p167 = pneg %p93
      $region18: #{downconv_forward.5} parent=11 // pred_check_branch
        %169 = sbr.rel (%p167) target = $region20
      $region19: #{downconv_forward.5} parent=11 // pred_region
        _
      $region20: #{downconv_forward.5} parent=11 // pred_fallthru
        _
    $region12: #{downconv_forward.5} parent=5 // pred_fallthru
      _
    %p170 = scmp.lt.s32.totalorder %s11, 2
    // Predicated region
    $region21: #{downconv_forward.5} parent=5 // pred_check
      %p171 = pneg %p170
    $region22: #{downconv_forward.5} parent=5 // pred_check_branch
      %173 = sbr.rel (%p171) target = $region24
    $region23: #{downconv_forward.5} parent=5 // pred_region
      // Predicated region
      $region25: #{downconv_forward.5} parent=23 // pred_check
        %p174 = pneg %p45
      $region26: #{downconv_forward.5} parent=23 // pred_check_branch
        %176 = sbr.rel (%p174) target = $region28
      $region27: #{downconv_forward.5} parent=23 // pred_region
        %s177 = smul.u32 8, %s19
        %p178 = scmp.lt.s32.totalorder %s18, 1
        %s179 = scalar_select %p178, %s18, 1
        %p180 = scmp.lt.s32.totalorder %s177, 7
        %s181 = scalar_select %p180, %s177, 7
        %s182 = smul.addr %s181, 4
        %s183 = smul.addr %s179, 32
        %s184 = sadd.s32 %s182, %s183
        %s185 = smul.addr %s184, 4
        %s186 = scalar_lea.vmem %s0, %s185
        %s187 = smul.u32 8, %s19
      $region28: #{downconv_forward.5} parent=23 // pred_fallthru
        _
    $region24: #{downconv_forward.5} parent=5 // pred_fallthru
      _
    %p188 = scmp.le.s32.totalorder 1, %s11
    %p189 = scmp.lt.s32.totalorder %s11, 3
    %p190 = pnand %p188, %p189
    %p191 = pneg %p190
    // Predicated region
    $region29: #{downconv_forward.5} parent=5 // pred_check
      _
    $region30: #{downconv_forward.5} parent=5 // pred_check_branch
      %193 = sbr.rel (%p190) target = $region32
    $region31: #{downconv_forward.5} parent=5 // pred_region
      %s194 = ssub.s32 %s11, 1
      %s195 = smul.u32 8, %s21
      %p196 = scmp.lt.s32.totalorder %s20, 1
      %s197 = scalar_select %p196, %s20, 1
      %p198 = scmp.lt.s32.totalorder %s195, 7
      %s199 = scalar_select %p198, %s195, 7
      %s200 = smul.addr %s199, 4
      %s201 = smul.addr %s197, 32
      %s202 = sadd.s32 %s200, %s201
      %s203 = smul.addr %s202, 4
      %s204 = scalar_lea.vmem %s0, %s203
      %p205 = pneg %p51
      %p206 = pneg %p48
      %p207 = pneg %p72
      %p208 = pneg %p69
      %p209 = pneg %p93
      %p210 = pneg %p90
      %p211 = pneg %p121
      %p212 = pneg %p118
      %s213 = smul.u32 8, %s21
      %p214 = scmp.lt.s32.totalorder %s20, 1
      %s215 = scalar_select %p214, %s20, 1
      %p216 = scmp.lt.s32.totalorder %s213, 7
      %s217 = scalar_select %p216, %s213, 7
      %s218 = smul.addr %s217, 4
      %s219 = smul.addr %s215, 32
      %s220 = sadd.s32 %s218, %s219
      %s221 = smul.addr %s220, 8
      %s222 = scalar_lea.vmem %s3, %s221
      %p223 = pneg %p149
      %p224 = pneg %p146
      %s225 = smul.u32 8, %s21
      %p226 = scmp.lt.s32.totalorder %s20, 1
      %s227 = scalar_select %p226, %s20, 1
      %p228 = scmp.lt.s32.totalorder %s225, 7
      %s229 = scalar_select %p228, %s225, 7
      %s230 = smul.addr %s227, 8
      %s231 = sadd.s32 %s229, %s230
      %s232 = smul.addr %s231, 8
      %s233 = scalar_lea.vmem %s4, %s232
      %s234 = smul.u32 8, %s21
      %p235 = scmp.lt.s32.totalorder %s20, 1
      %s236 = scalar_select %p235, %s20, 1
      %p237 = scmp.lt.s32.totalorder %s234, 7
      %s238 = scalar_select %p237, %s234, 7
      %s239 = smul.addr %s238, 4
      %s240 = smul.addr %s236, 32
      %s241 = sadd.s32 %s239, %s240
      %s242 = smul.addr %s241, 4
      %s243 = scalar_lea.vmem %s0, %s242
      %s244 = smul.u32 8, %s21
      %s245 = smul.u32 8, %s21
      %p246 = scmp.lt.s32.totalorder %s20, 1
      %s247 = scalar_select %p246, %s20, 1
      %p248 = scmp.lt.s32.totalorder %s245, 7
      %s249 = scalar_select %p248, %s245, 7
      %s250 = smul.addr %s249, 4
      %s251 = smul.addr %s247, 32
      %s252 = sadd.s32 %s250, %s251
      %s253 = smul.addr %s252, 8
      %s254 = scalar_lea.vmem %s3, %s253
      %s255 = smul.u32 8, %s21
      %s256 = smul.u32 8, %s21
      %p257 = scmp.lt.s32.totalorder %s20, 1
      %s258 = scalar_select %p257, %s20, 1
      %p259 = scmp.lt.s32.totalorder %s256, 7
      %s260 = scalar_select %p259, %s256, 7
      %s261 = smul.addr %s258, 8
      %s262 = sadd.s32 %s260, %s261
      %s263 = smul.addr %s262, 8
      %s264 = scalar_lea.vmem %s4, %s263
      %s265 = smul.u32 8, %s21
      %v266 = vld [vmem:[%s243] sm:$0xff]
      %v267 = vld [vmem:[%s243 + $0x8] sm:$0xff]
      %v268 = vld [vmem:[%s243 + $0x10] sm:$0xff]
      %v269 = vld [vmem:[%s243 + $0x18] sm:$0xff]
      %v270 = vld [vmem:[%s243 + $0x20] sm:$0xff]
      %v271 = vld [vmem:[%s243 + $0x28] sm:$0xff]
      %v272 = vld [vmem:[%s243 + $0x30] sm:$0xff]
      %v273 = vld [vmem:[%s243 + $0x38] sm:$0xff]
      %v274 = vld [vmem:[%s243 + $0x40] sm:$0xff]
      %v275 = vld [vmem:[%s243 + $0x48] sm:$0xff]
      %v276 = vld [vmem:[%s243 + $0x50] sm:$0xff]
      %v277 = vld [vmem:[%s243 + $0x58] sm:$0xff]
      %v278 = vld [vmem:[%s243 + $0x60] sm:$0xff]
      %v279 = vld [vmem:[%s243 + $0x68] sm:$0xff]
      %v280 = vld [vmem:[%s243 + $0x70] sm:$0xff]
      %v281 = vld [vmem:[%s243 + $0x78] sm:$0xff]
      %v282 = vunpack.c.l.bf16 %v266
      %v283 = vunpack.c.h.bf16 %v266
      %v284 = vunpack.c.l.bf16 %v267
      %v285 = vunpack.c.h.bf16 %v267
      %v286 = vunpack.c.l.bf16 %v268
      %v287 = vunpack.c.h.bf16 %v268
      %v288 = vunpack.c.l.bf16 %v269
      %v289 = vunpack.c.h.bf16 %v269
      %v290 = vunpack.c.l.bf16 %v270
      %v291 = vunpack.c.h.bf16 %v270
      %v292 = vunpack.c.l.bf16 %v271
      %v293 = vunpack.c.h.bf16 %v271
      %v294 = vunpack.c.l.bf16 %v272
      %v295 = vunpack.c.h.bf16 %v272
      %v296 = vunpack.c.l.bf16 %v273
      %v297 = vunpack.c.h.bf16 %v273
      %v298 = vunpack.c.l.bf16 %v274
      %v299 = vunpack.c.h.bf16 %v274
      %v300 = vunpack.c.l.bf16 %v275
      %v301 = vunpack.c.h.bf16 %v275
      %v302 = vunpack.c.l.bf16 %v276
      %v303 = vunpack.c.h.bf16 %v276
      %v304 = vunpack.c.l.bf16 %v277
      %v305 = vunpack.c.h.bf16 %v277
      %v306 = vunpack.c.l.bf16 %v278
      %v307 = vunpack.c.h.bf16 %v278
      %v308 = vunpack.c.l.bf16 %v279
      %v309 = vunpack.c.h.bf16 %v279
      %v310 = vunpack.c.l.bf16 %v280
      %v311 = vunpack.c.h.bf16 %v280
      %v312 = vunpack.c.l.bf16 %v281
      %v313 = vunpack.c.h.bf16 %v281
      %v314 = vld [vmem:[%s1] sm:$0x3]
      %v316 = vlaneseq
      %v317 = vshrl.u32 %v316, 7
      %v318 = vsub.s32 0, %v317
      %v319 = vrot.slane %v314, %v318
      %v320 = vlaneseq
      %v321 = vshrl.u32 %v320, 7
      %v322 = vsub.s32 1, %v321
      %v323 = vrot.slane %v314, %v322
      %v326 = vmul.f32 %v282, %v319
      %v327 = vmul.f32 %v283, %v323
      %v328 = vmul.f32 %v284, %v319
      %v329 = vmul.f32 %v285, %v323
      %v330 = vmul.f32 %v286, %v319
      %v331 = vmul.f32 %v287, %v323
      %v332 = vmul.f32 %v288, %v319
      %v333 = vmul.f32 %v289, %v323
      %v334 = vmul.f32 %v290, %v319
      %v335 = vmul.f32 %v291, %v323
      %v336 = vmul.f32 %v292, %v319
      %v337 = vmul.f32 %v293, %v323
      %v338 = vmul.f32 %v294, %v319
      %v339 = vmul.f32 %v295, %v323
      %v340 = vmul.f32 %v296, %v319
      %v341 = vmul.f32 %v297, %v323
      %v342 = vmul.f32 %v298, %v319
      %v343 = vmul.f32 %v299, %v323
      %v344 = vmul.f32 %v300, %v319
      %v345 = vmul.f32 %v301, %v323
      %v346 = vmul.f32 %v302, %v319
      %v347 = vmul.f32 %v303, %v323
      %v348 = vmul.f32 %v304, %v319
      %v349 = vmul.f32 %v305, %v323
      %v350 = vmul.f32 %v306, %v319
      %v351 = vmul.f32 %v307, %v323
      %v352 = vmul.f32 %v308, %v319
      %v353 = vmul.f32 %v309, %v323
      %v354 = vmul.f32 %v310, %v319
      %v355 = vmul.f32 %v311, %v323
      %v356 = vmul.f32 %v312, %v319
      %v357 = vmul.f32 %v313, %v323
      %v358 = vld [vmem:[%s2] sm:$0x3]
      %v360 = vlaneseq
      %v361 = vshrl.u32 %v360, 7
      %v362 = vsub.s32 0, %v361
      %v363 = vrot.slane %v358, %v362
      %v364 = vlaneseq
      %v365 = vshrl.u32 %v364, 7
      %v366 = vsub.s32 1, %v365
      %v367 = vrot.slane %v358, %v366
      %v370 = vadd.f32 %v326, %v363
      %v371 = vadd.f32 %v327, %v367
      %v372 = vadd.f32 %v328, %v363
      %v373 = vadd.f32 %v329, %v367
      %v374 = vadd.f32 %v330, %v363
      %v375 = vadd.f32 %v331, %v367
      %v376 = vadd.f32 %v332, %v363
      %v377 = vadd.f32 %v333, %v367
      %v378 = vadd.f32 %v334, %v363
      %v379 = vadd.f32 %v335, %v367
      %v380 = vadd.f32 %v336, %v363
      %v381 = vadd.f32 %v337, %v367
      %v382 = vadd.f32 %v338, %v363
      %v383 = vadd.f32 %v339, %v367
      %v384 = vadd.f32 %v340, %v363
      %v385 = vadd.f32 %v341, %v367
      %v386 = vadd.f32 %v342, %v363
      %v387 = vadd.f32 %v343, %v367
      %v388 = vadd.f32 %v344, %v363
      %v389 = vadd.f32 %v345, %v367
      %v390 = vadd.f32 %v346, %v363
      %v391 = vadd.f32 %v347, %v367
      %v392 = vadd.f32 %v348, %v363
      %v393 = vadd.f32 %v349, %v367
      %v394 = vadd.f32 %v350, %v363
      %v395 = vadd.f32 %v351, %v367
      %v396 = vadd.f32 %v352, %v363
      %v397 = vadd.f32 %v353, %v367
      %v398 = vadd.f32 %v354, %v363
      %v399 = vadd.f32 %v355, %v367
      %v400 = vadd.f32 %v356, %v363
      %v401 = vadd.f32 %v357, %v367
      %v402 = vmax.f32 %v370, 0.0
      %v403 = vmax.f32 %v371, 0.0
      %v404 = vmax.f32 %v372, 0.0
      %v405 = vmax.f32 %v373, 0.0
      %v406 = vmax.f32 %v374, 0.0
      %v407 = vmax.f32 %v375, 0.0
      %v408 = vmax.f32 %v376, 0.0
      %v409 = vmax.f32 %v377, 0.0
      %v410 = vmax.f32 %v378, 0.0
      %v411 = vmax.f32 %v379, 0.0
      %v412 = vmax.f32 %v380, 0.0
      %v413 = vmax.f32 %v381, 0.0
      %v414 = vmax.f32 %v382, 0.0
      %v415 = vmax.f32 %v383, 0.0
      %v416 = vmax.f32 %v384, 0.0
      %v417 = vmax.f32 %v385, 0.0
      %v418 = vmax.f32 %v386, 0.0
      %v419 = vmax.f32 %v387, 0.0
      %v420 = vmax.f32 %v388, 0.0
      %v421 = vmax.f32 %v389, 0.0
      %v422 = vmax.f32 %v390, 0.0
      %v423 = vmax.f32 %v391, 0.0
      %v424 = vmax.f32 %v392, 0.0
      %v425 = vmax.f32 %v393, 0.0
      %v426 = vmax.f32 %v394, 0.0
      %v427 = vmax.f32 %v395, 0.0
      %v428 = vmax.f32 %v396, 0.0
      %v429 = vmax.f32 %v397, 0.0
      %v430 = vmax.f32 %v398, 0.0
      %v431 = vmax.f32 %v399, 0.0
      %v432 = vmax.f32 %v400, 0.0
      %v433 = vmax.f32 %v401, 0.0
      %434 = vst [vmem:[%s254] sm:$0xff] %v402
      %435 = vst [vmem:[%s254 + $0x8] sm:$0xff] %v403
      %436 = vst [vmem:[%s254 + $0x10] sm:$0xff] %v404
      %437 = vst [vmem:[%s254 + $0x18] sm:$0xff] %v405
      %438 = vst [vmem:[%s254 + $0x20] sm:$0xff] %v406
      %439 = vst [vmem:[%s254 + $0x28] sm:$0xff] %v407
      %440 = vst [vmem:[%s254 + $0x30] sm:$0xff] %v408
      %441 = vst [vmem:[%s254 + $0x38] sm:$0xff] %v409
      %442 = vst [vmem:[%s254 + $0x40] sm:$0xff] %v410
      %443 = vst [vmem:[%s254 + $0x48] sm:$0xff] %v411
      %444 = vst [vmem:[%s254 + $0x50] sm:$0xff] %v412
      %445 = vst [vmem:[%s254 + $0x58] sm:$0xff] %v413
      %446 = vst [vmem:[%s254 + $0x60] sm:$0xff] %v414
      %447 = vst [vmem:[%s254 + $0x68] sm:$0xff] %v415
      %448 = vst [vmem:[%s254 + $0x70] sm:$0xff] %v416
      %449 = vst [vmem:[%s254 + $0x78] sm:$0xff] %v417
      %450 = vst [vmem:[%s254 + $0x80] sm:$0xff] %v418
      %451 = vst [vmem:[%s254 + $0x88] sm:$0xff] %v419
      %452 = vst [vmem:[%s254 + $0x90] sm:$0xff] %v420
      %453 = vst [vmem:[%s254 + $0x98] sm:$0xff] %v421
      %454 = vst [vmem:[%s254 + $0xa0] sm:$0xff] %v422
      %455 = vst [vmem:[%s254 + $0xa8] sm:$0xff] %v423
      %456 = vst [vmem:[%s254 + $0xb0] sm:$0xff] %v424
      %457 = vst [vmem:[%s254 + $0xb8] sm:$0xff] %v425
      %458 = vst [vmem:[%s254 + $0xc0] sm:$0xff] %v426
      %459 = vst [vmem:[%s254 + $0xc8] sm:$0xff] %v427
      %460 = vst [vmem:[%s254 + $0xd0] sm:$0xff] %v428
      %461 = vst [vmem:[%s254 + $0xd8] sm:$0xff] %v429
      %462 = vst [vmem:[%s254 + $0xe0] sm:$0xff] %v430
      %463 = vst [vmem:[%s254 + $0xe8] sm:$0xff] %v431
      %464 = vst [vmem:[%s254 + $0xf0] sm:$0xff] %v432
      %465 = vst [vmem:[%s254 + $0xf8] sm:$0xff] %v433
      %v466 = vmax.f32 %v402, %v404
      %v467 = vmax.f32 %v403, %v405
      %v468 = vmax.f32 %v406, %v408
      %v469 = vmax.f32 %v407, %v409
      %v470 = vmax.f32 %v410, %v412
      %v471 = vmax.f32 %v411, %v413
      %v472 = vmax.f32 %v414, %v416
      %v473 = vmax.f32 %v415, %v417
      %v474 = vmax.f32 %v418, %v420
      %v475 = vmax.f32 %v419, %v421
      %v476 = vmax.f32 %v422, %v424
      %v477 = vmax.f32 %v423, %v425
      %v478 = vmax.f32 %v426, %v428
      %v479 = vmax.f32 %v427, %v429
      %v480 = vmax.f32 %v430, %v432
      %v481 = vmax.f32 %v431, %v433
      %v482 = vmax.f32 %v466, %v467
      %v483 = vmax.f32 %v468, %v469
      %v484 = vmax.f32 %v470, %v471
      %v485 = vmax.f32 %v472, %v473
      %v486 = vmax.f32 %v474, %v475
      %v487 = vmax.f32 %v476, %v477
      %v488 = vmax.f32 %v478, %v479
      %v489 = vmax.f32 %v480, %v481
      %490 = vst [vmem:[%s264] sm:$0xff] %v482
      %491 = vst [vmem:[%s264 + $0x8] sm:$0xff] %v483
      %492 = vst [vmem:[%s264 + $0x10] sm:$0xff] %v484
      %493 = vst [vmem:[%s264 + $0x18] sm:$0xff] %v485
      %494 = vst [vmem:[%s264 + $0x20] sm:$0xff] %v486
      %495 = vst [vmem:[%s264 + $0x28] sm:$0xff] %v487
      %496 = vst [vmem:[%s264 + $0x30] sm:$0xff] %v488
      %497 = vst [vmem:[%s264 + $0x38] sm:$0xff] %v489
      %s498 = smul.u32 8, %s21
      %p499 = scmp.lt.s32.totalorder %s20, 1
      %s500 = scalar_select %p499, %s20, 1
      %p501 = scmp.lt.s32.totalorder %s498, 7
      %s502 = scalar_select %p501, %s498, 7
      %s503 = smul.addr %s502, 4
      %s504 = smul.addr %s500, 32
      %s505 = sadd.s32 %s503, %s504
      %s506 = smul.addr %s505, 8
      %s507 = scalar_lea.vmem %s3, %s506
      %s508 = smul.u32 8, %s21
      %p509 = scmp.lt.s32.totalorder %s20, 1
      %s510 = scalar_select %p509, %s20, 1
      %p511 = scmp.lt.s32.totalorder %s508, 7
      %s512 = scalar_select %p511, %s508, 7
      %s513 = smul.addr %s510, 8
      %s514 = sadd.s32 %s512, %s513
      %s515 = smul.addr %s514, 8
      %s516 = scalar_lea.vmem %s4, %s515
      // Predicated region
      $region33: #{downconv_forward.5} parent=31 // pred_check
        %p517 = pneg %p118
      $region34: #{downconv_forward.5} parent=31 // pred_check_branch
        %519 = sbr.rel (%p517) target = $region36
      $region35: #{downconv_forward.5} parent=31 // pred_region
        %s520 = smul.u32 8, %s21
      $region36: #{downconv_forward.5} parent=31 // pred_fallthru
        _
      // Predicated region
      $region37: #{downconv_forward.5} parent=31 // pred_check
        %p521 = pneg %p146
      $region38: #{downconv_forward.5} parent=31 // pred_check_branch
        %523 = sbr.rel (%p521) target = $region40
      $region39: #{downconv_forward.5} parent=31 // pred_region
        %s524 = smul.u32 8, %s21
      $region40: #{downconv_forward.5} parent=31 // pred_fallthru
        _
    $region32: #{downconv_forward.5} parent=5 // pred_fallthru
      _
    %p525 = scmp.le.s32.totalorder 2, %s11
    // Predicated region
    $region41: #{downconv_forward.5} parent=5 // pred_check
      %p526 = pneg %p525
    $region42: #{downconv_forward.5} parent=5 // pred_check_branch
      %528 = sbr.rel (%p526) target = $region44
    $region43: #{downconv_forward.5} parent=5 // pred_region
      %s529 = ssub.s32 %s11, 2
      // Predicated region
      $region45: #{downconv_forward.5} parent=43 // pred_check
        %p530 = pneg %p124
      $region46: #{downconv_forward.5} parent=43 // pred_check_branch
        %532 = sbr.rel (%p530) target = $region48
      $region47: #{downconv_forward.5} parent=43 // pred_region
        %s533 = smul.u32 8, %s23
        %p534 = scmp.lt.s32.totalorder %s22, 1
        %s535 = scalar_select %p534, %s22, 1
        %p536 = scmp.lt.s32.totalorder %s533, 7
        %s537 = scalar_select %p536, %s533, 7
        %s538 = smul.addr %s537, 4
        %s539 = smul.addr %s535, 32
        %s540 = sadd.s32 %s538, %s539
        %s541 = smul.addr %s540, 8
        %s542 = scalar_lea.vmem %s3, %s541
      $region48: #{downconv_forward.5} parent=43 // pred_fallthru
        _
      // Predicated region
      $region49: #{downconv_forward.5} parent=43 // pred_check
        %p543 = pneg %p152
      $region50: #{downconv_forward.5} parent=43 // pred_check_branch
        %545 = sbr.rel (%p543) target = $region52
      $region51: #{downconv_forward.5} parent=43 // pred_region
        %s546 = smul.u32 8, %s23
        %p547 = scmp.lt.s32.totalorder %s22, 1
        %s548 = scalar_select %p547, %s22, 1
        %p549 = scmp.lt.s32.totalorder %s546, 7
        %s550 = scalar_select %p549, %s546, 7
        %s551 = smul.addr %s548, 8
        %s552 = sadd.s32 %s550, %s551
        %s553 = smul.addr %s552, 8
        %s554 = scalar_lea.vmem %s4, %s553
      $region52: #{downconv_forward.5} parent=43 // pred_fallthru
        _
    $region44: #{downconv_forward.5} parent=5 // pred_fallthru
      _
  $region6: #{downconv_forward.5} parent=0 // loop_footer
    %s15 = sadd.s32 1, %s11
  $region7: #{downconv_forward.5} parent=0 // loop_footer_branch
    %10 = sbr.rel target = $region3
  $region8: #{downconv_forward.5} parent=0 // loop_exit
    _

// kernel: downconv_forward.4
$region0: #{downconv_forward.4}
  #allocation0 [shape = 'u32[]', space=smem, size = 0x4, offset = 0x4, fixed_abs, tag = 'smem constant byte address 0x4 - core index']
  #allocation1 [shape = 'u32[144,128]{1,0:T(1,128)}', space=vmem, size = 0x12000, scoped, tag = 'internal scratch']
  %s0 = inlined_call_operand.vmem [shape: bf16[2,16,18,128], index: 0, kind: input, shape index: {}, may-alias: {0,1,2}]
  %s1 = inlined_call_operand.vmem [shape: bf16[2,16,18,128], index: 1, kind: input, shape index: {}, may-alias: {0,1,2}]
  %s2 = inlined_call_operand.vmem [shape: bf16[2,16,18,128], index: 2, kind: input, shape index: {}, may-alias: {0,1,2}]
  %s3 = inlined_call_operand.vmem [shape: bf16[1152,128], index: 3, kind: input, shape index: {}]
  %s4 = inlined_call_operand.vmem [shape: f32[1,128], index: 4, kind: input, shape index: {}]
  %s5 = inlined_call_operand.vmem [shape: f32[1,128], index: 5, kind: input, shape index: {}]
  %s6 = inlined_call_operand.vmem [shape: bf16[2,16,16,128], index: 6, kind: output, shape index: {0}]
  %s7 = inlined_call_operand.vmem [shape: f32[2,1,2,128], index: 7, kind: output, shape index: {1}]
  %8 = xla_tuple %s6, %s7
  %s9 = sld [smem:[#allocation0]]
  $region65: #{downconv_forward.4} parent=0
    _
  %s11 = ssub.s32 1, %s9
  %s12 = scalar_select 0, %s11, %s9
  loop: start=0, step=1, limit=4
  $region2: #{downconv_forward.4} parent=0 // loop_pre_header
    _
  $region3: #{downconv_forward.4} parent=0 // loop_header
    %s14 = sphi 0, %s18
    %p15 = scmp.ge.s32.totalorder %s14, 4
    %s21 = sphi 0, %s33
    %s22 = sphi 0, %s29
    %s23 = sphi 0, %s21
    %s24 = sphi 0, %s22
    %s25 = sphi 0, %s23
    %s26 = sphi 0, %s24
    %s38 = sphi 0, %s40
    %s41 = sphi 0, %s38
    %s42 = sphi 0, %s41
    %s58 = sphi 0, %s42
    %s74 = sphi 0, %s76
    %s77 = sphi 0, %s74
    %s78 = sphi 0, %s77
    %s94 = sphi 0, %s78
    %s110 = sphi 0, %s112
    %s113 = sphi 0, %s110
    %s114 = sphi 0, %s113
    %s130 = sphi 0, %s114
    %s134 = sphi 0, %s134
    %s136 = sphi 0, %s134
    %s137 = sphi 0, %s136
    %s151 = sphi 0, %s137
    %s155 = sphi 0, %s155
    %s157 = sphi 0, %s155
    %s158 = sphi 0, %s157
    %s172 = sphi 0, %s158
    %s176 = sphi 0, %s176
    %s178 = sphi 0, %s176
    %s179 = sphi 0, %s178
    %s193 = sphi 0, %s179
    %s201 = sphi 0, %s203
    %s204 = sphi 0, %s201
    %s205 = sphi 0, %s204
    %s221 = sphi 0, %s205
    %s229 = sphi 0, %s231
    %s232 = sphi 0, %s229
    %s233 = sphi 0, %s232
    %s249 = sphi 0, %s233
  $region4: #{downconv_forward.4} parent=0 // loop_header_branch
    %17 = sbr.rel (%p15) target = $region8
  $region5: #{downconv_forward.4} parent=0 // loop_body
    %s19 = ssub.s32 %s14, 1
    %s20 = ssub.s32 %s14, 2
    %s27 = sadd.s32 1, %s22
    %p28 = scmp.ge.s32.totalorder %s27, 1
    %s29 = scalar_select %p28, 0, %s27
    %s30 = sadd.s32 1, %s21
    %s31 = scalar_select %p28, %s30, %s21
    %p32 = scmp.ge.s32.totalorder %s31, 2
    %s33 = scalar_select %p32, 0, %s31
    %s34 = ssub.s32 %s21, %s33
    %s35 = ssub.s32 %s22, %s29
    %s36 = sor.u32 %s34, %s35
    %p37 = scmp.eq.s32.totalorder %s36, 0
    %s39 = sadd.s32 %s38, 1
    %s40 = scalar_select %p37, %s38, %s39
    %p43 = pneg %p37
    %p44 = scmp.eq.s32.totalorder %s14, 1
    %p45 = por %p43, %p44
    %p46 = scmp.ne.s32.totalorder %s38, %s41
    %p47 = scmp.eq.s32.totalorder %s14, 0
    %p48 = por %p46, %p47
    %p49 = scmp.ne.s32.totalorder %s38, %s41
    %p50 = scmp.eq.s32.totalorder %s19, 1
    %p51 = por %p49, %p50
    %p52 = scmp.ne.s32.totalorder %s41, %s42
    %p53 = scmp.eq.s32.totalorder %s19, 0
    %p54 = por %p52, %p53
    %p55 = scmp.ne.s32.totalorder %s41, %s42
    %p56 = scmp.eq.s32.totalorder %s20, 1
    %p57 = por %p55, %p56
    %p59 = scmp.ne.s32.totalorder %s42, %s58
    %p60 = scmp.eq.s32.totalorder %s20, 0
    %p61 = por %p59, %p60
    %s62 = smul.u32 %s22, 16
    %s63 = ssub.s32 %s62, 1
    %p64 = scmp.gt.s32.totalorder %s63, 0
    %s65 = scalar_select %p64, %s63, 0
    %s66 = smul.u32 %s29, 16
    %s67 = ssub.s32 %s66, 1
    %p68 = scmp.gt.s32.totalorder %s67, 0
    %s69 = scalar_select %p68, %s67, 0
    %s70 = ssub.s32 %s21, %s33
    %s71 = ssub.s32 %s65, %s69
    %s72 = sor.u32 %s70, %s71
    %p73 = scmp.eq.s32.totalorder %s72, 0
    %s75 = sadd.s32 %s74, 1
    %s76 = scalar_select %p73, %s74, %s75
    %p79 = pneg %p73
    %p80 = scmp.eq.s32.totalorder %s14, 1
    %p81 = por %p79, %p80
    %p82 = scmp.ne.s32.totalorder %s74, %s77
    %p83 = scmp.eq.s32.totalorder %s14, 0
    %p84 = por %p82, %p83
    %p85 = scmp.ne.s32.totalorder %s74, %s77
    %p86 = scmp.eq.s32.totalorder %s19, 1
    %p87 = por %p85, %p86
    %p88 = scmp.ne.s32.totalorder %s77, %s78
    %p89 = scmp.eq.s32.totalorder %s19, 0
    %p90 = por %p88, %p89
    %p91 = scmp.ne.s32.totalorder %s77, %s78
    %p92 = scmp.eq.s32.totalorder %s20, 1
    %p93 = por %p91, %p92
    %p95 = scmp.ne.s32.totalorder %s78, %s94
    %p96 = scmp.eq.s32.totalorder %s20, 0
    %p97 = por %p95, %p96
    %s98 = smul.u32 %s22, 16
    %s99 = sadd.s32 %s98, 16
    %p100 = scmp.lt.s32.totalorder %s99, 15
    %s101 = scalar_select %p100, %s99, 15
    %s102 = smul.u32 %s29, 16
    %s103 = sadd.s32 %s102, 16
    %p104 = scmp.lt.s32.totalorder %s103, 15
    %s105 = scalar_select %p104, %s103, 15
    %s106 = ssub.s32 %s21, %s33
    %s107 = ssub.s32 %s101, %s105
    %s108 = sor.u32 %s106, %s107
    %p109 = scmp.eq.s32.totalorder %s108, 0
    %s111 = sadd.s32 %s110, 1
    %s112 = scalar_select %p109, %s110, %s111
    %p115 = pneg %p109
    %p116 = scmp.eq.s32.totalorder %s14, 1
    %p117 = por %p115, %p116
    %p118 = scmp.ne.s32.totalorder %s110, %s113
    %p119 = scmp.eq.s32.totalorder %s14, 0
    %p120 = por %p118, %p119
    %p121 = scmp.ne.s32.totalorder %s110, %s113
    %p122 = scmp.eq.s32.totalorder %s19, 1
    %p123 = por %p121, %p122
    %p124 = scmp.ne.s32.totalorder %s113, %s114
    %p125 = scmp.eq.s32.totalorder %s19, 0
    %p126 = por %p124, %p125
    %p127 = scmp.ne.s32.totalorder %s113, %s114
    %p128 = scmp.eq.s32.totalorder %s20, 1
    %p129 = por %p127, %p128
    %p131 = scmp.ne.s32.totalorder %s114, %s130
    %p132 = scmp.eq.s32.totalorder %s20, 0
    %p133 = por %p131, %p132
    %s135 = sadd.s32 %s134, 1
    %p138 = scmp.eq.s32.totalorder %s14, 1
    %p139 = scmp.ne.s32.totalorder %s134, %s136
    %p140 = scmp.eq.s32.totalorder %s14, 0
    %p141 = por %p139, %p140
    %p142 = scmp.ne.s32.totalorder %s134, %s136
    %p143 = scmp.eq.s32.totalorder %s19, 1
    %p144 = por %p142, %p143
    %p145 = scmp.ne.s32.totalorder %s136, %s137
    %p146 = scmp.eq.s32.totalorder %s19, 0
    %p147 = por %p145, %p146
    %p148 = scmp.ne.s32.totalorder %s136, %s137
    %p149 = scmp.eq.s32.totalorder %s20, 1
    %p150 = por %p148, %p149
    %p152 = scmp.ne.s32.totalorder %s137, %s151
    %p153 = scmp.eq.s32.totalorder %s20, 0
    %p154 = por %p152, %p153
    %s156 = sadd.s32 %s155, 1
    %p159 = scmp.eq.s32.totalorder %s14, 1
    %p160 = scmp.ne.s32.totalorder %s155, %s157
    %p161 = scmp.eq.s32.totalorder %s14, 0
    %p162 = por %p160, %p161
    %p163 = scmp.ne.s32.totalorder %s155, %s157
    %p164 = scmp.eq.s32.totalorder %s19, 1
    %p165 = por %p163, %p164
    %p166 = scmp.ne.s32.totalorder %s157, %s158
    %p167 = scmp.eq.s32.totalorder %s19, 0
    %p168 = por %p166, %p167
    %p169 = scmp.ne.s32.totalorder %s157, %s158
    %p170 = scmp.eq.s32.totalorder %s20, 1
    %p171 = por %p169, %p170
    %p173 = scmp.ne.s32.totalorder %s158, %s172
    %p174 = scmp.eq.s32.totalorder %s20, 0
    %p175 = por %p173, %p174
    %s177 = sadd.s32 %s176, 1
    %p180 = scmp.eq.s32.totalorder %s14, 1
    %p181 = scmp.ne.s32.totalorder %s176, %s178
    %p182 = scmp.eq.s32.totalorder %s14, 0
    %p183 = por %p181, %p182
    %p184 = scmp.ne.s32.totalorder %s176, %s178
    %p185 = scmp.eq.s32.totalorder %s19, 1
    %p186 = por %p184, %p185
    %p187 = scmp.ne.s32.totalorder %s178, %s179
    %p188 = scmp.eq.s32.totalorder %s19, 0
    %p189 = por %p187, %p188
    %p190 = scmp.ne.s32.totalorder %s178, %s179
    %p191 = scmp.eq.s32.totalorder %s20, 1
    %p192 = por %p190, %p191
    %p194 = scmp.ne.s32.totalorder %s179, %s193
    %p195 = scmp.eq.s32.totalorder %s20, 0
    %p196 = por %p194, %p195
    %s197 = ssub.s32 %s21, %s33
    %s198 = ssub.s32 %s22, %s29
    %s199 = sor.u32 %s197, %s198
    %p200 = scmp.eq.s32.totalorder %s199, 0
    %s202 = sadd.s32 %s201, 1
    %s203 = scalar_select %p200, %s201, %s202
    %p206 = pneg %p200
    %p207 = scmp.eq.s32.totalorder %s14, 1
    %p208 = por %p206, %p207
    %p209 = scmp.ne.s32.totalorder %s201, %s204
    %p210 = scmp.eq.s32.totalorder %s14, 0
    %p211 = por %p209, %p210
    %p212 = scmp.ne.s32.totalorder %s201, %s204
    %p213 = scmp.eq.s32.totalorder %s19, 1
    %p214 = por %p212, %p213
    %p215 = scmp.ne.s32.totalorder %s204, %s205
    %p216 = scmp.eq.s32.totalorder %s19, 0
    %p217 = por %p215, %p216
    %p218 = scmp.ne.s32.totalorder %s204, %s205
    %p219 = scmp.eq.s32.totalorder %s20, 1
    %p220 = por %p218, %p219
    %p222 = scmp.ne.s32.totalorder %s205, %s221
    %p223 = scmp.eq.s32.totalorder %s20, 0
    %p224 = por %p222, %p223
    %s225 = ssub.s32 %s21, %s33
    %s226 = ssub.s32 %s22, %s29
    %s227 = sor.u32 %s225, %s226
    %p228 = scmp.eq.s32.totalorder %s227, 0
    %s230 = sadd.s32 %s229, 1
    %s231 = scalar_select %p228, %s229, %s230
    %p234 = pneg %p228
    %p235 = scmp.eq.s32.totalorder %s14, 1
    %p236 = por %p234, %p235
    %p237 = scmp.ne.s32.totalorder %s229, %s232
    %p238 = scmp.eq.s32.totalorder %s14, 0
    %p239 = por %p237, %p238
    %p240 = scmp.ne.s32.totalorder %s229, %s232
    %p241 = scmp.eq.s32.totalorder %s19, 1
    %p242 = por %p240, %p241
    %p243 = scmp.ne.s32.totalorder %s232, %s233
    %p244 = scmp.eq.s32.totalorder %s19, 0
    %p245 = por %p243, %p244
    %p246 = scmp.ne.s32.totalorder %s232, %s233
    %p247 = scmp.eq.s32.totalorder %s20, 1
    %p248 = por %p246, %p247
    %p250 = scmp.ne.s32.totalorder %s233, %s249
    %p251 = scmp.eq.s32.totalorder %s20, 0
    %p252 = por %p250, %p251
    %p253 = scmp.le.s32.totalorder 1, %s14
    %p254 = scmp.lt.s32.totalorder %s14, 3
    %p255 = pnand %p253, %p254
    %p256 = pneg %p255
    // Predicated region
    $region9: #{downconv_forward.4} parent=5 // pred_check
      _
    $region10: #{downconv_forward.4} parent=5 // pred_check_branch
      %258 = sbr.rel (%p255) target = $region12
    $region11: #{downconv_forward.4} parent=5 // pred_region
      %s259 = ssub.s32 %s14, 1
      // Predicated region
      $region13: #{downconv_forward.4} parent=11 // pred_check
        %p260 = pneg %p147
      $region14: #{downconv_forward.4} parent=11 // pred_check_branch
        %262 = sbr.rel (%p260) target = $region16
      $region15: #{downconv_forward.4} parent=11 // pred_region
        _
      $region16: #{downconv_forward.4} parent=11 // pred_fallthru
        _
      // Predicated region
      $region17: #{downconv_forward.4} parent=11 // pred_check
        %p263 = pneg %p168
      $region18: #{downconv_forward.4} parent=11 // pred_check_branch
        %265 = sbr.rel (%p263) target = $region20
      $region19: #{downconv_forward.4} parent=11 // pred_region
        _
      $region20: #{downconv_forward.4} parent=11 // pred_fallthru
        _
      // Predicated region
      $region21: #{downconv_forward.4} parent=11 // pred_check
        %p266 = pneg %p189
      $region22: #{downconv_forward.4} parent=11 // pred_check_branch
        %268 = sbr.rel (%p266) target = $region24
      $region23: #{downconv_forward.4} parent=11 // pred_region
        _
      $region24: #{downconv_forward.4} parent=11 // pred_fallthru
        _
    $region12: #{downconv_forward.4} parent=5 // pred_fallthru
      _
    %p269 = scmp.lt.s32.totalorder %s14, 2
    // Predicated region
    $region25: #{downconv_forward.4} parent=5 // pred_check
      %p270 = pneg %p269
    $region26: #{downconv_forward.4} parent=5 // pred_check_branch
      %272 = sbr.rel (%p270) target = $region28
    $region27: #{downconv_forward.4} parent=5 // pred_region
      // Predicated region
      $region29: #{downconv_forward.4} parent=27 // pred_check
        %p273 = pneg %p48
      $region30: #{downconv_forward.4} parent=27 // pred_check_branch
        %275 = sbr.rel (%p273) target = $region32
      $region31: #{downconv_forward.4} parent=27 // pred_region
        %s276 = smul.u32 16, %s22
        %p277 = scmp.lt.s32.totalorder %s21, 1
        %s278 = scalar_select %p277, %s21, 1
        %p279 = scmp.lt.s32.totalorder %s276, 15
        %s280 = scalar_select %p279, %s276, 15
        %s281 = smul.addr %s280, 3
        %s282 = smul.addr %s278, 48
        %s283 = sadd.s32 %s281, %s282
        %s284 = smul.addr %s283, 4
        %s285 = scalar_lea.vmem %s0, %s284
        %s286 = smul.u32 16, %s22
      $region32: #{downconv_forward.4} parent=27 // pred_fallthru
        _
      // Predicated region
      $region33: #{downconv_forward.4} parent=27 // pred_check
        %p287 = pneg %p84
      $region34: #{downconv_forward.4} parent=27 // pred_check_branch
        %289 = sbr.rel (%p287) target = $region36
      $region35: #{downconv_forward.4} parent=27 // pred_region
        %s290 = smul.u32 %s22, 16
        %s291 = ssub.s32 %s290, 1
        %p292 = scmp.gt.s32.totalorder %s291, 0
        %s293 = scalar_select %p292, %s291, 0
        %p294 = scmp.lt.s32.totalorder %s21, 1
        %s295 = scalar_select %p294, %s21, 1
        %p296 = scmp.lt.s32.totalorder %s293, 15
        %s297 = scalar_select %p296, %s293, 15
        %s298 = smul.addr %s297, 3
        %s299 = smul.addr %s295, 48
        %s300 = sadd.s32 %s298, %s299
        %s301 = smul.addr %s300, 4
        %s302 = scalar_lea.vmem %s1, %s301
        %s303 = smul.u32 %s22, 16
        %s304 = ssub.s32 %s303, 1
        %p305 = scmp.gt.s32.totalorder %s304, 0
        %s306 = scalar_select %p305, %s304, 0
      $region36: #{downconv_forward.4} parent=27 // pred_fallthru
        _
      // Predicated region
      $region37: #{downconv_forward.4} parent=27 // pred_check
        %p307 = pneg %p120
      $region38: #{downconv_forward.4} parent=27 // pred_check_branch
        %309 = sbr.rel (%p307) target = $region40
      $region39: #{downconv_forward.4} parent=27 // pred_region
        %s310 = smul.u32 %s22, 16
        %s311 = sadd.s32 %s310, 16
        %p312 = scmp.lt.s32.totalorder %s311, 15
        %s313 = scalar_select %p312, %s311, 15
        %p314 = scmp.lt.s32.totalorder %s21, 1
        %s315 = scalar_select %p314, %s21, 1
        %p316 = scmp.lt.s32.totalorder %s313, 15
        %s317 = scalar_select %p316, %s313, 15
        %s318 = smul.addr %s317, 3
        %s319 = smul.addr %s315, 48
        %s320 = sadd.s32 %s318, %s319
        %s321 = smul.addr %s320, 4
        %s322 = scalar_lea.vmem %s2, %s321
        %s323 = smul.u32 %s22, 16
        %s324 = sadd.s32 %s323, 16
        %p325 = scmp.lt.s32.totalorder %s324, 15
        %s326 = scalar_select %p325, %s324, 15
      $region40: #{downconv_forward.4} parent=27 // pred_fallthru
        _
    $region28: #{downconv_forward.4} parent=5 // pred_fallthru
      _
    %p327 = scmp.le.s32.totalorder 1, %s14
    %p328 = scmp.lt.s32.totalorder %s14, 3
    %p329 = pnand %p327, %p328
    %p330 = pneg %p329
    // Predicated region
    $region41: #{downconv_forward.4} parent=5 // pred_check
      _
    $region42: #{downconv_forward.4} parent=5 // pred_check_branch
      %332 = sbr.rel (%p329) target = $region44
    $region43: #{downconv_forward.4} parent=5 // pred_region
      %s333 = ssub.s32 %s14, 1
      %s334 = smul.u32 16, %s24
      %p335 = scmp.lt.s32.totalorder %s23, 1
      %s336 = scalar_select %p335, %s23, 1
      %p337 = scmp.lt.s32.totalorder %s334, 15
      %s338 = scalar_select %p337, %s334, 15
      %s339 = smul.addr %s338, 3
      %s340 = smul.addr %s336, 48
      %s341 = sadd.s32 %s339, %s340
      %s342 = smul.addr %s341, 4
      %s343 = scalar_lea.vmem %s0, %s342
      %p344 = pneg %p54
      %p345 = pneg %p51
      %s346 = smul.u32 %s24, 16
      %s347 = ssub.s32 %s346, 1
      %p348 = scmp.gt.s32.totalorder %s347, 0
      %s349 = scalar_select %p348, %s347, 0
      %p350 = scmp.lt.s32.totalorder %s23, 1
      %s351 = scalar_select %p350, %s23, 1
      %p352 = scmp.lt.s32.totalorder %s349, 15
      %s353 = scalar_select %p352, %s349, 15
      %s354 = smul.addr %s353, 3
      %s355 = smul.addr %s351, 48
      %s356 = sadd.s32 %s354, %s355
      %s357 = smul.addr %s356, 4
      %s358 = scalar_lea.vmem %s1, %s357
      %p359 = pneg %p90
      %p360 = pneg %p87
      %s361 = smul.u32 %s24, 16
      %s362 = sadd.s32 %s361, 16
      %p363 = scmp.lt.s32.totalorder %s362, 15
      %s364 = scalar_select %p363, %s362, 15
      %p365 = scmp.lt.s32.totalorder %s23, 1
      %s366 = scalar_select %p365, %s23, 1
      %p367 = scmp.lt.s32.totalorder %s364, 15
      %s368 = scalar_select %p367, %s364, 15
      %s369 = smul.addr %s368, 3
      %s370 = smul.addr %s366, 48
      %s371 = sadd.s32 %s369, %s370
      %s372 = smul.addr %s371, 4
      %s373 = scalar_lea.vmem %s2, %s372
      %p374 = pneg %p126
      %p375 = pneg %p123
      %p376 = pneg %p147
      %p377 = pneg %p144
      %p378 = pneg %p168
      %p379 = pneg %p165
      %p380 = pneg %p189
      %p381 = pneg %p186
      %p382 = pneg %p217
      %p383 = pneg %p214
      %s384 = smul.u32 16, %s24
      %p385 = scmp.lt.s32.totalorder %s23, 1
      %s386 = scalar_select %p385, %s23, 1
      %p387 = scmp.lt.s32.totalorder %s384, 15
      %s388 = scalar_select %p387, %s384, 15
      %s389 = smul.addr %s388, 2
      %s390 = smul.addr %s386, 32
      %s391 = sadd.s32 %s389, %s390
      %s392 = smul.addr %s391, 4
      %s393 = scalar_lea.vmem %s6, %s392
      %p394 = pneg %p245
      %p395 = pneg %p242
      %p396 = scmp.lt.s32.totalorder %s23, 1
      %s397 = scalar_select %p396, %s23, 1
      %p398 = scmp.lt.s32.totalorder %s24, 0
      %s399 = scalar_select %p398, %s24, 0
      %s400 = sadd.s32 %s399, %s397
      %s401 = smul.addr %s400, 2
      %s402 = scalar_lea.vmem %s7, %s401
      %s403 = smul.u32 16, %s24
      %p404 = scmp.lt.s32.totalorder %s23, 1
      %s405 = scalar_select %p404, %s23, 1
      %p406 = scmp.lt.s32.totalorder %s403, 15
      %s407 = scalar_select %p406, %s403, 15
      %s408 = smul.addr %s407, 3
      %s409 = smul.addr %s405, 48
      %s410 = sadd.s32 %s408, %s409
      %s411 = smul.addr %s410, 4
      %s412 = scalar_lea.vmem %s0, %s411
      %s413 = smul.u32 16, %s24
      %s414 = smul.u32 %s24, 16
      %s415 = ssub.s32 %s414, 1
      %p416 = scmp.gt.s32.totalorder %s415, 0
      %s417 = scalar_select %p416, %s415, 0
      %p418 = scmp.lt.s32.totalorder %s23, 1
      %s419 = scalar_select %p418, %s23, 1
      %p420 = scmp.lt.s32.totalorder %s417, 15
      %s421 = scalar_select %p420, %s417, 15
      %s422 = smul.addr %s421, 3
      %s423 = smul.addr %s419, 48
      %s424 = sadd.s32 %s422, %s423
      %s425 = smul.addr %s424, 4
      %s426 = scalar_lea.vmem %s1, %s425
      %s427 = smul.u32 %s24, 16
      %s428 = ssub.s32 %s427, 1
      %p429 = scmp.gt.s32.totalorder %s428, 0
      %s430 = scalar_select %p429, %s428, 0
      %s431 = smul.u32 %s24, 16
      %s432 = sadd.s32 %s431, 16
      %p433 = scmp.lt.s32.totalorder %s432, 15
      %s434 = scalar_select %p433, %s432, 15
      %p435 = scmp.lt.s32.totalorder %s23, 1
      %s436 = scalar_select %p435, %s23, 1
      %p437 = scmp.lt.s32.totalorder %s434, 15
      %s438 = scalar_select %p437, %s434, 15
      %s439 = smul.addr %s438, 3
      %s440 = smul.addr %s436, 48
      %s441 = sadd.s32 %s439, %s440
      %s442 = smul.addr %s441, 4
      %s443 = scalar_lea.vmem %s2, %s442
      %s444 = smul.u32 %s24, 16
      %s445 = sadd.s32 %s444, 16
      %p446 = scmp.lt.s32.totalorder %s445, 15
      %s447 = scalar_select %p446, %s445, 15
      %s448 = smul.u32 16, %s24
      %p449 = scmp.lt.s32.totalorder %s23, 1
      %s450 = scalar_select %p449, %s23, 1
      %p451 = scmp.lt.s32.totalorder %s448, 15
      %s452 = scalar_select %p451, %s448, 15
      %s453 = smul.addr %s452, 2
      %s454 = smul.addr %s450, 32
      %s455 = sadd.s32 %s453, %s454
      %s456 = smul.addr %s455, 4
      %s457 = scalar_lea.vmem %s6, %s456
      %s458 = smul.u32 16, %s24
      %p459 = scmp.lt.s32.totalorder %s23, 1
      %s460 = scalar_select %p459, %s23, 1
      %p461 = scmp.lt.s32.totalorder %s24, 0
      %s462 = scalar_select %p461, %s24, 0
      %s463 = sadd.s32 %s462, %s460
      %s464 = smul.addr %s463, 2
      %s465 = scalar_lea.vmem %s7, %s464
      %v467 = vld [vmem:[%s412] sm:$0xf]
      %v468 = vld [vmem:[%s412 + $0x4] sm:$0xf]
      %v469 = vld [vmem:[%s412 + $0x8] sm:$0x1]
      %v470 = vld [vmem:[%s412 + $0xc] sm:$0xf]
      %v471 = vld [vmem:[%s412 + $0x10] sm:$0xf]
      %v472 = vld [vmem:[%s412 + $0x14] sm:$0x1]
      %v473 = vld [vmem:[%s412 + $0x18] sm:$0xf]
      %v474 = vld [vmem:[%s412 + $0x1c] sm:$0xf]
      %v475 = vld [vmem:[%s412 + $0x20] sm:$0x1]
      %v476 = vld [vmem:[%s412 + $0x24] sm:$0xf]
      %v477 = vld [vmem:[%s412 + $0x28] sm:$0xf]
      %v478 = vld [vmem:[%s412 + $0x2c] sm:$0x1]
      %v479 = vld [vmem:[%s412 + $0x30] sm:$0xf]
      %v480 = vld [vmem:[%s412 + $0x34] sm:$0xf]
      %v481 = vld [vmem:[%s412 + $0x38] sm:$0x1]
      %v482 = vld [vmem:[%s412 + $0x3c] sm:$0xf]
      %v483 = vld [vmem:[%s412 + $0x40] sm:$0xf]
      %v484 = vld [vmem:[%s412 + $0x44] sm:$0x1]
      %v485 = vld [vmem:[%s412 + $0x48] sm:$0xf]
      %v486 = vld [vmem:[%s412 + $0x4c] sm:$0xf]
      %v487 = vld [vmem:[%s412 + $0x50] sm:$0x1]
      %v488 = vld [vmem:[%s412 + $0x54] sm:$0xf]
      %v489 = vld [vmem:[%s412 + $0x58] sm:$0xf]
      %v490 = vld [vmem:[%s412 + $0x5c] sm:$0x1]
      %v491 = vld [vmem:[%s412 + $0x60] sm:$0xf]
      %v492 = vld [vmem:[%s412 + $0x64] sm:$0xf]
      %v493 = vld [vmem:[%s412 + $0x68] sm:$0x1]
      %v494 = vld [vmem:[%s412 + $0x6c] sm:$0xf]
      %v495 = vld [vmem:[%s412 + $0x70] sm:$0xf]
      %v496 = vld [vmem:[%s412 + $0x74] sm:$0x1]
      %v497 = vld [vmem:[%s412 + $0x78] sm:$0xf]
      %v498 = vld [vmem:[%s412 + $0x7c] sm:$0xf]
      %v499 = vld [vmem:[%s412 + $0x80] sm:$0x1]
      %v500 = vld [vmem:[%s412 + $0x84] sm:$0xf]
      %v501 = vld [vmem:[%s412 + $0x88] sm:$0xf]
      %v502 = vld [vmem:[%s412 + $0x8c] sm:$0x1]
      %v503 = vld [vmem:[%s412 + $0x90] sm:$0xf]
      %v504 = vld [vmem:[%s412 + $0x94] sm:$0xf]
      %v505 = vld [vmem:[%s412 + $0x98] sm:$0x1]
      %v506 = vld [vmem:[%s412 + $0x9c] sm:$0xf]
      %v507 = vld [vmem:[%s412 + $0xa0] sm:$0xf]
      %v508 = vld [vmem:[%s412 + $0xa4] sm:$0x1]
      %v509 = vld [vmem:[%s412 + $0xa8] sm:$0xf]
      %v510 = vld [vmem:[%s412 + $0xac] sm:$0xf]
      %v511 = vld [vmem:[%s412 + $0xb0] sm:$0x1]
      %v512 = vld [vmem:[%s412 + $0xb4] sm:$0xf]
      %v513 = vld [vmem:[%s412 + $0xb8] sm:$0xf]
      %v514 = vld [vmem:[%s412 + $0xbc] sm:$0x1]
      %v515 = vld [vmem:[%s426] sm:$0xf]
      %v516 = vld [vmem:[%s426 + $0x4] sm:$0xf]
      %v517 = vld [vmem:[%s426 + $0x8] sm:$0x1]
      %v518 = vld [vmem:[%s443] sm:$0xf]
      %v519 = vld [vmem:[%s443 + $0x4] sm:$0xf]
      %v520 = vld [vmem:[%s443 + $0x8] sm:$0x1]
      %v521 = vunpack.c.l.bf16 %v515
      %v522 = vunpack.c.l.bf16 %v516
      %v523 = vunpack.c.l.bf16 %v517
      %v524 = vunpack.c.l.bf16 %v467
      %v525 = vunpack.c.l.bf16 %v468
      %v526 = vunpack.c.l.bf16 %v469
      %v527 = vunpack.c.l.bf16 %v470
      %v528 = vunpack.c.l.bf16 %v471
      %v529 = vunpack.c.l.bf16 %v472
      %v530 = vunpack.c.l.bf16 %v473
      %v531 = vunpack.c.l.bf16 %v474
      %v532 = vunpack.c.l.bf16 %v475
      %v533 = vunpack.c.l.bf16 %v476
      %v534 = vunpack.c.l.bf16 %v477
      %v535 = vunpack.c.l.bf16 %v478
      %v536 = vunpack.c.l.bf16 %v479
      %v537 = vunpack.c.l.bf16 %v480
      %v538 = vunpack.c.l.bf16 %v481
      %v539 = vunpack.c.l.bf16 %v482
      %v540 = vunpack.c.l.bf16 %v483
      %v541 = vunpack.c.l.bf16 %v484
      %v542 = vunpack.c.l.bf16 %v485
      %v543 = vunpack.c.l.bf16 %v486
      %v544 = vunpack.c.l.bf16 %v487
      %v545 = vunpack.c.l.bf16 %v488
      %v546 = vunpack.c.l.bf16 %v489
      %v547 = vunpack.c.l.bf16 %v490
      %v548 = vunpack.c.l.bf16 %v491
      %v549 = vunpack.c.l.bf16 %v492
      %v550 = vunpack.c.l.bf16 %v493
      %v551 = vunpack.c.l.bf16 %v494
      %v552 = vunpack.c.l.bf16 %v495
      %v553 = vunpack.c.l.bf16 %v496
      %v554 = vunpack.c.l.bf16 %v497
      %v555 = vunpack.c.l.bf16 %v498
      %v556 = vunpack.c.l.bf16 %v499
      %v557 = vunpack.c.l.bf16 %v500
      %v558 = vunpack.c.l.bf16 %v501
      %v559 = vunpack.c.l.bf16 %v502
      %v560 = vunpack.c.l.bf16 %v503
      %v561 = vunpack.c.l.bf16 %v504
      %v562 = vunpack.c.l.bf16 %v505
      %v563 = vunpack.c.l.bf16 %v506
      %v564 = vunpack.c.l.bf16 %v507
      %v565 = vunpack.c.l.bf16 %v508
      %v566 = vunpack.c.l.bf16 %v509
      %v567 = vunpack.c.l.bf16 %v510
      %v568 = vunpack.c.l.bf16 %v511
      %v569 = vunpack.c.l.bf16 %v512
      %v570 = vunpack.c.l.bf16 %v513
      %v571 = vunpack.c.l.bf16 %v514
      %v572 = vunpack.c.l.bf16 %v518
      %v573 = vunpack.c.l.bf16 %v519
      %v574 = vunpack.c.l.bf16 %v520
      %v575 = vld [vmem:[%s4] sm:$0x1]
      %v577 = vlaneseq
      %v578 = vshrl.u32 %v577, 7
      %v579 = vsub.s32 0, %v578
      %v580 = vrot.slane %v575, %v579
      %v582 = vmul.f32 %v521, %v580
      %v583 = vmul.f32 %v522, %v580
      %v584 = vmul.f32 %v523, %v580
      %v585 = vmul.f32 %v524, %v580
      %v586 = vmul.f32 %v525, %v580
      %v587 = vmul.f32 %v526, %v580
      %v588 = vmul.f32 %v527, %v580
      %v589 = vmul.f32 %v528, %v580
      %v590 = vmul.f32 %v529, %v580
      %v591 = vmul.f32 %v530, %v580
      %v592 = vmul.f32 %v531, %v580
      %v593 = vmul.f32 %v532, %v580
      %v594 = vmul.f32 %v533, %v580
      %v595 = vmul.f32 %v534, %v580
      %v596 = vmul.f32 %v535, %v580
      %v597 = vmul.f32 %v536, %v580
      %v598 = vmul.f32 %v537, %v580
      %v599 = vmul.f32 %v538, %v580
      %v600 = vmul.f32 %v539, %v580
      %v601 = vmul.f32 %v540, %v580
      %v602 = vmul.f32 %v541, %v580
      %v603 = vmul.f32 %v542, %v580
      %v604 = vmul.f32 %v543, %v580
      %v605 = vmul.f32 %v544, %v580
      %v606 = vmul.f32 %v545, %v580
      %v607 = vmul.f32 %v546, %v580
      %v608 = vmul.f32 %v547, %v580
      %v609 = vmul.f32 %v548, %v580
      %v610 = vmul.f32 %v549, %v580
      %v611 = vmul.f32 %v550, %v580
      %v612 = vmul.f32 %v551, %v580
      %v613 = vmul.f32 %v552, %v580
      %v614 = vmul.f32 %v553, %v580
      %v615 = vmul.f32 %v554, %v580
      %v616 = vmul.f32 %v555, %v580
      %v617 = vmul.f32 %v556, %v580
      %v618 = vmul.f32 %v557, %v580
      %v619 = vmul.f32 %v558, %v580
      %v620 = vmul.f32 %v559, %v580
      %v621 = vmul.f32 %v560, %v580
      %v622 = vmul.f32 %v561, %v580
      %v623 = vmul.f32 %v562, %v580
      %v624 = vmul.f32 %v563, %v580
      %v625 = vmul.f32 %v564, %v580
      %v626 = vmul.f32 %v565, %v580
      %v627 = vmul.f32 %v566, %v580
      %v628 = vmul.f32 %v567, %v580
      %v629 = vmul.f32 %v568, %v580
      %v630 = vmul.f32 %v569, %v580
      %v631 = vmul.f32 %v570, %v580
      %v632 = vmul.f32 %v571, %v580
      %v633 = vmul.f32 %v572, %v580
      %v634 = vmul.f32 %v573, %v580
      %v635 = vmul.f32 %v574, %v580
      %v636 = vld [vmem:[%s5] sm:$0x1]
      %v638 = vlaneseq
      %v639 = vshrl.u32 %v638, 7
      %v640 = vsub.s32 0, %v639
      %v641 = vrot.slane %v636, %v640
      %v643 = vadd.f32 %v582, %v641
      %v644 = vadd.f32 %v583, %v641
      %v645 = vadd.f32 %v584, %v641
      %v646 = vadd.f32 %v585, %v641
      %v647 = vadd.f32 %v586, %v641
      %v648 = vadd.f32 %v587, %v641
      %v649 = vadd.f32 %v588, %v641
      %v650 = vadd.f32 %v589, %v641
      %v651 = vadd.f32 %v590, %v641
      %v652 = vadd.f32 %v591, %v641
      %v653 = vadd.f32 %v592, %v641
      %v654 = vadd.f32 %v593, %v641
      %v655 = vadd.f32 %v594, %v641
      %v656 = vadd.f32 %v595, %v641
      %v657 = vadd.f32 %v596, %v641
      %v658 = vadd.f32 %v597, %v641
      %v659 = vadd.f32 %v598, %v641
      %v660 = vadd.f32 %v599, %v641
      %v661 = vadd.f32 %v600, %v641
      %v662 = vadd.f32 %v601, %v641
      %v663 = vadd.f32 %v602, %v641
      %v664 = vadd.f32 %v603, %v641
      %v665 = vadd.f32 %v604, %v641
      %v666 = vadd.f32 %v605, %v641
      %v667 = vadd.f32 %v606, %v641
      %v668 = vadd.f32 %v607, %v641
      %v669 = vadd.f32 %v608, %v641
      %v670 = vadd.f32 %v609, %v641
      %v671 = vadd.f32 %v610, %v641
      %v672 = vadd.f32 %v611, %v641
      %v673 = vadd.f32 %v612, %v641
      %v674 = vadd.f32 %v613, %v641
      %v675 = vadd.f32 %v614, %v641
      %v676 = vadd.f32 %v615, %v641
      %v677 = vadd.f32 %v616, %v641
      %v678 = vadd.f32 %v617, %v641
      %v679 = vadd.f32 %v618, %v641
      %v680 = vadd.f32 %v619, %v641
      %v681 = vadd.f32 %v620, %v641
      %v682 = vadd.f32 %v621, %v641
      %v683 = vadd.f32 %v622, %v641
      %v684 = vadd.f32 %v623, %v641
      %v685 = vadd.f32 %v624, %v641
      %v686 = vadd.f32 %v625, %v641
      %v687 = vadd.f32 %v626, %v641
      %v688 = vadd.f32 %v627, %v641
      %v689 = vadd.f32 %v628, %v641
      %v690 = vadd.f32 %v629, %v641
      %v691 = vadd.f32 %v630, %v641
      %v692 = vadd.f32 %v631, %v641
      %v693 = vadd.f32 %v632, %v641
      %v694 = vadd.f32 %v633, %v641
      %v695 = vadd.f32 %v634, %v641
      %v696 = vadd.f32 %v635, %v641
      %v697 = vmax.f32 %v643, 0.0
      %v698 = vmax.f32 %v644, 0.0
      %v699 = vmax.f32 %v645, 0.0
      %v700 = vmax.f32 %v646, 0.0
      %v701 = vmax.f32 %v647, 0.0
      %v702 = vmax.f32 %v648, 0.0
      %v703 = vmax.f32 %v649, 0.0
      %v704 = vmax.f32 %v650, 0.0
      %v705 = vmax.f32 %v651, 0.0
      %v706 = vmax.f32 %v652, 0.0
      %v707 = vmax.f32 %v653, 0.0
      %v708 = vmax.f32 %v654, 0.0
      %v709 = vmax.f32 %v655, 0.0
      %v710 = vmax.f32 %v656, 0.0
      %v711 = vmax.f32 %v657, 0.0
      %v712 = vmax.f32 %v658, 0.0
      %v713 = vmax.f32 %v659, 0.0
      %v714 = vmax.f32 %v660, 0.0
      %v715 = vmax.f32 %v661, 0.0
      %v716 = vmax.f32 %v662, 0.0
      %v717 = vmax.f32 %v663, 0.0
      %v718 = vmax.f32 %v664, 0.0
      %v719 = vmax.f32 %v665, 0.0
      %v720 = vmax.f32 %v666, 0.0
      %v721 = vmax.f32 %v667, 0.0
      %v722 = vmax.f32 %v668, 0.0
      %v723 = vmax.f32 %v669, 0.0
      %v724 = vmax.f32 %v670, 0.0
      %v725 = vmax.f32 %v671, 0.0
      %v726 = vmax.f32 %v672, 0.0
      %v727 = vmax.f32 %v673, 0.0
      %v728 = vmax.f32 %v674, 0.0
      %v729 = vmax.f32 %v675, 0.0
      %v730 = vmax.f32 %v676, 0.0
      %v731 = vmax.f32 %v677, 0.0
      %v732 = vmax.f32 %v678, 0.0
      %v733 = vmax.f32 %v679, 0.0
      %v734 = vmax.f32 %v680, 0.0
      %v735 = vmax.f32 %v681, 0.0
      %v736 = vmax.f32 %v682, 0.0
      %v737 = vmax.f32 %v683, 0.0
      %v738 = vmax.f32 %v684, 0.0
      %v739 = vmax.f32 %v685, 0.0
      %v740 = vmax.f32 %v686, 0.0
      %v741 = vmax.f32 %v687, 0.0
      %v742 = vmax.f32 %v688, 0.0
      %v743 = vmax.f32 %v689, 0.0
      %v744 = vmax.f32 %v690, 0.0
      %v745 = vmax.f32 %v691, 0.0
      %v746 = vmax.f32 %v692, 0.0
      %v747 = vmax.f32 %v693, 0.0
      %v748 = vmax.f32 %v694, 0.0
      %v749 = vmax.f32 %v695, 0.0
      %v750 = vmax.f32 %v696, 0.0
      %s751 = smul.u32 %s24, 16
      %s752 = ssub.s32 %s751, 1
      %v753 = vstv %s752
      %v754 = vadd.s32 %v753, 1
      %v755 = vadd.s32 %v753, 2
      %v756 = vadd.s32 %v753, 3
      %v757 = vadd.s32 %v753, 4
      %v758 = vadd.s32 %v753, 5
      %v759 = vadd.s32 %v753, 6
      %v760 = vadd.s32 %v753, 7
      %v761 = vadd.s32 %v753, 8
      %v762 = vadd.s32 %v753, 9
      %v763 = vadd.s32 %v753, 10
      %v764 = vadd.s32 %v753, 11
      %v765 = vadd.s32 %v753, 12
      %v766 = vadd.s32 %v753, 13
      %v767 = vadd.s32 %v753, 14
      %v768 = vadd.s32 %v753, 15
      %v769 = vadd.s32 %v753, 16
      %v770 = vadd.s32 %v753, 17
      %v771 = vlaneseq
      %v772 = vshrl.u32 %v771, 7
      %v773 = vadd.s32 %v772, 8
      %v774 = vadd.s32 %v772, 16
      %vm775 = vcmp.ge.s32.totalorder %v753, 0
      %vm776 = vcmp.ge.s32.totalorder %v754, 0
      %vm777 = vcmp.ge.s32.totalorder %v755, 0
      %vm778 = vcmp.ge.s32.totalorder %v756, 0
      %vm779 = vcmp.ge.s32.totalorder %v757, 0
      %vm780 = vcmp.ge.s32.totalorder %v758, 0
      %vm781 = vcmp.ge.s32.totalorder %v759, 0
      %vm782 = vcmp.ge.s32.totalorder %v760, 0
      %vm783 = vcmp.ge.s32.totalorder %v761, 0
      %vm784 = vcmp.ge.s32.totalorder %v762, 0
      %vm785 = vcmp.ge.s32.totalorder %v763, 0
      %vm786 = vcmp.ge.s32.totalorder %v764, 0
      %vm787 = vcmp.ge.s32.totalorder %v765, 0
      %vm788 = vcmp.ge.s32.totalorder %v766, 0
      %vm789 = vcmp.ge.s32.totalorder %v767, 0
      %vm790 = vcmp.ge.s32.totalorder %v768, 0
      %vm791 = vcmp.ge.s32.totalorder %v769, 0
      %vm792 = vcmp.ge.s32.totalorder %v770, 0
      %vm793 = vcmp.lt.s32.totalorder %v753, 16
      %vm794 = vcmp.lt.s32.totalorder %v754, 16
      %vm795 = vcmp.lt.s32.totalorder %v755, 16
      %vm796 = vcmp.lt.s32.totalorder %v756, 16
      %vm797 = vcmp.lt.s32.totalorder %v757, 16
      %vm798 = vcmp.lt.s32.totalorder %v758, 16
      %vm799 = vcmp.lt.s32.totalorder %v759, 16
      %vm800 = vcmp.lt.s32.totalorder %v760, 16
      %vm801 = vcmp.lt.s32.totalorder %v761, 16
      %vm802 = vcmp.lt.s32.totalorder %v762, 16
      %vm803 = vcmp.lt.s32.totalorder %v763, 16
      %vm804 = vcmp.lt.s32.totalorder %v764, 16
      %vm805 = vcmp.lt.s32.totalorder %v765, 16
      %vm806 = vcmp.lt.s32.totalorder %v766, 16
      %vm807 = vcmp.lt.s32.totalorder %v767, 16
      %vm808 = vcmp.lt.s32.totalorder %v768, 16
      %vm809 = vcmp.lt.s32.totalorder %v769, 16
      %vm810 = vcmp.lt.s32.totalorder %v770, 16
      %vm811 = vmand %vm775, %vm793
      %vm812 = vmand %vm776, %vm794
      %vm813 = vmand %vm777, %vm795
      %vm814 = vmand %vm778, %vm796
      %vm815 = vmand %vm779, %vm797
      %vm816 = vmand %vm780, %vm798
      %vm817 = vmand %vm781, %vm799
      %vm818 = vmand %vm782, %vm800
      %vm819 = vmand %vm783, %vm801
      %vm820 = vmand %vm784, %vm802
      %vm821 = vmand %vm785, %vm803
      %vm822 = vmand %vm786, %vm804
      %vm823 = vmand %vm787, %vm805
      %vm824 = vmand %vm788, %vm806
      %vm825 = vmand %vm789, %vm807
      %vm826 = vmand %vm790, %vm808
      %vm827 = vmand %vm791, %vm809
      %vm828 = vmand %vm792, %vm810
      %vm829 = vcmp.ge.s32.totalorder %v772, 1
      %vm830 = vcmp.ge.s32.totalorder %v773, 1
      %vm831 = vcmp.ge.s32.totalorder %v774, 1
      %vm832 = vmand %vm811, %vm829
      %vm833 = vmand %vm811, %vm830
      %vm834 = vmand %vm811, %vm831
      %vm835 = vmand %vm812, %vm829
      %vm836 = vmand %vm812, %vm830
      %vm837 = vmand %vm812, %vm831
      %vm838 = vmand %vm813, %vm829
      %vm839 = vmand %vm813, %vm830
      %vm840 = vmand %vm813, %vm831
      %vm841 = vmand %vm814, %vm829
      %vm842 = vmand %vm814, %vm830
      %vm843 = vmand %vm814, %vm831
      %vm844 = vmand %vm815, %vm829
      %vm845 = vmand %vm815, %vm830
      %vm846 = vmand %vm815, %vm831
      %vm847 = vmand %vm816, %vm829
      %vm848 = vmand %vm816, %vm830
      %vm849 = vmand %vm816, %vm831
      %vm850 = vmand %vm817, %vm829
      %vm851 = vmand %vm817, %vm830
      %vm852 = vmand %vm817, %vm831
      %vm853 = vmand %vm818, %vm829
      %vm854 = vmand %vm818, %vm830
      %vm855 = vmand %vm818, %vm831
      %vm856 = vmand %vm819, %vm829
      %vm857 = vmand %vm819, %vm830
      %vm858 = vmand %vm819, %vm831
      %vm859 = vmand %vm820, %vm829
      %vm860 = vmand %vm820, %vm830
      %vm861 = vmand %vm820, %vm831
      %vm862 = vmand %vm821, %vm829
      %vm863 = vmand %vm821, %vm830
      %vm864 = vmand %vm821, %vm831
      %vm865 = vmand %vm822, %vm829
      %vm866 = vmand %vm822, %vm830
      %vm867 = vmand %vm822, %vm831
      %vm868 = vmand %vm823, %vm829
      %vm869 = vmand %vm823, %vm830
      %vm870 = vmand %vm823, %vm831
      %vm871 = vmand %vm824, %vm829
      %vm872 = vmand %vm824, %vm830
      %vm873 = vmand %vm824, %vm831
      %vm874 = vmand %vm825, %vm829
      %vm875 = vmand %vm825, %vm830
      %vm876 = vmand %vm825, %vm831
      %vm877 = vmand %vm826, %vm829
      %vm878 = vmand %vm826, %vm830
      %vm879 = vmand %vm826, %vm831
      %vm880 = vmand %vm827, %vm829
      %vm881 = vmand %vm827, %vm830
      %vm882 = vmand %vm827, %vm831
      %vm883 = vmand %vm828, %vm829
      %vm884 = vmand %vm828, %vm830
      %vm885 = vmand %vm828, %vm831
      %vm886 = vcmp.le.s32.totalorder %v772, 16
      %vm887 = vcmp.le.s32.totalorder %v773, 16
      %vm888 = vcmp.le.s32.totalorder %v774, 16
      %vm889 = vmand %vm832, %vm886
      %vm890 = vmand %vm833, %vm887
      %vm891 = vmand %vm834, %vm888
      %vm892 = vmand %vm835, %vm886
      %vm893 = vmand %vm836, %vm887
      %vm894 = vmand %vm837, %vm888
      %vm895 = vmand %vm838, %vm886
      %vm896 = vmand %vm839, %vm887
      %vm897 = vmand %vm840, %vm888
      %vm898 = vmand %vm841, %vm886
      %vm899 = vmand %vm842, %vm887
      %vm900 = vmand %vm843, %vm888
      %vm901 = vmand %vm844, %vm886
      %vm902 = vmand %vm845, %vm887
      %vm903 = vmand %vm846, %vm888
      %vm904 = vmand %vm847, %vm886
      %vm905 = vmand %vm848, %vm887
      %vm906 = vmand %vm849, %vm888
      %vm907 = vmand %vm850, %vm886
      %vm908 = vmand %vm851, %vm887
      %vm909 = vmand %vm852, %vm888
      %vm910 = vmand %vm853, %vm886
      %vm911 = vmand %vm854, %vm887
      %vm912 = vmand %vm855, %vm888
      %vm913 = vmand %vm856, %vm886
      %vm914 = vmand %vm857, %vm887
      %vm915 = vmand %vm858, %vm888
      %vm916 = vmand %vm859, %vm886
      %vm917 = vmand %vm860, %vm887
      %vm918 = vmand %vm861, %vm888
      %vm919 = vmand %vm862, %vm886
      %vm920 = vmand %vm863, %vm887
      %vm921 = vmand %vm864, %vm888
      %vm922 = vmand %vm865, %vm886
      %vm923 = vmand %vm866, %vm887
      %vm924 = vmand %vm867, %vm888
      %vm925 = vmand %vm868, %vm886
      %vm926 = vmand %vm869, %vm887
      %vm927 = vmand %vm870, %vm888
      %vm928 = vmand %vm871, %vm886
      %vm929 = vmand %vm872, %vm887
      %vm930 = vmand %vm873, %vm888
      %vm931 = vmand %vm874, %vm886
      %vm932 = vmand %vm875, %vm887
      %vm933 = vmand %vm876, %vm888
      %vm934 = vmand %vm877, %vm886
      %vm935 = vmand %vm878, %vm887
      %vm936 = vmand %vm879, %vm888
      %vm937 = vmand %vm880, %vm886
      %vm938 = vmand %vm881, %vm887
      %vm939 = vmand %vm882, %vm888
      %vm940 = vmand %vm883, %vm886
      %vm941 = vmand %vm884, %vm887
      %vm942 = vmand %vm885, %vm888
      %v943 = vsel %vm889, 1, 0
      %v944 = vsel %vm890, 1, 0
      %v945 = vsel %vm891, 1, 0
      %v946 = vsel %vm892, 1, 0
      %v947 = vsel %vm893, 1, 0
      %v948 = vsel %vm894, 1, 0
      %v949 = vsel %vm895, 1, 0
      %v950 = vsel %vm896, 1, 0
      %v951 = vsel %vm897, 1, 0
      %v952 = vsel %vm898, 1, 0
      %v953 = vsel %vm899, 1, 0
      %v954 = vsel %vm900, 1, 0
      %v955 = vsel %vm901, 1, 0
      %v956 = vsel %vm902, 1, 0
      %v957 = vsel %vm903, 1, 0
      %v958 = vsel %vm904, 1, 0
      %v959 = vsel %vm905, 1, 0
      %v960 = vsel %vm906, 1, 0
      %v961 = vsel %vm907, 1, 0
      %v962 = vsel %vm908, 1, 0
      %v963 = vsel %vm909, 1, 0
      %v964 = vsel %vm910, 1, 0
      %v965 = vsel %vm911, 1, 0
      %v966 = vsel %vm912, 1, 0
      %v967 = vsel %vm913, 1, 0
      %v968 = vsel %vm914, 1, 0
      %v969 = vsel %vm915, 1, 0
      %v970 = vsel %vm916, 1, 0
      %v971 = vsel %vm917, 1, 0
      %v972 = vsel %vm918, 1, 0
      %v973 = vsel %vm919, 1, 0
      %v974 = vsel %vm920, 1, 0
      %v975 = vsel %vm921, 1, 0
      %v976 = vsel %vm922, 1, 0
      %v977 = vsel %vm923, 1, 0
      %v978 = vsel %vm924, 1, 0
      %v979 = vsel %vm925, 1, 0
      %v980 = vsel %vm926, 1, 0
      %v981 = vsel %vm927, 1, 0
      %v982 = vsel %vm928, 1, 0
      %v983 = vsel %vm929, 1, 0
      %v984 = vsel %vm930, 1, 0
      %v985 = vsel %vm931, 1, 0
      %v986 = vsel %vm932, 1, 0
      %v987 = vsel %vm933, 1, 0
      %v988 = vsel %vm934, 1, 0
      %v989 = vsel %vm935, 1, 0
      %v990 = vsel %vm936, 1, 0
      %v991 = vsel %vm937, 1, 0
      %v992 = vsel %vm938, 1, 0
      %v993 = vsel %vm939, 1, 0
      %v994 = vsel %vm940, 1, 0
      %v995 = vsel %vm941, 1, 0
      %v996 = vsel %vm942, 1, 0
      %vm997 = vcmp.eq.s32.totalorder %v943, 1
      %vm998 = vcmp.eq.s32.totalorder %v944, 1
      %vm999 = vcmp.eq.s32.totalorder %v945, 1
      %vm1000 = vcmp.eq.s32.totalorder %v946, 1
      %vm1001 = vcmp.eq.s32.totalorder %v947, 1
      %vm1002 = vcmp.eq.s32.totalorder %v948, 1
      %vm1003 = vcmp.eq.s32.totalorder %v949, 1
      %vm1004 = vcmp.eq.s32.totalorder %v950, 1
      %vm1005 = vcmp.eq.s32.totalorder %v951, 1
      %vm1006 = vcmp.eq.s32.totalorder %v952, 1
      %vm1007 = vcmp.eq.s32.totalorder %v953, 1
      %vm1008 = vcmp.eq.s32.totalorder %v954, 1
      %vm1009 = vcmp.eq.s32.totalorder %v955, 1
      %vm1010 = vcmp.eq.s32.totalorder %v956, 1
      %vm1011 = vcmp.eq.s32.totalorder %v957, 1
      %vm1012 = vcmp.eq.s32.totalorder %v958, 1
      %vm1013 = vcmp.eq.s32.totalorder %v959, 1
      %vm1014 = vcmp.eq.s32.totalorder %v960, 1
      %vm1015 = vcmp.eq.s32.totalorder %v961, 1
      %vm1016 = vcmp.eq.s32.totalorder %v962, 1
      %vm1017 = vcmp.eq.s32.totalorder %v963, 1
      %vm1018 = vcmp.eq.s32.totalorder %v964, 1
      %vm1019 = vcmp.eq.s32.totalorder %v965, 1
      %vm1020 = vcmp.eq.s32.totalorder %v966, 1
      %vm1021 = vcmp.eq.s32.totalorder %v967, 1
      %vm1022 = vcmp.eq.s32.totalorder %v968, 1
      %vm1023 = vcmp.eq.s32.totalorder %v969, 1
      %vm1024 = vcmp.eq.s32.totalorder %v970, 1
      %vm1025 = vcmp.eq.s32.totalorder %v971, 1
      %vm1026 = vcmp.eq.s32.totalorder %v972, 1
      %vm1027 = vcmp.eq.s32.totalorder %v973, 1
      %vm1028 = vcmp.eq.s32.totalorder %v974, 1
      %vm1029 = vcmp.eq.s32.totalorder %v975, 1
      %vm1030 = vcmp.eq.s32.totalorder %v976, 1
      %vm1031 = vcmp.eq.s32.totalorder %v977, 1
      %vm1032 = vcmp.eq.s32.totalorder %v978, 1
      %vm1033 = vcmp.eq.s32.totalorder %v979, 1
      %vm1034 = vcmp.eq.s32.totalorder %v980, 1
      %vm1035 = vcmp.eq.s32.totalorder %v981, 1
      %vm1036 = vcmp.eq.s32.totalorder %v982, 1
      %vm1037 = vcmp.eq.s32.totalorder %v983, 1
      %vm1038 = vcmp.eq.s32.totalorder %v984, 1
      %vm1039 = vcmp.eq.s32.totalorder %v985, 1
      %vm1040 = vcmp.eq.s32.totalorder %v986, 1
      %vm1041 = vcmp.eq.s32.totalorder %v987, 1
      %vm1042 = vcmp.eq.s32.totalorder %v988, 1
      %vm1043 = vcmp.eq.s32.totalorder %v989, 1
      %vm1044 = vcmp.eq.s32.totalorder %v990, 1
      %vm1045 = vcmp.eq.s32.totalorder %v991, 1
      %vm1046 = vcmp.eq.s32.totalorder %v992, 1
      %vm1047 = vcmp.eq.s32.totalorder %v993, 1
      %vm1048 = vcmp.eq.s32.totalorder %v994, 1
      %vm1049 = vcmp.eq.s32.totalorder %v995, 1
      %vm1050 = vcmp.eq.s32.totalorder %v996, 1
      %v1051 = vsel %vm997, %v697, 0.0
      %v1052 = vsel %vm998, %v698, 0.0
      %v1053 = vsel %vm999, %v699, 0.0
      %v1054 = vsel %vm1000, %v700, 0.0
      %v1055 = vsel %vm1001, %v701, 0.0
      %v1056 = vsel %vm1002, %v702, 0.0
      %v1057 = vsel %vm1003, %v703, 0.0
      %v1058 = vsel %vm1004, %v704, 0.0
      %v1059 = vsel %vm1005, %v705, 0.0
      %v1060 = vsel %vm1006, %v706, 0.0
      %v1061 = vsel %vm1007, %v707, 0.0
      %v1062 = vsel %vm1008, %v708, 0.0
      %v1063 = vsel %vm1009, %v709, 0.0
      %v1064 = vsel %vm1010, %v710, 0.0
      %v1065 = vsel %vm1011, %v711, 0.0
      %v1066 = vsel %vm1012, %v712, 0.0
      %v1067 = vsel %vm1013, %v713, 0.0
      %v1068 = vsel %vm1014, %v714, 0.0
      %v1069 = vsel %vm1015, %v715, 0.0
      %v1070 = vsel %vm1016, %v716, 0.0
      %v1071 = vsel %vm1017, %v717, 0.0
      %v1072 = vsel %vm1018, %v718, 0.0
      %v1073 = vsel %vm1019, %v719, 0.0
      %v1074 = vsel %vm1020, %v720, 0.0
      %v1075 = vsel %vm1021, %v721, 0.0
      %v1076 = vsel %vm1022, %v722, 0.0
      %v1077 = vsel %vm1023, %v723, 0.0
      %v1078 = vsel %vm1024, %v724, 0.0
      %v1079 = vsel %vm1025, %v725, 0.0
      %v1080 = vsel %vm1026, %v726, 0.0
      %v1081 = vsel %vm1027, %v727, 0.0
      %v1082 = vsel %vm1028, %v728, 0.0
      %v1083 = vsel %vm1029, %v729, 0.0
      %v1084 = vsel %vm1030, %v730, 0.0
      %v1085 = vsel %vm1031, %v731, 0.0
      %v1086 = vsel %vm1032, %v732, 0.0
      %v1087 = vsel %vm1033, %v733, 0.0
      %v1088 = vsel %vm1034, %v734, 0.0
      %v1089 = vsel %vm1035, %v735, 0.0
      %v1090 = vsel %vm1036, %v736, 0.0
      %v1091 = vsel %vm1037, %v737, 0.0
      %v1092 = vsel %vm1038, %v738, 0.0
      %v1093 = vsel %vm1039, %v739, 0.0
      %v1094 = vsel %vm1040, %v740, 0.0
      %v1095 = vsel %vm1041, %v741, 0.0
      %v1096 = vsel %vm1042, %v742, 0.0
      %v1097 = vsel %vm1043, %v743, 0.0
      %v1098 = vsel %vm1044, %v744, 0.0
      %v1099 = vsel %vm1045, %v745, 0.0
      %v1100 = vsel %vm1046, %v746, 0.0
      %v1101 = vsel %vm1047, %v747, 0.0
      %v1102 = vsel %vm1048, %v748, 0.0
      %v1103 = vsel %vm1049, %v749, 0.0
      %v1104 = vsel %vm1050, %v750, 0.0
      %v1105 = vpack.c.bf16 %v1052, %v1051
      %v1106 = vpack.c.bf16 %v1053, %v1053
      %v1107 = vpack.c.bf16 %v1055, %v1054
      %v1108 = vpack.c.bf16 %v1056, %v1056
      %v1109 = vpack.c.bf16 %v1058, %v1057
      %v1110 = vpack.c.bf16 %v1059, %v1059
      %v1111 = vpack.c.bf16 %v1061, %v1060
      %v1112 = vpack.c.bf16 %v1062, %v1062
      %v1113 = vpack.c.bf16 %v1064, %v1063
      %v1114 = vpack.c.bf16 %v1065, %v1065
      %v1115 = vpack.c.bf16 %v1067, %v1066
      %v1116 = vpack.c.bf16 %v1068, %v1068
      %v1117 = vpack.c.bf16 %v1070, %v1069
      %v1118 = vpack.c.bf16 %v1071, %v1071
      %v1119 = vpack.c.bf16 %v1073, %v1072
      %v1120 = vpack.c.bf16 %v1074, %v1074
      %v1121 = vpack.c.bf16 %v1076, %v1075
      %v1122 = vpack.c.bf16 %v1077, %v1077
      %v1123 = vpack.c.bf16 %v1079, %v1078
      %v1124 = vpack.c.bf16 %v1080, %v1080
      %v1125 = vpack.c.bf16 %v1082, %v1081
      %v1126 = vpack.c.bf16 %v1083, %v1083
      %v1127 = vpack.c.bf16 %v1085, %v1084
      %v1128 = vpack.c.bf16 %v1086, %v1086
      %v1129 = vpack.c.bf16 %v1088, %v1087
      %v1130 = vpack.c.bf16 %v1089, %v1089
      %v1131 = vpack.c.bf16 %v1091, %v1090
      %v1132 = vpack.c.bf16 %v1092, %v1092
      %v1133 = vpack.c.bf16 %v1094, %v1093
      %v1134 = vpack.c.bf16 %v1095, %v1095
      %v1135 = vpack.c.bf16 %v1097, %v1096
      %v1136 = vpack.c.bf16 %v1098, %v1098
      %v1137 = vpack.c.bf16 %v1100, %v1099
      %v1138 = vpack.c.bf16 %v1101, %v1101
      %v1139 = vpack.c.bf16 %v1103, %v1102
      %v1140 = vpack.c.bf16 %v1104, %v1104
      %vm1141 = vsmask.f32 7424
      %v1143 = vshrl.u32 %v1105, 16
      %v1145 = vshll.u32 %v1105, 16
      %v1147 = vrot.slane %v1145, 1
      %v1148 = vor.u32 %v1143, %v1147
      %v1150 = vshll.u32 %v1106, 16
      %v1152 = vrot.slane %v1150, 1
      %v1153 = vsel %vm1141, %v1148, %v1152
      %v1155 = vshrl.u32 %v1107, 16
      %v1157 = vshll.u32 %v1107, 16
      %v1159 = vrot.slane %v1157, 1
      %v1160 = vor.u32 %v1155, %v1159
      %v1162 = vshll.u32 %v1108, 16
      %v1164 = vrot.slane %v1162, 1
      %v1165 = vsel %vm1141, %v1160, %v1164
      %v1167 = vshrl.u32 %v1109, 16
      %v1169 = vshll.u32 %v1109, 16
      %v1171 = vrot.slane %v1169, 1
      %v1172 = vor.u32 %v1167, %v1171
      %v1174 = vshll.u32 %v1110, 16
      %v1176 = vrot.slane %v1174, 1
      %v1177 = vsel %vm1141, %v1172, %v1176
      %v1179 = vshrl.u32 %v1111, 16
      %v1181 = vshll.u32 %v1111, 16
      %v1183 = vrot.slane %v1181, 1
      %v1184 = vor.u32 %v1179, %v1183
      %v1186 = vshll.u32 %v1112, 16
      %v1188 = vrot.slane %v1186, 1
      %v1189 = vsel %vm1141, %v1184, %v1188
      %v1191 = vshrl.u32 %v1113, 16
      %v1193 = vshll.u32 %v1113, 16
      %v1195 = vrot.slane %v1193, 1
      %v1196 = vor.u32 %v1191, %v1195
      %v1198 = vshll.u32 %v1114, 16
      %v1200 = vrot.slane %v1198, 1
      %v1201 = vsel %vm1141, %v1196, %v1200
      %v1203 = vshrl.u32 %v1115, 16
      %v1205 = vshll.u32 %v1115, 16
      %v1207 = vrot.slane %v1205, 1
      %v1208 = vor.u32 %v1203, %v1207
      %v1210 = vshll.u32 %v1116, 16
      %v1212 = vrot.slane %v1210, 1
      %v1213 = vsel %vm1141, %v1208, %v1212
      %v1215 = vshrl.u32 %v1117, 16
      %v1217 = vshll.u32 %v1117, 16
      %v1219 = vrot.slane %v1217, 1
      %v1220 = vor.u32 %v1215, %v1219
      %v1222 = vshll.u32 %v1118, 16
      %v1224 = vrot.slane %v1222, 1
      %v1225 = vsel %vm1141, %v1220, %v1224
      %v1227 = vshrl.u32 %v1119, 16
      %v1229 = vshll.u32 %v1119, 16
      %v1231 = vrot.slane %v1229, 1
      %v1232 = vor.u32 %v1227, %v1231
      %v1234 = vshll.u32 %v1120, 16
      %v1236 = vrot.slane %v1234, 1
      %v1237 = vsel %vm1141, %v1232, %v1236
      %v1239 = vshrl.u32 %v1121, 16
      %v1241 = vshll.u32 %v1121, 16
      %v1243 = vrot.slane %v1241, 1
      %v1244 = vor.u32 %v1239, %v1243
      %v1246 = vshll.u32 %v1122, 16
      %v1248 = vrot.slane %v1246, 1
      %v1249 = vsel %vm1141, %v1244, %v1248
      %v1251 = vshrl.u32 %v1123, 16
      %v1253 = vshll.u32 %v1123, 16
      %v1255 = vrot.slane %v1253, 1
      %v1256 = vor.u32 %v1251, %v1255
      %v1258 = vshll.u32 %v1124, 16
      %v1260 = vrot.slane %v1258, 1
      %v1261 = vsel %vm1141, %v1256, %v1260
      %v1263 = vshrl.u32 %v1125, 16
      %v1265 = vshll.u32 %v1125, 16
      %v1267 = vrot.slane %v1265, 1
      %v1268 = vor.u32 %v1263, %v1267
      %v1270 = vshll.u32 %v1126, 16
      %v1272 = vrot.slane %v1270, 1
      %v1273 = vsel %vm1141, %v1268, %v1272
      %v1275 = vshrl.u32 %v1127, 16
      %v1277 = vshll.u32 %v1127, 16
      %v1279 = vrot.slane %v1277, 1
      %v1280 = vor.u32 %v1275, %v1279
      %v1282 = vshll.u32 %v1128, 16
      %v1284 = vrot.slane %v1282, 1
      %v1285 = vsel %vm1141, %v1280, %v1284
      %v1287 = vshrl.u32 %v1129, 16
      %v1289 = vshll.u32 %v1129, 16
      %v1291 = vrot.slane %v1289, 1
      %v1292 = vor.u32 %v1287, %v1291
      %v1294 = vshll.u32 %v1130, 16
      %v1296 = vrot.slane %v1294, 1
      %v1297 = vsel %vm1141, %v1292, %v1296
      %v1299 = vshrl.u32 %v1131, 16
      %v1301 = vshll.u32 %v1131, 16
      %v1303 = vrot.slane %v1301, 1
      %v1304 = vor.u32 %v1299, %v1303
      %v1306 = vshll.u32 %v1132, 16
      %v1308 = vrot.slane %v1306, 1
      %v1309 = vsel %vm1141, %v1304, %v1308
      %v1311 = vshrl.u32 %v1133, 16
      %v1313 = vshll.u32 %v1133, 16
      %v1315 = vrot.slane %v1313, 1
      %v1316 = vor.u32 %v1311, %v1315
      %v1318 = vshll.u32 %v1134, 16
      %v1320 = vrot.slane %v1318, 1
      %v1321 = vsel %vm1141, %v1316, %v1320
      %v1323 = vshrl.u32 %v1135, 16
      %v1325 = vshll.u32 %v1135, 16
      %v1327 = vrot.slane %v1325, 1
      %v1328 = vor.u32 %v1323, %v1327
      %v1330 = vshll.u32 %v1136, 16
      %v1332 = vrot.slane %v1330, 1
      %v1333 = vsel %vm1141, %v1328, %v1332
      %vm1382 = vcmask 1046528
      %v1383 = vrot.slane %v1105, 1
      %v1384 = vrot.slane %v1106, 1
      %v1385 = vsel %vm1382, %v1383, %v1384
      %v1386 = vrot.slane %v1107, 1
      %v1387 = vrot.slane %v1108, 1
      %v1388 = vsel %vm1382, %v1386, %v1387
      %v1389 = vrot.slane %v1109, 1
      %v1390 = vrot.slane %v1110, 1
      %v1391 = vsel %vm1382, %v1389, %v1390
      %v1392 = vrot.slane %v1111, 1
      %v1393 = vrot.slane %v1112, 1
      %v1394 = vsel %vm1382, %v1392, %v1393
      %v1395 = vrot.slane %v1113, 1
      %v1396 = vrot.slane %v1114, 1
      %v1397 = vsel %vm1382, %v1395, %v1396
      %v1398 = vrot.slane %v1115, 1
      %v1399 = vrot.slane %v1116, 1
      %v1400 = vsel %vm1382, %v1398, %v1399
      %v1401 = vrot.slane %v1117, 1
      %v1402 = vrot.slane %v1118, 1
      %v1403 = vsel %vm1382, %v1401, %v1402
      %v1404 = vrot.slane %v1119, 1
      %v1405 = vrot.slane %v1120, 1
      %v1406 = vsel %vm1382, %v1404, %v1405
      %v1407 = vrot.slane %v1121, 1
      %v1408 = vrot.slane %v1122, 1
      %v1409 = vsel %vm1382, %v1407, %v1408
      %v1410 = vrot.slane %v1123, 1
      %v1411 = vrot.slane %v1124, 1
      %v1412 = vsel %vm1382, %v1410, %v1411
      %v1413 = vrot.slane %v1125, 1
      %v1414 = vrot.slane %v1126, 1
      %v1415 = vsel %vm1382, %v1413, %v1414
      %v1416 = vrot.slane %v1127, 1
      %v1417 = vrot.slane %v1128, 1
      %v1418 = vsel %vm1382, %v1416, %v1417
      %v1419 = vrot.slane %v1129, 1
      %v1420 = vrot.slane %v1130, 1
      %v1421 = vsel %vm1382, %v1419, %v1420
      %v1422 = vrot.slane %v1131, 1
      %v1423 = vrot.slane %v1132, 1
      %v1424 = vsel %vm1382, %v1422, %v1423
      %v1425 = vrot.slane %v1133, 1
      %v1426 = vrot.slane %v1134, 1
      %v1427 = vsel %vm1382, %v1425, %v1426
      %v1428 = vrot.slane %v1135, 1
      %v1429 = vrot.slane %v1136, 1
      %v1430 = vsel %vm1382, %v1428, %v1429
      %v1448 = vshrl.u32 %v1137, 16
      %v1450 = vshll.u32 %v1137, 16
      %v1452 = vrot.slane %v1450, 1
      %v1453 = vor.u32 %v1448, %v1452
      %v1455 = vshll.u32 %v1138, 16
      %v1457 = vrot.slane %v1455, 1
      %v1458 = vsel %vm1141, %v1453, %v1457
      %v1462 = vrot.slane %v1137, 1
      %v1463 = vrot.slane %v1138, 1
      %v1464 = vsel %vm1382, %v1462, %v1463
      %v1467 = vshrl.u32 %v1139, 16
      %v1469 = vshll.u32 %v1139, 16
      %v1471 = vrot.slane %v1469, 1
      %v1472 = vor.u32 %v1467, %v1471
      %v1474 = vshll.u32 %v1140, 16
      %v1476 = vrot.slane %v1474, 1
      %v1477 = vsel %vm1141, %v1472, %v1476
      %v1481 = vrot.slane %v1139, 1
      %v1482 = vrot.slane %v1140, 1
      %v1483 = vsel %vm1382, %v1481, %v1482
      %v1485 = vld [vmem:[%s3] sm:$0xf]
      %v1486 = vld [vmem:[%s3 + $0x4] sm:$0xf]
      %v1487 = vld [vmem:[%s3 + $0x8] sm:$0xf]
      %v1488 = vld [vmem:[%s3 + $0xc] sm:$0xf]
      %v1489 = vld [vmem:[%s3 + $0x10] sm:$0xf]
      %v1490 = vld [vmem:[%s3 + $0x14] sm:$0xf]
      %v1491 = vld [vmem:[%s3 + $0x18] sm:$0xf]
      %v1492 = vld [vmem:[%s3 + $0x1c] sm:$0xf]
      %v1493 = vld [vmem:[%s3 + $0x20] sm:$0xf]
      %v1494 = vld [vmem:[%s3 + $0x24] sm:$0xf]
      %v1495 = vld [vmem:[%s3 + $0x28] sm:$0xf]
      %v1496 = vld [vmem:[%s3 + $0x2c] sm:$0xf]
      %v1497 = vld [vmem:[%s3 + $0x30] sm:$0xf]
      %v1498 = vld [vmem:[%s3 + $0x34] sm:$0xf]
      %v1499 = vld [vmem:[%s3 + $0x38] sm:$0xf]
      %v1500 = vld [vmem:[%s3 + $0x3c] sm:$0xf]
      %v1501 = vld [vmem:[%s3 + $0x40] sm:$0xf]
      %v1502 = vld [vmem:[%s3 + $0x44] sm:$0xf]
      %v1503 = vld [vmem:[%s3 + $0x48] sm:$0xf]
      %v1504 = vld [vmem:[%s3 + $0x4c] sm:$0xf]
      %v1505 = vld [vmem:[%s3 + $0x50] sm:$0xf]
      %v1506 = vld [vmem:[%s3 + $0x54] sm:$0xf]
      %v1507 = vld [vmem:[%s3 + $0x58] sm:$0xf]
      %v1508 = vld [vmem:[%s3 + $0x5c] sm:$0xf]
      %v1509 = vld [vmem:[%s3 + $0x60] sm:$0xf]
      %v1510 = vld [vmem:[%s3 + $0x64] sm:$0xf]
      %v1511 = vld [vmem:[%s3 + $0x68] sm:$0xf]
      %v1512 = vld [vmem:[%s3 + $0x6c] sm:$0xf]
      %v1513 = vld [vmem:[%s3 + $0x70] sm:$0xf]
      %v1514 = vld [vmem:[%s3 + $0x74] sm:$0xf]
      %v1515 = vld [vmem:[%s3 + $0x78] sm:$0xf]
      %v1516 = vld [vmem:[%s3 + $0x7c] sm:$0xf]
      %v1517 = vld [vmem:[%s3 + $0x80] sm:$0xf]
      %v1518 = vld [vmem:[%s3 + $0x84] sm:$0xf]
      %v1519 = vld [vmem:[%s3 + $0x88] sm:$0xf]
      %v1520 = vld [vmem:[%s3 + $0x8c] sm:$0xf]
      %v1521 = vld [vmem:[%s3 + $0x90] sm:$0xf]
      %v1522 = vld [vmem:[%s3 + $0x94] sm:$0xf]
      %v1523 = vld [vmem:[%s3 + $0x98] sm:$0xf]
      %v1524 = vld [vmem:[%s3 + $0x9c] sm:$0xf]
      %v1525 = vld [vmem:[%s3 + $0xa0] sm:$0xf]
      %v1526 = vld [vmem:[%s3 + $0xa4] sm:$0xf]
      %v1527 = vld [vmem:[%s3 + $0xa8] sm:$0xf]
      %v1528 = vld [vmem:[%s3 + $0xac] sm:$0xf]
      %v1529 = vld [vmem:[%s3 + $0xb0] sm:$0xf]
      %v1530 = vld [vmem:[%s3 + $0xb4] sm:$0xf]
      %v1531 = vld [vmem:[%s3 + $0xb8] sm:$0xf]
      %v1532 = vld [vmem:[%s3 + $0xbc] sm:$0xf]
      %v1533 = vld [vmem:[%s3 + $0xc0] sm:$0xf]
      %v1534 = vld [vmem:[%s3 + $0xc4] sm:$0xf]
      %v1535 = vld [vmem:[%s3 + $0xc8] sm:$0xf]
      %v1536 = vld [vmem:[%s3 + $0xcc] sm:$0xf]
      %v1537 = vld [vmem:[%s3 + $0xd0] sm:$0xf]
      %v1538 = vld [vmem:[%s3 + $0xd4] sm:$0xf]
      %v1539 = vld [vmem:[%s3 + $0xd8] sm:$0xf]
      %v1540 = vld [vmem:[%s3 + $0xdc] sm:$0xf]
      %v1541 = vld [vmem:[%s3 + $0xe0] sm:$0xf]
      %v1542 = vld [vmem:[%s3 + $0xe4] sm:$0xf]
      %v1543 = vld [vmem:[%s3 + $0xe8] sm:$0xf]
      %v1544 = vld [vmem:[%s3 + $0xec] sm:$0xf]
      %v1545 = vld [vmem:[%s3 + $0xf0] sm:$0xf]
      %v1546 = vld [vmem:[%s3 + $0xf4] sm:$0xf]
      %v1547 = vld [vmem:[%s3 + $0xf8] sm:$0xf]
      %v1548 = vld [vmem:[%s3 + $0xfc] sm:$0xf]
      %v1549 = vld [vmem:[%s3 + $0x100] sm:$0xf]
      %v1550 = vld [vmem:[%s3 + $0x104] sm:$0xf]
      %v1551 = vld [vmem:[%s3 + $0x108] sm:$0xf]
      %v1552 = vld [vmem:[%s3 + $0x10c] sm:$0xf]
      %v1553 = vld [vmem:[%s3 + $0x110] sm:$0xf]
      %v1554 = vld [vmem:[%s3 + $0x114] sm:$0xf]
      %v1555 = vld [vmem:[%s3 + $0x118] sm:$0xf]
      %v1556 = vld [vmem:[%s3 + $0x11c] sm:$0xf]
      %v1557 = vld [vmem:[%s3 + $0x120] sm:$0xf]
      %v1558 = vld [vmem:[%s3 + $0x124] sm:$0xf]
      %v1559 = vld [vmem:[%s3 + $0x128] sm:$0xf]
      %v1560 = vld [vmem:[%s3 + $0x12c] sm:$0xf]
      %v1561 = vld [vmem:[%s3 + $0x130] sm:$0xf]
      %v1562 = vld [vmem:[%s3 + $0x134] sm:$0xf]
      %v1563 = vld [vmem:[%s3 + $0x138] sm:$0xf]
      %v1564 = vld [vmem:[%s3 + $0x13c] sm:$0xf]
      %v1565 = vld [vmem:[%s3 + $0x140] sm:$0xf]
      %v1566 = vld [vmem:[%s3 + $0x144] sm:$0xf]
      %v1567 = vld [vmem:[%s3 + $0x148] sm:$0xf]
      %v1568 = vld [vmem:[%s3 + $0x14c] sm:$0xf]
      %v1569 = vld [vmem:[%s3 + $0x150] sm:$0xf]
      %v1570 = vld [vmem:[%s3 + $0x154] sm:$0xf]
      %v1571 = vld [vmem:[%s3 + $0x158] sm:$0xf]
      %v1572 = vld [vmem:[%s3 + $0x15c] sm:$0xf]
      %v1573 = vld [vmem:[%s3 + $0x160] sm:$0xf]
      %v1574 = vld [vmem:[%s3 + $0x164] sm:$0xf]
      %v1575 = vld [vmem:[%s3 + $0x168] sm:$0xf]
      %v1576 = vld [vmem:[%s3 + $0x16c] sm:$0xf]
      %v1577 = vld [vmem:[%s3 + $0x170] sm:$0xf]
      %v1578 = vld [vmem:[%s3 + $0x174] sm:$0xf]
      %v1579 = vld [vmem:[%s3 + $0x178] sm:$0xf]
      %v1580 = vld [vmem:[%s3 + $0x17c] sm:$0xf]
      %v1581 = vld [vmem:[%s3 + $0x180] sm:$0xf]
      %v1582 = vld [vmem:[%s3 + $0x184] sm:$0xf]
      %v1583 = vld [vmem:[%s3 + $0x188] sm:$0xf]
      %v1584 = vld [vmem:[%s3 + $0x18c] sm:$0xf]
      %v1585 = vld [vmem:[%s3 + $0x190] sm:$0xf]
      %v1586 = vld [vmem:[%s3 + $0x194] sm:$0xf]
      %v1587 = vld [vmem:[%s3 + $0x198] sm:$0xf]
      %v1588 = vld [vmem:[%s3 + $0x19c] sm:$0xf]
      %v1589 = vld [vmem:[%s3 + $0x1a0] sm:$0xf]
      %v1590 = vld [vmem:[%s3 + $0x1a4] sm:$0xf]
      %v1591 = vld [vmem:[%s3 + $0x1a8] sm:$0xf]
      %v1592 = vld [vmem:[%s3 + $0x1ac] sm:$0xf]
      %v1593 = vld [vmem:[%s3 + $0x1b0] sm:$0xf]
      %v1594 = vld [vmem:[%s3 + $0x1b4] sm:$0xf]
      %v1595 = vld [vmem:[%s3 + $0x1b8] sm:$0xf]
      %v1596 = vld [vmem:[%s3 + $0x1bc] sm:$0xf]
      %v1597 = vld [vmem:[%s3 + $0x1c0] sm:$0xf]
      %v1598 = vld [vmem:[%s3 + $0x1c4] sm:$0xf]
      %v1599 = vld [vmem:[%s3 + $0x1c8] sm:$0xf]
      %v1600 = vld [vmem:[%s3 + $0x1cc] sm:$0xf]
      %v1601 = vld [vmem:[%s3 + $0x1d0] sm:$0xf]
      %v1602 = vld [vmem:[%s3 + $0x1d4] sm:$0xf]
      %v1603 = vld [vmem:[%s3 + $0x1d8] sm:$0xf]
      %v1604 = vld [vmem:[%s3 + $0x1dc] sm:$0xf]
      %v1605 = vld [vmem:[%s3 + $0x1e0] sm:$0xf]
      %v1606 = vld [vmem:[%s3 + $0x1e4] sm:$0xf]
      %v1607 = vld [vmem:[%s3 + $0x1e8] sm:$0xf]
      %v1608 = vld [vmem:[%s3 + $0x1ec] sm:$0xf]
      %v1609 = vld [vmem:[%s3 + $0x1f0] sm:$0xf]
      %v1610 = vld [vmem:[%s3 + $0x1f4] sm:$0xf]
      %v1611 = vld [vmem:[%s3 + $0x1f8] sm:$0xf]
      %v1612 = vld [vmem:[%s3 + $0x1fc] sm:$0xf]
      %v1613 = vld [vmem:[%s3 + $0x200] sm:$0xf]
      %v1614 = vld [vmem:[%s3 + $0x204] sm:$0xf]
      %v1615 = vld [vmem:[%s3 + $0x208] sm:$0xf]
      %v1616 = vld [vmem:[%s3 + $0x20c] sm:$0xf]
      %v1617 = vld [vmem:[%s3 + $0x210] sm:$0xf]
      %v1618 = vld [vmem:[%s3 + $0x214] sm:$0xf]
      %v1619 = vld [vmem:[%s3 + $0x218] sm:$0xf]
      %v1620 = vld [vmem:[%s3 + $0x21c] sm:$0xf]
      %v1621 = vld [vmem:[%s3 + $0x220] sm:$0xf]
      %v1622 = vld [vmem:[%s3 + $0x224] sm:$0xf]
      %v1623 = vld [vmem:[%s3 + $0x228] sm:$0xf]
      %v1624 = vld [vmem:[%s3 + $0x22c] sm:$0xf]
      %v1625 = vld [vmem:[%s3 + $0x230] sm:$0xf]
      %v1626 = vld [vmem:[%s3 + $0x234] sm:$0xf]
      %v1627 = vld [vmem:[%s3 + $0x238] sm:$0xf]
      %v1628 = vld [vmem:[%s3 + $0x23c] sm:$0xf]
      %v1773 = vunpack.c.l.b16 %v1485
      %v1774 = vunpack.c.l.b16 %v1486
      %v1775 = vunpack.c.l.b16 %v1487
      %v1776 = vunpack.c.l.b16 %v1488
      %v1777 = vunpack.c.l.b16 %v1489
      %v1778 = vunpack.c.l.b16 %v1490
      %v1779 = vunpack.c.l.b16 %v1491
      %v1780 = vunpack.c.l.b16 %v1492
      %v1781 = vunpack.c.l.b16 %v1493
      %v1782 = vunpack.c.l.b16 %v1494
      %v1783 = vunpack.c.l.b16 %v1495
      %v1784 = vunpack.c.l.b16 %v1496
      %v1785 = vunpack.c.l.b16 %v1497
      %v1786 = vunpack.c.l.b16 %v1498
      %v1787 = vunpack.c.l.b16 %v1499
      %v1788 = vunpack.c.l.b16 %v1500
      %v1789 = vunpack.c.l.b16 %v1501
      %v1790 = vunpack.c.l.b16 %v1502
      %v1791 = vunpack.c.l.b16 %v1503
      %v1792 = vunpack.c.l.b16 %v1504
      %v1793 = vunpack.c.l.b16 %v1505
      %v1794 = vunpack.c.l.b16 %v1506
      %v1795 = vunpack.c.l.b16 %v1507
      %v1796 = vunpack.c.l.b16 %v1508
      %v1797 = vunpack.c.l.b16 %v1509
      %v1798 = vunpack.c.l.b16 %v1510
      %v1799 = vunpack.c.l.b16 %v1511
      %v1800 = vunpack.c.l.b16 %v1512
      %v1801 = vunpack.c.l.b16 %v1513
      %v1802 = vunpack.c.l.b16 %v1514
      %v1803 = vunpack.c.l.b16 %v1515
      %v1804 = vunpack.c.l.b16 %v1516
      %v1805 = vunpack.c.l.b16 %v1517
      %v1806 = vunpack.c.l.b16 %v1518
      %v1807 = vunpack.c.l.b16 %v1519
      %v1808 = vunpack.c.l.b16 %v1520
      %v1809 = vunpack.c.l.b16 %v1521
      %v1810 = vunpack.c.l.b16 %v1522
      %v1811 = vunpack.c.l.b16 %v1523
      %v1812 = vunpack.c.l.b16 %v1524
      %v1813 = vunpack.c.l.b16 %v1525
      %v1814 = vunpack.c.l.b16 %v1526
      %v1815 = vunpack.c.l.b16 %v1527
      %v1816 = vunpack.c.l.b16 %v1528
      %v1817 = vunpack.c.l.b16 %v1529
      %v1818 = vunpack.c.l.b16 %v1530
      %v1819 = vunpack.c.l.b16 %v1531
      %v1820 = vunpack.c.l.b16 %v1532
      %v1821 = vunpack.c.l.b16 %v1533
      %v1822 = vunpack.c.l.b16 %v1534
      %v1823 = vunpack.c.l.b16 %v1535
      %v1824 = vunpack.c.l.b16 %v1536
      %v1825 = vunpack.c.l.b16 %v1537
      %v1826 = vunpack.c.l.b16 %v1538
      %v1827 = vunpack.c.l.b16 %v1539
      %v1828 = vunpack.c.l.b16 %v1540
      %v1829 = vunpack.c.l.b16 %v1541
      %v1830 = vunpack.c.l.b16 %v1542
      %v1831 = vunpack.c.l.b16 %v1543
      %v1832 = vunpack.c.l.b16 %v1544
      %v1833 = vunpack.c.l.b16 %v1545
      %v1834 = vunpack.c.l.b16 %v1546
      %v1835 = vunpack.c.l.b16 %v1547
      %v1836 = vunpack.c.l.b16 %v1548
      %v1837 = vunpack.c.l.b16 %v1549
      %v1838 = vunpack.c.l.b16 %v1550
      %v1839 = vunpack.c.l.b16 %v1551
      %v1840 = vunpack.c.l.b16 %v1552
      %v1841 = vunpack.c.l.b16 %v1553
      %v1842 = vunpack.c.l.b16 %v1554
      %v1843 = vunpack.c.l.b16 %v1555
      %v1844 = vunpack.c.l.b16 %v1556
      %v1845 = vunpack.c.l.b16 %v1557
      %v1846 = vunpack.c.l.b16 %v1558
      %v1847 = vunpack.c.l.b16 %v1559
      %v1848 = vunpack.c.l.b16 %v1560
      %v1849 = vunpack.c.l.b16 %v1561
      %v1850 = vunpack.c.l.b16 %v1562
      %v1851 = vunpack.c.l.b16 %v1563
      %v1852 = vunpack.c.l.b16 %v1564
      %v1853 = vunpack.c.l.b16 %v1565
      %v1854 = vunpack.c.l.b16 %v1566
      %v1855 = vunpack.c.l.b16 %v1567
      %v1856 = vunpack.c.l.b16 %v1568
      %v1857 = vunpack.c.l.b16 %v1569
      %v1858 = vunpack.c.l.b16 %v1570
      %v1859 = vunpack.c.l.b16 %v1571
      %v1860 = vunpack.c.l.b16 %v1572
      %v1861 = vunpack.c.l.b16 %v1573
      %v1862 = vunpack.c.l.b16 %v1574
      %v1863 = vunpack.c.l.b16 %v1575
      %v1864 = vunpack.c.l.b16 %v1576
      %v1865 = vunpack.c.l.b16 %v1577
      %v1866 = vunpack.c.l.b16 %v1578
      %v1867 = vunpack.c.l.b16 %v1579
      %v1868 = vunpack.c.l.b16 %v1580
      %v1869 = vunpack.c.l.b16 %v1581
      %v1870 = vunpack.c.l.b16 %v1582
      %v1871 = vunpack.c.l.b16 %v1583
      %v1872 = vunpack.c.l.b16 %v1584
      %v1873 = vunpack.c.l.b16 %v1585
      %v1874 = vunpack.c.l.b16 %v1586
      %v1875 = vunpack.c.l.b16 %v1587
      %v1876 = vunpack.c.l.b16 %v1588
      %v1877 = vunpack.c.l.b16 %v1589
      %v1878 = vunpack.c.l.b16 %v1590
      %v1879 = vunpack.c.l.b16 %v1591
      %v1880 = vunpack.c.l.b16 %v1592
      %v1881 = vunpack.c.l.b16 %v1593
      %v1882 = vunpack.c.l.b16 %v1594
      %v1883 = vunpack.c.l.b16 %v1595
      %v1884 = vunpack.c.l.b16 %v1596
      %v1885 = vunpack.c.l.b16 %v1597
      %v1886 = vunpack.c.l.b16 %v1598
      %v1887 = vunpack.c.l.b16 %v1599
      %v1888 = vunpack.c.l.b16 %v1600
      %v1889 = vunpack.c.l.b16 %v1601
      %v1890 = vunpack.c.l.b16 %v1602
      %v1891 = vunpack.c.l.b16 %v1603
      %v1892 = vunpack.c.l.b16 %v1604
      %v1893 = vunpack.c.l.b16 %v1605
      %v1894 = vunpack.c.l.b16 %v1606
      %v1895 = vunpack.c.l.b16 %v1607
      %v1896 = vunpack.c.l.b16 %v1608
      %v1897 = vunpack.c.l.b16 %v1609
      %v1898 = vunpack.c.l.b16 %v1610
      %v1899 = vunpack.c.l.b16 %v1611
      %v1900 = vunpack.c.l.b16 %v1612
      %v1901 = vunpack.c.l.b16 %v1613
      %v1902 = vunpack.c.l.b16 %v1614
      %v1903 = vunpack.c.l.b16 %v1615
      %v1904 = vunpack.c.l.b16 %v1616
      %v1905 = vunpack.c.l.b16 %v1617
      %v1906 = vunpack.c.l.b16 %v1618
      %v1907 = vunpack.c.l.b16 %v1619
      %v1908 = vunpack.c.l.b16 %v1620
      %v1909 = vunpack.c.l.b16 %v1621
      %v1910 = vunpack.c.l.b16 %v1622
      %v1911 = vunpack.c.l.b16 %v1623
      %v1912 = vunpack.c.l.b16 %v1624
      %v1913 = vunpack.c.l.b16 %v1625
      %v1914 = vunpack.c.l.b16 %v1626
      %v1915 = vunpack.c.l.b16 %v1627
      %v1916 = vunpack.c.l.b16 %v1628
      %v1917 = vpack.c.b16 %v1774, %v1773
      %v1918 = vpack.c.b16 %v1776, %v1775
      %v1919 = vpack.c.b16 %v1778, %v1777
      %v1920 = vpack.c.b16 %v1780, %v1779
      %v1921 = vpack.c.b16 %v1782, %v1781
      %v1922 = vpack.c.b16 %v1784, %v1783
      %v1923 = vpack.c.b16 %v1786, %v1785
      %v1924 = vpack.c.b16 %v1788, %v1787
      %v1925 = vpack.c.b16 %v1790, %v1789
      %v1926 = vpack.c.b16 %v1792, %v1791
      %v1927 = vpack.c.b16 %v1794, %v1793
      %v1928 = vpack.c.b16 %v1796, %v1795
      %v1929 = vpack.c.b16 %v1798, %v1797
      %v1930 = vpack.c.b16 %v1800, %v1799
      %v1931 = vpack.c.b16 %v1802, %v1801
      %v1932 = vpack.c.b16 %v1804, %v1803
      %v1933 = vpack.c.b16 %v1806, %v1805
      %v1934 = vpack.c.b16 %v1808, %v1807
      %v1935 = vpack.c.b16 %v1810, %v1809
      %v1936 = vpack.c.b16 %v1812, %v1811
      %v1937 = vpack.c.b16 %v1814, %v1813
      %v1938 = vpack.c.b16 %v1816, %v1815
      %v1939 = vpack.c.b16 %v1818, %v1817
      %v1940 = vpack.c.b16 %v1820, %v1819
      %v1941 = vpack.c.b16 %v1822, %v1821
      %v1942 = vpack.c.b16 %v1824, %v1823
      %v1943 = vpack.c.b16 %v1826, %v1825
      %v1944 = vpack.c.b16 %v1828, %v1827
      %v1945 = vpack.c.b16 %v1830, %v1829
      %v1946 = vpack.c.b16 %v1832, %v1831
      %v1947 = vpack.c.b16 %v1834, %v1833
      %v1948 = vpack.c.b16 %v1836, %v1835
      %v1949 = vpack.c.b16 %v1838, %v1837
      %v1950 = vpack.c.b16 %v1840, %v1839
      %v1951 = vpack.c.b16 %v1842, %v1841
      %v1952 = vpack.c.b16 %v1844, %v1843
      %v1953 = vpack.c.b16 %v1846, %v1845
      %v1954 = vpack.c.b16 %v1848, %v1847
      %v1955 = vpack.c.b16 %v1850, %v1849
      %v1956 = vpack.c.b16 %v1852, %v1851
      %v1957 = vpack.c.b16 %v1854, %v1853
      %v1958 = vpack.c.b16 %v1856, %v1855
      %v1959 = vpack.c.b16 %v1858, %v1857
      %v1960 = vpack.c.b16 %v1860, %v1859
      %v1961 = vpack.c.b16 %v1862, %v1861
      %v1962 = vpack.c.b16 %v1864, %v1863
      %v1963 = vpack.c.b16 %v1866, %v1865
      %v1964 = vpack.c.b16 %v1868, %v1867
      %v1965 = vpack.c.b16 %v1870, %v1869
      %v1966 = vpack.c.b16 %v1872, %v1871
      %v1967 = vpack.c.b16 %v1874, %v1873
      %v1968 = vpack.c.b16 %v1876, %v1875
      %v1969 = vpack.c.b16 %v1878, %v1877
      %v1970 = vpack.c.b16 %v1880, %v1879
      %v1971 = vpack.c.b16 %v1882, %v1881
      %v1972 = vpack.c.b16 %v1884, %v1883
      %v1973 = vpack.c.b16 %v1886, %v1885
      %v1974 = vpack.c.b16 %v1888, %v1887
      %v1975 = vpack.c.b16 %v1890, %v1889
      %v1976 = vpack.c.b16 %v1892, %v1891
      %v1977 = vpack.c.b16 %v1894, %v1893
      %v1978 = vpack.c.b16 %v1896, %v1895
      %v1979 = vpack.c.b16 %v1898, %v1897
      %v1980 = vpack.c.b16 %v1900, %v1899
      %v1981 = vpack.c.b16 %v1902, %v1901
      %v1982 = vpack.c.b16 %v1904, %v1903
      %v1983 = vpack.c.b16 %v1906, %v1905
      %v1984 = vpack.c.b16 %v1908, %v1907
      %v1985 = vpack.c.b16 %v1910, %v1909
      %v1986 = vpack.c.b16 %v1912, %v1911
      %v1987 = vpack.c.b16 %v1914, %v1913
      %v1988 = vpack.c.b16 %v1916, %v1915
      %2061 = vmatprep.subr.bf16.mxu0 0
      %2062 = vmatpush1.bf16.msra.mxu0 %v1924
      %2063 = vmatprep.subr.bf16.mxu0 0
      %2064 = vmatpush1.bf16.msra.mxu0 %v1923
      %2065 = vmatprep.subr.bf16.mxu0 0
      %2066 = vmatpush1.bf16.msra.mxu0 %v1922
      %2067 = vmatprep.subr.bf16.mxu0 0
      %2068 = vmatpush1.bf16.msra.mxu0 %v1921
      %2069 = vmatprep.subr.bf16.mxu0 0
      %2070 = vmatpush1.bf16.msra.mxu0 %v1920
      %2071 = vmatprep.subr.bf16.mxu0 0
      %2072 = vmatpush1.bf16.msra.mxu0 %v1919
      %2073 = vmatprep.subr.bf16.mxu0 0
      %2074 = vmatpush1.bf16.msra.mxu0 %v1918
      %2075 = vmatprep.subr.bf16.mxu0 0
      %2076 = vmatpush1.bf16.msra.mxu0 %v1917
      %2077 = vmatprep.subr.bf16.mxu0 0
      %2078 = vmatpush2.bf16.msra.mxu0 %v1932
      %2079 = vmatprep.subr.bf16.mxu0 0
      %2080 = vmatpush2.bf16.msra.mxu0 %v1931
      %2081 = vmatprep.subr.bf16.mxu0 0
      %2082 = vmatpush2.bf16.msra.mxu0 %v1930
      %2083 = vmatprep.subr.bf16.mxu0 0
      %2084 = vmatpush2.bf16.msra.mxu0 %v1929
      %2085 = vmatprep.subr.bf16.mxu0 0
      %2086 = vmatpush2.bf16.msra.mxu0 %v1928
      %2087 = vmatprep.subr.bf16.mxu0 0
      %2088 = vmatpush2.bf16.msra.mxu0 %v1927
      %2089 = vmatprep.subr.bf16.mxu0 0
      %2090 = vmatpush2.bf16.msra.mxu0 %v1926
      %2091 = vmatprep.subr.bf16.mxu0 0
      %2092 = vmatpush2.bf16.msra.mxu0 %v1925
      %2093 = vmatprep.mubr.bf16.mxu0 %v1153
      %2094 = vmatmul.mubr.bf16.gmra.mxu0 %v1105
      %v2095 = vpop.f32.mrf.mxu0
      %v2096 = vadd.f32 0.0, %v2095
      %v2097 = vpop.f32.mrf.mxu0
      %v2098 = vpop.f32.mrf.mxu0
      %v2099 = vadd.f32 0.0, %v2098
      %v2100 = vpop.f32.mrf.mxu0
      %2101 = vmatprep.mubr.bf16.mxu0 %v1165
      %2102 = vmatmul.mubr.bf16.gmra.mxu0 %v1107
      %v2103 = vpop.f32.mrf.mxu0
      %v2104 = vadd.f32 0.0, %v2103
      %v2105 = vpop.f32.mrf.mxu0
      %v2106 = vpop.f32.mrf.mxu0
      %v2107 = vadd.f32 0.0, %v2106
      %v2108 = vpop.f32.mrf.mxu0
      %2109 = vmatprep.mubr.bf16.mxu0 %v1177
      %2110 = vmatmul.mubr.bf16.gmra.mxu0 %v1109
      %v2111 = vpop.f32.mrf.mxu0
      %v2112 = vadd.f32 0.0, %v2111
      %v2113 = vpop.f32.mrf.mxu0
      %v2114 = vpop.f32.mrf.mxu0
      %v2115 = vadd.f32 0.0, %v2114
      %v2116 = vpop.f32.mrf.mxu0
      %2117 = vmatprep.mubr.bf16.mxu0 %v1189
      %2118 = vmatmul.mubr.bf16.gmra.mxu0 %v1111
      %v2119 = vpop.f32.mrf.mxu0
      %v2120 = vadd.f32 0.0, %v2119
      %v2121 = vpop.f32.mrf.mxu0
      %v2122 = vpop.f32.mrf.mxu0
      %v2123 = vadd.f32 0.0, %v2122
      %v2124 = vpop.f32.mrf.mxu0
      %2125 = vmatprep.mubr.bf16.mxu0 %v1201
      %2126 = vmatmul.mubr.bf16.gmra.mxu0 %v1113
      %v2127 = vpop.f32.mrf.mxu0
      %v2128 = vadd.f32 0.0, %v2127
      %v2129 = vpop.f32.mrf.mxu0
      %v2130 = vpop.f32.mrf.mxu0
      %v2131 = vadd.f32 0.0, %v2130
      %v2132 = vpop.f32.mrf.mxu0
      %2133 = vmatprep.mubr.bf16.mxu0 %v1213
      %2134 = vmatmul.mubr.bf16.gmra.mxu0 %v1115
      %v2135 = vpop.f32.mrf.mxu0
      %v2136 = vadd.f32 0.0, %v2135
      %v2137 = vpop.f32.mrf.mxu0
      %v2138 = vpop.f32.mrf.mxu0
      %v2139 = vadd.f32 0.0, %v2138
      %v2140 = vpop.f32.mrf.mxu0
      %2141 = vmatprep.mubr.bf16.mxu0 %v1225
      %2142 = vmatmul.mubr.bf16.gmra.mxu0 %v1117
      %v2143 = vpop.f32.mrf.mxu0
      %v2144 = vadd.f32 0.0, %v2143
      %v2145 = vpop.f32.mrf.mxu0
      %v2146 = vpop.f32.mrf.mxu0
      %v2147 = vadd.f32 0.0, %v2146
      %v2148 = vpop.f32.mrf.mxu0
      %2149 = vmatprep.mubr.bf16.mxu0 %v1237
      %2150 = vmatmul.mubr.bf16.gmra.mxu0 %v1119
      %v2151 = vpop.f32.mrf.mxu0
      %v2152 = vadd.f32 0.0, %v2151
      %v2153 = vpop.f32.mrf.mxu0
      %v2154 = vpop.f32.mrf.mxu0
      %v2155 = vadd.f32 0.0, %v2154
      %v2156 = vpop.f32.mrf.mxu0
      %2157 = vmatprep.mubr.bf16.mxu0 %v1249
      %2158 = vmatmul.mubr.bf16.gmra.mxu0 %v1121
      %v2159 = vpop.f32.mrf.mxu0
      %v2160 = vadd.f32 0.0, %v2159
      %v2161 = vpop.f32.mrf.mxu0
      %v2162 = vpop.f32.mrf.mxu0
      %v2163 = vadd.f32 0.0, %v2162
      %v2164 = vpop.f32.mrf.mxu0
      %2165 = vmatprep.mubr.bf16.mxu0 %v1261
      %2166 = vmatmul.mubr.bf16.gmra.mxu0 %v1123
      %v2167 = vpop.f32.mrf.mxu0
      %v2168 = vadd.f32 0.0, %v2167
      %v2169 = vpop.f32.mrf.mxu0
      %v2170 = vpop.f32.mrf.mxu0
      %v2171 = vadd.f32 0.0, %v2170
      %v2172 = vpop.f32.mrf.mxu0
      %2173 = vmatprep.mubr.bf16.mxu0 %v1273
      %2174 = vmatmul.mubr.bf16.gmra.mxu0 %v1125
      %v2175 = vpop.f32.mrf.mxu0
      %v2176 = vadd.f32 0.0, %v2175
      %v2177 = vpop.f32.mrf.mxu0
      %v2178 = vpop.f32.mrf.mxu0
      %v2179 = vadd.f32 0.0, %v2178
      %v2180 = vpop.f32.mrf.mxu0
      %2181 = vmatprep.mubr.bf16.mxu0 %v1285
      %2182 = vmatmul.mubr.bf16.gmra.mxu0 %v1127
      %v2183 = vpop.f32.mrf.mxu0
      %v2184 = vadd.f32 0.0, %v2183
      %v2185 = vpop.f32.mrf.mxu0
      %v2186 = vpop.f32.mrf.mxu0
      %v2187 = vadd.f32 0.0, %v2186
      %v2188 = vpop.f32.mrf.mxu0
      %2189 = vmatprep.mubr.bf16.mxu0 %v1297
      %2190 = vmatmul.mubr.bf16.gmra.mxu0 %v1129
      %v2191 = vpop.f32.mrf.mxu0
      %v2192 = vadd.f32 0.0, %v2191
      %v2193 = vpop.f32.mrf.mxu0
      %v2194 = vpop.f32.mrf.mxu0
      %v2195 = vadd.f32 0.0, %v2194
      %v2196 = vpop.f32.mrf.mxu0
      %2197 = vmatprep.mubr.bf16.mxu0 %v1309
      %2198 = vmatmul.mubr.bf16.gmra.mxu0 %v1131
      %v2199 = vpop.f32.mrf.mxu0
      %v2200 = vadd.f32 0.0, %v2199
      %v2201 = vpop.f32.mrf.mxu0
      %v2202 = vpop.f32.mrf.mxu0
      %v2203 = vadd.f32 0.0, %v2202
      %v2204 = vpop.f32.mrf.mxu0
      %2205 = vmatprep.mubr.bf16.mxu0 %v1321
      %2206 = vmatmul.mubr.bf16.gmra.mxu0 %v1133
      %v2207 = vpop.f32.mrf.mxu0
      %v2208 = vadd.f32 0.0, %v2207
      %v2209 = vpop.f32.mrf.mxu0
      %v2210 = vpop.f32.mrf.mxu0
      %v2211 = vadd.f32 0.0, %v2210
      %v2212 = vpop.f32.mrf.mxu0
      %2213 = vmatprep.mubr.bf16.mxu0 %v1333
      %2214 = vmatmul.mubr.bf16.gmra.mxu0 %v1135
      %v2215 = vpop.f32.mrf.mxu0
      %v2216 = vadd.f32 0.0, %v2215
      %v2217 = vpop.f32.mrf.mxu0
      %v2218 = vpop.f32.mrf.mxu0
      %v2219 = vadd.f32 0.0, %v2218
      %v2220 = vpop.f32.mrf.mxu0
      %2221 = vdwg.mxu0
      %2222 = vmatprep.subr.bf16.mxu0 0
      %2223 = vmatpush1.bf16.msra.mxu0 %v1940
      %2224 = vmatprep.subr.bf16.mxu0 0
      %2225 = vmatpush1.bf16.msra.mxu0 %v1939
      %2226 = vmatprep.subr.bf16.mxu0 0
      %2227 = vmatpush1.bf16.msra.mxu0 %v1938
      %2228 = vmatprep.subr.bf16.mxu0 0
      %2229 = vmatpush1.bf16.msra.mxu0 %v1937
      %2230 = vmatprep.subr.bf16.mxu0 0
      %2231 = vmatpush1.bf16.msra.mxu0 %v1936
      %2232 = vmatprep.subr.bf16.mxu0 0
      %2233 = vmatpush1.bf16.msra.mxu0 %v1935
      %2234 = vmatprep.subr.bf16.mxu0 0
      %2235 = vmatpush1.bf16.msra.mxu0 %v1934
      %2236 = vmatprep.subr.bf16.mxu0 0
      %2237 = vmatpush1.bf16.msra.mxu0 %v1933
      %2238 = vmatprep.subr.bf16.mxu0 0
      %2239 = vmatpush2.bf16.msra.mxu0 %v1948
      %2240 = vmatprep.subr.bf16.mxu0 0
      %2241 = vmatpush2.bf16.msra.mxu0 %v1947
      %2242 = vmatprep.subr.bf16.mxu0 0
      %2243 = vmatpush2.bf16.msra.mxu0 %v1946
      %2244 = vmatprep.subr.bf16.mxu0 0
      %2245 = vmatpush2.bf16.msra.mxu0 %v1945
      %2246 = vmatprep.subr.bf16.mxu0 0
      %2247 = vmatpush2.bf16.msra.mxu0 %v1944
      %2248 = vmatprep.subr.bf16.mxu0 0
      %2249 = vmatpush2.bf16.msra.mxu0 %v1943
      %2250 = vmatprep.subr.bf16.mxu0 0
      %2251 = vmatpush2.bf16.msra.mxu0 %v1942
      %2252 = vmatprep.subr.bf16.mxu0 0
      %2253 = vmatpush2.bf16.msra.mxu0 %v1941
      %2254 = vmatprep.mubr.bf16.mxu0 %v1107
      %2255 = vmatmul.mubr.bf16.gmra.mxu0 %v1385
      %v2256 = vpop.f32.mrf.mxu0
      %v2257 = vadd.f32 %v2096, %v2256
      %v2258 = vpop.f32.mrf.mxu0
      %v2259 = vpop.f32.mrf.mxu0
      %v2260 = vadd.f32 %v2099, %v2259
      %v2261 = vpop.f32.mrf.mxu0
      %2262 = vmatprep.mubr.bf16.mxu0 %v1109
      %2263 = vmatmul.mubr.bf16.gmra.mxu0 %v1388
      %v2264 = vpop.f32.mrf.mxu0
      %v2265 = vadd.f32 %v2104, %v2264
      %v2266 = vpop.f32.mrf.mxu0
      %v2267 = vpop.f32.mrf.mxu0
      %v2268 = vadd.f32 %v2107, %v2267
      %v2269 = vpop.f32.mrf.mxu0
      %2270 = vmatprep.mubr.bf16.mxu0 %v1111
      %2271 = vmatmul.mubr.bf16.gmra.mxu0 %v1391
      %v2272 = vpop.f32.mrf.mxu0
      %v2273 = vadd.f32 %v2112, %v2272
      %v2274 = vpop.f32.mrf.mxu0
      %v2275 = vpop.f32.mrf.mxu0
      %v2276 = vadd.f32 %v2115, %v2275
      %v2277 = vpop.f32.mrf.mxu0
      %2278 = vmatprep.mubr.bf16.mxu0 %v1113
      %2279 = vmatmul.mubr.bf16.gmra.mxu0 %v1394
      %v2280 = vpop.f32.mrf.mxu0
      %v2281 = vadd.f32 %v2120, %v2280
      %v2282 = vpop.f32.mrf.mxu0
      %v2283 = vpop.f32.mrf.mxu0
      %v2284 = vadd.f32 %v2123, %v2283
      %v2285 = vpop.f32.mrf.mxu0
      %2286 = vmatprep.mubr.bf16.mxu0 %v1115
      %2287 = vmatmul.mubr.bf16.gmra.mxu0 %v1397
      %v2288 = vpop.f32.mrf.mxu0
      %v2289 = vadd.f32 %v2128, %v2288
      %v2290 = vpop.f32.mrf.mxu0
      %v2291 = vpop.f32.mrf.mxu0
      %v2292 = vadd.f32 %v2131, %v2291
      %v2293 = vpop.f32.mrf.mxu0
      %2294 = vmatprep.mubr.bf16.mxu0 %v1117
      %2295 = vmatmul.mubr.bf16.gmra.mxu0 %v1400
      %v2296 = vpop.f32.mrf.mxu0
      %v2297 = vadd.f32 %v2136, %v2296
      %v2298 = vpop.f32.mrf.mxu0
      %v2299 = vpop.f32.mrf.mxu0
      %v2300 = vadd.f32 %v2139, %v2299
      %v2301 = vpop.f32.mrf.mxu0
      %2302 = vmatprep.mubr.bf16.mxu0 %v1119
      %2303 = vmatmul.mubr.bf16.gmra.mxu0 %v1403
      %v2304 = vpop.f32.mrf.mxu0
      %v2305 = vadd.f32 %v2144, %v2304
      %v2306 = vpop.f32.mrf.mxu0
      %v2307 = vpop.f32.mrf.mxu0
      %v2308 = vadd.f32 %v2147, %v2307
      %v2309 = vpop.f32.mrf.mxu0
      %2310 = vmatprep.mubr.bf16.mxu0 %v1121
      %2311 = vmatmul.mubr.bf16.gmra.mxu0 %v1406
      %v2312 = vpop.f32.mrf.mxu0
      %v2313 = vadd.f32 %v2152, %v2312
      %v2314 = vpop.f32.mrf.mxu0
      %v2315 = vpop.f32.mrf.mxu0
      %v2316 = vadd.f32 %v2155, %v2315
      %v2317 = vpop.f32.mrf.mxu0
      %2318 = vmatprep.mubr.bf16.mxu0 %v1123
      %2319 = vmatmul.mubr.bf16.gmra.mxu0 %v1409
      %v2320 = vpop.f32.mrf.mxu0
      %v2321 = vadd.f32 %v2160, %v2320
      %v2322 = vpop.f32.mrf.mxu0
      %v2323 = vpop.f32.mrf.mxu0
      %v2324 = vadd.f32 %v2163, %v2323
      %v2325 = vpop.f32.mrf.mxu0
      %2326 = vmatprep.mubr.bf16.mxu0 %v1125
      %2327 = vmatmul.mubr.bf16.gmra.mxu0 %v1412
      %v2328 = vpop.f32.mrf.mxu0
      %v2329 = vadd.f32 %v2168, %v2328
      %v2330 = vpop.f32.mrf.mxu0
      %v2331 = vpop.f32.mrf.mxu0
      %v2332 = vadd.f32 %v2171, %v2331
      %v2333 = vpop.f32.mrf.mxu0
      %2334 = vmatprep.mubr.bf16.mxu0 %v1127
      %2335 = vmatmul.mubr.bf16.gmra.mxu0 %v1415
      %v2336 = vpop.f32.mrf.mxu0
      %v2337 = vadd.f32 %v2176, %v2336
      %v2338 = vpop.f32.mrf.mxu0
      %v2339 = vpop.f32.mrf.mxu0
      %v2340 = vadd.f32 %v2179, %v2339
      %v2341 = vpop.f32.mrf.mxu0
      %2342 = vmatprep.mubr.bf16.mxu0 %v1129
      %2343 = vmatmul.mubr.bf16.gmra.mxu0 %v1418
      %v2344 = vpop.f32.mrf.mxu0
      %v2345 = vadd.f32 %v2184, %v2344
      %v2346 = vpop.f32.mrf.mxu0
      %v2347 = vpop.f32.mrf.mxu0
      %v2348 = vadd.f32 %v2187, %v2347
      %v2349 = vpop.f32.mrf.mxu0
      %2350 = vmatprep.mubr.bf16.mxu0 %v1131
      %2351 = vmatmul.mubr.bf16.gmra.mxu0 %v1421
      %v2352 = vpop.f32.mrf.mxu0
      %v2353 = vadd.f32 %v2192, %v2352
      %v2354 = vpop.f32.mrf.mxu0
      %v2355 = vpop.f32.mrf.mxu0
      %v2356 = vadd.f32 %v2195, %v2355
      %v2357 = vpop.f32.mrf.mxu0
      %2358 = vmatprep.mubr.bf16.mxu0 %v1133
      %2359 = vmatmul.mubr.bf16.gmra.mxu0 %v1424
      %v2360 = vpop.f32.mrf.mxu0
      %v2361 = vadd.f32 %v2200, %v2360
      %v2362 = vpop.f32.mrf.mxu0
      %v2363 = vpop.f32.mrf.mxu0
      %v2364 = vadd.f32 %v2203, %v2363
      %v2365 = vpop.f32.mrf.mxu0
      %2366 = vmatprep.mubr.bf16.mxu0 %v1135
      %2367 = vmatmul.mubr.bf16.gmra.mxu0 %v1427
      %v2368 = vpop.f32.mrf.mxu0
      %v2369 = vadd.f32 %v2208, %v2368
      %v2370 = vpop.f32.mrf.mxu0
      %v2371 = vpop.f32.mrf.mxu0
      %v2372 = vadd.f32 %v2211, %v2371
      %v2373 = vpop.f32.mrf.mxu0
      %2374 = vmatprep.mubr.bf16.mxu0 %v1137
      %2375 = vmatmul.mubr.bf16.gmra.mxu0 %v1430
      %v2376 = vpop.f32.mrf.mxu0
      %v2377 = vadd.f32 %v2216, %v2376
      %v2378 = vpop.f32.mrf.mxu0
      %v2379 = vpop.f32.mrf.mxu0
      %v2380 = vadd.f32 %v2219, %v2379
      %v2381 = vpop.f32.mrf.mxu0
      %2382 = vdwg.mxu0
      %2383 = vmatprep.subr.bf16.mxu0 0
      %2384 = vmatpush1.bf16.msra.mxu0 %v1956
      %2385 = vmatprep.subr.bf16.mxu0 0
      %2386 = vmatpush1.bf16.msra.mxu0 %v1955
      %2387 = vmatprep.subr.bf16.mxu0 0
      %2388 = vmatpush1.bf16.msra.mxu0 %v1954
      %2389 = vmatprep.subr.bf16.mxu0 0
      %2390 = vmatpush1.bf16.msra.mxu0 %v1953
      %2391 = vmatprep.subr.bf16.mxu0 0
      %2392 = vmatpush1.bf16.msra.mxu0 %v1952
      %2393 = vmatprep.subr.bf16.mxu0 0
      %2394 = vmatpush1.bf16.msra.mxu0 %v1951
      %2395 = vmatprep.subr.bf16.mxu0 0
      %2396 = vmatpush1.bf16.msra.mxu0 %v1950
      %2397 = vmatprep.subr.bf16.mxu0 0
      %2398 = vmatpush1.bf16.msra.mxu0 %v1949
      %2399 = vmatprep.subr.bf16.mxu0 0
      %2400 = vmatpush2.bf16.msra.mxu0 %v1964
      %2401 = vmatprep.subr.bf16.mxu0 0
      %2402 = vmatpush2.bf16.msra.mxu0 %v1963
      %2403 = vmatprep.subr.bf16.mxu0 0
      %2404 = vmatpush2.bf16.msra.mxu0 %v1962
      %2405 = vmatprep.subr.bf16.mxu0 0
      %2406 = vmatpush2.bf16.msra.mxu0 %v1961
      %2407 = vmatprep.subr.bf16.mxu0 0
      %2408 = vmatpush2.bf16.msra.mxu0 %v1960
      %2409 = vmatprep.subr.bf16.mxu0 0
      %2410 = vmatpush2.bf16.msra.mxu0 %v1959
      %2411 = vmatprep.subr.bf16.mxu0 0
      %2412 = vmatpush2.bf16.msra.mxu0 %v1958
      %2413 = vmatprep.subr.bf16.mxu0 0
      %2414 = vmatpush2.bf16.msra.mxu0 %v1957
      %2415 = vmatprep.mubr.bf16.mxu0 %v1388
      %2416 = vmatmul.mubr.bf16.gmra.mxu0 %v1165
      %v2417 = vpop.f32.mrf.mxu0
      %v2418 = vadd.f32 %v2257, %v2417
      %v2419 = vpop.f32.mrf.mxu0
      %v2420 = vpop.f32.mrf.mxu0
      %v2421 = vadd.f32 %v2260, %v2420
      %v2422 = vpop.f32.mrf.mxu0
      %2423 = vmatprep.mubr.bf16.mxu0 %v1391
      %2424 = vmatmul.mubr.bf16.gmra.mxu0 %v1177
      %v2425 = vpop.f32.mrf.mxu0
      %v2426 = vadd.f32 %v2265, %v2425
      %v2427 = vpop.f32.mrf.mxu0
      %v2428 = vpop.f32.mrf.mxu0
      %v2429 = vadd.f32 %v2268, %v2428
      %v2430 = vpop.f32.mrf.mxu0
      %2431 = vmatprep.mubr.bf16.mxu0 %v1394
      %2432 = vmatmul.mubr.bf16.gmra.mxu0 %v1189
      %v2433 = vpop.f32.mrf.mxu0
      %v2434 = vadd.f32 %v2273, %v2433
      %v2435 = vpop.f32.mrf.mxu0
      %v2436 = vpop.f32.mrf.mxu0
      %v2437 = vadd.f32 %v2276, %v2436
      %v2438 = vpop.f32.mrf.mxu0
      %2439 = vmatprep.mubr.bf16.mxu0 %v1397
      %2440 = vmatmul.mubr.bf16.gmra.mxu0 %v1201
      %v2441 = vpop.f32.mrf.mxu0
      %v2442 = vadd.f32 %v2281, %v2441
      %v2443 = vpop.f32.mrf.mxu0
      %v2444 = vpop.f32.mrf.mxu0
      %v2445 = vadd.f32 %v2284, %v2444
      %v2446 = vpop.f32.mrf.mxu0
      %2447 = vmatprep.mubr.bf16.mxu0 %v1400
      %2448 = vmatmul.mubr.bf16.gmra.mxu0 %v1213
      %v2449 = vpop.f32.mrf.mxu0
      %v2450 = vadd.f32 %v2289, %v2449
      %v2451 = vpop.f32.mrf.mxu0
      %v2452 = vpop.f32.mrf.mxu0
      %v2453 = vadd.f32 %v2292, %v2452
      %v2454 = vpop.f32.mrf.mxu0
      %2455 = vmatprep.mubr.bf16.mxu0 %v1403
      %2456 = vmatmul.mubr.bf16.gmra.mxu0 %v1225
      %v2457 = vpop.f32.mrf.mxu0
      %v2458 = vadd.f32 %v2297, %v2457
      %v2459 = vpop.f32.mrf.mxu0
      %v2460 = vpop.f32.mrf.mxu0
      %v2461 = vadd.f32 %v2300, %v2460
      %v2462 = vpop.f32.mrf.mxu0
      %2463 = vmatprep.mubr.bf16.mxu0 %v1406
      %2464 = vmatmul.mubr.bf16.gmra.mxu0 %v1237
      %v2465 = vpop.f32.mrf.mxu0
      %v2466 = vadd.f32 %v2305, %v2465
      %v2467 = vpop.f32.mrf.mxu0
      %v2468 = vpop.f32.mrf.mxu0
      %v2469 = vadd.f32 %v2308, %v2468
      %v2470 = vpop.f32.mrf.mxu0
      %2471 = vmatprep.mubr.bf16.mxu0 %v1409
      %2472 = vmatmul.mubr.bf16.gmra.mxu0 %v1249
      %v2473 = vpop.f32.mrf.mxu0
      %v2474 = vadd.f32 %v2313, %v2473
      %v2475 = vpop.f32.mrf.mxu0
      %v2476 = vpop.f32.mrf.mxu0
      %v2477 = vadd.f32 %v2316, %v2476
      %v2478 = vpop.f32.mrf.mxu0
      %2479 = vmatprep.mubr.bf16.mxu0 %v1412
      %2480 = vmatmul.mubr.bf16.gmra.mxu0 %v1261
      %v2481 = vpop.f32.mrf.mxu0
      %v2482 = vadd.f32 %v2321, %v2481
      %v2483 = vpop.f32.mrf.mxu0
      %v2484 = vpop.f32.mrf.mxu0
      %v2485 = vadd.f32 %v2324, %v2484
      %v2486 = vpop.f32.mrf.mxu0
      %2487 = vmatprep.mubr.bf16.mxu0 %v1415
      %2488 = vmatmul.mubr.bf16.gmra.mxu0 %v1273
      %v2489 = vpop.f32.mrf.mxu0
      %v2490 = vadd.f32 %v2329, %v2489
      %v2491 = vpop.f32.mrf.mxu0
      %v2492 = vpop.f32.mrf.mxu0
      %v2493 = vadd.f32 %v2332, %v2492
      %v2494 = vpop.f32.mrf.mxu0
      %2495 = vmatprep.mubr.bf16.mxu0 %v1418
      %2496 = vmatmul.mubr.bf16.gmra.mxu0 %v1285
      %v2497 = vpop.f32.mrf.mxu0
      %v2498 = vadd.f32 %v2337, %v2497
      %v2499 = vpop.f32.mrf.mxu0
      %v2500 = vpop.f32.mrf.mxu0
      %v2501 = vadd.f32 %v2340, %v2500
      %v2502 = vpop.f32.mrf.mxu0
      %2503 = vmatprep.mubr.bf16.mxu0 %v1421
      %2504 = vmatmul.mubr.bf16.gmra.mxu0 %v1297
      %v2505 = vpop.f32.mrf.mxu0
      %v2506 = vadd.f32 %v2345, %v2505
      %v2507 = vpop.f32.mrf.mxu0
      %v2508 = vpop.f32.mrf.mxu0
      %v2509 = vadd.f32 %v2348, %v2508
      %v2510 = vpop.f32.mrf.mxu0
      %2511 = vmatprep.mubr.bf16.mxu0 %v1424
      %2512 = vmatmul.mubr.bf16.gmra.mxu0 %v1309
      %v2513 = vpop.f32.mrf.mxu0
      %v2514 = vadd.f32 %v2353, %v2513
      %v2515 = vpop.f32.mrf.mxu0
      %v2516 = vpop.f32.mrf.mxu0
      %v2517 = vadd.f32 %v2356, %v2516
      %v2518 = vpop.f32.mrf.mxu0
      %2519 = vmatprep.mubr.bf16.mxu0 %v1427
      %2520 = vmatmul.mubr.bf16.gmra.mxu0 %v1321
      %v2521 = vpop.f32.mrf.mxu0
      %v2522 = vadd.f32 %v2361, %v2521
      %v2523 = vpop.f32.mrf.mxu0
      %v2524 = vpop.f32.mrf.mxu0
      %v2525 = vadd.f32 %v2364, %v2524
      %v2526 = vpop.f32.mrf.mxu0
      %2527 = vmatprep.mubr.bf16.mxu0 %v1430
      %2528 = vmatmul.mubr.bf16.gmra.mxu0 %v1333
      %v2529 = vpop.f32.mrf.mxu0
      %v2530 = vadd.f32 %v2369, %v2529
      %v2531 = vpop.f32.mrf.mxu0
      %v2532 = vpop.f32.mrf.mxu0
      %v2533 = vadd.f32 %v2372, %v2532
      %v2534 = vpop.f32.mrf.mxu0
      %2535 = vmatprep.mubr.bf16.mxu0 %v1464
      %2536 = vmatmul.mubr.bf16.gmra.mxu0 %v1458
      %v2537 = vpop.f32.mrf.mxu0
      %v2538 = vadd.f32 %v2377, %v2537
      %v2539 = vpop.f32.mrf.mxu0
      %v2540 = vpop.f32.mrf.mxu0
      %v2541 = vadd.f32 %v2380, %v2540
      %v2542 = vpop.f32.mrf.mxu0
      %2543 = vdwg.mxu0
      %2544 = vmatprep.subr.bf16.mxu0 0
      %2545 = vmatpush1.bf16.msra.mxu0 %v1972
      %2546 = vmatprep.subr.bf16.mxu0 0
      %2547 = vmatpush1.bf16.msra.mxu0 %v1971
      %2548 = vmatprep.subr.bf16.mxu0 0
      %2549 = vmatpush1.bf16.msra.mxu0 %v1970
      %2550 = vmatprep.subr.bf16.mxu0 0
      %2551 = vmatpush1.bf16.msra.mxu0 %v1969
      %2552 = vmatprep.subr.bf16.mxu0 0
      %2553 = vmatpush1.bf16.msra.mxu0 %v1968
      %2554 = vmatprep.subr.bf16.mxu0 0
      %2555 = vmatpush1.bf16.msra.mxu0 %v1967
      %2556 = vmatprep.subr.bf16.mxu0 0
      %2557 = vmatpush1.bf16.msra.mxu0 %v1966
      %2558 = vmatprep.subr.bf16.mxu0 0
      %2559 = vmatpush1.bf16.msra.mxu0 %v1965
      %2560 = vmatprep.subr.bf16.mxu0 0
      %2561 = vmatpush2.bf16.msra.mxu0 %v1980
      %2562 = vmatprep.subr.bf16.mxu0 0
      %2563 = vmatpush2.bf16.msra.mxu0 %v1979
      %2564 = vmatprep.subr.bf16.mxu0 0
      %2565 = vmatpush2.bf16.msra.mxu0 %v1978
      %2566 = vmatprep.subr.bf16.mxu0 0
      %2567 = vmatpush2.bf16.msra.mxu0 %v1977
      %2568 = vmatprep.subr.bf16.mxu0 0
      %2569 = vmatpush2.bf16.msra.mxu0 %v1976
      %2570 = vmatprep.subr.bf16.mxu0 0
      %2571 = vmatpush2.bf16.msra.mxu0 %v1975
      %2572 = vmatprep.subr.bf16.mxu0 0
      %2573 = vmatpush2.bf16.msra.mxu0 %v1974
      %2574 = vmatprep.subr.bf16.mxu0 0
      %2575 = vmatpush2.bf16.msra.mxu0 %v1973
      %2576 = vmatprep.mubr.bf16.mxu0 %v1177
      %2577 = vmatmul.mubr.bf16.gmra.mxu0 %v1109
      %v2578 = vpop.f32.mrf.mxu0
      %v2579 = vadd.f32 %v2418, %v2578
      %v2580 = vpop.f32.mrf.mxu0
      %v2581 = vpop.f32.mrf.mxu0
      %v2582 = vadd.f32 %v2421, %v2581
      %v2583 = vpop.f32.mrf.mxu0
      %2584 = vmatprep.mubr.bf16.mxu0 %v1189
      %2585 = vmatmul.mubr.bf16.gmra.mxu0 %v1111
      %v2586 = vpop.f32.mrf.mxu0
      %v2587 = vadd.f32 %v2426, %v2586
      %v2588 = vpop.f32.mrf.mxu0
      %v2589 = vpop.f32.mrf.mxu0
      %v2590 = vadd.f32 %v2429, %v2589
      %v2591 = vpop.f32.mrf.mxu0
      %2592 = vmatprep.mubr.bf16.mxu0 %v1201
      %2593 = vmatmul.mubr.bf16.gmra.mxu0 %v1113
      %v2594 = vpop.f32.mrf.mxu0
      %v2595 = vadd.f32 %v2434, %v2594
      %v2596 = vpop.f32.mrf.mxu0
      %v2597 = vpop.f32.mrf.mxu0
      %v2598 = vadd.f32 %v2437, %v2597
      %v2599 = vpop.f32.mrf.mxu0
      %2600 = vmatprep.mubr.bf16.mxu0 %v1213
      %2601 = vmatmul.mubr.bf16.gmra.mxu0 %v1115
      %v2602 = vpop.f32.mrf.mxu0
      %v2603 = vadd.f32 %v2442, %v2602
      %v2604 = vpop.f32.mrf.mxu0
      %v2605 = vpop.f32.mrf.mxu0
      %v2606 = vadd.f32 %v2445, %v2605
      %v2607 = vpop.f32.mrf.mxu0
      %2608 = vmatprep.mubr.bf16.mxu0 %v1225
      %2609 = vmatmul.mubr.bf16.gmra.mxu0 %v1117
      %v2610 = vpop.f32.mrf.mxu0
      %v2611 = vadd.f32 %v2450, %v2610
      %v2612 = vpop.f32.mrf.mxu0
      %v2613 = vpop.f32.mrf.mxu0
      %v2614 = vadd.f32 %v2453, %v2613
      %v2615 = vpop.f32.mrf.mxu0
      %2616 = vmatprep.mubr.bf16.mxu0 %v1237
      %2617 = vmatmul.mubr.bf16.gmra.mxu0 %v1119
      %v2618 = vpop.f32.mrf.mxu0
      %v2619 = vadd.f32 %v2458, %v2618
      %v2620 = vpop.f32.mrf.mxu0
      %v2621 = vpop.f32.mrf.mxu0
      %v2622 = vadd.f32 %v2461, %v2621
      %v2623 = vpop.f32.mrf.mxu0
      %2624 = vmatprep.mubr.bf16.mxu0 %v1249
      %2625 = vmatmul.mubr.bf16.gmra.mxu0 %v1121
      %v2626 = vpop.f32.mrf.mxu0
      %v2627 = vadd.f32 %v2466, %v2626
      %v2628 = vpop.f32.mrf.mxu0
      %v2629 = vpop.f32.mrf.mxu0
      %v2630 = vadd.f32 %v2469, %v2629
      %v2631 = vpop.f32.mrf.mxu0
      %2632 = vmatprep.mubr.bf16.mxu0 %v1261
      %2633 = vmatmul.mubr.bf16.gmra.mxu0 %v1123
      %v2634 = vpop.f32.mrf.mxu0
      %v2635 = vadd.f32 %v2474, %v2634
      %v2636 = vpop.f32.mrf.mxu0
      %v2637 = vpop.f32.mrf.mxu0
      %v2638 = vadd.f32 %v2477, %v2637
      %v2639 = vpop.f32.mrf.mxu0
      %2640 = vmatprep.mubr.bf16.mxu0 %v1273
      %2641 = vmatmul.mubr.bf16.gmra.mxu0 %v1125
      %v2642 = vpop.f32.mrf.mxu0
      %v2643 = vadd.f32 %v2482, %v2642
      %v2644 = vpop.f32.mrf.mxu0
      %v2645 = vpop.f32.mrf.mxu0
      %v2646 = vadd.f32 %v2485, %v2645
      %v2647 = vpop.f32.mrf.mxu0
      %2648 = vmatprep.mubr.bf16.mxu0 %v1285
      %2649 = vmatmul.mubr.bf16.gmra.mxu0 %v1127
      %v2650 = vpop.f32.mrf.mxu0
      %v2651 = vadd.f32 %v2490, %v2650
      %v2652 = vpop.f32.mrf.mxu0
      %v2653 = vpop.f32.mrf.mxu0
      %v2654 = vadd.f32 %v2493, %v2653
      %v2655 = vpop.f32.mrf.mxu0
      %2656 = vmatprep.mubr.bf16.mxu0 %v1297
      %2657 = vmatmul.mubr.bf16.gmra.mxu0 %v1129
      %v2658 = vpop.f32.mrf.mxu0
      %v2659 = vadd.f32 %v2498, %v2658
      %v2660 = vpop.f32.mrf.mxu0
      %v2661 = vpop.f32.mrf.mxu0
      %v2662 = vadd.f32 %v2501, %v2661
      %v2663 = vpop.f32.mrf.mxu0
      %2664 = vmatprep.mubr.bf16.mxu0 %v1309
      %2665 = vmatmul.mubr.bf16.gmra.mxu0 %v1131
      %v2666 = vpop.f32.mrf.mxu0
      %v2667 = vadd.f32 %v2506, %v2666
      %v2668 = vpop.f32.mrf.mxu0
      %v2669 = vpop.f32.mrf.mxu0
      %v2670 = vadd.f32 %v2509, %v2669
      %v2671 = vpop.f32.mrf.mxu0
      %2672 = vmatprep.mubr.bf16.mxu0 %v1321
      %2673 = vmatmul.mubr.bf16.gmra.mxu0 %v1133
      %v2674 = vpop.f32.mrf.mxu0
      %v2675 = vadd.f32 %v2514, %v2674
      %v2676 = vpop.f32.mrf.mxu0
      %v2677 = vpop.f32.mrf.mxu0
      %v2678 = vadd.f32 %v2517, %v2677
      %v2679 = vpop.f32.mrf.mxu0
      %2680 = vmatprep.mubr.bf16.mxu0 %v1333
      %2681 = vmatmul.mubr.bf16.gmra.mxu0 %v1135
      %v2682 = vpop.f32.mrf.mxu0
      %v2683 = vadd.f32 %v2522, %v2682
      %v2684 = vpop.f32.mrf.mxu0
      %v2685 = vpop.f32.mrf.mxu0
      %v2686 = vadd.f32 %v2525, %v2685
      %v2687 = vpop.f32.mrf.mxu0
      %2688 = vmatprep.mubr.bf16.mxu0 %v1458
      %2689 = vmatmul.mubr.bf16.gmra.mxu0 %v1137
      %v2690 = vpop.f32.mrf.mxu0
      %v2691 = vadd.f32 %v2530, %v2690
      %v2692 = vpop.f32.mrf.mxu0
      %v2693 = vpop.f32.mrf.mxu0
      %v2694 = vadd.f32 %v2533, %v2693
      %v2695 = vpop.f32.mrf.mxu0
      %2696 = vmatprep.mubr.bf16.mxu0 %v1477
      %2697 = vmatmul.mubr.bf16.gmra.mxu0 %v1139
      %v2698 = vpop.f32.mrf.mxu0
      %v2699 = vadd.f32 %v2538, %v2698
      %v2700 = vpop.f32.mrf.mxu0
      %v2701 = vpop.f32.mrf.mxu0
      %v2702 = vadd.f32 %v2541, %v2701
      %v2703 = vpop.f32.mrf.mxu0
      %2704 = vdwg.mxu0
      %2705 = vmatprep.subr.bf16.mxu0 0
      %2706 = vmatpush1.bf16.msra.mxu0 %v1988
      %2707 = vmatprep.subr.bf16.mxu0 0
      %2708 = vmatpush1.bf16.msra.mxu0 %v1987
      %2709 = vmatprep.subr.bf16.mxu0 0
      %2710 = vmatpush1.bf16.msra.mxu0 %v1986
      %2711 = vmatprep.subr.bf16.mxu0 0
      %2712 = vmatpush1.bf16.msra.mxu0 %v1985
      %2713 = vmatprep.subr.bf16.mxu0 0
      %2714 = vmatpush1.bf16.msra.mxu0 %v1984
      %2715 = vmatprep.subr.bf16.mxu0 0
      %2716 = vmatpush1.bf16.msra.mxu0 %v1983
      %2717 = vmatprep.subr.bf16.mxu0 0
      %2718 = vmatpush1.bf16.msra.mxu0 %v1982
      %2719 = vmatprep.subr.bf16.mxu0 0
      %2720 = vmatpush1.bf16.msra.mxu0 %v1981
      %2721 = vmatprep.subr.bf16.mxu0 0
      %2722 = vmatpush2.bf16.msra.mxu0 0
      %2723 = vmatprep.subr.bf16.mxu0 0
      %2724 = vmatpush2.bf16.msra.mxu0 0
      %2725 = vmatprep.subr.bf16.mxu0 0
      %2726 = vmatpush2.bf16.msra.mxu0 0
      %2727 = vmatprep.subr.bf16.mxu0 0
      %2728 = vmatpush2.bf16.msra.mxu0 0
      %2729 = vmatprep.subr.bf16.mxu0 0
      %2730 = vmatpush2.bf16.msra.mxu0 0
      %2731 = vmatprep.subr.bf16.mxu0 0
      %2732 = vmatpush2.bf16.msra.mxu0 0
      %2733 = vmatprep.subr.bf16.mxu0 0
      %2734 = vmatpush2.bf16.msra.mxu0 0
      %2735 = vmatprep.subr.bf16.mxu0 0
      %2736 = vmatpush2.bf16.msra.mxu0 0
      %2737 = vmatprep.mubr.bf16.mxu0 0
      %2738 = vmatmul.mubr.bf16.gmra.mxu0 %v1391
      %v2739 = vpop.f32.mrf.mxu0
      %v2740 = vadd.f32 %v2579, %v2739
      %v2741 = vpop.f32.mrf.mxu0
      %v2742 = vpop.f32.mrf.mxu0
      %v2743 = vadd.f32 %v2582, %v2742
      %v2744 = vpop.f32.mrf.mxu0
      %2745 = vmatprep.mubr.bf16.mxu0 0
      %2746 = vmatmul.mubr.bf16.gmra.mxu0 %v1394
      %v2747 = vpop.f32.mrf.mxu0
      %v2748 = vadd.f32 %v2587, %v2747
      %v2749 = vpop.f32.mrf.mxu0
      %v2750 = vpop.f32.mrf.mxu0
      %v2751 = vadd.f32 %v2590, %v2750
      %v2752 = vpop.f32.mrf.mxu0
      %2753 = vmatprep.mubr.bf16.mxu0 0
      %2754 = vmatmul.mubr.bf16.gmra.mxu0 %v1397
      %v2755 = vpop.f32.mrf.mxu0
      %v2756 = vadd.f32 %v2595, %v2755
      %v2757 = vpop.f32.mrf.mxu0
      %v2758 = vpop.f32.mrf.mxu0
      %v2759 = vadd.f32 %v2598, %v2758
      %v2760 = vpop.f32.mrf.mxu0
      %2761 = vmatprep.mubr.bf16.mxu0 0
      %2762 = vmatmul.mubr.bf16.gmra.mxu0 %v1400
      %v2763 = vpop.f32.mrf.mxu0
      %v2764 = vadd.f32 %v2603, %v2763
      %v2765 = vpop.f32.mrf.mxu0
      %v2766 = vpop.f32.mrf.mxu0
      %v2767 = vadd.f32 %v2606, %v2766
      %v2768 = vpop.f32.mrf.mxu0
      %2769 = vmatprep.mubr.bf16.mxu0 0
      %2770 = vmatmul.mubr.bf16.gmra.mxu0 %v1403
      %v2771 = vpop.f32.mrf.mxu0
      %v2772 = vadd.f32 %v2611, %v2771
      %v2773 = vpop.f32.mrf.mxu0
      %v2774 = vpop.f32.mrf.mxu0
      %v2775 = vadd.f32 %v2614, %v2774
      %v2776 = vpop.f32.mrf.mxu0
      %2777 = vmatprep.mubr.bf16.mxu0 0
      %2778 = vmatmul.mubr.bf16.gmra.mxu0 %v1406
      %v2779 = vpop.f32.mrf.mxu0
      %v2780 = vadd.f32 %v2619, %v2779
      %v2781 = vpop.f32.mrf.mxu0
      %v2782 = vpop.f32.mrf.mxu0
      %v2783 = vadd.f32 %v2622, %v2782
      %v2784 = vpop.f32.mrf.mxu0
      %2785 = vmatprep.mubr.bf16.mxu0 0
      %2786 = vmatmul.mubr.bf16.gmra.mxu0 %v1409
      %v2787 = vpop.f32.mrf.mxu0
      %v2788 = vadd.f32 %v2627, %v2787
      %v2789 = vpop.f32.mrf.mxu0
      %v2790 = vpop.f32.mrf.mxu0
      %v2791 = vadd.f32 %v2630, %v2790
      %v2792 = vpop.f32.mrf.mxu0
      %2793 = vmatprep.mubr.bf16.mxu0 0
      %2794 = vmatmul.mubr.bf16.gmra.mxu0 %v1412
      %v2795 = vpop.f32.mrf.mxu0
      %v2796 = vadd.f32 %v2635, %v2795
      %v2797 = vpop.f32.mrf.mxu0
      %v2798 = vpop.f32.mrf.mxu0
      %v2799 = vadd.f32 %v2638, %v2798
      %v2800 = vpop.f32.mrf.mxu0
      %2801 = vmatprep.mubr.bf16.mxu0 0
      %2802 = vmatmul.mubr.bf16.gmra.mxu0 %v1415
      %v2803 = vpop.f32.mrf.mxu0
      %v2804 = vadd.f32 %v2643, %v2803
      %v2805 = vpop.f32.mrf.mxu0
      %v2806 = vpop.f32.mrf.mxu0
      %v2807 = vadd.f32 %v2646, %v2806
      %v2808 = vpop.f32.mrf.mxu0
      %2809 = vmatprep.mubr.bf16.mxu0 0
      %2810 = vmatmul.mubr.bf16.gmra.mxu0 %v1418
      %v2811 = vpop.f32.mrf.mxu0
      %v2812 = vadd.f32 %v2651, %v2811
      %v2813 = vpop.f32.mrf.mxu0
      %v2814 = vpop.f32.mrf.mxu0
      %v2815 = vadd.f32 %v2654, %v2814
      %v2816 = vpop.f32.mrf.mxu0
      %2817 = vmatprep.mubr.bf16.mxu0 0
      %2818 = vmatmul.mubr.bf16.gmra.mxu0 %v1421
      %v2819 = vpop.f32.mrf.mxu0
      %v2820 = vadd.f32 %v2659, %v2819
      %v2821 = vpop.f32.mrf.mxu0
      %v2822 = vpop.f32.mrf.mxu0
      %v2823 = vadd.f32 %v2662, %v2822
      %v2824 = vpop.f32.mrf.mxu0
      %2825 = vmatprep.mubr.bf16.mxu0 0
      %2826 = vmatmul.mubr.bf16.gmra.mxu0 %v1424
      %v2827 = vpop.f32.mrf.mxu0
      %v2828 = vadd.f32 %v2667, %v2827
      %v2829 = vpop.f32.mrf.mxu0
      %v2830 = vpop.f32.mrf.mxu0
      %v2831 = vadd.f32 %v2670, %v2830
      %v2832 = vpop.f32.mrf.mxu0
      %2833 = vmatprep.mubr.bf16.mxu0 0
      %2834 = vmatmul.mubr.bf16.gmra.mxu0 %v1427
      %v2835 = vpop.f32.mrf.mxu0
      %v2836 = vadd.f32 %v2675, %v2835
      %v2837 = vpop.f32.mrf.mxu0
      %v2838 = vpop.f32.mrf.mxu0
      %v2839 = vadd.f32 %v2678, %v2838
      %v2840 = vpop.f32.mrf.mxu0
      %2841 = vmatprep.mubr.bf16.mxu0 0
      %2842 = vmatmul.mubr.bf16.gmra.mxu0 %v1430
      %v2843 = vpop.f32.mrf.mxu0
      %v2844 = vadd.f32 %v2683, %v2843
      %v2845 = vpop.f32.mrf.mxu0
      %v2846 = vpop.f32.mrf.mxu0
      %v2847 = vadd.f32 %v2686, %v2846
      %v2848 = vpop.f32.mrf.mxu0
      %2849 = vmatprep.mubr.bf16.mxu0 0
      %2850 = vmatmul.mubr.bf16.gmra.mxu0 %v1464
      %v2851 = vpop.f32.mrf.mxu0
      %v2852 = vadd.f32 %v2691, %v2851
      %v2853 = vpop.f32.mrf.mxu0
      %v2854 = vpop.f32.mrf.mxu0
      %v2855 = vadd.f32 %v2694, %v2854
      %v2856 = vpop.f32.mrf.mxu0
      %2857 = vmatprep.mubr.bf16.mxu0 0
      %2858 = vmatmul.mubr.bf16.gmra.mxu0 %v1483
      %v2859 = vpop.f32.mrf.mxu0
      %v2860 = vadd.f32 %v2699, %v2859
      %v2861 = vpop.f32.mrf.mxu0
      %v2862 = vpop.f32.mrf.mxu0
      %v2863 = vadd.f32 %v2702, %v2862
      %v2864 = vpop.f32.mrf.mxu0
      %2865 = vdwg.mxu0
      %v2866 = vpack.c.bf16 %v2743, %v2740
      %v2867 = vpack.c.bf16 %v2751, %v2748
      %v2868 = vpack.c.bf16 %v2759, %v2756
      %v2869 = vpack.c.bf16 %v2767, %v2764
      %v2870 = vpack.c.bf16 %v2775, %v2772
      %v2871 = vpack.c.bf16 %v2783, %v2780
      %v2872 = vpack.c.bf16 %v2791, %v2788
      %v2873 = vpack.c.bf16 %v2799, %v2796
      %v2874 = vpack.c.bf16 %v2807, %v2804
      %v2875 = vpack.c.bf16 %v2815, %v2812
      %v2876 = vpack.c.bf16 %v2823, %v2820
      %v2877 = vpack.c.bf16 %v2831, %v2828
      %v2878 = vpack.c.bf16 %v2839, %v2836
      %v2879 = vpack.c.bf16 %v2847, %v2844
      %v2880 = vpack.c.bf16 %v2855, %v2852
      %v2881 = vpack.c.bf16 %v2863, %v2860
      %v2898 = vunpack.c.l.b16 %v2866
      %v2899 = vunpack.c.h.b16 %v2866
      %v2900 = vunpack.c.l.b16 %v2867
      %v2901 = vunpack.c.h.b16 %v2867
      %v2902 = vunpack.c.l.b16 %v2868
      %v2903 = vunpack.c.h.b16 %v2868
      %v2904 = vunpack.c.l.b16 %v2869
      %v2905 = vunpack.c.h.b16 %v2869
      %v2906 = vunpack.c.l.b16 %v2870
      %v2907 = vunpack.c.h.b16 %v2870
      %v2908 = vunpack.c.l.b16 %v2871
      %v2909 = vunpack.c.h.b16 %v2871
      %v2910 = vunpack.c.l.b16 %v2872
      %v2911 = vunpack.c.h.b16 %v2872
      %v2912 = vunpack.c.l.b16 %v2873
      %v2913 = vunpack.c.h.b16 %v2873
      %v2914 = vunpack.c.l.b16 %v2874
      %v2915 = vunpack.c.h.b16 %v2874
      %v2916 = vunpack.c.l.b16 %v2875
      %v2917 = vunpack.c.h.b16 %v2875
      %v2918 = vunpack.c.l.b16 %v2876
      %v2919 = vunpack.c.h.b16 %v2876
      %v2920 = vunpack.c.l.b16 %v2877
      %v2921 = vunpack.c.h.b16 %v2877
      %v2922 = vunpack.c.l.b16 %v2878
      %v2923 = vunpack.c.h.b16 %v2878
      %v2924 = vunpack.c.l.b16 %v2879
      %v2925 = vunpack.c.h.b16 %v2879
      %v2926 = vunpack.c.l.b16 %v2880
      %v2927 = vunpack.c.h.b16 %v2880
      %v2928 = vunpack.c.l.b16 %v2881
      %v2929 = vunpack.c.h.b16 %v2881
      %v2930 = vpack.c.b16 %v2898, %v2898
      %v2931 = vpack.c.b16 %v2899, %v2899
      %v2932 = vpack.c.b16 %v2900, %v2900
      %v2933 = vpack.c.b16 %v2901, %v2901
      %v2934 = vpack.c.b16 %v2902, %v2902
      %v2935 = vpack.c.b16 %v2903, %v2903
      %v2936 = vpack.c.b16 %v2904, %v2904
      %v2937 = vpack.c.b16 %v2905, %v2905
      %v2938 = vpack.c.b16 %v2906, %v2906
      %v2939 = vpack.c.b16 %v2907, %v2907
      %v2940 = vpack.c.b16 %v2908, %v2908
      %v2941 = vpack.c.b16 %v2909, %v2909
      %v2942 = vpack.c.b16 %v2910, %v2910
      %v2943 = vpack.c.b16 %v2911, %v2911
      %v2944 = vpack.c.b16 %v2912, %v2912
      %v2945 = vpack.c.b16 %v2913, %v2913
      %v2946 = vpack.c.b16 %v2914, %v2914
      %v2947 = vpack.c.b16 %v2915, %v2915
      %v2948 = vpack.c.b16 %v2916, %v2916
      %v2949 = vpack.c.b16 %v2917, %v2917
      %v2950 = vpack.c.b16 %v2918, %v2918
      %v2951 = vpack.c.b16 %v2919, %v2919
      %v2952 = vpack.c.b16 %v2920, %v2920
      %v2953 = vpack.c.b16 %v2921, %v2921
      %v2954 = vpack.c.b16 %v2922, %v2922
      %v2955 = vpack.c.b16 %v2923, %v2923
      %v2956 = vpack.c.b16 %v2924, %v2924
      %v2957 = vpack.c.b16 %v2925, %v2925
      %v2958 = vpack.c.b16 %v2926, %v2926
      %v2959 = vpack.c.b16 %v2927, %v2927
      %v2960 = vpack.c.b16 %v2928, %v2928
      %v2961 = vpack.c.b16 %v2929, %v2929
      %2994 = vst [vmem:[%s457] sm:$0xf] %v2930
      %2995 = vst [vmem:[%s457 + $0x4] sm:$0xf] %v2931
      %2996 = vst [vmem:[%s457 + $0x8] sm:$0xf] %v2932
      %2997 = vst [vmem:[%s457 + $0xc] sm:$0xf] %v2933
      %2998 = vst [vmem:[%s457 + $0x10] sm:$0xf] %v2934
      %2999 = vst [vmem:[%s457 + $0x14] sm:$0xf] %v2935
      %3000 = vst [vmem:[%s457 + $0x18] sm:$0xf] %v2936
      %3001 = vst [vmem:[%s457 + $0x1c] sm:$0xf] %v2937
      %3002 = vst [vmem:[%s457 + $0x20] sm:$0xf] %v2938
      %3003 = vst [vmem:[%s457 + $0x24] sm:$0xf] %v2939
      %3004 = vst [vmem:[%s457 + $0x28] sm:$0xf] %v2940
      %3005 = vst [vmem:[%s457 + $0x2c] sm:$0xf] %v2941
      %3006 = vst [vmem:[%s457 + $0x30] sm:$0xf] %v2942
      %3007 = vst [vmem:[%s457 + $0x34] sm:$0xf] %v2943
      %3008 = vst [vmem:[%s457 + $0x38] sm:$0xf] %v2944
      %3009 = vst [vmem:[%s457 + $0x3c] sm:$0xf] %v2945
      %3010 = vst [vmem:[%s457 + $0x40] sm:$0xf] %v2946
      %3011 = vst [vmem:[%s457 + $0x44] sm:$0xf] %v2947
      %3012 = vst [vmem:[%s457 + $0x48] sm:$0xf] %v2948
      %3013 = vst [vmem:[%s457 + $0x4c] sm:$0xf] %v2949
      %3014 = vst [vmem:[%s457 + $0x50] sm:$0xf] %v2950
      %3015 = vst [vmem:[%s457 + $0x54] sm:$0xf] %v2951
      %3016 = vst [vmem:[%s457 + $0x58] sm:$0xf] %v2952
      %3017 = vst [vmem:[%s457 + $0x5c] sm:$0xf] %v2953
      %3018 = vst [vmem:[%s457 + $0x60] sm:$0xf] %v2954
      %3019 = vst [vmem:[%s457 + $0x64] sm:$0xf] %v2955
      %3020 = vst [vmem:[%s457 + $0x68] sm:$0xf] %v2956
      %3021 = vst [vmem:[%s457 + $0x6c] sm:$0xf] %v2957
      %3022 = vst [vmem:[%s457 + $0x70] sm:$0xf] %v2958
      %3023 = vst [vmem:[%s457 + $0x74] sm:$0xf] %v2959
      %3024 = vst [vmem:[%s457 + $0x78] sm:$0xf] %v2960
      %3025 = vst [vmem:[%s457 + $0x7c] sm:$0xf] %v2961
      %v3026 = vadd.f32 %v2740, %v2743
      %v3027 = vadd.f32 %v3026, %v2748
      %v3028 = vadd.f32 %v3027, %v2751
      %v3029 = vadd.f32 %v3028, %v2756
      %v3030 = vadd.f32 %v3029, %v2759
      %v3031 = vadd.f32 %v3030, %v2764
      %v3032 = vadd.f32 %v3031, %v2767
      %v3033 = vadd.f32 %v3032, %v2772
      %v3034 = vadd.f32 %v3033, %v2775
      %v3035 = vadd.f32 %v3034, %v2780
      %v3036 = vadd.f32 %v3035, %v2783
      %v3037 = vadd.f32 %v3036, %v2788
      %v3038 = vadd.f32 %v3037, %v2791
      %v3039 = vadd.f32 %v3038, %v2796
      %v3040 = vadd.f32 %v3039, %v2799
      %v3041 = vadd.f32 %v3040, %v2804
      %v3042 = vadd.f32 %v3041, %v2807
      %v3043 = vadd.f32 %v3042, %v2812
      %v3044 = vadd.f32 %v3043, %v2815
      %v3045 = vadd.f32 %v3044, %v2820
      %v3046 = vadd.f32 %v3045, %v2823
      %v3047 = vadd.f32 %v3046, %v2828
      %v3048 = vadd.f32 %v3047, %v2831
      %v3049 = vadd.f32 %v3048, %v2836
      %v3050 = vadd.f32 %v3049, %v2839
      %v3051 = vadd.f32 %v3050, %v2844
      %v3052 = vadd.f32 %v3051, %v2847
      %v3053 = vadd.f32 %v3052, %v2852
      %v3054 = vadd.f32 %v3053, %v2855
      %v3055 = vadd.f32 %v3054, %v2860
      %v3056 = vadd.f32 %v3055, %v2863
      %v3057 = vrot.slane %v3056, 4
      %v3058 = vadd.f32 %v3056, %v3057
      %v3059 = vrot.slane %v3058, 2
      %v3060 = vadd.f32 %v3058, %v3059
      %v3061 = vrot.slane %v3060, 1
      %v3062 = vadd.f32 %v3060, %v3061
      %3063 = vst [vmem:[%s465] sm:$0x1] %v3062
      %v3064 = vmul.f32 %v2740, %v2740
      %v3065 = vmul.f32 %v2743, %v2743
      %v3066 = vmul.f32 %v2748, %v2748
      %v3067 = vmul.f32 %v2751, %v2751
      %v3068 = vmul.f32 %v2756, %v2756
      %v3069 = vmul.f32 %v2759, %v2759
      %v3070 = vmul.f32 %v2764, %v2764
      %v3071 = vmul.f32 %v2767, %v2767
      %v3072 = vmul.f32 %v2772, %v2772
      %v3073 = vmul.f32 %v2775, %v2775
      %v3074 = vmul.f32 %v2780, %v2780
      %v3075 = vmul.f32 %v2783, %v2783
      %v3076 = vmul.f32 %v2788, %v2788
      %v3077 = vmul.f32 %v2791, %v2791
      %v3078 = vmul.f32 %v2796, %v2796
      %v3079 = vmul.f32 %v2799, %v2799
      %v3080 = vmul.f32 %v2804, %v2804
      %v3081 = vmul.f32 %v2807, %v2807
      %v3082 = vmul.f32 %v2812, %v2812
      %v3083 = vmul.f32 %v2815, %v2815
      %v3084 = vmul.f32 %v2820, %v2820
      %v3085 = vmul.f32 %v2823, %v2823
      %v3086 = vmul.f32 %v2828, %v2828
      %v3087 = vmul.f32 %v2831, %v2831
      %v3088 = vmul.f32 %v2836, %v2836
      %v3089 = vmul.f32 %v2839, %v2839
      %v3090 = vmul.f32 %v2844, %v2844
      %v3091 = vmul.f32 %v2847, %v2847
      %v3092 = vmul.f32 %v2852, %v2852
      %v3093 = vmul.f32 %v2855, %v2855
      %v3094 = vmul.f32 %v2860, %v2860
      %v3095 = vmul.f32 %v2863, %v2863
      %v3096 = vadd.f32 %v3064, %v3065
      %v3097 = vadd.f32 %v3096, %v3066
      %v3098 = vadd.f32 %v3097, %v3067
      %v3099 = vadd.f32 %v3098, %v3068
      %v3100 = vadd.f32 %v3099, %v3069
      %v3101 = vadd.f32 %v3100, %v3070
      %v3102 = vadd.f32 %v3101, %v3071
      %v3103 = vadd.f32 %v3102, %v3072
      %v3104 = vadd.f32 %v3103, %v3073
      %v3105 = vadd.f32 %v3104, %v3074
      %v3106 = vadd.f32 %v3105, %v3075
      %v3107 = vadd.f32 %v3106, %v3076
      %v3108 = vadd.f32 %v3107, %v3077
      %v3109 = vadd.f32 %v3108, %v3078
      %v3110 = vadd.f32 %v3109, %v3079
      %v3111 = vadd.f32 %v3110, %v3080
      %v3112 = vadd.f32 %v3111, %v3081
      %v3113 = vadd.f32 %v3112, %v3082
      %v3114 = vadd.f32 %v3113, %v3083
      %v3115 = vadd.f32 %v3114, %v3084
      %v3116 = vadd.f32 %v3115, %v3085
      %v3117 = vadd.f32 %v3116, %v3086
      %v3118 = vadd.f32 %v3117, %v3087
      %v3119 = vadd.f32 %v3118, %v3088
      %v3120 = vadd.f32 %v3119, %v3089
      %v3121 = vadd.f32 %v3120, %v3090
      %v3122 = vadd.f32 %v3121, %v3091
      %v3123 = vadd.f32 %v3122, %v3092
      %v3124 = vadd.f32 %v3123, %v3093
      %v3125 = vadd.f32 %v3124, %v3094
      %v3126 = vadd.f32 %v3125, %v3095
      %v3127 = vrot.slane %v3126, 4
      %v3128 = vadd.f32 %v3126, %v3127
      %v3129 = vrot.slane %v3128, 2
      %v3130 = vadd.f32 %v3128, %v3129
      %v3131 = vrot.slane %v3130, 1
      %v3132 = vadd.f32 %v3130, %v3131
      %3133 = vst [vmem:[%s465 + $0x1] sm:$0x1] %v3132
      %s3134 = smul.u32 16, %s24
      %p3135 = scmp.lt.s32.totalorder %s23, 1
      %s3136 = scalar_select %p3135, %s23, 1
      %p3137 = scmp.lt.s32.totalorder %s3134, 15
      %s3138 = scalar_select %p3137, %s3134, 15
      %s3139 = smul.addr %s3138, 2
      %s3140 = smul.addr %s3136, 32
      %s3141 = sadd.s32 %s3139, %s3140
      %s3142 = smul.addr %s3141, 4
      %s3143 = scalar_lea.vmem %s6, %s3142
      %p3144 = scmp.lt.s32.totalorder %s23, 1
      %s3145 = scalar_select %p3144, %s23, 1
      %p3146 = scmp.lt.s32.totalorder %s24, 0
      %s3147 = scalar_select %p3146, %s24, 0
      %s3148 = sadd.s32 %s3147, %s3145
      %s3149 = smul.addr %s3148, 2
      %s3150 = scalar_lea.vmem %s7, %s3149
      // Predicated region
      $region45: #{downconv_forward.4} parent=43 // pred_check
        %p3151 = pneg %p214
      $region46: #{downconv_forward.4} parent=43 // pred_check_branch
        %3153 = sbr.rel (%p3151) target = $region48
      $region47: #{downconv_forward.4} parent=43 // pred_region
        %s3154 = smul.u32 16, %s24
      $region48: #{downconv_forward.4} parent=43 // pred_fallthru
        _
      // Predicated region
      $region49: #{downconv_forward.4} parent=43 // pred_check
        %p3155 = pneg %p242
      $region50: #{downconv_forward.4} parent=43 // pred_check_branch
        %3157 = sbr.rel (%p3155) target = $region52
      $region51: #{downconv_forward.4} parent=43 // pred_region
        _
      $region52: #{downconv_forward.4} parent=43 // pred_fallthru
        _
    $region44: #{downconv_forward.4} parent=5 // pred_fallthru
      _
    %p3158 = scmp.le.s32.totalorder 2, %s14
    // Predicated region
    $region53: #{downconv_forward.4} parent=5 // pred_check
      %p3159 = pneg %p3158
    $region54: #{downconv_forward.4} parent=5 // pred_check_branch
      %3161 = sbr.rel (%p3159) target = $region56
    $region55: #{downconv_forward.4} parent=5 // pred_region
      %s3162 = ssub.s32 %s14, 2
      // Predicated region
      $region57: #{downconv_forward.4} parent=55 // pred_check
        %p3163 = pneg %p220
      $region58: #{downconv_forward.4} parent=55 // pred_check_branch
        %3165 = sbr.rel (%p3163) target = $region60
      $region59: #{downconv_forward.4} parent=55 // pred_region
        %s3166 = smul.u32 16, %s26
        %p3167 = scmp.lt.s32.totalorder %s25, 1
        %s3168 = scalar_select %p3167, %s25, 1
        %p3169 = scmp.lt.s32.totalorder %s3166, 15
        %s3170 = scalar_select %p3169, %s3166, 15
        %s3171 = smul.addr %s3170, 2
        %s3172 = smul.addr %s3168, 32
        %s3173 = sadd.s32 %s3171, %s3172
        %s3174 = smul.addr %s3173, 4
        %s3175 = scalar_lea.vmem %s6, %s3174
      $region60: #{downconv_forward.4} parent=55 // pred_fallthru
        _
      // Predicated region
      $region61: #{downconv_forward.4} parent=55 // pred_check
        %p3176 = pneg %p248
      $region62: #{downconv_forward.4} parent=55 // pred_check_branch
        %3178 = sbr.rel (%p3176) target = $region64
      $region63: #{downconv_forward.4} parent=55 // pred_region
        %p3179 = scmp.lt.s32.totalorder %s25, 1
        %s3180 = scalar_select %p3179, %s25, 1
        %p3181 = scmp.lt.s32.totalorder %s26, 0
        %s3182 = scalar_select %p3181, %s26, 0
        %s3183 = sadd.s32 %s3182, %s3180
        %s3184 = smul.addr %s3183, 2
        %s3185 = scalar_lea.vmem %s7, %s3184
      $region64: #{downconv_forward.4} parent=55 // pred_fallthru
        _
    $region56: #{downconv_forward.4} parent=5 // pred_fallthru
      _
  $region6: #{downconv_forward.4} parent=0 // loop_footer
    %s18 = sadd.s32 1, %s14
  $region7: #{downconv_forward.4} parent=0 // loop_footer_branch
    %13 = sbr.rel target = $region3
  $region8: #{downconv_forward.4} parent=0 // loop_exit
    _

// kernel: downconv_forward.3
$region0: #{downconv_forward.3}
  #allocation0 [shape = 'u32[]', space=smem, size = 0x4, offset = 0x4, fixed_abs, tag = 'smem constant byte address 0x4 - core index']
  #allocation1 [shape = 'u32[144,128]{1,0:T(1,128)}', space=vmem, size = 0x12000, scoped, tag = 'internal scratch']
  %s0 = inlined_call_operand.vmem [shape: bf16[2,18,18,4], index: 0, kind: input, shape index: {}, may-alias: {0,1,2}]
  %s1 = inlined_call_operand.vmem [shape: bf16[2,18,18,4], index: 1, kind: input, shape index: {}, may-alias: {0,1,2}]
  %s2 = inlined_call_operand.vmem [shape: bf16[2,18,18,4], index: 2, kind: input, shape index: {}, may-alias: {0,1,2}]
  %s3 = inlined_call_operand.vmem [shape: bf16[9,4,128], index: 3, kind: input, shape index: {}]
  %s4 = inlined_call_operand.vmem [shape: bf16[2,16,18,128], index: 4, kind: output, shape index: {0}]
  %s5 = inlined_call_operand.vmem [shape: f32[2,1,2,128], index: 5, kind: output, shape index: {1}]
  %6 = xla_tuple %s4, %s5
  %s7 = sld [smem:[#allocation0]]
  $region57: #{downconv_forward.3} parent=0
    _
  %s9 = ssub.s32 1, %s7
  %s10 = scalar_select 0, %s9, %s7
  loop: start=0, step=1, limit=4
  $region2: #{downconv_forward.3} parent=0 // loop_pre_header
    _
  $region3: #{downconv_forward.3} parent=0 // loop_header
    %s12 = sphi 0, %s16
    %p13 = scmp.ge.s32.totalorder %s12, 4
    %s19 = sphi 0, %s31
    %s20 = sphi 0, %s27
    %s21 = sphi 0, %s19
    %s22 = sphi 0, %s20
    %s23 = sphi 0, %s21
    %s24 = sphi 0, %s22
    %s36 = sphi 0, %s38
    %s39 = sphi 0, %s36
    %s40 = sphi 0, %s39
    %s56 = sphi 0, %s40
    %s68 = sphi 0, %s70
    %s71 = sphi 0, %s68
    %s72 = sphi 0, %s71
    %s88 = sphi 0, %s72
    %s100 = sphi 0, %s102
    %s103 = sphi 0, %s100
    %s104 = sphi 0, %s103
    %s120 = sphi 0, %s104
    %s124 = sphi 0, %s124
    %s126 = sphi 0, %s124
    %s127 = sphi 0, %s126
    %s141 = sphi 0, %s127
    %s149 = sphi 0, %s151
    %s152 = sphi 0, %s149
    %s153 = sphi 0, %s152
    %s169 = sphi 0, %s153
    %s177 = sphi 0, %s179
    %s180 = sphi 0, %s177
    %s181 = sphi 0, %s180
    %s197 = sphi 0, %s181
  $region4: #{downconv_forward.3} parent=0 // loop_header_branch
    %15 = sbr.rel (%p13) target = $region8
  $region5: #{downconv_forward.3} parent=0 // loop_body
    %s17 = ssub.s32 %s12, 1
    %s18 = ssub.s32 %s12, 2
    %s25 = sadd.s32 1, %s20
    %p26 = scmp.ge.s32.totalorder %s25, 1
    %s27 = scalar_select %p26, 0, %s25
    %s28 = sadd.s32 1, %s19
    %s29 = scalar_select %p26, %s28, %s19
    %p30 = scmp.ge.s32.totalorder %s29, 2
    %s31 = scalar_select %p30, 0, %s29
    %s32 = ssub.s32 %s19, %s31
    %s33 = ssub.s32 %s20, %s27
    %s34 = sor.u32 %s32, %s33
    %p35 = scmp.eq.s32.totalorder %s34, 0
    %s37 = sadd.s32 %s36, 1
    %s38 = scalar_select %p35, %s36, %s37
    %p41 = pneg %p35
    %p42 = scmp.eq.s32.totalorder %s12, 1
    %p43 = por %p41, %p42
    %p44 = scmp.ne.s32.totalorder %s36, %s39
    %p45 = scmp.eq.s32.totalorder %s12, 0
    %p46 = por %p44, %p45
    %p47 = scmp.ne.s32.totalorder %s36, %s39
    %p48 = scmp.eq.s32.totalorder %s17, 1
    %p49 = por %p47, %p48
    %p50 = scmp.ne.s32.totalorder %s39, %s40
    %p51 = scmp.eq.s32.totalorder %s17, 0
    %p52 = por %p50, %p51
    %p53 = scmp.ne.s32.totalorder %s39, %s40
    %p54 = scmp.eq.s32.totalorder %s18, 1
    %p55 = por %p53, %p54
    %p57 = scmp.ne.s32.totalorder %s40, %s56
    %p58 = scmp.eq.s32.totalorder %s18, 0
    %p59 = por %p57, %p58
    %s60 = smul.u32 %s20, 16
    %s61 = sadd.s32 %s60, 16
    %s62 = smul.u32 %s27, 16
    %s63 = sadd.s32 %s62, 16
    %s64 = ssub.s32 %s19, %s31
    %s65 = ssub.s32 %s61, %s63
    %s66 = sor.u32 %s64, %s65
    %p67 = scmp.eq.s32.totalorder %s66, 0
    %s69 = sadd.s32 %s68, 1
    %s70 = scalar_select %p67, %s68, %s69
    %p73 = pneg %p67
    %p74 = scmp.eq.s32.totalorder %s12, 1
    %p75 = por %p73, %p74
    %p76 = scmp.ne.s32.totalorder %s68, %s71
    %p77 = scmp.eq.s32.totalorder %s12, 0
    %p78 = por %p76, %p77
    %p79 = scmp.ne.s32.totalorder %s68, %s71
    %p80 = scmp.eq.s32.totalorder %s17, 1
    %p81 = por %p79, %p80
    %p82 = scmp.ne.s32.totalorder %s71, %s72
    %p83 = scmp.eq.s32.totalorder %s17, 0
    %p84 = por %p82, %p83
    %p85 = scmp.ne.s32.totalorder %s71, %s72
    %p86 = scmp.eq.s32.totalorder %s18, 1
    %p87 = por %p85, %p86
    %p89 = scmp.ne.s32.totalorder %s72, %s88
    %p90 = scmp.eq.s32.totalorder %s18, 0
    %p91 = por %p89, %p90
    %s92 = smul.u32 %s20, 16
    %s93 = sadd.s32 %s92, 17
    %s94 = smul.u32 %s27, 16
    %s95 = sadd.s32 %s94, 17
    %s96 = ssub.s32 %s19, %s31
    %s97 = ssub.s32 %s93, %s95
    %s98 = sor.u32 %s96, %s97
    %p99 = scmp.eq.s32.totalorder %s98, 0
    %s101 = sadd.s32 %s100, 1
    %s102 = scalar_select %p99, %s100, %s101
    %p105 = pneg %p99
    %p106 = scmp.eq.s32.totalorder %s12, 1
    %p107 = por %p105, %p106
    %p108 = scmp.ne.s32.totalorder %s100, %s103
    %p109 = scmp.eq.s32.totalorder %s12, 0
    %p110 = por %p108, %p109
    %p111 = scmp.ne.s32.totalorder %s100, %s103
    %p112 = scmp.eq.s32.totalorder %s17, 1
    %p113 = por %p111, %p112
    %p114 = scmp.ne.s32.totalorder %s103, %s104
    %p115 = scmp.eq.s32.totalorder %s17, 0
    %p116 = por %p114, %p115
    %p117 = scmp.ne.s32.totalorder %s103, %s104
    %p118 = scmp.eq.s32.totalorder %s18, 1
    %p119 = por %p117, %p118
    %p121 = scmp.ne.s32.totalorder %s104, %s120
    %p122 = scmp.eq.s32.totalorder %s18, 0
    %p123 = por %p121, %p122
    %s125 = sadd.s32 %s124, 1
    %p128 = scmp.eq.s32.totalorder %s12, 1
    %p129 = scmp.ne.s32.totalorder %s124, %s126
    %p130 = scmp.eq.s32.totalorder %s12, 0
    %p131 = por %p129, %p130
    %p132 = scmp.ne.s32.totalorder %s124, %s126
    %p133 = scmp.eq.s32.totalorder %s17, 1
    %p134 = por %p132, %p133
    %p135 = scmp.ne.s32.totalorder %s126, %s127
    %p136 = scmp.eq.s32.totalorder %s17, 0
    %p137 = por %p135, %p136
    %p138 = scmp.ne.s32.totalorder %s126, %s127
    %p139 = scmp.eq.s32.totalorder %s18, 1
    %p140 = por %p138, %p139
    %p142 = scmp.ne.s32.totalorder %s127, %s141
    %p143 = scmp.eq.s32.totalorder %s18, 0
    %p144 = por %p142, %p143
    %s145 = ssub.s32 %s19, %s31
    %s146 = ssub.s32 %s20, %s27
    %s147 = sor.u32 %s145, %s146
    %p148 = scmp.eq.s32.totalorder %s147, 0
    %s150 = sadd.s32 %s149, 1
    %s151 = scalar_select %p148, %s149, %s150
    %p154 = pneg %p148
    %p155 = scmp.eq.s32.totalorder %s12, 1
    %p156 = por %p154, %p155
    %p157 = scmp.ne.s32.totalorder %s149, %s152
    %p158 = scmp.eq.s32.totalorder %s12, 0
    %p159 = por %p157, %p158
    %p160 = scmp.ne.s32.totalorder %s149, %s152
    %p161 = scmp.eq.s32.totalorder %s17, 1
    %p162 = por %p160, %p161
    %p163 = scmp.ne.s32.totalorder %s152, %s153
    %p164 = scmp.eq.s32.totalorder %s17, 0
    %p165 = por %p163, %p164
    %p166 = scmp.ne.s32.totalorder %s152, %s153
    %p167 = scmp.eq.s32.totalorder %s18, 1
    %p168 = por %p166, %p167
    %p170 = scmp.ne.s32.totalorder %s153, %s169
    %p171 = scmp.eq.s32.totalorder %s18, 0
    %p172 = por %p170, %p171
    %s173 = ssub.s32 %s19, %s31
    %s174 = ssub.s32 %s20, %s27
    %s175 = sor.u32 %s173, %s174
    %p176 = scmp.eq.s32.totalorder %s175, 0
    %s178 = sadd.s32 %s177, 1
    %s179 = scalar_select %p176, %s177, %s178
    %p182 = pneg %p176
    %p183 = scmp.eq.s32.totalorder %s12, 1
    %p184 = por %p182, %p183
    %p185 = scmp.ne.s32.totalorder %s177, %s180
    %p186 = scmp.eq.s32.totalorder %s12, 0
    %p187 = por %p185, %p186
    %p188 = scmp.ne.s32.totalorder %s177, %s180
    %p189 = scmp.eq.s32.totalorder %s17, 1
    %p190 = por %p188, %p189
    %p191 = scmp.ne.s32.totalorder %s180, %s181
    %p192 = scmp.eq.s32.totalorder %s17, 0
    %p193 = por %p191, %p192
    %p194 = scmp.ne.s32.totalorder %s180, %s181
    %p195 = scmp.eq.s32.totalorder %s18, 1
    %p196 = por %p194, %p195
    %p198 = scmp.ne.s32.totalorder %s181, %s197
    %p199 = scmp.eq.s32.totalorder %s18, 0
    %p200 = por %p198, %p199
    %p201 = scmp.le.s32.totalorder 1, %s12
    %p202 = scmp.lt.s32.totalorder %s12, 3
    %p203 = pnand %p201, %p202
    %p204 = pneg %p203
    // Predicated region
    $region9: #{downconv_forward.3} parent=5 // pred_check
      _
    $region10: #{downconv_forward.3} parent=5 // pred_check_branch
      %206 = sbr.rel (%p203) target = $region12
    $region11: #{downconv_forward.3} parent=5 // pred_region
      %s207 = ssub.s32 %s12, 1
      // Predicated region
      $region13: #{downconv_forward.3} parent=11 // pred_check
        %p208 = pneg %p137
      $region14: #{downconv_forward.3} parent=11 // pred_check_branch
        %210 = sbr.rel (%p208) target = $region16
      $region15: #{downconv_forward.3} parent=11 // pred_region
        _
      $region16: #{downconv_forward.3} parent=11 // pred_fallthru
        _
    $region12: #{downconv_forward.3} parent=5 // pred_fallthru
      _
    %p211 = scmp.lt.s32.totalorder %s12, 2
    // Predicated region
    $region17: #{downconv_forward.3} parent=5 // pred_check
      %p212 = pneg %p211
    $region18: #{downconv_forward.3} parent=5 // pred_check_branch
      %214 = sbr.rel (%p212) target = $region20
    $region19: #{downconv_forward.3} parent=5 // pred_region
      // Predicated region
      $region21: #{downconv_forward.3} parent=19 // pred_check
        %p215 = pneg %p46
      $region22: #{downconv_forward.3} parent=19 // pred_check_branch
        %217 = sbr.rel (%p215) target = $region24
      $region23: #{downconv_forward.3} parent=19 // pred_region
        %s218 = smul.u32 16, %s20
        %s219 = ssub.s32 18, %s218
        %p220 = scmp.lt.s32.totalorder %s219, 16
        %s221 = scalar_select %p220, %s219, 16
        %s222 = smul.u32 64, %s221
        %s223 = smul.u32 %s222, 3
        %p224 = scmp.lt.s32.totalorder %s19, 1
        %s225 = scalar_select %p224, %s19, 1
        %p226 = scmp.lt.s32.totalorder %s218, 17
        %s227 = scalar_select %p226, %s218, 17
        %s228 = smul.addr %s227, 3
        %s229 = smul.addr %s225, 54
        %s230 = sadd.s32 %s228, %s229
        %s231 = smul.addr %s230, 4
        %s232 = scalar_lea.vmem %s0, %s231
        %s233 = smul.u32 16, %s20
        %s234 = ssub.s32 18, %s233
        %p235 = scmp.lt.s32.totalorder %s234, 16
        %s236 = scalar_select %p235, %s234, 16
        %s237 = smul.u32 64, %s236
        %s238 = smul.u32 %s237, 3
      $region24: #{downconv_forward.3} parent=19 // pred_fallthru
        _
      // Predicated region
      $region25: #{downconv_forward.3} parent=19 // pred_check
        %p239 = pneg %p78
      $region26: #{downconv_forward.3} parent=19 // pred_check_branch
        %241 = sbr.rel (%p239) target = $region28
      $region27: #{downconv_forward.3} parent=19 // pred_region
        %s242 = smul.u32 %s20, 16
        %s243 = sadd.s32 %s242, 16
        %p244 = scmp.lt.s32.totalorder %s19, 1
        %s245 = scalar_select %p244, %s19, 1
        %p246 = scmp.lt.s32.totalorder %s243, 17
        %s247 = scalar_select %p246, %s243, 17
        %s248 = smul.addr %s247, 3
        %s249 = smul.addr %s245, 54
        %s250 = sadd.s32 %s248, %s249
        %s251 = smul.addr %s250, 4
        %s252 = scalar_lea.vmem %s1, %s251
        %s253 = smul.u32 %s20, 16
        %s254 = sadd.s32 %s253, 16
      $region28: #{downconv_forward.3} parent=19 // pred_fallthru
        _
      // Predicated region
      $region29: #{downconv_forward.3} parent=19 // pred_check
        %p255 = pneg %p110
      $region30: #{downconv_forward.3} parent=19 // pred_check_branch
        %257 = sbr.rel (%p255) target = $region32
      $region31: #{downconv_forward.3} parent=19 // pred_region
        %s258 = smul.u32 %s20, 16
        %s259 = sadd.s32 %s258, 17
        %p260 = scmp.lt.s32.totalorder %s19, 1
        %s261 = scalar_select %p260, %s19, 1
        %p262 = scmp.lt.s32.totalorder %s259, 17
        %s263 = scalar_select %p262, %s259, 17
        %s264 = smul.addr %s263, 3
        %s265 = smul.addr %s261, 54
        %s266 = sadd.s32 %s264, %s265
        %s267 = smul.addr %s266, 4
        %s268 = scalar_lea.vmem %s2, %s267
        %s269 = smul.u32 %s20, 16
        %s270 = sadd.s32 %s269, 17
      $region32: #{downconv_forward.3} parent=19 // pred_fallthru
        _
    $region20: #{downconv_forward.3} parent=5 // pred_fallthru
      _
    %p271 = scmp.le.s32.totalorder 1, %s12
    %p272 = scmp.lt.s32.totalorder %s12, 3
    %p273 = pnand %p271, %p272
    %p274 = pneg %p273
    // Predicated region
    $region33: #{downconv_forward.3} parent=5 // pred_check
      _
    $region34: #{downconv_forward.3} parent=5 // pred_check_branch
      %276 = sbr.rel (%p273) target = $region36
    $region35: #{downconv_forward.3} parent=5 // pred_region
      %s277 = ssub.s32 %s12, 1
      %s278 = smul.u32 16, %s22
      %s279 = ssub.s32 18, %s278
      %p280 = scmp.lt.s32.totalorder %s279, 16
      %s281 = scalar_select %p280, %s279, 16
      %s282 = smul.u32 64, %s281
      %s283 = smul.u32 %s282, 3
      %p284 = scmp.lt.s32.totalorder %s21, 1
      %s285 = scalar_select %p284, %s21, 1
      %p286 = scmp.lt.s32.totalorder %s278, 17
      %s287 = scalar_select %p286, %s278, 17
      %s288 = smul.addr %s287, 3
      %s289 = smul.addr %s285, 54
      %s290 = sadd.s32 %s288, %s289
      %s291 = smul.addr %s290, 4
      %s292 = scalar_lea.vmem %s0, %s291
      %p293 = pneg %p52
      %p294 = pneg %p49
      %s295 = smul.u32 %s22, 16
      %s296 = sadd.s32 %s295, 16
      %p297 = scmp.lt.s32.totalorder %s21, 1
      %s298 = scalar_select %p297, %s21, 1
      %p299 = scmp.lt.s32.totalorder %s296, 17
      %s300 = scalar_select %p299, %s296, 17
      %s301 = smul.addr %s300, 3
      %s302 = smul.addr %s298, 54
      %s303 = sadd.s32 %s301, %s302
      %s304 = smul.addr %s303, 4
      %s305 = scalar_lea.vmem %s1, %s304
      %p306 = pneg %p84
      %p307 = pneg %p81
      %s308 = smul.u32 %s22, 16
      %s309 = sadd.s32 %s308, 17
      %p310 = scmp.lt.s32.totalorder %s21, 1
      %s311 = scalar_select %p310, %s21, 1
      %p312 = scmp.lt.s32.totalorder %s309, 17
      %s313 = scalar_select %p312, %s309, 17
      %s314 = smul.addr %s313, 3
      %s315 = smul.addr %s311, 54
      %s316 = sadd.s32 %s314, %s315
      %s317 = smul.addr %s316, 4
      %s318 = scalar_lea.vmem %s2, %s317
      %p319 = pneg %p116
      %p320 = pneg %p113
      %p321 = pneg %p137
      %p322 = pneg %p134
      %p323 = pneg %p165
      %p324 = pneg %p162
      %s325 = smul.u32 16, %s22
      %p326 = scmp.lt.s32.totalorder %s21, 1
      %s327 = scalar_select %p326, %s21, 1
      %p328 = scmp.lt.s32.totalorder %s325, 15
      %s329 = scalar_select %p328, %s325, 15
      %s330 = smul.addr %s329, 3
      %s331 = smul.addr %s327, 48
      %s332 = sadd.s32 %s330, %s331
      %s333 = smul.addr %s332, 4
      %s334 = scalar_lea.vmem %s4, %s333
      %p335 = pneg %p193
      %p336 = pneg %p190
      %p337 = scmp.lt.s32.totalorder %s21, 1
      %s338 = scalar_select %p337, %s21, 1
      %p339 = scmp.lt.s32.totalorder %s22, 0
      %s340 = scalar_select %p339, %s22, 0
      %s341 = sadd.s32 %s340, %s338
      %s342 = smul.addr %s341, 2
      %s343 = scalar_lea.vmem %s5, %s342
      %s344 = smul.u32 16, %s22
      %s345 = ssub.s32 18, %s344
      %p346 = scmp.lt.s32.totalorder %s345, 16
      %s347 = scalar_select %p346, %s345, 16
      %s348 = smul.u32 64, %s347
      %s349 = smul.u32 %s348, 3
      %p350 = scmp.lt.s32.totalorder %s21, 1
      %s351 = scalar_select %p350, %s21, 1
      %p352 = scmp.lt.s32.totalorder %s344, 17
      %s353 = scalar_select %p352, %s344, 17
      %s354 = smul.addr %s353, 3
      %s355 = smul.addr %s351, 54
      %s356 = sadd.s32 %s354, %s355
      %s357 = smul.addr %s356, 4
      %s358 = scalar_lea.vmem %s0, %s357
      %s359 = smul.u32 16, %s22
      %s360 = ssub.s32 18, %s359
      %p361 = scmp.lt.s32.totalorder %s360, 16
      %s362 = scalar_select %p361, %s360, 16
      %s363 = smul.u32 64, %s362
      %s364 = smul.u32 %s363, 3
      %s365 = smul.u32 %s22, 16
      %s366 = sadd.s32 %s365, 16
      %p367 = scmp.lt.s32.totalorder %s21, 1
      %s368 = scalar_select %p367, %s21, 1
      %p369 = scmp.lt.s32.totalorder %s366, 17
      %s370 = scalar_select %p369, %s366, 17
      %s371 = smul.addr %s370, 3
      %s372 = smul.addr %s368, 54
      %s373 = sadd.s32 %s371, %s372
      %s374 = smul.addr %s373, 4
      %s375 = scalar_lea.vmem %s1, %s374
      %s376 = smul.u32 %s22, 16
      %s377 = sadd.s32 %s376, 16
      %s378 = smul.u32 %s22, 16
      %s379 = sadd.s32 %s378, 17
      %p380 = scmp.lt.s32.totalorder %s21, 1
      %s381 = scalar_select %p380, %s21, 1
      %p382 = scmp.lt.s32.totalorder %s379, 17
      %s383 = scalar_select %p382, %s379, 17
      %s384 = smul.addr %s383, 3
      %s385 = smul.addr %s381, 54
      %s386 = sadd.s32 %s384, %s385
      %s387 = smul.addr %s386, 4
      %s388 = scalar_lea.vmem %s2, %s387
      %s389 = smul.u32 %s22, 16
      %s390 = sadd.s32 %s389, 17
      %s391 = smul.u32 16, %s22
      %p392 = scmp.lt.s32.totalorder %s21, 1
      %s393 = scalar_select %p392, %s21, 1
      %p394 = scmp.lt.s32.totalorder %s391, 15
      %s395 = scalar_select %p394, %s391, 15
      %s396 = smul.addr %s395, 3
      %s397 = smul.addr %s393, 48
      %s398 = sadd.s32 %s396, %s397
      %s399 = smul.addr %s398, 4
      %s400 = scalar_lea.vmem %s4, %s399
      %s401 = smul.u32 16, %s22
      %p402 = scmp.lt.s32.totalorder %s21, 1
      %s403 = scalar_select %p402, %s21, 1
      %p404 = scmp.lt.s32.totalorder %s22, 0
      %s405 = scalar_select %p404, %s22, 0
      %s406 = sadd.s32 %s405, %s403
      %s407 = smul.addr %s406, 2
      %s408 = scalar_lea.vmem %s5, %s407
      %v410 = vld [vmem:[%s358] sm:$0xf]
      %v411 = vld [vmem:[%s358 + $0x4] sm:$0xf]
      %v412 = vld [vmem:[%s358 + $0x8] sm:$0x1]
      %v413 = vld [vmem:[%s358 + $0xc] sm:$0xf]
      %v414 = vld [vmem:[%s358 + $0x10] sm:$0xf]
      %v415 = vld [vmem:[%s358 + $0x14] sm:$0x1]
      %v416 = vld [vmem:[%s358 + $0x18] sm:$0xf]
      %v417 = vld [vmem:[%s358 + $0x1c] sm:$0xf]
      %v418 = vld [vmem:[%s358 + $0x20] sm:$0x1]
      %v419 = vld [vmem:[%s358 + $0x24] sm:$0xf]
      %v420 = vld [vmem:[%s358 + $0x28] sm:$0xf]
      %v421 = vld [vmem:[%s358 + $0x2c] sm:$0x1]
      %v422 = vld [vmem:[%s358 + $0x30] sm:$0xf]
      %v423 = vld [vmem:[%s358 + $0x34] sm:$0xf]
      %v424 = vld [vmem:[%s358 + $0x38] sm:$0x1]
      %v425 = vld [vmem:[%s358 + $0x3c] sm:$0xf]
      %v426 = vld [vmem:[%s358 + $0x40] sm:$0xf]
      %v427 = vld [vmem:[%s358 + $0x44] sm:$0x1]
      %v428 = vld [vmem:[%s358 + $0x48] sm:$0xf]
      %v429 = vld [vmem:[%s358 + $0x4c] sm:$0xf]
      %v430 = vld [vmem:[%s358 + $0x50] sm:$0x1]
      %v431 = vld [vmem:[%s358 + $0x54] sm:$0xf]
      %v432 = vld [vmem:[%s358 + $0x58] sm:$0xf]
      %v433 = vld [vmem:[%s358 + $0x5c] sm:$0x1]
      %v434 = vld [vmem:[%s358 + $0x60] sm:$0xf]
      %v435 = vld [vmem:[%s358 + $0x64] sm:$0xf]
      %v436 = vld [vmem:[%s358 + $0x68] sm:$0x1]
      %v437 = vld [vmem:[%s358 + $0x6c] sm:$0xf]
      %v438 = vld [vmem:[%s358 + $0x70] sm:$0xf]
      %v439 = vld [vmem:[%s358 + $0x74] sm:$0x1]
      %v440 = vld [vmem:[%s358 + $0x78] sm:$0xf]
      %v441 = vld [vmem:[%s358 + $0x7c] sm:$0xf]
      %v442 = vld [vmem:[%s358 + $0x80] sm:$0x1]
      %v443 = vld [vmem:[%s358 + $0x84] sm:$0xf]
      %v444 = vld [vmem:[%s358 + $0x88] sm:$0xf]
      %v445 = vld [vmem:[%s358 + $0x8c] sm:$0x1]
      %v446 = vld [vmem:[%s358 + $0x90] sm:$0xf]
      %v447 = vld [vmem:[%s358 + $0x94] sm:$0xf]
      %v448 = vld [vmem:[%s358 + $0x98] sm:$0x1]
      %v449 = vld [vmem:[%s358 + $0x9c] sm:$0xf]
      %v450 = vld [vmem:[%s358 + $0xa0] sm:$0xf]
      %v451 = vld [vmem:[%s358 + $0xa4] sm:$0x1]
      %v452 = vld [vmem:[%s358 + $0xa8] sm:$0xf]
      %v453 = vld [vmem:[%s358 + $0xac] sm:$0xf]
      %v454 = vld [vmem:[%s358 + $0xb0] sm:$0x1]
      %v455 = vld [vmem:[%s358 + $0xb4] sm:$0xf]
      %v456 = vld [vmem:[%s358 + $0xb8] sm:$0xf]
      %v457 = vld [vmem:[%s358 + $0xbc] sm:$0x1]
      %v458 = vld [vmem:[%s375] sm:$0xf]
      %v459 = vld [vmem:[%s375 + $0x4] sm:$0xf]
      %v460 = vld [vmem:[%s375 + $0x8] sm:$0x1]
      %v461 = vld [vmem:[%s388] sm:$0xf]
      %v462 = vld [vmem:[%s388 + $0x4] sm:$0xf]
      %v463 = vld [vmem:[%s388 + $0x8] sm:$0x1]
      %v464 = vld [vmem:[%s3] sm:$0x3]
      %vm465 = vsmask.f32 3328
      %vm466 = vsmask.f32 7440
      %vm467 = vmor %vm465, %vm466
      %v469 = vshrl.u32 %v410, 16
      %v471 = vrot.slane %v469, 4
      %v472 = vshll.u32 %v410, 16
      %v474 = vrot.slane %v472, 5
      %v475 = vor.u32 %v471, %v474
      %v476 = vrot.slane %v475, 4
      %v478 = vshll.u32 %v411, 16
      %v480 = vrot.slane %v478, 5
      %v481 = vsel %vm467, %v476, %v480
      %v482 = vshrl.u32 %v411, 16
      %v484 = vrot.slane %v482, 4
      %v485 = vor.u32 %v484, %v480
      %v486 = vrot.slane %v485, 4
      %v488 = vshll.u32 %v412, 16
      %v490 = vrot.slane %v488, 5
      %v491 = vsel %vm467, %v486, %v490
      %v493 = vshrl.u32 %v413, 16
      %v495 = vrot.slane %v493, 4
      %v496 = vshll.u32 %v413, 16
      %v498 = vrot.slane %v496, 5
      %v499 = vor.u32 %v495, %v498
      %v500 = vrot.slane %v499, 4
      %v502 = vshll.u32 %v414, 16
      %v504 = vrot.slane %v502, 5
      %v505 = vsel %vm467, %v500, %v504
      %v506 = vshrl.u32 %v414, 16
      %v508 = vrot.slane %v506, 4
      %v509 = vor.u32 %v508, %v504
      %v510 = vrot.slane %v509, 4
      %v512 = vshll.u32 %v415, 16
      %v514 = vrot.slane %v512, 5
      %v515 = vsel %vm467, %v510, %v514
      %v517 = vshrl.u32 %v416, 16
      %v519 = vrot.slane %v517, 4
      %v520 = vshll.u32 %v416, 16
      %v522 = vrot.slane %v520, 5
      %v523 = vor.u32 %v519, %v522
      %v524 = vrot.slane %v523, 4
      %v526 = vshll.u32 %v417, 16
      %v528 = vrot.slane %v526, 5
      %v529 = vsel %vm467, %v524, %v528
      %v530 = vshrl.u32 %v417, 16
      %v532 = vrot.slane %v530, 4
      %v533 = vor.u32 %v532, %v528
      %v534 = vrot.slane %v533, 4
      %v536 = vshll.u32 %v418, 16
      %v538 = vrot.slane %v536, 5
      %v539 = vsel %vm467, %v534, %v538
      %v541 = vshrl.u32 %v419, 16
      %v543 = vrot.slane %v541, 4
      %v544 = vshll.u32 %v419, 16
      %v546 = vrot.slane %v544, 5
      %v547 = vor.u32 %v543, %v546
      %v548 = vrot.slane %v547, 4
      %v550 = vshll.u32 %v420, 16
      %v552 = vrot.slane %v550, 5
      %v553 = vsel %vm467, %v548, %v552
      %v554 = vshrl.u32 %v420, 16
      %v556 = vrot.slane %v554, 4
      %v557 = vor.u32 %v556, %v552
      %v558 = vrot.slane %v557, 4
      %v560 = vshll.u32 %v421, 16
      %v562 = vrot.slane %v560, 5
      %v563 = vsel %vm467, %v558, %v562
      %v565 = vshrl.u32 %v422, 16
      %v567 = vrot.slane %v565, 4
      %v568 = vshll.u32 %v422, 16
      %v570 = vrot.slane %v568, 5
      %v571 = vor.u32 %v567, %v570
      %v572 = vrot.slane %v571, 4
      %v574 = vshll.u32 %v423, 16
      %v576 = vrot.slane %v574, 5
      %v577 = vsel %vm467, %v572, %v576
      %v578 = vshrl.u32 %v423, 16
      %v580 = vrot.slane %v578, 4
      %v581 = vor.u32 %v580, %v576
      %v582 = vrot.slane %v581, 4
      %v584 = vshll.u32 %v424, 16
      %v586 = vrot.slane %v584, 5
      %v587 = vsel %vm467, %v582, %v586
      %v589 = vshrl.u32 %v425, 16
      %v591 = vrot.slane %v589, 4
      %v592 = vshll.u32 %v425, 16
      %v594 = vrot.slane %v592, 5
      %v595 = vor.u32 %v591, %v594
      %v596 = vrot.slane %v595, 4
      %v598 = vshll.u32 %v426, 16
      %v600 = vrot.slane %v598, 5
      %v601 = vsel %vm467, %v596, %v600
      %v602 = vshrl.u32 %v426, 16
      %v604 = vrot.slane %v602, 4
      %v605 = vor.u32 %v604, %v600
      %v606 = vrot.slane %v605, 4
      %v608 = vshll.u32 %v427, 16
      %v610 = vrot.slane %v608, 5
      %v611 = vsel %vm467, %v606, %v610
      %v613 = vshrl.u32 %v428, 16
      %v615 = vrot.slane %v613, 4
      %v616 = vshll.u32 %v428, 16
      %v618 = vrot.slane %v616, 5
      %v619 = vor.u32 %v615, %v618
      %v620 = vrot.slane %v619, 4
      %v622 = vshll.u32 %v429, 16
      %v624 = vrot.slane %v622, 5
      %v625 = vsel %vm467, %v620, %v624
      %v626 = vshrl.u32 %v429, 16
      %v628 = vrot.slane %v626, 4
      %v629 = vor.u32 %v628, %v624
      %v630 = vrot.slane %v629, 4
      %v632 = vshll.u32 %v430, 16
      %v634 = vrot.slane %v632, 5
      %v635 = vsel %vm467, %v630, %v634
      %v637 = vshrl.u32 %v431, 16
      %v639 = vrot.slane %v637, 4
      %v640 = vshll.u32 %v431, 16
      %v642 = vrot.slane %v640, 5
      %v643 = vor.u32 %v639, %v642
      %v644 = vrot.slane %v643, 4
      %v646 = vshll.u32 %v432, 16
      %v648 = vrot.slane %v646, 5
      %v649 = vsel %vm467, %v644, %v648
      %v650 = vshrl.u32 %v432, 16
      %v652 = vrot.slane %v650, 4
      %v653 = vor.u32 %v652, %v648
      %v654 = vrot.slane %v653, 4
      %v656 = vshll.u32 %v433, 16
      %v658 = vrot.slane %v656, 5
      %v659 = vsel %vm467, %v654, %v658
      %v661 = vshrl.u32 %v434, 16
      %v663 = vrot.slane %v661, 4
      %v664 = vshll.u32 %v434, 16
      %v666 = vrot.slane %v664, 5
      %v667 = vor.u32 %v663, %v666
      %v668 = vrot.slane %v667, 4
      %v670 = vshll.u32 %v435, 16
      %v672 = vrot.slane %v670, 5
      %v673 = vsel %vm467, %v668, %v672
      %v674 = vshrl.u32 %v435, 16
      %v676 = vrot.slane %v674, 4
      %v677 = vor.u32 %v676, %v672
      %v678 = vrot.slane %v677, 4
      %v680 = vshll.u32 %v436, 16
      %v682 = vrot.slane %v680, 5
      %v683 = vsel %vm467, %v678, %v682
      %v685 = vshrl.u32 %v437, 16
      %v687 = vrot.slane %v685, 4
      %v688 = vshll.u32 %v437, 16
      %v690 = vrot.slane %v688, 5
      %v691 = vor.u32 %v687, %v690
      %v692 = vrot.slane %v691, 4
      %v694 = vshll.u32 %v438, 16
      %v696 = vrot.slane %v694, 5
      %v697 = vsel %vm467, %v692, %v696
      %v698 = vshrl.u32 %v438, 16
      %v700 = vrot.slane %v698, 4
      %v701 = vor.u32 %v700, %v696
      %v702 = vrot.slane %v701, 4
      %v704 = vshll.u32 %v439, 16
      %v706 = vrot.slane %v704, 5
      %v707 = vsel %vm467, %v702, %v706
      %v709 = vshrl.u32 %v440, 16
      %v711 = vrot.slane %v709, 4
      %v712 = vshll.u32 %v440, 16
      %v714 = vrot.slane %v712, 5
      %v715 = vor.u32 %v711, %v714
      %v716 = vrot.slane %v715, 4
      %v718 = vshll.u32 %v441, 16
      %v720 = vrot.slane %v718, 5
      %v721 = vsel %vm467, %v716, %v720
      %v722 = vshrl.u32 %v441, 16
      %v724 = vrot.slane %v722, 4
      %v725 = vor.u32 %v724, %v720
      %v726 = vrot.slane %v725, 4
      %v728 = vshll.u32 %v442, 16
      %v730 = vrot.slane %v728, 5
      %v731 = vsel %vm467, %v726, %v730
      %v733 = vshrl.u32 %v443, 16
      %v735 = vrot.slane %v733, 4
      %v736 = vshll.u32 %v443, 16
      %v738 = vrot.slane %v736, 5
      %v739 = vor.u32 %v735, %v738
      %v740 = vrot.slane %v739, 4
      %v742 = vshll.u32 %v444, 16
      %v744 = vrot.slane %v742, 5
      %v745 = vsel %vm467, %v740, %v744
      %v746 = vshrl.u32 %v444, 16
      %v748 = vrot.slane %v746, 4
      %v749 = vor.u32 %v748, %v744
      %v750 = vrot.slane %v749, 4
      %v752 = vshll.u32 %v445, 16
      %v754 = vrot.slane %v752, 5
      %v755 = vsel %vm467, %v750, %v754
      %v757 = vshrl.u32 %v446, 16
      %v759 = vrot.slane %v757, 4
      %v760 = vshll.u32 %v446, 16
      %v762 = vrot.slane %v760, 5
      %v763 = vor.u32 %v759, %v762
      %v764 = vrot.slane %v763, 4
      %v766 = vshll.u32 %v447, 16
      %v768 = vrot.slane %v766, 5
      %v769 = vsel %vm467, %v764, %v768
      %v770 = vshrl.u32 %v447, 16
      %v772 = vrot.slane %v770, 4
      %v773 = vor.u32 %v772, %v768
      %v774 = vrot.slane %v773, 4
      %v776 = vshll.u32 %v448, 16
      %v778 = vrot.slane %v776, 5
      %v779 = vsel %vm467, %v774, %v778
      %v781 = vshrl.u32 %v449, 16
      %v783 = vrot.slane %v781, 4
      %v784 = vshll.u32 %v449, 16
      %v786 = vrot.slane %v784, 5
      %v787 = vor.u32 %v783, %v786
      %v788 = vrot.slane %v787, 4
      %v790 = vshll.u32 %v450, 16
      %v792 = vrot.slane %v790, 5
      %v793 = vsel %vm467, %v788, %v792
      %v794 = vshrl.u32 %v450, 16
      %v796 = vrot.slane %v794, 4
      %v797 = vor.u32 %v796, %v792
      %v798 = vrot.slane %v797, 4
      %v800 = vshll.u32 %v451, 16
      %v802 = vrot.slane %v800, 5
      %v803 = vsel %vm467, %v798, %v802
      %v805 = vshrl.u32 %v452, 16
      %v807 = vrot.slane %v805, 4
      %v808 = vshll.u32 %v452, 16
      %v810 = vrot.slane %v808, 5
      %v811 = vor.u32 %v807, %v810
      %v812 = vrot.slane %v811, 4
      %v814 = vshll.u32 %v453, 16
      %v816 = vrot.slane %v814, 5
      %v817 = vsel %vm467, %v812, %v816
      %v818 = vshrl.u32 %v453, 16
      %v820 = vrot.slane %v818, 4
      %v821 = vor.u32 %v820, %v816
      %v822 = vrot.slane %v821, 4
      %v824 = vshll.u32 %v454, 16
      %v826 = vrot.slane %v824, 5
      %v827 = vsel %vm467, %v822, %v826
      %v829 = vshrl.u32 %v455, 16
      %v831 = vrot.slane %v829, 4
      %v832 = vshll.u32 %v455, 16
      %v834 = vrot.slane %v832, 5
      %v835 = vor.u32 %v831, %v834
      %v836 = vrot.slane %v835, 4
      %v838 = vshll.u32 %v456, 16
      %v840 = vrot.slane %v838, 5
      %v841 = vsel %vm467, %v836, %v840
      %v842 = vshrl.u32 %v456, 16
      %v844 = vrot.slane %v842, 4
      %v845 = vor.u32 %v844, %v840
      %v846 = vrot.slane %v845, 4
      %v848 = vshll.u32 %v457, 16
      %v850 = vrot.slane %v848, 5
      %v851 = vsel %vm467, %v846, %v850
      %s852 = scalar_lea.vmem %s3, 2
      %v853 = vld [vmem:[%s852] sm:$0x3]
      %v854 = vunpack.c.l.b16 %v481
      %v855 = vunpack.c.l.b16 %v491
      %v856 = vunpack.c.l.b16 %v505
      %v857 = vunpack.c.l.b16 %v515
      %v858 = vunpack.c.l.b16 %v529
      %v859 = vunpack.c.l.b16 %v539
      %v860 = vunpack.c.l.b16 %v553
      %v861 = vunpack.c.l.b16 %v563
      %v862 = vunpack.c.l.b16 %v577
      %v863 = vunpack.c.l.b16 %v587
      %v864 = vunpack.c.l.b16 %v601
      %v865 = vunpack.c.l.b16 %v611
      %v866 = vunpack.c.l.b16 %v625
      %v867 = vunpack.c.l.b16 %v635
      %v868 = vunpack.c.l.b16 %v649
      %v869 = vunpack.c.l.b16 %v659
      %v870 = vunpack.c.l.b16 %v673
      %v871 = vunpack.c.l.b16 %v683
      %v872 = vunpack.c.l.b16 %v697
      %v873 = vunpack.c.l.b16 %v707
      %v874 = vunpack.c.l.b16 %v721
      %v875 = vunpack.c.l.b16 %v731
      %v876 = vunpack.c.l.b16 %v745
      %v877 = vunpack.c.l.b16 %v755
      %v878 = vunpack.c.l.b16 %v769
      %v879 = vunpack.c.l.b16 %v779
      %v880 = vunpack.c.l.b16 %v793
      %v881 = vunpack.c.l.b16 %v803
      %v882 = vunpack.c.l.b16 %v817
      %v883 = vunpack.c.l.b16 %v827
      %v884 = vunpack.c.l.b16 %v841
      %v885 = vunpack.c.l.b16 %v851
      %v886 = vpack.c.b16 %v855, %v854
      %v887 = vpack.c.b16 %v857, %v856
      %v888 = vpack.c.b16 %v859, %v858
      %v889 = vpack.c.b16 %v861, %v860
      %v890 = vpack.c.b16 %v863, %v862
      %v891 = vpack.c.b16 %v865, %v864
      %v892 = vpack.c.b16 %v867, %v866
      %v893 = vpack.c.b16 %v869, %v868
      %v894 = vpack.c.b16 %v871, %v870
      %v895 = vpack.c.b16 %v873, %v872
      %v896 = vpack.c.b16 %v875, %v874
      %v897 = vpack.c.b16 %v877, %v876
      %v898 = vpack.c.b16 %v879, %v878
      %v899 = vpack.c.b16 %v881, %v880
      %v900 = vpack.c.b16 %v883, %v882
      %v901 = vpack.c.b16 %v885, %v884
      %vm902 = vcmask 31744
      %v904 = vsel %vm902, %v886, 0
      %v907 = vsel %vm902, %v887, 0
      %v910 = vsel %vm902, %v888, 0
      %v913 = vsel %vm902, %v889, 0
      %v916 = vsel %vm902, %v890, 0
      %v919 = vsel %vm902, %v891, 0
      %v922 = vsel %vm902, %v892, 0
      %v925 = vsel %vm902, %v893, 0
      %v928 = vsel %vm902, %v894, 0
      %v931 = vsel %vm902, %v895, 0
      %v934 = vsel %vm902, %v896, 0
      %v937 = vsel %vm902, %v897, 0
      %v940 = vsel %vm902, %v898, 0
      %v943 = vsel %vm902, %v899, 0
      %v946 = vsel %vm902, %v900, 0
      %v949 = vsel %vm902, %v901, 0
      %vm951 = vcmask 1041408
      %v953 = vsel %vm951, %v853, 0
      %955 = vmatprep.subr.bf16.mxu0 0
      %956 = vmatpush1.bf16.msra.mxu0 0
      %957 = vmatprep.subr.bf16.mxu0 0
      %958 = vmatpush1.bf16.msra.mxu0 0
      %959 = vmatprep.subr.bf16.mxu0 0
      %960 = vmatpush1.bf16.msra.mxu0 0
      %961 = vmatprep.subr.bf16.mxu0 0
      %962 = vmatpush1.bf16.msra.mxu0 0
      %963 = vmatprep.subr.bf16.mxu0 0
      %964 = vmatpush1.bf16.msra.mxu0 0
      %965 = vmatprep.subr.bf16.mxu0 0
      %966 = vmatpush1.bf16.msra.mxu0 0
      %967 = vmatprep.subr.bf16.mxu0 0
      %968 = vmatpush1.bf16.msra.mxu0 0
      %969 = vmatprep.subr.bf16.mxu0 0
      %970 = vmatpush1.bf16.msra.mxu0 %v953
      %971 = vmatprep.subr.bf16.mxu0 0
      %972 = vmatpush2.bf16.msra.mxu0 0
      %973 = vmatprep.subr.bf16.mxu0 0
      %974 = vmatpush2.bf16.msra.mxu0 0
      %975 = vmatprep.subr.bf16.mxu0 0
      %976 = vmatpush2.bf16.msra.mxu0 0
      %977 = vmatprep.subr.bf16.mxu0 0
      %978 = vmatpush2.bf16.msra.mxu0 0
      %979 = vmatprep.subr.bf16.mxu0 0
      %980 = vmatpush2.bf16.msra.mxu0 0
      %981 = vmatprep.subr.bf16.mxu0 0
      %982 = vmatpush2.bf16.msra.mxu0 0
      %983 = vmatprep.subr.bf16.mxu0 0
      %984 = vmatpush2.bf16.msra.mxu0 0
      %985 = vmatprep.subr.bf16.mxu0 0
      %986 = vmatpush2.bf16.msra.mxu0 0
      %987 = vmatprep.mubr.bf16.mxu0 0
      %988 = vmatmul.mubr.bf16.gmra.mxu0 %v904
      %v989 = vpop.f32.mrf.mxu0
      %v990 = vadd.f32 0.0, %v989
      %v991 = vpop.f32.mrf.mxu0
      %v992 = vpop.f32.mrf.mxu0
      %v993 = vadd.f32 0.0, %v992
      %v994 = vpop.f32.mrf.mxu0
      %995 = vmatprep.mubr.bf16.mxu0 0
      %996 = vmatmul.mubr.bf16.gmra.mxu0 %v907
      %v997 = vpop.f32.mrf.mxu0
      %v998 = vadd.f32 0.0, %v997
      %v999 = vpop.f32.mrf.mxu0
      %v1000 = vpop.f32.mrf.mxu0
      %v1001 = vadd.f32 0.0, %v1000
      %v1002 = vpop.f32.mrf.mxu0
      %1003 = vmatprep.mubr.bf16.mxu0 0
      %1004 = vmatmul.mubr.bf16.gmra.mxu0 %v910
      %v1005 = vpop.f32.mrf.mxu0
      %v1006 = vadd.f32 0.0, %v1005
      %v1007 = vpop.f32.mrf.mxu0
      %v1008 = vpop.f32.mrf.mxu0
      %v1009 = vadd.f32 0.0, %v1008
      %v1010 = vpop.f32.mrf.mxu0
      %1011 = vmatprep.mubr.bf16.mxu0 0
      %1012 = vmatmul.mubr.bf16.gmra.mxu0 %v913
      %v1013 = vpop.f32.mrf.mxu0
      %v1014 = vadd.f32 0.0, %v1013
      %v1015 = vpop.f32.mrf.mxu0
      %v1016 = vpop.f32.mrf.mxu0
      %v1017 = vadd.f32 0.0, %v1016
      %v1018 = vpop.f32.mrf.mxu0
      %1019 = vmatprep.mubr.bf16.mxu0 0
      %1020 = vmatmul.mubr.bf16.gmra.mxu0 %v916
      %v1021 = vpop.f32.mrf.mxu0
      %v1022 = vadd.f32 0.0, %v1021
      %v1023 = vpop.f32.mrf.mxu0
      %v1024 = vpop.f32.mrf.mxu0
      %v1025 = vadd.f32 0.0, %v1024
      %v1026 = vpop.f32.mrf.mxu0
      %1027 = vmatprep.mubr.bf16.mxu0 0
      %1028 = vmatmul.mubr.bf16.gmra.mxu0 %v919
      %v1029 = vpop.f32.mrf.mxu0
      %v1030 = vadd.f32 0.0, %v1029
      %v1031 = vpop.f32.mrf.mxu0
      %v1032 = vpop.f32.mrf.mxu0
      %v1033 = vadd.f32 0.0, %v1032
      %v1034 = vpop.f32.mrf.mxu0
      %1035 = vmatprep.mubr.bf16.mxu0 0
      %1036 = vmatmul.mubr.bf16.gmra.mxu0 %v922
      %v1037 = vpop.f32.mrf.mxu0
      %v1038 = vadd.f32 0.0, %v1037
      %v1039 = vpop.f32.mrf.mxu0
      %v1040 = vpop.f32.mrf.mxu0
      %v1041 = vadd.f32 0.0, %v1040
      %v1042 = vpop.f32.mrf.mxu0
      %1043 = vmatprep.mubr.bf16.mxu0 0
      %1044 = vmatmul.mubr.bf16.gmra.mxu0 %v925
      %v1045 = vpop.f32.mrf.mxu0
      %v1046 = vadd.f32 0.0, %v1045
      %v1047 = vpop.f32.mrf.mxu0
      %v1048 = vpop.f32.mrf.mxu0
      %v1049 = vadd.f32 0.0, %v1048
      %v1050 = vpop.f32.mrf.mxu0
      %1051 = vmatprep.mubr.bf16.mxu0 0
      %1052 = vmatmul.mubr.bf16.gmra.mxu0 %v928
      %v1053 = vpop.f32.mrf.mxu0
      %v1054 = vadd.f32 0.0, %v1053
      %v1055 = vpop.f32.mrf.mxu0
      %v1056 = vpop.f32.mrf.mxu0
      %v1057 = vadd.f32 0.0, %v1056
      %v1058 = vpop.f32.mrf.mxu0
      %1059 = vmatprep.mubr.bf16.mxu0 0
      %1060 = vmatmul.mubr.bf16.gmra.mxu0 %v931
      %v1061 = vpop.f32.mrf.mxu0
      %v1062 = vadd.f32 0.0, %v1061
      %v1063 = vpop.f32.mrf.mxu0
      %v1064 = vpop.f32.mrf.mxu0
      %v1065 = vadd.f32 0.0, %v1064
      %v1066 = vpop.f32.mrf.mxu0
      %1067 = vmatprep.mubr.bf16.mxu0 0
      %1068 = vmatmul.mubr.bf16.gmra.mxu0 %v934
      %v1069 = vpop.f32.mrf.mxu0
      %v1070 = vadd.f32 0.0, %v1069
      %v1071 = vpop.f32.mrf.mxu0
      %v1072 = vpop.f32.mrf.mxu0
      %v1073 = vadd.f32 0.0, %v1072
      %v1074 = vpop.f32.mrf.mxu0
      %1075 = vmatprep.mubr.bf16.mxu0 0
      %1076 = vmatmul.mubr.bf16.gmra.mxu0 %v937
      %v1077 = vpop.f32.mrf.mxu0
      %v1078 = vadd.f32 0.0, %v1077
      %v1079 = vpop.f32.mrf.mxu0
      %v1080 = vpop.f32.mrf.mxu0
      %v1081 = vadd.f32 0.0, %v1080
      %v1082 = vpop.f32.mrf.mxu0
      %1083 = vmatprep.mubr.bf16.mxu0 0
      %1084 = vmatmul.mubr.bf16.gmra.mxu0 %v940
      %v1085 = vpop.f32.mrf.mxu0
      %v1086 = vadd.f32 0.0, %v1085
      %v1087 = vpop.f32.mrf.mxu0
      %v1088 = vpop.f32.mrf.mxu0
      %v1089 = vadd.f32 0.0, %v1088
      %v1090 = vpop.f32.mrf.mxu0
      %1091 = vmatprep.mubr.bf16.mxu0 0
      %1092 = vmatmul.mubr.bf16.gmra.mxu0 %v943
      %v1093 = vpop.f32.mrf.mxu0
      %v1094 = vadd.f32 0.0, %v1093
      %v1095 = vpop.f32.mrf.mxu0
      %v1096 = vpop.f32.mrf.mxu0
      %v1097 = vadd.f32 0.0, %v1096
      %v1098 = vpop.f32.mrf.mxu0
      %1099 = vmatprep.mubr.bf16.mxu0 0
      %1100 = vmatmul.mubr.bf16.gmra.mxu0 %v946
      %v1101 = vpop.f32.mrf.mxu0
      %v1102 = vadd.f32 0.0, %v1101
      %v1103 = vpop.f32.mrf.mxu0
      %v1104 = vpop.f32.mrf.mxu0
      %v1105 = vadd.f32 0.0, %v1104
      %v1106 = vpop.f32.mrf.mxu0
      %1107 = vmatprep.mubr.bf16.mxu0 0
      %1108 = vmatmul.mubr.bf16.gmra.mxu0 %v949
      %v1109 = vpop.f32.mrf.mxu0
      %v1110 = vadd.f32 0.0, %v1109
      %v1111 = vpop.f32.mrf.mxu0
      %v1112 = vpop.f32.mrf.mxu0
      %v1113 = vadd.f32 0.0, %v1112
      %v1114 = vpop.f32.mrf.mxu0
      %1115 = vdwg.mxu0
      %v1148 = vunpack.c.l.b16 %v410
      %v1149 = vunpack.c.l.b16 %v411
      %v1150 = vunpack.c.l.b16 %v413
      %v1151 = vunpack.c.l.b16 %v414
      %v1152 = vunpack.c.l.b16 %v416
      %v1153 = vunpack.c.l.b16 %v417
      %v1154 = vunpack.c.l.b16 %v419
      %v1155 = vunpack.c.l.b16 %v420
      %v1156 = vunpack.c.l.b16 %v422
      %v1157 = vunpack.c.l.b16 %v423
      %v1158 = vunpack.c.l.b16 %v425
      %v1159 = vunpack.c.l.b16 %v426
      %v1160 = vunpack.c.l.b16 %v428
      %v1161 = vunpack.c.l.b16 %v429
      %v1162 = vunpack.c.l.b16 %v431
      %v1163 = vunpack.c.l.b16 %v432
      %v1164 = vunpack.c.l.b16 %v434
      %v1165 = vunpack.c.l.b16 %v435
      %v1166 = vunpack.c.l.b16 %v437
      %v1167 = vunpack.c.l.b16 %v438
      %v1168 = vunpack.c.l.b16 %v440
      %v1169 = vunpack.c.l.b16 %v441
      %v1170 = vunpack.c.l.b16 %v443
      %v1171 = vunpack.c.l.b16 %v444
      %v1172 = vunpack.c.l.b16 %v446
      %v1173 = vunpack.c.l.b16 %v447
      %v1174 = vunpack.c.l.b16 %v449
      %v1175 = vunpack.c.l.b16 %v450
      %v1176 = vunpack.c.l.b16 %v452
      %v1177 = vunpack.c.l.b16 %v453
      %v1178 = vunpack.c.l.b16 %v455
      %v1179 = vunpack.c.l.b16 %v456
      %v1180 = vpack.c.b16 %v1149, %v1148
      %v1181 = vpack.c.b16 %v1151, %v1150
      %v1182 = vpack.c.b16 %v1153, %v1152
      %v1183 = vpack.c.b16 %v1155, %v1154
      %v1184 = vpack.c.b16 %v1157, %v1156
      %v1185 = vpack.c.b16 %v1159, %v1158
      %v1186 = vpack.c.b16 %v1161, %v1160
      %v1187 = vpack.c.b16 %v1163, %v1162
      %v1188 = vpack.c.b16 %v1165, %v1164
      %v1189 = vpack.c.b16 %v1167, %v1166
      %v1190 = vpack.c.b16 %v1169, %v1168
      %v1191 = vpack.c.b16 %v1171, %v1170
      %v1192 = vpack.c.b16 %v1173, %v1172
      %v1193 = vpack.c.b16 %v1175, %v1174
      %v1194 = vpack.c.b16 %v1177, %v1176
      %v1195 = vpack.c.b16 %v1179, %v1178
      %v1197 = vsel %vm902, %v1180, 0
      %v1200 = vsel %vm902, %v1181, 0
      %v1203 = vsel %vm902, %v1182, 0
      %v1206 = vsel %vm902, %v1183, 0
      %v1209 = vsel %vm902, %v1184, 0
      %v1212 = vsel %vm902, %v1185, 0
      %v1215 = vsel %vm902, %v1186, 0
      %v1218 = vsel %vm902, %v1187, 0
      %v1221 = vsel %vm902, %v1188, 0
      %v1224 = vsel %vm902, %v1189, 0
      %v1227 = vsel %vm902, %v1190, 0
      %v1230 = vsel %vm902, %v1191, 0
      %v1233 = vsel %vm902, %v1192, 0
      %v1236 = vsel %vm902, %v1193, 0
      %v1239 = vsel %vm902, %v1194, 0
      %v1242 = vsel %vm902, %v1195, 0
      %v1245 = vsel %vm951, %v464, 0
      %1247 = vmatprep.subr.bf16.mxu0 0
      %1248 = vmatpush1.bf16.msra.mxu0 0
      %1249 = vmatprep.subr.bf16.mxu0 0
      %1250 = vmatpush1.bf16.msra.mxu0 0
      %1251 = vmatprep.subr.bf16.mxu0 0
      %1252 = vmatpush1.bf16.msra.mxu0 0
      %1253 = vmatprep.subr.bf16.mxu0 0
      %1254 = vmatpush1.bf16.msra.mxu0 0
      %1255 = vmatprep.subr.bf16.mxu0 0
      %1256 = vmatpush1.bf16.msra.mxu0 0
      %1257 = vmatprep.subr.bf16.mxu0 0
      %1258 = vmatpush1.bf16.msra.mxu0 0
      %1259 = vmatprep.subr.bf16.mxu0 0
      %1260 = vmatpush1.bf16.msra.mxu0 0
      %1261 = vmatprep.subr.bf16.mxu0 0
      %1262 = vmatpush1.bf16.msra.mxu0 %v1245
      %1263 = vmatprep.subr.bf16.mxu0 0
      %1264 = vmatpush2.bf16.msra.mxu0 0
      %1265 = vmatprep.subr.bf16.mxu0 0
      %1266 = vmatpush2.bf16.msra.mxu0 0
      %1267 = vmatprep.subr.bf16.mxu0 0
      %1268 = vmatpush2.bf16.msra.mxu0 0
      %1269 = vmatprep.subr.bf16.mxu0 0
      %1270 = vmatpush2.bf16.msra.mxu0 0
      %1271 = vmatprep.subr.bf16.mxu0 0
      %1272 = vmatpush2.bf16.msra.mxu0 0
      %1273 = vmatprep.subr.bf16.mxu0 0
      %1274 = vmatpush2.bf16.msra.mxu0 0
      %1275 = vmatprep.subr.bf16.mxu0 0
      %1276 = vmatpush2.bf16.msra.mxu0 0
      %1277 = vmatprep.subr.bf16.mxu0 0
      %1278 = vmatpush2.bf16.msra.mxu0 0
      %1279 = vmatprep.mubr.bf16.mxu0 0
      %1280 = vmatmul.mubr.bf16.gmra.mxu0 %v1197
      %v1281 = vpop.f32.mrf.mxu0
      %v1282 = vadd.f32 %v990, %v1281
      %v1283 = vpop.f32.mrf.mxu0
      %v1284 = vpop.f32.mrf.mxu0
      %v1285 = vadd.f32 %v993, %v1284
      %v1286 = vpop.f32.mrf.mxu0
      %1287 = vmatprep.mubr.bf16.mxu0 0
      %1288 = vmatmul.mubr.bf16.gmra.mxu0 %v1200
      %v1289 = vpop.f32.mrf.mxu0
      %v1290 = vadd.f32 %v998, %v1289
      %v1291 = vpop.f32.mrf.mxu0
      %v1292 = vpop.f32.mrf.mxu0
      %v1293 = vadd.f32 %v1001, %v1292
      %v1294 = vpop.f32.mrf.mxu0
      %1295 = vmatprep.mubr.bf16.mxu0 0
      %1296 = vmatmul.mubr.bf16.gmra.mxu0 %v1203
      %v1297 = vpop.f32.mrf.mxu0
      %v1298 = vadd.f32 %v1006, %v1297
      %v1299 = vpop.f32.mrf.mxu0
      %v1300 = vpop.f32.mrf.mxu0
      %v1301 = vadd.f32 %v1009, %v1300
      %v1302 = vpop.f32.mrf.mxu0
      %1303 = vmatprep.mubr.bf16.mxu0 0
      %1304 = vmatmul.mubr.bf16.gmra.mxu0 %v1206
      %v1305 = vpop.f32.mrf.mxu0
      %v1306 = vadd.f32 %v1014, %v1305
      %v1307 = vpop.f32.mrf.mxu0
      %v1308 = vpop.f32.mrf.mxu0
      %v1309 = vadd.f32 %v1017, %v1308
      %v1310 = vpop.f32.mrf.mxu0
      %1311 = vmatprep.mubr.bf16.mxu0 0
      %1312 = vmatmul.mubr.bf16.gmra.mxu0 %v1209
      %v1313 = vpop.f32.mrf.mxu0
      %v1314 = vadd.f32 %v1022, %v1313
      %v1315 = vpop.f32.mrf.mxu0
      %v1316 = vpop.f32.mrf.mxu0
      %v1317 = vadd.f32 %v1025, %v1316
      %v1318 = vpop.f32.mrf.mxu0
      %1319 = vmatprep.mubr.bf16.mxu0 0
      %1320 = vmatmul.mubr.bf16.gmra.mxu0 %v1212
      %v1321 = vpop.f32.mrf.mxu0
      %v1322 = vadd.f32 %v1030, %v1321
      %v1323 = vpop.f32.mrf.mxu0
      %v1324 = vpop.f32.mrf.mxu0
      %v1325 = vadd.f32 %v1033, %v1324
      %v1326 = vpop.f32.mrf.mxu0
      %1327 = vmatprep.mubr.bf16.mxu0 0
      %1328 = vmatmul.mubr.bf16.gmra.mxu0 %v1215
      %v1329 = vpop.f32.mrf.mxu0
      %v1330 = vadd.f32 %v1038, %v1329
      %v1331 = vpop.f32.mrf.mxu0
      %v1332 = vpop.f32.mrf.mxu0
      %v1333 = vadd.f32 %v1041, %v1332
      %v1334 = vpop.f32.mrf.mxu0
      %1335 = vmatprep.mubr.bf16.mxu0 0
      %1336 = vmatmul.mubr.bf16.gmra.mxu0 %v1218
      %v1337 = vpop.f32.mrf.mxu0
      %v1338 = vadd.f32 %v1046, %v1337
      %v1339 = vpop.f32.mrf.mxu0
      %v1340 = vpop.f32.mrf.mxu0
      %v1341 = vadd.f32 %v1049, %v1340
      %v1342 = vpop.f32.mrf.mxu0
      %1343 = vmatprep.mubr.bf16.mxu0 0
      %1344 = vmatmul.mubr.bf16.gmra.mxu0 %v1221
      %v1345 = vpop.f32.mrf.mxu0
      %v1346 = vadd.f32 %v1054, %v1345
      %v1347 = vpop.f32.mrf.mxu0
      %v1348 = vpop.f32.mrf.mxu0
      %v1349 = vadd.f32 %v1057, %v1348
      %v1350 = vpop.f32.mrf.mxu0
      %1351 = vmatprep.mubr.bf16.mxu0 0
      %1352 = vmatmul.mubr.bf16.gmra.mxu0 %v1224
      %v1353 = vpop.f32.mrf.mxu0
      %v1354 = vadd.f32 %v1062, %v1353
      %v1355 = vpop.f32.mrf.mxu0
      %v1356 = vpop.f32.mrf.mxu0
      %v1357 = vadd.f32 %v1065, %v1356
      %v1358 = vpop.f32.mrf.mxu0
      %1359 = vmatprep.mubr.bf16.mxu0 0
      %1360 = vmatmul.mubr.bf16.gmra.mxu0 %v1227
      %v1361 = vpop.f32.mrf.mxu0
      %v1362 = vadd.f32 %v1070, %v1361
      %v1363 = vpop.f32.mrf.mxu0
      %v1364 = vpop.f32.mrf.mxu0
      %v1365 = vadd.f32 %v1073, %v1364
      %v1366 = vpop.f32.mrf.mxu0
      %1367 = vmatprep.mubr.bf16.mxu0 0
      %1368 = vmatmul.mubr.bf16.gmra.mxu0 %v1230
      %v1369 = vpop.f32.mrf.mxu0
      %v1370 = vadd.f32 %v1078, %v1369
      %v1371 = vpop.f32.mrf.mxu0
      %v1372 = vpop.f32.mrf.mxu0
      %v1373 = vadd.f32 %v1081, %v1372
      %v1374 = vpop.f32.mrf.mxu0
      %1375 = vmatprep.mubr.bf16.mxu0 0
      %1376 = vmatmul.mubr.bf16.gmra.mxu0 %v1233
      %v1377 = vpop.f32.mrf.mxu0
      %v1378 = vadd.f32 %v1086, %v1377
      %v1379 = vpop.f32.mrf.mxu0
      %v1380 = vpop.f32.mrf.mxu0
      %v1381 = vadd.f32 %v1089, %v1380
      %v1382 = vpop.f32.mrf.mxu0
      %1383 = vmatprep.mubr.bf16.mxu0 0
      %1384 = vmatmul.mubr.bf16.gmra.mxu0 %v1236
      %v1385 = vpop.f32.mrf.mxu0
      %v1386 = vadd.f32 %v1094, %v1385
      %v1387 = vpop.f32.mrf.mxu0
      %v1388 = vpop.f32.mrf.mxu0
      %v1389 = vadd.f32 %v1097, %v1388
      %v1390 = vpop.f32.mrf.mxu0
      %1391 = vmatprep.mubr.bf16.mxu0 0
      %1392 = vmatmul.mubr.bf16.gmra.mxu0 %v1239
      %v1393 = vpop.f32.mrf.mxu0
      %v1394 = vadd.f32 %v1102, %v1393
      %v1395 = vpop.f32.mrf.mxu0
      %v1396 = vpop.f32.mrf.mxu0
      %v1397 = vadd.f32 %v1105, %v1396
      %v1398 = vpop.f32.mrf.mxu0
      %1399 = vmatprep.mubr.bf16.mxu0 0
      %1400 = vmatmul.mubr.bf16.gmra.mxu0 %v1242
      %v1401 = vpop.f32.mrf.mxu0
      %v1402 = vadd.f32 %v1110, %v1401
      %v1403 = vpop.f32.mrf.mxu0
      %v1404 = vpop.f32.mrf.mxu0
      %v1405 = vadd.f32 %v1113, %v1404
      %v1406 = vpop.f32.mrf.mxu0
      %1407 = vdwg.mxu0
      %vm1424 = vcmask 1042432
      %vm1425 = vcmask 1046532
      %vm1426 = vmor %vm1424, %vm1425
      %v1427 = vrot.slane %v410, 5
      %v1428 = vrot.slane %v1427, 4
      %v1429 = vrot.slane %v411, 5
      %v1430 = vsel %vm1426, %v1428, %v1429
      %v1431 = vrot.slane %v1429, 4
      %v1432 = vrot.slane %v412, 5
      %v1433 = vsel %vm1426, %v1431, %v1432
      %v1434 = vrot.slane %v413, 5
      %v1435 = vrot.slane %v1434, 4
      %v1436 = vrot.slane %v414, 5
      %v1437 = vsel %vm1426, %v1435, %v1436
      %v1438 = vrot.slane %v1436, 4
      %v1439 = vrot.slane %v415, 5
      %v1440 = vsel %vm1426, %v1438, %v1439
      %v1441 = vrot.slane %v416, 5
      %v1442 = vrot.slane %v1441, 4
      %v1443 = vrot.slane %v417, 5
      %v1444 = vsel %vm1426, %v1442, %v1443
      %v1445 = vrot.slane %v1443, 4
      %v1446 = vrot.slane %v418, 5
      %v1447 = vsel %vm1426, %v1445, %v1446
      %v1448 = vrot.slane %v419, 5
      %v1449 = vrot.slane %v1448, 4
      %v1450 = vrot.slane %v420, 5
      %v1451 = vsel %vm1426, %v1449, %v1450
      %v1452 = vrot.slane %v1450, 4
      %v1453 = vrot.slane %v421, 5
      %v1454 = vsel %vm1426, %v1452, %v1453
      %v1455 = vrot.slane %v422, 5
      %v1456 = vrot.slane %v1455, 4
      %v1457 = vrot.slane %v423, 5
      %v1458 = vsel %vm1426, %v1456, %v1457
      %v1459 = vrot.slane %v1457, 4
      %v1460 = vrot.slane %v424, 5
      %v1461 = vsel %vm1426, %v1459, %v1460
      %v1462 = vrot.slane %v425, 5
      %v1463 = vrot.slane %v1462, 4
      %v1464 = vrot.slane %v426, 5
      %v1465 = vsel %vm1426, %v1463, %v1464
      %v1466 = vrot.slane %v1464, 4
      %v1467 = vrot.slane %v427, 5
      %v1468 = vsel %vm1426, %v1466, %v1467
      %v1469 = vrot.slane %v428, 5
      %v1470 = vrot.slane %v1469, 4
      %v1471 = vrot.slane %v429, 5
      %v1472 = vsel %vm1426, %v1470, %v1471
      %v1473 = vrot.slane %v1471, 4
      %v1474 = vrot.slane %v430, 5
      %v1475 = vsel %vm1426, %v1473, %v1474
      %v1476 = vrot.slane %v431, 5
      %v1477 = vrot.slane %v1476, 4
      %v1478 = vrot.slane %v432, 5
      %v1479 = vsel %vm1426, %v1477, %v1478
      %v1480 = vrot.slane %v1478, 4
      %v1481 = vrot.slane %v433, 5
      %v1482 = vsel %vm1426, %v1480, %v1481
      %v1483 = vrot.slane %v434, 5
      %v1484 = vrot.slane %v1483, 4
      %v1485 = vrot.slane %v435, 5
      %v1486 = vsel %vm1426, %v1484, %v1485
      %v1487 = vrot.slane %v1485, 4
      %v1488 = vrot.slane %v436, 5
      %v1489 = vsel %vm1426, %v1487, %v1488
      %v1490 = vrot.slane %v437, 5
      %v1491 = vrot.slane %v1490, 4
      %v1492 = vrot.slane %v438, 5
      %v1493 = vsel %vm1426, %v1491, %v1492
      %v1494 = vrot.slane %v1492, 4
      %v1495 = vrot.slane %v439, 5
      %v1496 = vsel %vm1426, %v1494, %v1495
      %v1497 = vrot.slane %v440, 5
      %v1498 = vrot.slane %v1497, 4
      %v1499 = vrot.slane %v441, 5
      %v1500 = vsel %vm1426, %v1498, %v1499
      %v1501 = vrot.slane %v1499, 4
      %v1502 = vrot.slane %v442, 5
      %v1503 = vsel %vm1426, %v1501, %v1502
      %v1504 = vrot.slane %v443, 5
      %v1505 = vrot.slane %v1504, 4
      %v1506 = vrot.slane %v444, 5
      %v1507 = vsel %vm1426, %v1505, %v1506
      %v1508 = vrot.slane %v1506, 4
      %v1509 = vrot.slane %v445, 5
      %v1510 = vsel %vm1426, %v1508, %v1509
      %v1511 = vrot.slane %v446, 5
      %v1512 = vrot.slane %v1511, 4
      %v1513 = vrot.slane %v447, 5
      %v1514 = vsel %vm1426, %v1512, %v1513
      %v1515 = vrot.slane %v1513, 4
      %v1516 = vrot.slane %v448, 5
      %v1517 = vsel %vm1426, %v1515, %v1516
      %v1518 = vrot.slane %v449, 5
      %v1519 = vrot.slane %v1518, 4
      %v1520 = vrot.slane %v450, 5
      %v1521 = vsel %vm1426, %v1519, %v1520
      %v1522 = vrot.slane %v1520, 4
      %v1523 = vrot.slane %v451, 5
      %v1524 = vsel %vm1426, %v1522, %v1523
      %v1525 = vrot.slane %v452, 5
      %v1526 = vrot.slane %v1525, 4
      %v1527 = vrot.slane %v453, 5
      %v1528 = vsel %vm1426, %v1526, %v1527
      %v1529 = vrot.slane %v1527, 4
      %v1530 = vrot.slane %v454, 5
      %v1531 = vsel %vm1426, %v1529, %v1530
      %v1532 = vrot.slane %v455, 5
      %v1533 = vrot.slane %v1532, 4
      %v1534 = vrot.slane %v456, 5
      %v1535 = vsel %vm1426, %v1533, %v1534
      %v1536 = vrot.slane %v1534, 4
      %v1537 = vrot.slane %v457, 5
      %v1538 = vsel %vm1426, %v1536, %v1537
      %s1539 = scalar_lea.vmem %s3, 4
      %v1540 = vld [vmem:[%s1539] sm:$0x3]
      %v1541 = vunpack.c.l.b16 %v1430
      %v1542 = vunpack.c.l.b16 %v1433
      %v1543 = vunpack.c.l.b16 %v1437
      %v1544 = vunpack.c.l.b16 %v1440
      %v1545 = vunpack.c.l.b16 %v1444
      %v1546 = vunpack.c.l.b16 %v1447
      %v1547 = vunpack.c.l.b16 %v1451
      %v1548 = vunpack.c.l.b16 %v1454
      %v1549 = vunpack.c.l.b16 %v1458
      %v1550 = vunpack.c.l.b16 %v1461
      %v1551 = vunpack.c.l.b16 %v1465
      %v1552 = vunpack.c.l.b16 %v1468
      %v1553 = vunpack.c.l.b16 %v1472
      %v1554 = vunpack.c.l.b16 %v1475
      %v1555 = vunpack.c.l.b16 %v1479
      %v1556 = vunpack.c.l.b16 %v1482
      %v1557 = vunpack.c.l.b16 %v1486
      %v1558 = vunpack.c.l.b16 %v1489
      %v1559 = vunpack.c.l.b16 %v1493
      %v1560 = vunpack.c.l.b16 %v1496
      %v1561 = vunpack.c.l.b16 %v1500
      %v1562 = vunpack.c.l.b16 %v1503
      %v1563 = vunpack.c.l.b16 %v1507
      %v1564 = vunpack.c.l.b16 %v1510
      %v1565 = vunpack.c.l.b16 %v1514
      %v1566 = vunpack.c.l.b16 %v1517
      %v1567 = vunpack.c.l.b16 %v1521
      %v1568 = vunpack.c.l.b16 %v1524
      %v1569 = vunpack.c.l.b16 %v1528
      %v1570 = vunpack.c.l.b16 %v1531
      %v1571 = vunpack.c.l.b16 %v1535
      %v1572 = vunpack.c.l.b16 %v1538
      %v1573 = vpack.c.b16 %v1542, %v1541
      %v1574 = vpack.c.b16 %v1544, %v1543
      %v1575 = vpack.c.b16 %v1546, %v1545
      %v1576 = vpack.c.b16 %v1548, %v1547
      %v1577 = vpack.c.b16 %v1550, %v1549
      %v1578 = vpack.c.b16 %v1552, %v1551
      %v1579 = vpack.c.b16 %v1554, %v1553
      %v1580 = vpack.c.b16 %v1556, %v1555
      %v1581 = vpack.c.b16 %v1558, %v1557
      %v1582 = vpack.c.b16 %v1560, %v1559
      %v1583 = vpack.c.b16 %v1562, %v1561
      %v1584 = vpack.c.b16 %v1564, %v1563
      %v1585 = vpack.c.b16 %v1566, %v1565
      %v1586 = vpack.c.b16 %v1568, %v1567
      %v1587 = vpack.c.b16 %v1570, %v1569
      %v1588 = vpack.c.b16 %v1572, %v1571
      %v1590 = vsel %vm902, %v1573, 0
      %v1593 = vsel %vm902, %v1574, 0
      %v1596 = vsel %vm902, %v1575, 0
      %v1599 = vsel %vm902, %v1576, 0
      %v1602 = vsel %vm902, %v1577, 0
      %v1605 = vsel %vm902, %v1578, 0
      %v1608 = vsel %vm902, %v1579, 0
      %v1611 = vsel %vm902, %v1580, 0
      %v1614 = vsel %vm902, %v1581, 0
      %v1617 = vsel %vm902, %v1582, 0
      %v1620 = vsel %vm902, %v1583, 0
      %v1623 = vsel %vm902, %v1584, 0
      %v1626 = vsel %vm902, %v1585, 0
      %v1629 = vsel %vm902, %v1586, 0
      %v1632 = vsel %vm902, %v1587, 0
      %v1635 = vsel %vm902, %v1588, 0
      %v1638 = vsel %vm951, %v1540, 0
      %1640 = vmatprep.subr.bf16.mxu0 0
      %1641 = vmatpush1.bf16.msra.mxu0 0
      %1642 = vmatprep.subr.bf16.mxu0 0
      %1643 = vmatpush1.bf16.msra.mxu0 0
      %1644 = vmatprep.subr.bf16.mxu0 0
      %1645 = vmatpush1.bf16.msra.mxu0 0
      %1646 = vmatprep.subr.bf16.mxu0 0
      %1647 = vmatpush1.bf16.msra.mxu0 0
      %1648 = vmatprep.subr.bf16.mxu0 0
      %1649 = vmatpush1.bf16.msra.mxu0 0
      %1650 = vmatprep.subr.bf16.mxu0 0
      %1651 = vmatpush1.bf16.msra.mxu0 0
      %1652 = vmatprep.subr.bf16.mxu0 0
      %1653 = vmatpush1.bf16.msra.mxu0 0
      %1654 = vmatprep.subr.bf16.mxu0 0
      %1655 = vmatpush1.bf16.msra.mxu0 %v1638
      %1656 = vmatprep.subr.bf16.mxu0 0
      %1657 = vmatpush2.bf16.msra.mxu0 0
      %1658 = vmatprep.subr.bf16.mxu0 0
      %1659 = vmatpush2.bf16.msra.mxu0 0
      %1660 = vmatprep.subr.bf16.mxu0 0
      %1661 = vmatpush2.bf16.msra.mxu0 0
      %1662 = vmatprep.subr.bf16.mxu0 0
      %1663 = vmatpush2.bf16.msra.mxu0 0
      %1664 = vmatprep.subr.bf16.mxu0 0
      %1665 = vmatpush2.bf16.msra.mxu0 0
      %1666 = vmatprep.subr.bf16.mxu0 0
      %1667 = vmatpush2.bf16.msra.mxu0 0
      %1668 = vmatprep.subr.bf16.mxu0 0
      %1669 = vmatpush2.bf16.msra.mxu0 0
      %1670 = vmatprep.subr.bf16.mxu0 0
      %1671 = vmatpush2.bf16.msra.mxu0 0
      %1672 = vmatprep.mubr.bf16.mxu0 0
      %1673 = vmatmul.mubr.bf16.gmra.mxu0 %v1590
      %v1674 = vpop.f32.mrf.mxu0
      %v1675 = vadd.f32 0.0, %v1674
      %v1676 = vpop.f32.mrf.mxu0
      %v1677 = vpop.f32.mrf.mxu0
      %v1678 = vadd.f32 0.0, %v1677
      %v1679 = vpop.f32.mrf.mxu0
      %1680 = vmatprep.mubr.bf16.mxu0 0
      %1681 = vmatmul.mubr.bf16.gmra.mxu0 %v1593
      %v1682 = vpop.f32.mrf.mxu0
      %v1683 = vadd.f32 0.0, %v1682
      %v1684 = vpop.f32.mrf.mxu0
      %v1685 = vpop.f32.mrf.mxu0
      %v1686 = vadd.f32 0.0, %v1685
      %v1687 = vpop.f32.mrf.mxu0
      %1688 = vmatprep.mubr.bf16.mxu0 0
      %1689 = vmatmul.mubr.bf16.gmra.mxu0 %v1596
      %v1690 = vpop.f32.mrf.mxu0
      %v1691 = vadd.f32 0.0, %v1690
      %v1692 = vpop.f32.mrf.mxu0
      %v1693 = vpop.f32.mrf.mxu0
      %v1694 = vadd.f32 0.0, %v1693
      %v1695 = vpop.f32.mrf.mxu0
      %1696 = vmatprep.mubr.bf16.mxu0 0
      %1697 = vmatmul.mubr.bf16.gmra.mxu0 %v1599
      %v1698 = vpop.f32.mrf.mxu0
      %v1699 = vadd.f32 0.0, %v1698
      %v1700 = vpop.f32.mrf.mxu0
      %v1701 = vpop.f32.mrf.mxu0
      %v1702 = vadd.f32 0.0, %v1701
      %v1703 = vpop.f32.mrf.mxu0
      %1704 = vmatprep.mubr.bf16.mxu0 0
      %1705 = vmatmul.mubr.bf16.gmra.mxu0 %v1602
      %v1706 = vpop.f32.mrf.mxu0
      %v1707 = vadd.f32 0.0, %v1706
      %v1708 = vpop.f32.mrf.mxu0
      %v1709 = vpop.f32.mrf.mxu0
      %v1710 = vadd.f32 0.0, %v1709
      %v1711 = vpop.f32.mrf.mxu0
      %1712 = vmatprep.mubr.bf16.mxu0 0
      %1713 = vmatmul.mubr.bf16.gmra.mxu0 %v1605
      %v1714 = vpop.f32.mrf.mxu0
      %v1715 = vadd.f32 0.0, %v1714
      %v1716 = vpop.f32.mrf.mxu0
      %v1717 = vpop.f32.mrf.mxu0
      %v1718 = vadd.f32 0.0, %v1717
      %v1719 = vpop.f32.mrf.mxu0
      %1720 = vmatprep.mubr.bf16.mxu0 0
      %1721 = vmatmul.mubr.bf16.gmra.mxu0 %v1608
      %v1722 = vpop.f32.mrf.mxu0
      %v1723 = vadd.f32 0.0, %v1722
      %v1724 = vpop.f32.mrf.mxu0
      %v1725 = vpop.f32.mrf.mxu0
      %v1726 = vadd.f32 0.0, %v1725
      %v1727 = vpop.f32.mrf.mxu0
      %1728 = vmatprep.mubr.bf16.mxu0 0
      %1729 = vmatmul.mubr.bf16.gmra.mxu0 %v1611
      %v1730 = vpop.f32.mrf.mxu0
      %v1731 = vadd.f32 0.0, %v1730
      %v1732 = vpop.f32.mrf.mxu0
      %v1733 = vpop.f32.mrf.mxu0
      %v1734 = vadd.f32 0.0, %v1733
      %v1735 = vpop.f32.mrf.mxu0
      %1736 = vmatprep.mubr.bf16.mxu0 0
      %1737 = vmatmul.mubr.bf16.gmra.mxu0 %v1614
      %v1738 = vpop.f32.mrf.mxu0
      %v1739 = vadd.f32 0.0, %v1738
      %v1740 = vpop.f32.mrf.mxu0
      %v1741 = vpop.f32.mrf.mxu0
      %v1742 = vadd.f32 0.0, %v1741
      %v1743 = vpop.f32.mrf.mxu0
      %1744 = vmatprep.mubr.bf16.mxu0 0
      %1745 = vmatmul.mubr.bf16.gmra.mxu0 %v1617
      %v1746 = vpop.f32.mrf.mxu0
      %v1747 = vadd.f32 0.0, %v1746
      %v1748 = vpop.f32.mrf.mxu0
      %v1749 = vpop.f32.mrf.mxu0
      %v1750 = vadd.f32 0.0, %v1749
      %v1751 = vpop.f32.mrf.mxu0
      %1752 = vmatprep.mubr.bf16.mxu0 0
      %1753 = vmatmul.mubr.bf16.gmra.mxu0 %v1620
      %v1754 = vpop.f32.mrf.mxu0
      %v1755 = vadd.f32 0.0, %v1754
      %v1756 = vpop.f32.mrf.mxu0
      %v1757 = vpop.f32.mrf.mxu0
      %v1758 = vadd.f32 0.0, %v1757
      %v1759 = vpop.f32.mrf.mxu0
      %1760 = vmatprep.mubr.bf16.mxu0 0
      %1761 = vmatmul.mubr.bf16.gmra.mxu0 %v1623
      %v1762 = vpop.f32.mrf.mxu0
      %v1763 = vadd.f32 0.0, %v1762
      %v1764 = vpop.f32.mrf.mxu0
      %v1765 = vpop.f32.mrf.mxu0
      %v1766 = vadd.f32 0.0, %v1765
      %v1767 = vpop.f32.mrf.mxu0
      %1768 = vmatprep.mubr.bf16.mxu0 0
      %1769 = vmatmul.mubr.bf16.gmra.mxu0 %v1626
      %v1770 = vpop.f32.mrf.mxu0
      %v1771 = vadd.f32 0.0, %v1770
      %v1772 = vpop.f32.mrf.mxu0
      %v1773 = vpop.f32.mrf.mxu0
      %v1774 = vadd.f32 0.0, %v1773
      %v1775 = vpop.f32.mrf.mxu0
      %1776 = vmatprep.mubr.bf16.mxu0 0
      %1777 = vmatmul.mubr.bf16.gmra.mxu0 %v1629
      %v1778 = vpop.f32.mrf.mxu0
      %v1779 = vadd.f32 0.0, %v1778
      %v1780 = vpop.f32.mrf.mxu0
      %v1781 = vpop.f32.mrf.mxu0
      %v1782 = vadd.f32 0.0, %v1781
      %v1783 = vpop.f32.mrf.mxu0
      %1784 = vmatprep.mubr.bf16.mxu0 0
      %1785 = vmatmul.mubr.bf16.gmra.mxu0 %v1632
      %v1786 = vpop.f32.mrf.mxu0
      %v1787 = vadd.f32 0.0, %v1786
      %v1788 = vpop.f32.mrf.mxu0
      %v1789 = vpop.f32.mrf.mxu0
      %v1790 = vadd.f32 0.0, %v1789
      %v1791 = vpop.f32.mrf.mxu0
      %1792 = vmatprep.mubr.bf16.mxu0 0
      %1793 = vmatmul.mubr.bf16.gmra.mxu0 %v1635
      %v1794 = vpop.f32.mrf.mxu0
      %v1795 = vadd.f32 0.0, %v1794
      %v1796 = vpop.f32.mrf.mxu0
      %v1797 = vpop.f32.mrf.mxu0
      %v1798 = vadd.f32 0.0, %v1797
      %v1799 = vpop.f32.mrf.mxu0
      %1800 = vdwg.mxu0
      %v1801 = vadd.f32 %v1282, %v1675
      %v1802 = vadd.f32 %v1285, %v1678
      %v1803 = vadd.f32 %v1290, %v1683
      %v1804 = vadd.f32 %v1293, %v1686
      %v1805 = vadd.f32 %v1298, %v1691
      %v1806 = vadd.f32 %v1301, %v1694
      %v1807 = vadd.f32 %v1306, %v1699
      %v1808 = vadd.f32 %v1309, %v1702
      %v1809 = vadd.f32 %v1314, %v1707
      %v1810 = vadd.f32 %v1317, %v1710
      %v1811 = vadd.f32 %v1322, %v1715
      %v1812 = vadd.f32 %v1325, %v1718
      %v1813 = vadd.f32 %v1330, %v1723
      %v1814 = vadd.f32 %v1333, %v1726
      %v1815 = vadd.f32 %v1338, %v1731
      %v1816 = vadd.f32 %v1341, %v1734
      %v1817 = vadd.f32 %v1346, %v1739
      %v1818 = vadd.f32 %v1349, %v1742
      %v1819 = vadd.f32 %v1354, %v1747
      %v1820 = vadd.f32 %v1357, %v1750
      %v1821 = vadd.f32 %v1362, %v1755
      %v1822 = vadd.f32 %v1365, %v1758
      %v1823 = vadd.f32 %v1370, %v1763
      %v1824 = vadd.f32 %v1373, %v1766
      %v1825 = vadd.f32 %v1378, %v1771
      %v1826 = vadd.f32 %v1381, %v1774
      %v1827 = vadd.f32 %v1386, %v1779
      %v1828 = vadd.f32 %v1389, %v1782
      %v1829 = vadd.f32 %v1394, %v1787
      %v1830 = vadd.f32 %v1397, %v1790
      %v1831 = vadd.f32 %v1402, %v1795
      %v1832 = vadd.f32 %v1405, %v1798
      %s1833 = scalar_lea.vmem %s3, 6
      %v1834 = vld [vmem:[%s1833] sm:$0x3]
      %v1837 = vunpack.c.l.b16 %v458
      %v1838 = vunpack.c.l.b16 %v459
      %v1839 = vpack.c.b16 %v1838, %v1837
      %v1841 = vsel %vm902, %v1839, 0
      %v1844 = vsel %vm951, %v1834, 0
      %1846 = vmatprep.subr.bf16.mxu0 0
      %1847 = vmatpush1.bf16.msra.mxu0 0
      %1848 = vmatprep.subr.bf16.mxu0 0
      %1849 = vmatpush1.bf16.msra.mxu0 0
      %1850 = vmatprep.subr.bf16.mxu0 0
      %1851 = vmatpush1.bf16.msra.mxu0 0
      %1852 = vmatprep.subr.bf16.mxu0 0
      %1853 = vmatpush1.bf16.msra.mxu0 0
      %1854 = vmatprep.subr.bf16.mxu0 0
      %1855 = vmatpush1.bf16.msra.mxu0 0
      %1856 = vmatprep.subr.bf16.mxu0 0
      %1857 = vmatpush1.bf16.msra.mxu0 0
      %1858 = vmatprep.subr.bf16.mxu0 0
      %1859 = vmatpush1.bf16.msra.mxu0 0
      %1860 = vmatprep.subr.bf16.mxu0 0
      %1861 = vmatpush1.bf16.msra.mxu0 %v1844
      %1862 = vmatprep.subr.bf16.mxu0 0
      %1863 = vmatpush2.bf16.msra.mxu0 0
      %1864 = vmatprep.subr.bf16.mxu0 0
      %1865 = vmatpush2.bf16.msra.mxu0 0
      %1866 = vmatprep.subr.bf16.mxu0 0
      %1867 = vmatpush2.bf16.msra.mxu0 0
      %1868 = vmatprep.subr.bf16.mxu0 0
      %1869 = vmatpush2.bf16.msra.mxu0 0
      %1870 = vmatprep.subr.bf16.mxu0 0
      %1871 = vmatpush2.bf16.msra.mxu0 0
      %1872 = vmatprep.subr.bf16.mxu0 0
      %1873 = vmatpush2.bf16.msra.mxu0 0
      %1874 = vmatprep.subr.bf16.mxu0 0
      %1875 = vmatpush2.bf16.msra.mxu0 0
      %1876 = vmatprep.subr.bf16.mxu0 0
      %1877 = vmatpush2.bf16.msra.mxu0 0
      %1878 = vmatprep.mubr.bf16.mxu0 0
      %1879 = vmatmul.mubr.bf16.gmra.mxu0 %v1200
      %v1880 = vpop.f32.mrf.mxu0
      %v1881 = vadd.f32 0.0, %v1880
      %v1882 = vpop.f32.mrf.mxu0
      %v1883 = vpop.f32.mrf.mxu0
      %v1884 = vadd.f32 0.0, %v1883
      %v1885 = vpop.f32.mrf.mxu0
      %1886 = vmatprep.mubr.bf16.mxu0 0
      %1887 = vmatmul.mubr.bf16.gmra.mxu0 %v1203
      %v1888 = vpop.f32.mrf.mxu0
      %v1889 = vadd.f32 0.0, %v1888
      %v1890 = vpop.f32.mrf.mxu0
      %v1891 = vpop.f32.mrf.mxu0
      %v1892 = vadd.f32 0.0, %v1891
      %v1893 = vpop.f32.mrf.mxu0
      %1894 = vmatprep.mubr.bf16.mxu0 0
      %1895 = vmatmul.mubr.bf16.gmra.mxu0 %v1206
      %v1896 = vpop.f32.mrf.mxu0
      %v1897 = vadd.f32 0.0, %v1896
      %v1898 = vpop.f32.mrf.mxu0
      %v1899 = vpop.f32.mrf.mxu0
      %v1900 = vadd.f32 0.0, %v1899
      %v1901 = vpop.f32.mrf.mxu0
      %1902 = vmatprep.mubr.bf16.mxu0 0
      %1903 = vmatmul.mubr.bf16.gmra.mxu0 %v1209
      %v1904 = vpop.f32.mrf.mxu0
      %v1905 = vadd.f32 0.0, %v1904
      %v1906 = vpop.f32.mrf.mxu0
      %v1907 = vpop.f32.mrf.mxu0
      %v1908 = vadd.f32 0.0, %v1907
      %v1909 = vpop.f32.mrf.mxu0
      %1910 = vmatprep.mubr.bf16.mxu0 0
      %1911 = vmatmul.mubr.bf16.gmra.mxu0 %v1212
      %v1912 = vpop.f32.mrf.mxu0
      %v1913 = vadd.f32 0.0, %v1912
      %v1914 = vpop.f32.mrf.mxu0
      %v1915 = vpop.f32.mrf.mxu0
      %v1916 = vadd.f32 0.0, %v1915
      %v1917 = vpop.f32.mrf.mxu0
      %1918 = vmatprep.mubr.bf16.mxu0 0
      %1919 = vmatmul.mubr.bf16.gmra.mxu0 %v1215
      %v1920 = vpop.f32.mrf.mxu0
      %v1921 = vadd.f32 0.0, %v1920
      %v1922 = vpop.f32.mrf.mxu0
      %v1923 = vpop.f32.mrf.mxu0
      %v1924 = vadd.f32 0.0, %v1923
      %v1925 = vpop.f32.mrf.mxu0
      %1926 = vmatprep.mubr.bf16.mxu0 0
      %1927 = vmatmul.mubr.bf16.gmra.mxu0 %v1218
      %v1928 = vpop.f32.mrf.mxu0
      %v1929 = vadd.f32 0.0, %v1928
      %v1930 = vpop.f32.mrf.mxu0
      %v1931 = vpop.f32.mrf.mxu0
      %v1932 = vadd.f32 0.0, %v1931
      %v1933 = vpop.f32.mrf.mxu0
      %1934 = vmatprep.mubr.bf16.mxu0 0
      %1935 = vmatmul.mubr.bf16.gmra.mxu0 %v1221
      %v1936 = vpop.f32.mrf.mxu0
      %v1937 = vadd.f32 0.0, %v1936
      %v1938 = vpop.f32.mrf.mxu0
      %v1939 = vpop.f32.mrf.mxu0
      %v1940 = vadd.f32 0.0, %v1939
      %v1941 = vpop.f32.mrf.mxu0
      %1942 = vmatprep.mubr.bf16.mxu0 0
      %1943 = vmatmul.mubr.bf16.gmra.mxu0 %v1224
      %v1944 = vpop.f32.mrf.mxu0
      %v1945 = vadd.f32 0.0, %v1944
      %v1946 = vpop.f32.mrf.mxu0
      %v1947 = vpop.f32.mrf.mxu0
      %v1948 = vadd.f32 0.0, %v1947
      %v1949 = vpop.f32.mrf.mxu0
      %1950 = vmatprep.mubr.bf16.mxu0 0
      %1951 = vmatmul.mubr.bf16.gmra.mxu0 %v1227
      %v1952 = vpop.f32.mrf.mxu0
      %v1953 = vadd.f32 0.0, %v1952
      %v1954 = vpop.f32.mrf.mxu0
      %v1955 = vpop.f32.mrf.mxu0
      %v1956 = vadd.f32 0.0, %v1955
      %v1957 = vpop.f32.mrf.mxu0
      %1958 = vmatprep.mubr.bf16.mxu0 0
      %1959 = vmatmul.mubr.bf16.gmra.mxu0 %v1230
      %v1960 = vpop.f32.mrf.mxu0
      %v1961 = vadd.f32 0.0, %v1960
      %v1962 = vpop.f32.mrf.mxu0
      %v1963 = vpop.f32.mrf.mxu0
      %v1964 = vadd.f32 0.0, %v1963
      %v1965 = vpop.f32.mrf.mxu0
      %1966 = vmatprep.mubr.bf16.mxu0 0
      %1967 = vmatmul.mubr.bf16.gmra.mxu0 %v1233
      %v1968 = vpop.f32.mrf.mxu0
      %v1969 = vadd.f32 0.0, %v1968
      %v1970 = vpop.f32.mrf.mxu0
      %v1971 = vpop.f32.mrf.mxu0
      %v1972 = vadd.f32 0.0, %v1971
      %v1973 = vpop.f32.mrf.mxu0
      %1974 = vmatprep.mubr.bf16.mxu0 0
      %1975 = vmatmul.mubr.bf16.gmra.mxu0 %v1236
      %v1976 = vpop.f32.mrf.mxu0
      %v1977 = vadd.f32 0.0, %v1976
      %v1978 = vpop.f32.mrf.mxu0
      %v1979 = vpop.f32.mrf.mxu0
      %v1980 = vadd.f32 0.0, %v1979
      %v1981 = vpop.f32.mrf.mxu0
      %1982 = vmatprep.mubr.bf16.mxu0 0
      %1983 = vmatmul.mubr.bf16.gmra.mxu0 %v1239
      %v1984 = vpop.f32.mrf.mxu0
      %v1985 = vadd.f32 0.0, %v1984
      %v1986 = vpop.f32.mrf.mxu0
      %v1987 = vpop.f32.mrf.mxu0
      %v1988 = vadd.f32 0.0, %v1987
      %v1989 = vpop.f32.mrf.mxu0
      %1990 = vmatprep.mubr.bf16.mxu0 0
      %1991 = vmatmul.mubr.bf16.gmra.mxu0 %v1242
      %v1992 = vpop.f32.mrf.mxu0
      %v1993 = vadd.f32 0.0, %v1992
      %v1994 = vpop.f32.mrf.mxu0
      %v1995 = vpop.f32.mrf.mxu0
      %v1996 = vadd.f32 0.0, %v1995
      %v1997 = vpop.f32.mrf.mxu0
      %1998 = vmatprep.mubr.bf16.mxu0 0
      %1999 = vmatmul.mubr.bf16.gmra.mxu0 %v1841
      %v2000 = vpop.f32.mrf.mxu0
      %v2001 = vadd.f32 0.0, %v2000
      %v2002 = vpop.f32.mrf.mxu0
      %v2003 = vpop.f32.mrf.mxu0
      %v2004 = vadd.f32 0.0, %v2003
      %v2005 = vpop.f32.mrf.mxu0
      %2006 = vdwg.mxu0
      %v2007 = vadd.f32 %v1801, %v1881
      %v2008 = vadd.f32 %v1802, %v1884
      %v2009 = vadd.f32 %v1803, %v1889
      %v2010 = vadd.f32 %v1804, %v1892
      %v2011 = vadd.f32 %v1805, %v1897
      %v2012 = vadd.f32 %v1806, %v1900
      %v2013 = vadd.f32 %v1807, %v1905
      %v2014 = vadd.f32 %v1808, %v1908
      %v2015 = vadd.f32 %v1809, %v1913
      %v2016 = vadd.f32 %v1810, %v1916
      %v2017 = vadd.f32 %v1811, %v1921
      %v2018 = vadd.f32 %v1812, %v1924
      %v2019 = vadd.f32 %v1813, %v1929
      %v2020 = vadd.f32 %v1814, %v1932
      %v2021 = vadd.f32 %v1815, %v1937
      %v2022 = vadd.f32 %v1816, %v1940
      %v2023 = vadd.f32 %v1817, %v1945
      %v2024 = vadd.f32 %v1818, %v1948
      %v2025 = vadd.f32 %v1819, %v1953
      %v2026 = vadd.f32 %v1820, %v1956
      %v2027 = vadd.f32 %v1821, %v1961
      %v2028 = vadd.f32 %v1822, %v1964
      %v2029 = vadd.f32 %v1823, %v1969
      %v2030 = vadd.f32 %v1824, %v1972
      %v2031 = vadd.f32 %v1825, %v1977
      %v2032 = vadd.f32 %v1826, %v1980
      %v2033 = vadd.f32 %v1827, %v1985
      %v2034 = vadd.f32 %v1828, %v1988
      %v2035 = vadd.f32 %v1829, %v1993
      %v2036 = vadd.f32 %v1830, %v1996
      %v2037 = vadd.f32 %v1831, %v2001
      %v2038 = vadd.f32 %v1832, %v2004
      %v2040 = vshrl.u32 %v458, 16
      %v2042 = vrot.slane %v2040, 4
      %v2043 = vshll.u32 %v458, 16
      %v2045 = vrot.slane %v2043, 5
      %v2046 = vor.u32 %v2042, %v2045
      %v2047 = vrot.slane %v2046, 4
      %v2049 = vshll.u32 %v459, 16
      %v2051 = vrot.slane %v2049, 5
      %v2052 = vsel %vm467, %v2047, %v2051
      %v2053 = vshrl.u32 %v459, 16
      %v2055 = vrot.slane %v2053, 4
      %v2056 = vor.u32 %v2055, %v2051
      %v2057 = vrot.slane %v2056, 4
      %v2059 = vshll.u32 %v460, 16
      %v2061 = vrot.slane %v2059, 5
      %v2062 = vsel %vm467, %v2057, %v2061
      %s2063 = scalar_lea.vmem %s3, 8
      %v2064 = vld [vmem:[%s2063] sm:$0x3]
      %v2065 = vunpack.c.l.b16 %v2052
      %v2066 = vunpack.c.l.b16 %v2062
      %v2067 = vpack.c.b16 %v2066, %v2065
      %v2069 = vsel %vm902, %v2067, 0
      %v2072 = vsel %vm951, %v2064, 0
      %2074 = vmatprep.subr.bf16.mxu0 0
      %2075 = vmatpush1.bf16.msra.mxu0 0
      %2076 = vmatprep.subr.bf16.mxu0 0
      %2077 = vmatpush1.bf16.msra.mxu0 0
      %2078 = vmatprep.subr.bf16.mxu0 0
      %2079 = vmatpush1.bf16.msra.mxu0 0
      %2080 = vmatprep.subr.bf16.mxu0 0
      %2081 = vmatpush1.bf16.msra.mxu0 0
      %2082 = vmatprep.subr.bf16.mxu0 0
      %2083 = vmatpush1.bf16.msra.mxu0 0
      %2084 = vmatprep.subr.bf16.mxu0 0
      %2085 = vmatpush1.bf16.msra.mxu0 0
      %2086 = vmatprep.subr.bf16.mxu0 0
      %2087 = vmatpush1.bf16.msra.mxu0 0
      %2088 = vmatprep.subr.bf16.mxu0 0
      %2089 = vmatpush1.bf16.msra.mxu0 %v2072
      %2090 = vmatprep.subr.bf16.mxu0 0
      %2091 = vmatpush2.bf16.msra.mxu0 0
      %2092 = vmatprep.subr.bf16.mxu0 0
      %2093 = vmatpush2.bf16.msra.mxu0 0
      %2094 = vmatprep.subr.bf16.mxu0 0
      %2095 = vmatpush2.bf16.msra.mxu0 0
      %2096 = vmatprep.subr.bf16.mxu0 0
      %2097 = vmatpush2.bf16.msra.mxu0 0
      %2098 = vmatprep.subr.bf16.mxu0 0
      %2099 = vmatpush2.bf16.msra.mxu0 0
      %2100 = vmatprep.subr.bf16.mxu0 0
      %2101 = vmatpush2.bf16.msra.mxu0 0
      %2102 = vmatprep.subr.bf16.mxu0 0
      %2103 = vmatpush2.bf16.msra.mxu0 0
      %2104 = vmatprep.subr.bf16.mxu0 0
      %2105 = vmatpush2.bf16.msra.mxu0 0
      %2106 = vmatprep.mubr.bf16.mxu0 0
      %2107 = vmatmul.mubr.bf16.gmra.mxu0 %v907
      %v2108 = vpop.f32.mrf.mxu0
      %v2109 = vadd.f32 0.0, %v2108
      %v2110 = vpop.f32.mrf.mxu0
      %v2111 = vpop.f32.mrf.mxu0
      %v2112 = vadd.f32 0.0, %v2111
      %v2113 = vpop.f32.mrf.mxu0
      %2114 = vmatprep.mubr.bf16.mxu0 0
      %2115 = vmatmul.mubr.bf16.gmra.mxu0 %v910
      %v2116 = vpop.f32.mrf.mxu0
      %v2117 = vadd.f32 0.0, %v2116
      %v2118 = vpop.f32.mrf.mxu0
      %v2119 = vpop.f32.mrf.mxu0
      %v2120 = vadd.f32 0.0, %v2119
      %v2121 = vpop.f32.mrf.mxu0
      %2122 = vmatprep.mubr.bf16.mxu0 0
      %2123 = vmatmul.mubr.bf16.gmra.mxu0 %v913
      %v2124 = vpop.f32.mrf.mxu0
      %v2125 = vadd.f32 0.0, %v2124
      %v2126 = vpop.f32.mrf.mxu0
      %v2127 = vpop.f32.mrf.mxu0
      %v2128 = vadd.f32 0.0, %v2127
      %v2129 = vpop.f32.mrf.mxu0
      %2130 = vmatprep.mubr.bf16.mxu0 0
      %2131 = vmatmul.mubr.bf16.gmra.mxu0 %v916
      %v2132 = vpop.f32.mrf.mxu0
      %v2133 = vadd.f32 0.0, %v2132
      %v2134 = vpop.f32.mrf.mxu0
      %v2135 = vpop.f32.mrf.mxu0
      %v2136 = vadd.f32 0.0, %v2135
      %v2137 = vpop.f32.mrf.mxu0
      %2138 = vmatprep.mubr.bf16.mxu0 0
      %2139 = vmatmul.mubr.bf16.gmra.mxu0 %v919
      %v2140 = vpop.f32.mrf.mxu0
      %v2141 = vadd.f32 0.0, %v2140
      %v2142 = vpop.f32.mrf.mxu0
      %v2143 = vpop.f32.mrf.mxu0
      %v2144 = vadd.f32 0.0, %v2143
      %v2145 = vpop.f32.mrf.mxu0
      %2146 = vmatprep.mubr.bf16.mxu0 0
      %2147 = vmatmul.mubr.bf16.gmra.mxu0 %v922
      %v2148 = vpop.f32.mrf.mxu0
      %v2149 = vadd.f32 0.0, %v2148
      %v2150 = vpop.f32.mrf.mxu0
      %v2151 = vpop.f32.mrf.mxu0
      %v2152 = vadd.f32 0.0, %v2151
      %v2153 = vpop.f32.mrf.mxu0
      %2154 = vmatprep.mubr.bf16.mxu0 0
      %2155 = vmatmul.mubr.bf16.gmra.mxu0 %v925
      %v2156 = vpop.f32.mrf.mxu0
      %v2157 = vadd.f32 0.0, %v2156
      %v2158 = vpop.f32.mrf.mxu0
      %v2159 = vpop.f32.mrf.mxu0
      %v2160 = vadd.f32 0.0, %v2159
      %v2161 = vpop.f32.mrf.mxu0
      %2162 = vmatprep.mubr.bf16.mxu0 0
      %2163 = vmatmul.mubr.bf16.gmra.mxu0 %v928
      %v2164 = vpop.f32.mrf.mxu0
      %v2165 = vadd.f32 0.0, %v2164
      %v2166 = vpop.f32.mrf.mxu0
      %v2167 = vpop.f32.mrf.mxu0
      %v2168 = vadd.f32 0.0, %v2167
      %v2169 = vpop.f32.mrf.mxu0
      %2170 = vmatprep.mubr.bf16.mxu0 0
      %2171 = vmatmul.mubr.bf16.gmra.mxu0 %v931
      %v2172 = vpop.f32.mrf.mxu0
      %v2173 = vadd.f32 0.0, %v2172
      %v2174 = vpop.f32.mrf.mxu0
      %v2175 = vpop.f32.mrf.mxu0
      %v2176 = vadd.f32 0.0, %v2175
      %v2177 = vpop.f32.mrf.mxu0
      %2178 = vmatprep.mubr.bf16.mxu0 0
      %2179 = vmatmul.mubr.bf16.gmra.mxu0 %v934
      %v2180 = vpop.f32.mrf.mxu0
      %v2181 = vadd.f32 0.0, %v2180
      %v2182 = vpop.f32.mrf.mxu0
      %v2183 = vpop.f32.mrf.mxu0
      %v2184 = vadd.f32 0.0, %v2183
      %v2185 = vpop.f32.mrf.mxu0
      %2186 = vmatprep.mubr.bf16.mxu0 0
      %2187 = vmatmul.mubr.bf16.gmra.mxu0 %v937
      %v2188 = vpop.f32.mrf.mxu0
      %v2189 = vadd.f32 0.0, %v2188
      %v2190 = vpop.f32.mrf.mxu0
      %v2191 = vpop.f32.mrf.mxu0
      %v2192 = vadd.f32 0.0, %v2191
      %v2193 = vpop.f32.mrf.mxu0
      %2194 = vmatprep.mubr.bf16.mxu0 0
      %2195 = vmatmul.mubr.bf16.gmra.mxu0 %v940
      %v2196 = vpop.f32.mrf.mxu0
      %v2197 = vadd.f32 0.0, %v2196
      %v2198 = vpop.f32.mrf.mxu0
      %v2199 = vpop.f32.mrf.mxu0
      %v2200 = vadd.f32 0.0, %v2199
      %v2201 = vpop.f32.mrf.mxu0
      %2202 = vmatprep.mubr.bf16.mxu0 0
      %2203 = vmatmul.mubr.bf16.gmra.mxu0 %v943
      %v2204 = vpop.f32.mrf.mxu0
      %v2205 = vadd.f32 0.0, %v2204
      %v2206 = vpop.f32.mrf.mxu0
      %v2207 = vpop.f32.mrf.mxu0
      %v2208 = vadd.f32 0.0, %v2207
      %v2209 = vpop.f32.mrf.mxu0
      %2210 = vmatprep.mubr.bf16.mxu0 0
      %2211 = vmatmul.mubr.bf16.gmra.mxu0 %v946
      %v2212 = vpop.f32.mrf.mxu0
      %v2213 = vadd.f32 0.0, %v2212
      %v2214 = vpop.f32.mrf.mxu0
      %v2215 = vpop.f32.mrf.mxu0
      %v2216 = vadd.f32 0.0, %v2215
      %v2217 = vpop.f32.mrf.mxu0
      %2218 = vmatprep.mubr.bf16.mxu0 0
      %2219 = vmatmul.mubr.bf16.gmra.mxu0 %v949
      %v2220 = vpop.f32.mrf.mxu0
      %v2221 = vadd.f32 0.0, %v2220
      %v2222 = vpop.f32.mrf.mxu0
      %v2223 = vpop.f32.mrf.mxu0
      %v2224 = vadd.f32 0.0, %v2223
      %v2225 = vpop.f32.mrf.mxu0
      %2226 = vmatprep.mubr.bf16.mxu0 0
      %2227 = vmatmul.mubr.bf16.gmra.mxu0 %v2069
      %v2228 = vpop.f32.mrf.mxu0
      %v2229 = vadd.f32 0.0, %v2228
      %v2230 = vpop.f32.mrf.mxu0
      %v2231 = vpop.f32.mrf.mxu0
      %v2232 = vadd.f32 0.0, %v2231
      %v2233 = vpop.f32.mrf.mxu0
      %2234 = vdwg.mxu0
      %v2235 = vadd.f32 %v2007, %v2109
      %v2236 = vadd.f32 %v2008, %v2112
      %v2237 = vadd.f32 %v2009, %v2117
      %v2238 = vadd.f32 %v2010, %v2120
      %v2239 = vadd.f32 %v2011, %v2125
      %v2240 = vadd.f32 %v2012, %v2128
      %v2241 = vadd.f32 %v2013, %v2133
      %v2242 = vadd.f32 %v2014, %v2136
      %v2243 = vadd.f32 %v2015, %v2141
      %v2244 = vadd.f32 %v2016, %v2144
      %v2245 = vadd.f32 %v2017, %v2149
      %v2246 = vadd.f32 %v2018, %v2152
      %v2247 = vadd.f32 %v2019, %v2157
      %v2248 = vadd.f32 %v2020, %v2160
      %v2249 = vadd.f32 %v2021, %v2165
      %v2250 = vadd.f32 %v2022, %v2168
      %v2251 = vadd.f32 %v2023, %v2173
      %v2252 = vadd.f32 %v2024, %v2176
      %v2253 = vadd.f32 %v2025, %v2181
      %v2254 = vadd.f32 %v2026, %v2184
      %v2255 = vadd.f32 %v2027, %v2189
      %v2256 = vadd.f32 %v2028, %v2192
      %v2257 = vadd.f32 %v2029, %v2197
      %v2258 = vadd.f32 %v2030, %v2200
      %v2259 = vadd.f32 %v2031, %v2205
      %v2260 = vadd.f32 %v2032, %v2208
      %v2261 = vadd.f32 %v2033, %v2213
      %v2262 = vadd.f32 %v2034, %v2216
      %v2263 = vadd.f32 %v2035, %v2221
      %v2264 = vadd.f32 %v2036, %v2224
      %v2265 = vadd.f32 %v2037, %v2229
      %v2266 = vadd.f32 %v2038, %v2232
      %v2268 = vrot.slane %v458, 5
      %v2269 = vrot.slane %v2268, 4
      %v2270 = vrot.slane %v459, 5
      %v2271 = vsel %vm1426, %v2269, %v2270
      %v2272 = vrot.slane %v2270, 4
      %v2273 = vrot.slane %v460, 5
      %v2274 = vsel %vm1426, %v2272, %v2273
      %s2275 = scalar_lea.vmem %s3, 10
      %v2276 = vld [vmem:[%s2275] sm:$0x3]
      %v2277 = vunpack.c.l.b16 %v2271
      %v2278 = vunpack.c.l.b16 %v2274
      %v2279 = vpack.c.b16 %v2278, %v2277
      %v2281 = vsel %vm902, %v2279, 0
      %v2284 = vsel %vm951, %v2276, 0
      %2286 = vmatprep.subr.bf16.mxu0 0
      %2287 = vmatpush1.bf16.msra.mxu0 0
      %2288 = vmatprep.subr.bf16.mxu0 0
      %2289 = vmatpush1.bf16.msra.mxu0 0
      %2290 = vmatprep.subr.bf16.mxu0 0
      %2291 = vmatpush1.bf16.msra.mxu0 0
      %2292 = vmatprep.subr.bf16.mxu0 0
      %2293 = vmatpush1.bf16.msra.mxu0 0
      %2294 = vmatprep.subr.bf16.mxu0 0
      %2295 = vmatpush1.bf16.msra.mxu0 0
      %2296 = vmatprep.subr.bf16.mxu0 0
      %2297 = vmatpush1.bf16.msra.mxu0 0
      %2298 = vmatprep.subr.bf16.mxu0 0
      %2299 = vmatpush1.bf16.msra.mxu0 0
      %2300 = vmatprep.subr.bf16.mxu0 0
      %2301 = vmatpush1.bf16.msra.mxu0 %v2284
      %2302 = vmatprep.subr.bf16.mxu0 0
      %2303 = vmatpush2.bf16.msra.mxu0 0
      %2304 = vmatprep.subr.bf16.mxu0 0
      %2305 = vmatpush2.bf16.msra.mxu0 0
      %2306 = vmatprep.subr.bf16.mxu0 0
      %2307 = vmatpush2.bf16.msra.mxu0 0
      %2308 = vmatprep.subr.bf16.mxu0 0
      %2309 = vmatpush2.bf16.msra.mxu0 0
      %2310 = vmatprep.subr.bf16.mxu0 0
      %2311 = vmatpush2.bf16.msra.mxu0 0
      %2312 = vmatprep.subr.bf16.mxu0 0
      %2313 = vmatpush2.bf16.msra.mxu0 0
      %2314 = vmatprep.subr.bf16.mxu0 0
      %2315 = vmatpush2.bf16.msra.mxu0 0
      %2316 = vmatprep.subr.bf16.mxu0 0
      %2317 = vmatpush2.bf16.msra.mxu0 0
      %2318 = vmatprep.mubr.bf16.mxu0 0
      %2319 = vmatmul.mubr.bf16.gmra.mxu0 %v1593
      %v2320 = vpop.f32.mrf.mxu0
      %v2321 = vadd.f32 0.0, %v2320
      %v2322 = vpop.f32.mrf.mxu0
      %v2323 = vpop.f32.mrf.mxu0
      %v2324 = vadd.f32 0.0, %v2323
      %v2325 = vpop.f32.mrf.mxu0
      %2326 = vmatprep.mubr.bf16.mxu0 0
      %2327 = vmatmul.mubr.bf16.gmra.mxu0 %v1596
      %v2328 = vpop.f32.mrf.mxu0
      %v2329 = vadd.f32 0.0, %v2328
      %v2330 = vpop.f32.mrf.mxu0
      %v2331 = vpop.f32.mrf.mxu0
      %v2332 = vadd.f32 0.0, %v2331
      %v2333 = vpop.f32.mrf.mxu0
      %2334 = vmatprep.mubr.bf16.mxu0 0
      %2335 = vmatmul.mubr.bf16.gmra.mxu0 %v1599
      %v2336 = vpop.f32.mrf.mxu0
      %v2337 = vadd.f32 0.0, %v2336
      %v2338 = vpop.f32.mrf.mxu0
      %v2339 = vpop.f32.mrf.mxu0
      %v2340 = vadd.f32 0.0, %v2339
      %v2341 = vpop.f32.mrf.mxu0
      %2342 = vmatprep.mubr.bf16.mxu0 0
      %2343 = vmatmul.mubr.bf16.gmra.mxu0 %v1602
      %v2344 = vpop.f32.mrf.mxu0
      %v2345 = vadd.f32 0.0, %v2344
      %v2346 = vpop.f32.mrf.mxu0
      %v2347 = vpop.f32.mrf.mxu0
      %v2348 = vadd.f32 0.0, %v2347
      %v2349 = vpop.f32.mrf.mxu0
      %2350 = vmatprep.mubr.bf16.mxu0 0
      %2351 = vmatmul.mubr.bf16.gmra.mxu0 %v1605
      %v2352 = vpop.f32.mrf.mxu0
      %v2353 = vadd.f32 0.0, %v2352
      %v2354 = vpop.f32.mrf.mxu0
      %v2355 = vpop.f32.mrf.mxu0
      %v2356 = vadd.f32 0.0, %v2355
      %v2357 = vpop.f32.mrf.mxu0
      %2358 = vmatprep.mubr.bf16.mxu0 0
      %2359 = vmatmul.mubr.bf16.gmra.mxu0 %v1608
      %v2360 = vpop.f32.mrf.mxu0
      %v2361 = vadd.f32 0.0, %v2360
      %v2362 = vpop.f32.mrf.mxu0
      %v2363 = vpop.f32.mrf.mxu0
      %v2364 = vadd.f32 0.0, %v2363
      %v2365 = vpop.f32.mrf.mxu0
      %2366 = vmatprep.mubr.bf16.mxu0 0
      %2367 = vmatmul.mubr.bf16.gmra.mxu0 %v1611
      %v2368 = vpop.f32.mrf.mxu0
      %v2369 = vadd.f32 0.0, %v2368
      %v2370 = vpop.f32.mrf.mxu0
      %v2371 = vpop.f32.mrf.mxu0
      %v2372 = vadd.f32 0.0, %v2371
      %v2373 = vpop.f32.mrf.mxu0
      %2374 = vmatprep.mubr.bf16.mxu0 0
      %2375 = vmatmul.mubr.bf16.gmra.mxu0 %v1614
      %v2376 = vpop.f32.mrf.mxu0
      %v2377 = vadd.f32 0.0, %v2376
      %v2378 = vpop.f32.mrf.mxu0
      %v2379 = vpop.f32.mrf.mxu0
      %v2380 = vadd.f32 0.0, %v2379
      %v2381 = vpop.f32.mrf.mxu0
      %2382 = vmatprep.mubr.bf16.mxu0 0
      %2383 = vmatmul.mubr.bf16.gmra.mxu0 %v1617
      %v2384 = vpop.f32.mrf.mxu0
      %v2385 = vadd.f32 0.0, %v2384
      %v2386 = vpop.f32.mrf.mxu0
      %v2387 = vpop.f32.mrf.mxu0
      %v2388 = vadd.f32 0.0, %v2387
      %v2389 = vpop.f32.mrf.mxu0
      %2390 = vmatprep.mubr.bf16.mxu0 0
      %2391 = vmatmul.mubr.bf16.gmra.mxu0 %v1620
      %v2392 = vpop.f32.mrf.mxu0
      %v2393 = vadd.f32 0.0, %v2392
      %v2394 = vpop.f32.mrf.mxu0
      %v2395 = vpop.f32.mrf.mxu0
      %v2396 = vadd.f32 0.0, %v2395
      %v2397 = vpop.f32.mrf.mxu0
      %2398 = vmatprep.mubr.bf16.mxu0 0
      %2399 = vmatmul.mubr.bf16.gmra.mxu0 %v1623
      %v2400 = vpop.f32.mrf.mxu0
      %v2401 = vadd.f32 0.0, %v2400
      %v2402 = vpop.f32.mrf.mxu0
      %v2403 = vpop.f32.mrf.mxu0
      %v2404 = vadd.f32 0.0, %v2403
      %v2405 = vpop.f32.mrf.mxu0
      %2406 = vmatprep.mubr.bf16.mxu0 0
      %2407 = vmatmul.mubr.bf16.gmra.mxu0 %v1626
      %v2408 = vpop.f32.mrf.mxu0
      %v2409 = vadd.f32 0.0, %v2408
      %v2410 = vpop.f32.mrf.mxu0
      %v2411 = vpop.f32.mrf.mxu0
      %v2412 = vadd.f32 0.0, %v2411
      %v2413 = vpop.f32.mrf.mxu0
      %2414 = vmatprep.mubr.bf16.mxu0 0
      %2415 = vmatmul.mubr.bf16.gmra.mxu0 %v1629
      %v2416 = vpop.f32.mrf.mxu0
      %v2417 = vadd.f32 0.0, %v2416
      %v2418 = vpop.f32.mrf.mxu0
      %v2419 = vpop.f32.mrf.mxu0
      %v2420 = vadd.f32 0.0, %v2419
      %v2421 = vpop.f32.mrf.mxu0
      %2422 = vmatprep.mubr.bf16.mxu0 0
      %2423 = vmatmul.mubr.bf16.gmra.mxu0 %v1632
      %v2424 = vpop.f32.mrf.mxu0
      %v2425 = vadd.f32 0.0, %v2424
      %v2426 = vpop.f32.mrf.mxu0
      %v2427 = vpop.f32.mrf.mxu0
      %v2428 = vadd.f32 0.0, %v2427
      %v2429 = vpop.f32.mrf.mxu0
      %2430 = vmatprep.mubr.bf16.mxu0 0
      %2431 = vmatmul.mubr.bf16.gmra.mxu0 %v1635
      %v2432 = vpop.f32.mrf.mxu0
      %v2433 = vadd.f32 0.0, %v2432
      %v2434 = vpop.f32.mrf.mxu0
      %v2435 = vpop.f32.mrf.mxu0
      %v2436 = vadd.f32 0.0, %v2435
      %v2437 = vpop.f32.mrf.mxu0
      %2438 = vmatprep.mubr.bf16.mxu0 0
      %2439 = vmatmul.mubr.bf16.gmra.mxu0 %v2281
      %v2440 = vpop.f32.mrf.mxu0
      %v2441 = vadd.f32 0.0, %v2440
      %v2442 = vpop.f32.mrf.mxu0
      %v2443 = vpop.f32.mrf.mxu0
      %v2444 = vadd.f32 0.0, %v2443
      %v2445 = vpop.f32.mrf.mxu0
      %2446 = vdwg.mxu0
      %v2447 = vadd.f32 %v2235, %v2321
      %v2448 = vadd.f32 %v2236, %v2324
      %v2449 = vadd.f32 %v2237, %v2329
      %v2450 = vadd.f32 %v2238, %v2332
      %v2451 = vadd.f32 %v2239, %v2337
      %v2452 = vadd.f32 %v2240, %v2340
      %v2453 = vadd.f32 %v2241, %v2345
      %v2454 = vadd.f32 %v2242, %v2348
      %v2455 = vadd.f32 %v2243, %v2353
      %v2456 = vadd.f32 %v2244, %v2356
      %v2457 = vadd.f32 %v2245, %v2361
      %v2458 = vadd.f32 %v2246, %v2364
      %v2459 = vadd.f32 %v2247, %v2369
      %v2460 = vadd.f32 %v2248, %v2372
      %v2461 = vadd.f32 %v2249, %v2377
      %v2462 = vadd.f32 %v2250, %v2380
      %v2463 = vadd.f32 %v2251, %v2385
      %v2464 = vadd.f32 %v2252, %v2388
      %v2465 = vadd.f32 %v2253, %v2393
      %v2466 = vadd.f32 %v2254, %v2396
      %v2467 = vadd.f32 %v2255, %v2401
      %v2468 = vadd.f32 %v2256, %v2404
      %v2469 = vadd.f32 %v2257, %v2409
      %v2470 = vadd.f32 %v2258, %v2412
      %v2471 = vadd.f32 %v2259, %v2417
      %v2472 = vadd.f32 %v2260, %v2420
      %v2473 = vadd.f32 %v2261, %v2425
      %v2474 = vadd.f32 %v2262, %v2428
      %v2475 = vadd.f32 %v2263, %v2433
      %v2476 = vadd.f32 %v2264, %v2436
      %v2477 = vadd.f32 %v2265, %v2441
      %v2478 = vadd.f32 %v2266, %v2444
      %s2479 = scalar_lea.vmem %s3, 12
      %v2480 = vld [vmem:[%s2479] sm:$0x3]
      %v2483 = vunpack.c.l.b16 %v461
      %v2484 = vunpack.c.l.b16 %v462
      %v2485 = vpack.c.b16 %v2484, %v2483
      %v2487 = vsel %vm902, %v2485, 0
      %v2490 = vsel %vm951, %v2480, 0
      %2492 = vmatprep.subr.bf16.mxu0 0
      %2493 = vmatpush1.bf16.msra.mxu0 0
      %2494 = vmatprep.subr.bf16.mxu0 0
      %2495 = vmatpush1.bf16.msra.mxu0 0
      %2496 = vmatprep.subr.bf16.mxu0 0
      %2497 = vmatpush1.bf16.msra.mxu0 0
      %2498 = vmatprep.subr.bf16.mxu0 0
      %2499 = vmatpush1.bf16.msra.mxu0 0
      %2500 = vmatprep.subr.bf16.mxu0 0
      %2501 = vmatpush1.bf16.msra.mxu0 0
      %2502 = vmatprep.subr.bf16.mxu0 0
      %2503 = vmatpush1.bf16.msra.mxu0 0
      %2504 = vmatprep.subr.bf16.mxu0 0
      %2505 = vmatpush1.bf16.msra.mxu0 0
      %2506 = vmatprep.subr.bf16.mxu0 0
      %2507 = vmatpush1.bf16.msra.mxu0 %v2490
      %2508 = vmatprep.subr.bf16.mxu0 0
      %2509 = vmatpush2.bf16.msra.mxu0 0
      %2510 = vmatprep.subr.bf16.mxu0 0
      %2511 = vmatpush2.bf16.msra.mxu0 0
      %2512 = vmatprep.subr.bf16.mxu0 0
      %2513 = vmatpush2.bf16.msra.mxu0 0
      %2514 = vmatprep.subr.bf16.mxu0 0
      %2515 = vmatpush2.bf16.msra.mxu0 0
      %2516 = vmatprep.subr.bf16.mxu0 0
      %2517 = vmatpush2.bf16.msra.mxu0 0
      %2518 = vmatprep.subr.bf16.mxu0 0
      %2519 = vmatpush2.bf16.msra.mxu0 0
      %2520 = vmatprep.subr.bf16.mxu0 0
      %2521 = vmatpush2.bf16.msra.mxu0 0
      %2522 = vmatprep.subr.bf16.mxu0 0
      %2523 = vmatpush2.bf16.msra.mxu0 0
      %2524 = vmatprep.mubr.bf16.mxu0 0
      %2525 = vmatmul.mubr.bf16.gmra.mxu0 %v1203
      %v2526 = vpop.f32.mrf.mxu0
      %v2527 = vadd.f32 0.0, %v2526
      %v2528 = vpop.f32.mrf.mxu0
      %v2529 = vpop.f32.mrf.mxu0
      %v2530 = vadd.f32 0.0, %v2529
      %v2531 = vpop.f32.mrf.mxu0
      %2532 = vmatprep.mubr.bf16.mxu0 0
      %2533 = vmatmul.mubr.bf16.gmra.mxu0 %v1206
      %v2534 = vpop.f32.mrf.mxu0
      %v2535 = vadd.f32 0.0, %v2534
      %v2536 = vpop.f32.mrf.mxu0
      %v2537 = vpop.f32.mrf.mxu0
      %v2538 = vadd.f32 0.0, %v2537
      %v2539 = vpop.f32.mrf.mxu0
      %2540 = vmatprep.mubr.bf16.mxu0 0
      %2541 = vmatmul.mubr.bf16.gmra.mxu0 %v1209
      %v2542 = vpop.f32.mrf.mxu0
      %v2543 = vadd.f32 0.0, %v2542
      %v2544 = vpop.f32.mrf.mxu0
      %v2545 = vpop.f32.mrf.mxu0
      %v2546 = vadd.f32 0.0, %v2545
      %v2547 = vpop.f32.mrf.mxu0
      %2548 = vmatprep.mubr.bf16.mxu0 0
      %2549 = vmatmul.mubr.bf16.gmra.mxu0 %v1212
      %v2550 = vpop.f32.mrf.mxu0
      %v2551 = vadd.f32 0.0, %v2550
      %v2552 = vpop.f32.mrf.mxu0
      %v2553 = vpop.f32.mrf.mxu0
      %v2554 = vadd.f32 0.0, %v2553
      %v2555 = vpop.f32.mrf.mxu0
      %2556 = vmatprep.mubr.bf16.mxu0 0
      %2557 = vmatmul.mubr.bf16.gmra.mxu0 %v1215
      %v2558 = vpop.f32.mrf.mxu0
      %v2559 = vadd.f32 0.0, %v2558
      %v2560 = vpop.f32.mrf.mxu0
      %v2561 = vpop.f32.mrf.mxu0
      %v2562 = vadd.f32 0.0, %v2561
      %v2563 = vpop.f32.mrf.mxu0
      %2564 = vmatprep.mubr.bf16.mxu0 0
      %2565 = vmatmul.mubr.bf16.gmra.mxu0 %v1218
      %v2566 = vpop.f32.mrf.mxu0
      %v2567 = vadd.f32 0.0, %v2566
      %v2568 = vpop.f32.mrf.mxu0
      %v2569 = vpop.f32.mrf.mxu0
      %v2570 = vadd.f32 0.0, %v2569
      %v2571 = vpop.f32.mrf.mxu0
      %2572 = vmatprep.mubr.bf16.mxu0 0
      %2573 = vmatmul.mubr.bf16.gmra.mxu0 %v1221
      %v2574 = vpop.f32.mrf.mxu0
      %v2575 = vadd.f32 0.0, %v2574
      %v2576 = vpop.f32.mrf.mxu0
      %v2577 = vpop.f32.mrf.mxu0
      %v2578 = vadd.f32 0.0, %v2577
      %v2579 = vpop.f32.mrf.mxu0
      %2580 = vmatprep.mubr.bf16.mxu0 0
      %2581 = vmatmul.mubr.bf16.gmra.mxu0 %v1224
      %v2582 = vpop.f32.mrf.mxu0
      %v2583 = vadd.f32 0.0, %v2582
      %v2584 = vpop.f32.mrf.mxu0
      %v2585 = vpop.f32.mrf.mxu0
      %v2586 = vadd.f32 0.0, %v2585
      %v2587 = vpop.f32.mrf.mxu0
      %2588 = vmatprep.mubr.bf16.mxu0 0
      %2589 = vmatmul.mubr.bf16.gmra.mxu0 %v1227
      %v2590 = vpop.f32.mrf.mxu0
      %v2591 = vadd.f32 0.0, %v2590
      %v2592 = vpop.f32.mrf.mxu0
      %v2593 = vpop.f32.mrf.mxu0
      %v2594 = vadd.f32 0.0, %v2593
      %v2595 = vpop.f32.mrf.mxu0
      %2596 = vmatprep.mubr.bf16.mxu0 0
      %2597 = vmatmul.mubr.bf16.gmra.mxu0 %v1230
      %v2598 = vpop.f32.mrf.mxu0
      %v2599 = vadd.f32 0.0, %v2598
      %v2600 = vpop.f32.mrf.mxu0
      %v2601 = vpop.f32.mrf.mxu0
      %v2602 = vadd.f32 0.0, %v2601
      %v2603 = vpop.f32.mrf.mxu0
      %2604 = vmatprep.mubr.bf16.mxu0 0
      %2605 = vmatmul.mubr.bf16.gmra.mxu0 %v1233
      %v2606 = vpop.f32.mrf.mxu0
      %v2607 = vadd.f32 0.0, %v2606
      %v2608 = vpop.f32.mrf.mxu0
      %v2609 = vpop.f32.mrf.mxu0
      %v2610 = vadd.f32 0.0, %v2609
      %v2611 = vpop.f32.mrf.mxu0
      %2612 = vmatprep.mubr.bf16.mxu0 0
      %2613 = vmatmul.mubr.bf16.gmra.mxu0 %v1236
      %v2614 = vpop.f32.mrf.mxu0
      %v2615 = vadd.f32 0.0, %v2614
      %v2616 = vpop.f32.mrf.mxu0
      %v2617 = vpop.f32.mrf.mxu0
      %v2618 = vadd.f32 0.0, %v2617
      %v2619 = vpop.f32.mrf.mxu0
      %2620 = vmatprep.mubr.bf16.mxu0 0
      %2621 = vmatmul.mubr.bf16.gmra.mxu0 %v1239
      %v2622 = vpop.f32.mrf.mxu0
      %v2623 = vadd.f32 0.0, %v2622
      %v2624 = vpop.f32.mrf.mxu0
      %v2625 = vpop.f32.mrf.mxu0
      %v2626 = vadd.f32 0.0, %v2625
      %v2627 = vpop.f32.mrf.mxu0
      %2628 = vmatprep.mubr.bf16.mxu0 0
      %2629 = vmatmul.mubr.bf16.gmra.mxu0 %v1242
      %v2630 = vpop.f32.mrf.mxu0
      %v2631 = vadd.f32 0.0, %v2630
      %v2632 = vpop.f32.mrf.mxu0
      %v2633 = vpop.f32.mrf.mxu0
      %v2634 = vadd.f32 0.0, %v2633
      %v2635 = vpop.f32.mrf.mxu0
      %2636 = vmatprep.mubr.bf16.mxu0 0
      %2637 = vmatmul.mubr.bf16.gmra.mxu0 %v1841
      %v2638 = vpop.f32.mrf.mxu0
      %v2639 = vadd.f32 0.0, %v2638
      %v2640 = vpop.f32.mrf.mxu0
      %v2641 = vpop.f32.mrf.mxu0
      %v2642 = vadd.f32 0.0, %v2641
      %v2643 = vpop.f32.mrf.mxu0
      %2644 = vmatprep.mubr.bf16.mxu0 0
      %2645 = vmatmul.mubr.bf16.gmra.mxu0 %v2487
      %v2646 = vpop.f32.mrf.mxu0
      %v2647 = vadd.f32 0.0, %v2646
      %v2648 = vpop.f32.mrf.mxu0
      %v2649 = vpop.f32.mrf.mxu0
      %v2650 = vadd.f32 0.0, %v2649
      %v2651 = vpop.f32.mrf.mxu0
      %2652 = vdwg.mxu0
      %v2653 = vadd.f32 %v2447, %v2527
      %v2654 = vadd.f32 %v2448, %v2530
      %v2655 = vadd.f32 %v2449, %v2535
      %v2656 = vadd.f32 %v2450, %v2538
      %v2657 = vadd.f32 %v2451, %v2543
      %v2658 = vadd.f32 %v2452, %v2546
      %v2659 = vadd.f32 %v2453, %v2551
      %v2660 = vadd.f32 %v2454, %v2554
      %v2661 = vadd.f32 %v2455, %v2559
      %v2662 = vadd.f32 %v2456, %v2562
      %v2663 = vadd.f32 %v2457, %v2567
      %v2664 = vadd.f32 %v2458, %v2570
      %v2665 = vadd.f32 %v2459, %v2575
      %v2666 = vadd.f32 %v2460, %v2578
      %v2667 = vadd.f32 %v2461, %v2583
      %v2668 = vadd.f32 %v2462, %v2586
      %v2669 = vadd.f32 %v2463, %v2591
      %v2670 = vadd.f32 %v2464, %v2594
      %v2671 = vadd.f32 %v2465, %v2599
      %v2672 = vadd.f32 %v2466, %v2602
      %v2673 = vadd.f32 %v2467, %v2607
      %v2674 = vadd.f32 %v2468, %v2610
      %v2675 = vadd.f32 %v2469, %v2615
      %v2676 = vadd.f32 %v2470, %v2618
      %v2677 = vadd.f32 %v2471, %v2623
      %v2678 = vadd.f32 %v2472, %v2626
      %v2679 = vadd.f32 %v2473, %v2631
      %v2680 = vadd.f32 %v2474, %v2634
      %v2681 = vadd.f32 %v2475, %v2639
      %v2682 = vadd.f32 %v2476, %v2642
      %v2683 = vadd.f32 %v2477, %v2647
      %v2684 = vadd.f32 %v2478, %v2650
      %v2686 = vshrl.u32 %v461, 16
      %v2688 = vrot.slane %v2686, 4
      %v2689 = vshll.u32 %v461, 16
      %v2691 = vrot.slane %v2689, 5
      %v2692 = vor.u32 %v2688, %v2691
      %v2693 = vrot.slane %v2692, 4
      %v2695 = vshll.u32 %v462, 16
      %v2697 = vrot.slane %v2695, 5
      %v2698 = vsel %vm467, %v2693, %v2697
      %v2699 = vshrl.u32 %v462, 16
      %v2701 = vrot.slane %v2699, 4
      %v2702 = vor.u32 %v2701, %v2697
      %v2703 = vrot.slane %v2702, 4
      %v2705 = vshll.u32 %v463, 16
      %v2707 = vrot.slane %v2705, 5
      %v2708 = vsel %vm467, %v2703, %v2707
      %s2709 = scalar_lea.vmem %s3, 14
      %v2710 = vld [vmem:[%s2709] sm:$0x3]
      %v2711 = vunpack.c.l.b16 %v2698
      %v2712 = vunpack.c.l.b16 %v2708
      %v2713 = vpack.c.b16 %v2712, %v2711
      %v2715 = vsel %vm902, %v2713, 0
      %v2718 = vsel %vm951, %v2710, 0
      %2720 = vmatprep.subr.bf16.mxu0 0
      %2721 = vmatpush1.bf16.msra.mxu0 0
      %2722 = vmatprep.subr.bf16.mxu0 0
      %2723 = vmatpush1.bf16.msra.mxu0 0
      %2724 = vmatprep.subr.bf16.mxu0 0
      %2725 = vmatpush1.bf16.msra.mxu0 0
      %2726 = vmatprep.subr.bf16.mxu0 0
      %2727 = vmatpush1.bf16.msra.mxu0 0
      %2728 = vmatprep.subr.bf16.mxu0 0
      %2729 = vmatpush1.bf16.msra.mxu0 0
      %2730 = vmatprep.subr.bf16.mxu0 0
      %2731 = vmatpush1.bf16.msra.mxu0 0
      %2732 = vmatprep.subr.bf16.mxu0 0
      %2733 = vmatpush1.bf16.msra.mxu0 0
      %2734 = vmatprep.subr.bf16.mxu0 0
      %2735 = vmatpush1.bf16.msra.mxu0 %v2718
      %2736 = vmatprep.subr.bf16.mxu0 0
      %2737 = vmatpush2.bf16.msra.mxu0 0
      %2738 = vmatprep.subr.bf16.mxu0 0
      %2739 = vmatpush2.bf16.msra.mxu0 0
      %2740 = vmatprep.subr.bf16.mxu0 0
      %2741 = vmatpush2.bf16.msra.mxu0 0
      %2742 = vmatprep.subr.bf16.mxu0 0
      %2743 = vmatpush2.bf16.msra.mxu0 0
      %2744 = vmatprep.subr.bf16.mxu0 0
      %2745 = vmatpush2.bf16.msra.mxu0 0
      %2746 = vmatprep.subr.bf16.mxu0 0
      %2747 = vmatpush2.bf16.msra.mxu0 0
      %2748 = vmatprep.subr.bf16.mxu0 0
      %2749 = vmatpush2.bf16.msra.mxu0 0
      %2750 = vmatprep.subr.bf16.mxu0 0
      %2751 = vmatpush2.bf16.msra.mxu0 0
      %2752 = vmatprep.mubr.bf16.mxu0 0
      %2753 = vmatmul.mubr.bf16.gmra.mxu0 %v910
      %v2754 = vpop.f32.mrf.mxu0
      %v2755 = vadd.f32 0.0, %v2754
      %v2756 = vpop.f32.mrf.mxu0
      %v2757 = vpop.f32.mrf.mxu0
      %v2758 = vadd.f32 0.0, %v2757
      %v2759 = vpop.f32.mrf.mxu0
      %2760 = vmatprep.mubr.bf16.mxu0 0
      %2761 = vmatmul.mubr.bf16.gmra.mxu0 %v913
      %v2762 = vpop.f32.mrf.mxu0
      %v2763 = vadd.f32 0.0, %v2762
      %v2764 = vpop.f32.mrf.mxu0
      %v2765 = vpop.f32.mrf.mxu0
      %v2766 = vadd.f32 0.0, %v2765
      %v2767 = vpop.f32.mrf.mxu0
      %2768 = vmatprep.mubr.bf16.mxu0 0
      %2769 = vmatmul.mubr.bf16.gmra.mxu0 %v916
      %v2770 = vpop.f32.mrf.mxu0
      %v2771 = vadd.f32 0.0, %v2770
      %v2772 = vpop.f32.mrf.mxu0
      %v2773 = vpop.f32.mrf.mxu0
      %v2774 = vadd.f32 0.0, %v2773
      %v2775 = vpop.f32.mrf.mxu0
      %2776 = vmatprep.mubr.bf16.mxu0 0
      %2777 = vmatmul.mubr.bf16.gmra.mxu0 %v919
      %v2778 = vpop.f32.mrf.mxu0
      %v2779 = vadd.f32 0.0, %v2778
      %v2780 = vpop.f32.mrf.mxu0
      %v2781 = vpop.f32.mrf.mxu0
      %v2782 = vadd.f32 0.0, %v2781
      %v2783 = vpop.f32.mrf.mxu0
      %2784 = vmatprep.mubr.bf16.mxu0 0
      %2785 = vmatmul.mubr.bf16.gmra.mxu0 %v922
      %v2786 = vpop.f32.mrf.mxu0
      %v2787 = vadd.f32 0.0, %v2786
      %v2788 = vpop.f32.mrf.mxu0
      %v2789 = vpop.f32.mrf.mxu0
      %v2790 = vadd.f32 0.0, %v2789
      %v2791 = vpop.f32.mrf.mxu0
      %2792 = vmatprep.mubr.bf16.mxu0 0
      %2793 = vmatmul.mubr.bf16.gmra.mxu0 %v925
      %v2794 = vpop.f32.mrf.mxu0
      %v2795 = vadd.f32 0.0, %v2794
      %v2796 = vpop.f32.mrf.mxu0
      %v2797 = vpop.f32.mrf.mxu0
      %v2798 = vadd.f32 0.0, %v2797
      %v2799 = vpop.f32.mrf.mxu0
      %2800 = vmatprep.mubr.bf16.mxu0 0
      %2801 = vmatmul.mubr.bf16.gmra.mxu0 %v928
      %v2802 = vpop.f32.mrf.mxu0
      %v2803 = vadd.f32 0.0, %v2802
      %v2804 = vpop.f32.mrf.mxu0
      %v2805 = vpop.f32.mrf.mxu0
      %v2806 = vadd.f32 0.0, %v2805
      %v2807 = vpop.f32.mrf.mxu0
      %2808 = vmatprep.mubr.bf16.mxu0 0
      %2809 = vmatmul.mubr.bf16.gmra.mxu0 %v931
      %v2810 = vpop.f32.mrf.mxu0
      %v2811 = vadd.f32 0.0, %v2810
      %v2812 = vpop.f32.mrf.mxu0
      %v2813 = vpop.f32.mrf.mxu0
      %v2814 = vadd.f32 0.0, %v2813
      %v2815 = vpop.f32.mrf.mxu0
      %2816 = vmatprep.mubr.bf16.mxu0 0
      %2817 = vmatmul.mubr.bf16.gmra.mxu0 %v934
      %v2818 = vpop.f32.mrf.mxu0
      %v2819 = vadd.f32 0.0, %v2818
      %v2820 = vpop.f32.mrf.mxu0
      %v2821 = vpop.f32.mrf.mxu0
      %v2822 = vadd.f32 0.0, %v2821
      %v2823 = vpop.f32.mrf.mxu0
      %2824 = vmatprep.mubr.bf16.mxu0 0
      %2825 = vmatmul.mubr.bf16.gmra.mxu0 %v937
      %v2826 = vpop.f32.mrf.mxu0
      %v2827 = vadd.f32 0.0, %v2826
      %v2828 = vpop.f32.mrf.mxu0
      %v2829 = vpop.f32.mrf.mxu0
      %v2830 = vadd.f32 0.0, %v2829
      %v2831 = vpop.f32.mrf.mxu0
      %2832 = vmatprep.mubr.bf16.mxu0 0
      %2833 = vmatmul.mubr.bf16.gmra.mxu0 %v940
      %v2834 = vpop.f32.mrf.mxu0
      %v2835 = vadd.f32 0.0, %v2834
      %v2836 = vpop.f32.mrf.mxu0
      %v2837 = vpop.f32.mrf.mxu0
      %v2838 = vadd.f32 0.0, %v2837
      %v2839 = vpop.f32.mrf.mxu0
      %2840 = vmatprep.mubr.bf16.mxu0 0
      %2841 = vmatmul.mubr.bf16.gmra.mxu0 %v943
      %v2842 = vpop.f32.mrf.mxu0
      %v2843 = vadd.f32 0.0, %v2842
      %v2844 = vpop.f32.mrf.mxu0
      %v2845 = vpop.f32.mrf.mxu0
      %v2846 = vadd.f32 0.0, %v2845
      %v2847 = vpop.f32.mrf.mxu0
      %2848 = vmatprep.mubr.bf16.mxu0 0
      %2849 = vmatmul.mubr.bf16.gmra.mxu0 %v946
      %v2850 = vpop.f32.mrf.mxu0
      %v2851 = vadd.f32 0.0, %v2850
      %v2852 = vpop.f32.mrf.mxu0
      %v2853 = vpop.f32.mrf.mxu0
      %v2854 = vadd.f32 0.0, %v2853
      %v2855 = vpop.f32.mrf.mxu0
      %2856 = vmatprep.mubr.bf16.mxu0 0
      %2857 = vmatmul.mubr.bf16.gmra.mxu0 %v949
      %v2858 = vpop.f32.mrf.mxu0
      %v2859 = vadd.f32 0.0, %v2858
      %v2860 = vpop.f32.mrf.mxu0
      %v2861 = vpop.f32.mrf.mxu0
      %v2862 = vadd.f32 0.0, %v2861
      %v2863 = vpop.f32.mrf.mxu0
      %2864 = vmatprep.mubr.bf16.mxu0 0
      %2865 = vmatmul.mubr.bf16.gmra.mxu0 %v2069
      %v2866 = vpop.f32.mrf.mxu0
      %v2867 = vadd.f32 0.0, %v2866
      %v2868 = vpop.f32.mrf.mxu0
      %v2869 = vpop.f32.mrf.mxu0
      %v2870 = vadd.f32 0.0, %v2869
      %v2871 = vpop.f32.mrf.mxu0
      %2872 = vmatprep.mubr.bf16.mxu0 0
      %2873 = vmatmul.mubr.bf16.gmra.mxu0 %v2715
      %v2874 = vpop.f32.mrf.mxu0
      %v2875 = vadd.f32 0.0, %v2874
      %v2876 = vpop.f32.mrf.mxu0
      %v2877 = vpop.f32.mrf.mxu0
      %v2878 = vadd.f32 0.0, %v2877
      %v2879 = vpop.f32.mrf.mxu0
      %2880 = vdwg.mxu0
      %v2881 = vadd.f32 %v2653, %v2755
      %v2882 = vadd.f32 %v2654, %v2758
      %v2883 = vadd.f32 %v2655, %v2763
      %v2884 = vadd.f32 %v2656, %v2766
      %v2885 = vadd.f32 %v2657, %v2771
      %v2886 = vadd.f32 %v2658, %v2774
      %v2887 = vadd.f32 %v2659, %v2779
      %v2888 = vadd.f32 %v2660, %v2782
      %v2889 = vadd.f32 %v2661, %v2787
      %v2890 = vadd.f32 %v2662, %v2790
      %v2891 = vadd.f32 %v2663, %v2795
      %v2892 = vadd.f32 %v2664, %v2798
      %v2893 = vadd.f32 %v2665, %v2803
      %v2894 = vadd.f32 %v2666, %v2806
      %v2895 = vadd.f32 %v2667, %v2811
      %v2896 = vadd.f32 %v2668, %v2814
      %v2897 = vadd.f32 %v2669, %v2819
      %v2898 = vadd.f32 %v2670, %v2822
      %v2899 = vadd.f32 %v2671, %v2827
      %v2900 = vadd.f32 %v2672, %v2830
      %v2901 = vadd.f32 %v2673, %v2835
      %v2902 = vadd.f32 %v2674, %v2838
      %v2903 = vadd.f32 %v2675, %v2843
      %v2904 = vadd.f32 %v2676, %v2846
      %v2905 = vadd.f32 %v2677, %v2851
      %v2906 = vadd.f32 %v2678, %v2854
      %v2907 = vadd.f32 %v2679, %v2859
      %v2908 = vadd.f32 %v2680, %v2862
      %v2909 = vadd.f32 %v2681, %v2867
      %v2910 = vadd.f32 %v2682, %v2870
      %v2911 = vadd.f32 %v2683, %v2875
      %v2912 = vadd.f32 %v2684, %v2878
      %v2914 = vrot.slane %v461, 5
      %v2915 = vrot.slane %v2914, 4
      %v2916 = vrot.slane %v462, 5
      %v2917 = vsel %vm1426, %v2915, %v2916
      %v2918 = vrot.slane %v2916, 4
      %v2919 = vrot.slane %v463, 5
      %v2920 = vsel %vm1426, %v2918, %v2919
      %s2921 = scalar_lea.vmem %s3, 16
      %v2922 = vld [vmem:[%s2921] sm:$0x3]
      %v2923 = vunpack.c.l.b16 %v2917
      %v2924 = vunpack.c.l.b16 %v2920
      %v2925 = vpack.c.b16 %v2924, %v2923
      %v2927 = vsel %vm902, %v2925, 0
      %v2930 = vsel %vm951, %v2922, 0
      %2932 = vmatprep.subr.bf16.mxu0 0
      %2933 = vmatpush1.bf16.msra.mxu0 0
      %2934 = vmatprep.subr.bf16.mxu0 0
      %2935 = vmatpush1.bf16.msra.mxu0 0
      %2936 = vmatprep.subr.bf16.mxu0 0
      %2937 = vmatpush1.bf16.msra.mxu0 0
      %2938 = vmatprep.subr.bf16.mxu0 0
      %2939 = vmatpush1.bf16.msra.mxu0 0
      %2940 = vmatprep.subr.bf16.mxu0 0
      %2941 = vmatpush1.bf16.msra.mxu0 0
      %2942 = vmatprep.subr.bf16.mxu0 0
      %2943 = vmatpush1.bf16.msra.mxu0 0
      %2944 = vmatprep.subr.bf16.mxu0 0
      %2945 = vmatpush1.bf16.msra.mxu0 0
      %2946 = vmatprep.subr.bf16.mxu0 0
      %2947 = vmatpush1.bf16.msra.mxu0 %v2930
      %2948 = vmatprep.subr.bf16.mxu0 0
      %2949 = vmatpush2.bf16.msra.mxu0 0
      %2950 = vmatprep.subr.bf16.mxu0 0
      %2951 = vmatpush2.bf16.msra.mxu0 0
      %2952 = vmatprep.subr.bf16.mxu0 0
      %2953 = vmatpush2.bf16.msra.mxu0 0
      %2954 = vmatprep.subr.bf16.mxu0 0
      %2955 = vmatpush2.bf16.msra.mxu0 0
      %2956 = vmatprep.subr.bf16.mxu0 0
      %2957 = vmatpush2.bf16.msra.mxu0 0
      %2958 = vmatprep.subr.bf16.mxu0 0
      %2959 = vmatpush2.bf16.msra.mxu0 0
      %2960 = vmatprep.subr.bf16.mxu0 0
      %2961 = vmatpush2.bf16.msra.mxu0 0
      %2962 = vmatprep.subr.bf16.mxu0 0
      %2963 = vmatpush2.bf16.msra.mxu0 0
      %2964 = vmatprep.mubr.bf16.mxu0 0
      %2965 = vmatmul.mubr.bf16.gmra.mxu0 %v1596
      %v2966 = vpop.f32.mrf.mxu0
      %v2967 = vadd.f32 0.0, %v2966
      %v2968 = vpop.f32.mrf.mxu0
      %v2969 = vpop.f32.mrf.mxu0
      %v2970 = vadd.f32 0.0, %v2969
      %v2971 = vpop.f32.mrf.mxu0
      %2972 = vmatprep.mubr.bf16.mxu0 0
      %2973 = vmatmul.mubr.bf16.gmra.mxu0 %v1599
      %v2974 = vpop.f32.mrf.mxu0
      %v2975 = vadd.f32 0.0, %v2974
      %v2976 = vpop.f32.mrf.mxu0
      %v2977 = vpop.f32.mrf.mxu0
      %v2978 = vadd.f32 0.0, %v2977
      %v2979 = vpop.f32.mrf.mxu0
      %2980 = vmatprep.mubr.bf16.mxu0 0
      %2981 = vmatmul.mubr.bf16.gmra.mxu0 %v1602
      %v2982 = vpop.f32.mrf.mxu0
      %v2983 = vadd.f32 0.0, %v2982
      %v2984 = vpop.f32.mrf.mxu0
      %v2985 = vpop.f32.mrf.mxu0
      %v2986 = vadd.f32 0.0, %v2985
      %v2987 = vpop.f32.mrf.mxu0
      %2988 = vmatprep.mubr.bf16.mxu0 0
      %2989 = vmatmul.mubr.bf16.gmra.mxu0 %v1605
      %v2990 = vpop.f32.mrf.mxu0
      %v2991 = vadd.f32 0.0, %v2990
      %v2992 = vpop.f32.mrf.mxu0
      %v2993 = vpop.f32.mrf.mxu0
      %v2994 = vadd.f32 0.0, %v2993
      %v2995 = vpop.f32.mrf.mxu0
      %2996 = vmatprep.mubr.bf16.mxu0 0
      %2997 = vmatmul.mubr.bf16.gmra.mxu0 %v1608
      %v2998 = vpop.f32.mrf.mxu0
      %v2999 = vadd.f32 0.0, %v2998
      %v3000 = vpop.f32.mrf.mxu0
      %v3001 = vpop.f32.mrf.mxu0
      %v3002 = vadd.f32 0.0, %v3001
      %v3003 = vpop.f32.mrf.mxu0
      %3004 = vmatprep.mubr.bf16.mxu0 0
      %3005 = vmatmul.mubr.bf16.gmra.mxu0 %v1611
      %v3006 = vpop.f32.mrf.mxu0
      %v3007 = vadd.f32 0.0, %v3006
      %v3008 = vpop.f32.mrf.mxu0
      %v3009 = vpop.f32.mrf.mxu0
      %v3010 = vadd.f32 0.0, %v3009
      %v3011 = vpop.f32.mrf.mxu0
      %3012 = vmatprep.mubr.bf16.mxu0 0
      %3013 = vmatmul.mubr.bf16.gmra.mxu0 %v1614
      %v3014 = vpop.f32.mrf.mxu0
      %v3015 = vadd.f32 0.0, %v3014
      %v3016 = vpop.f32.mrf.mxu0
      %v3017 = vpop.f32.mrf.mxu0
      %v3018 = vadd.f32 0.0, %v3017
      %v3019 = vpop.f32.mrf.mxu0
      %3020 = vmatprep.mubr.bf16.mxu0 0
      %3021 = vmatmul.mubr.bf16.gmra.mxu0 %v1617
      %v3022 = vpop.f32.mrf.mxu0
      %v3023 = vadd.f32 0.0, %v3022
      %v3024 = vpop.f32.mrf.mxu0
      %v3025 = vpop.f32.mrf.mxu0
      %v3026 = vadd.f32 0.0, %v3025
      %v3027 = vpop.f32.mrf.mxu0
      %3028 = vmatprep.mubr.bf16.mxu0 0
      %3029 = vmatmul.mubr.bf16.gmra.mxu0 %v1620
      %v3030 = vpop.f32.mrf.mxu0
      %v3031 = vadd.f32 0.0, %v3030
      %v3032 = vpop.f32.mrf.mxu0
      %v3033 = vpop.f32.mrf.mxu0
      %v3034 = vadd.f32 0.0, %v3033
      %v3035 = vpop.f32.mrf.mxu0
      %3036 = vmatprep.mubr.bf16.mxu0 0
      %3037 = vmatmul.mubr.bf16.gmra.mxu0 %v1623
      %v3038 = vpop.f32.mrf.mxu0
      %v3039 = vadd.f32 0.0, %v3038
      %v3040 = vpop.f32.mrf.mxu0
      %v3041 = vpop.f32.mrf.mxu0
      %v3042 = vadd.f32 0.0, %v3041
      %v3043 = vpop.f32.mrf.mxu0
      %3044 = vmatprep.mubr.bf16.mxu0 0
      %3045 = vmatmul.mubr.bf16.gmra.mxu0 %v1626
      %v3046 = vpop.f32.mrf.mxu0
      %v3047 = vadd.f32 0.0, %v3046
      %v3048 = vpop.f32.mrf.mxu0
      %v3049 = vpop.f32.mrf.mxu0
      %v3050 = vadd.f32 0.0, %v3049
      %v3051 = vpop.f32.mrf.mxu0
      %3052 = vmatprep.mubr.bf16.mxu0 0
      %3053 = vmatmul.mubr.bf16.gmra.mxu0 %v1629
      %v3054 = vpop.f32.mrf.mxu0
      %v3055 = vadd.f32 0.0, %v3054
      %v3056 = vpop.f32.mrf.mxu0
      %v3057 = vpop.f32.mrf.mxu0
      %v3058 = vadd.f32 0.0, %v3057
      %v3059 = vpop.f32.mrf.mxu0
      %3060 = vmatprep.mubr.bf16.mxu0 0
      %3061 = vmatmul.mubr.bf16.gmra.mxu0 %v1632
      %v3062 = vpop.f32.mrf.mxu0
      %v3063 = vadd.f32 0.0, %v3062
      %v3064 = vpop.f32.mrf.mxu0
      %v3065 = vpop.f32.mrf.mxu0
      %v3066 = vadd.f32 0.0, %v3065
      %v3067 = vpop.f32.mrf.mxu0
      %3068 = vmatprep.mubr.bf16.mxu0 0
      %3069 = vmatmul.mubr.bf16.gmra.mxu0 %v1635
      %v3070 = vpop.f32.mrf.mxu0
      %v3071 = vadd.f32 0.0, %v3070
      %v3072 = vpop.f32.mrf.mxu0
      %v3073 = vpop.f32.mrf.mxu0
      %v3074 = vadd.f32 0.0, %v3073
      %v3075 = vpop.f32.mrf.mxu0
      %3076 = vmatprep.mubr.bf16.mxu0 0
      %3077 = vmatmul.mubr.bf16.gmra.mxu0 %v2281
      %v3078 = vpop.f32.mrf.mxu0
      %v3079 = vadd.f32 0.0, %v3078
      %v3080 = vpop.f32.mrf.mxu0
      %v3081 = vpop.f32.mrf.mxu0
      %v3082 = vadd.f32 0.0, %v3081
      %v3083 = vpop.f32.mrf.mxu0
      %3084 = vmatprep.mubr.bf16.mxu0 0
      %3085 = vmatmul.mubr.bf16.gmra.mxu0 %v2927
      %v3086 = vpop.f32.mrf.mxu0
      %v3087 = vadd.f32 0.0, %v3086
      %v3088 = vpop.f32.mrf.mxu0
      %v3089 = vpop.f32.mrf.mxu0
      %v3090 = vadd.f32 0.0, %v3089
      %v3091 = vpop.f32.mrf.mxu0
      %3092 = vdwg.mxu0
      %v3093 = vadd.f32 %v2881, %v2967
      %v3094 = vadd.f32 %v2882, %v2970
      %v3095 = vadd.f32 %v2883, %v2975
      %v3096 = vadd.f32 %v2884, %v2978
      %v3097 = vadd.f32 %v2885, %v2983
      %v3098 = vadd.f32 %v2886, %v2986
      %v3099 = vadd.f32 %v2887, %v2991
      %v3100 = vadd.f32 %v2888, %v2994
      %v3101 = vadd.f32 %v2889, %v2999
      %v3102 = vadd.f32 %v2890, %v3002
      %v3103 = vadd.f32 %v2891, %v3007
      %v3104 = vadd.f32 %v2892, %v3010
      %v3105 = vadd.f32 %v2893, %v3015
      %v3106 = vadd.f32 %v2894, %v3018
      %v3107 = vadd.f32 %v2895, %v3023
      %v3108 = vadd.f32 %v2896, %v3026
      %v3109 = vadd.f32 %v2897, %v3031
      %v3110 = vadd.f32 %v2898, %v3034
      %v3111 = vadd.f32 %v2899, %v3039
      %v3112 = vadd.f32 %v2900, %v3042
      %v3113 = vadd.f32 %v2901, %v3047
      %v3114 = vadd.f32 %v2902, %v3050
      %v3115 = vadd.f32 %v2903, %v3055
      %v3116 = vadd.f32 %v2904, %v3058
      %v3117 = vadd.f32 %v2905, %v3063
      %v3118 = vadd.f32 %v2906, %v3066
      %v3119 = vadd.f32 %v2907, %v3071
      %v3120 = vadd.f32 %v2908, %v3074
      %v3121 = vadd.f32 %v2909, %v3079
      %v3122 = vadd.f32 %v2910, %v3082
      %v3123 = vadd.f32 %v2911, %v3087
      %v3124 = vadd.f32 %v2912, %v3090
      %v3125 = vpack.c.bf16 %v3094, %v3093
      %v3126 = vpack.c.bf16 %v3096, %v3095
      %v3127 = vpack.c.bf16 %v3098, %v3097
      %v3128 = vpack.c.bf16 %v3100, %v3099
      %v3129 = vpack.c.bf16 %v3102, %v3101
      %v3130 = vpack.c.bf16 %v3104, %v3103
      %v3131 = vpack.c.bf16 %v3106, %v3105
      %v3132 = vpack.c.bf16 %v3108, %v3107
      %v3133 = vpack.c.bf16 %v3110, %v3109
      %v3134 = vpack.c.bf16 %v3112, %v3111
      %v3135 = vpack.c.bf16 %v3114, %v3113
      %v3136 = vpack.c.bf16 %v3116, %v3115
      %v3137 = vpack.c.bf16 %v3118, %v3117
      %v3138 = vpack.c.bf16 %v3120, %v3119
      %v3139 = vpack.c.bf16 %v3122, %v3121
      %v3140 = vpack.c.bf16 %v3124, %v3123
      %v3157 = vunpack.c.l.b16 %v3125
      %v3158 = vunpack.c.h.b16 %v3125
      %v3159 = vunpack.c.l.b16 %v3126
      %v3160 = vunpack.c.h.b16 %v3126
      %v3161 = vunpack.c.l.b16 %v3127
      %v3162 = vunpack.c.h.b16 %v3127
      %v3163 = vunpack.c.l.b16 %v3128
      %v3164 = vunpack.c.h.b16 %v3128
      %v3165 = vunpack.c.l.b16 %v3129
      %v3166 = vunpack.c.h.b16 %v3129
      %v3167 = vunpack.c.l.b16 %v3130
      %v3168 = vunpack.c.h.b16 %v3130
      %v3169 = vunpack.c.l.b16 %v3131
      %v3170 = vunpack.c.h.b16 %v3131
      %v3171 = vunpack.c.l.b16 %v3132
      %v3172 = vunpack.c.h.b16 %v3132
      %v3173 = vunpack.c.l.b16 %v3133
      %v3174 = vunpack.c.h.b16 %v3133
      %v3175 = vunpack.c.l.b16 %v3134
      %v3176 = vunpack.c.h.b16 %v3134
      %v3177 = vunpack.c.l.b16 %v3135
      %v3178 = vunpack.c.h.b16 %v3135
      %v3179 = vunpack.c.l.b16 %v3136
      %v3180 = vunpack.c.h.b16 %v3136
      %v3181 = vunpack.c.l.b16 %v3137
      %v3182 = vunpack.c.h.b16 %v3137
      %v3183 = vunpack.c.l.b16 %v3138
      %v3184 = vunpack.c.h.b16 %v3138
      %v3185 = vunpack.c.l.b16 %v3139
      %v3186 = vunpack.c.h.b16 %v3139
      %v3187 = vunpack.c.l.b16 %v3140
      %v3188 = vunpack.c.h.b16 %v3140
      %v3189 = vpack.c.b16 %v3157, %v3157
      %v3190 = vpack.c.b16 %v3158, %v3158
      %v3191 = vpack.c.b16 %v3159, %v3159
      %v3192 = vpack.c.b16 %v3160, %v3160
      %v3193 = vpack.c.b16 %v3161, %v3161
      %v3194 = vpack.c.b16 %v3162, %v3162
      %v3195 = vpack.c.b16 %v3163, %v3163
      %v3196 = vpack.c.b16 %v3164, %v3164
      %v3197 = vpack.c.b16 %v3165, %v3165
      %v3198 = vpack.c.b16 %v3166, %v3166
      %v3199 = vpack.c.b16 %v3167, %v3167
      %v3200 = vpack.c.b16 %v3168, %v3168
      %v3201 = vpack.c.b16 %v3169, %v3169
      %v3202 = vpack.c.b16 %v3170, %v3170
      %v3203 = vpack.c.b16 %v3171, %v3171
      %v3204 = vpack.c.b16 %v3172, %v3172
      %v3205 = vpack.c.b16 %v3173, %v3173
      %v3206 = vpack.c.b16 %v3174, %v3174
      %v3207 = vpack.c.b16 %v3175, %v3175
      %v3208 = vpack.c.b16 %v3176, %v3176
      %v3209 = vpack.c.b16 %v3177, %v3177
      %v3210 = vpack.c.b16 %v3178, %v3178
      %v3211 = vpack.c.b16 %v3179, %v3179
      %v3212 = vpack.c.b16 %v3180, %v3180
      %v3213 = vpack.c.b16 %v3181, %v3181
      %v3214 = vpack.c.b16 %v3182, %v3182
      %v3215 = vpack.c.b16 %v3183, %v3183
      %v3216 = vpack.c.b16 %v3184, %v3184
      %v3217 = vpack.c.b16 %v3185, %v3185
      %v3218 = vpack.c.b16 %v3186, %v3186
      %v3219 = vpack.c.b16 %v3187, %v3187
      %v3220 = vpack.c.b16 %v3188, %v3188
      %vm3221 = vsmask.f32 256
      %vm3222 = vsmask.f32 4368
      %vm3223 = vmor %vm3221, %vm3222
      %v3225 = vshrl.u32 %v3189, 16
      %v3227 = vrot.slane %v3225, 7
      %v3228 = vshll.u32 %v3189, 16
      %v3230 = vor.u32 %v3227, %v3228
      %v3231 = vrot.slane %v3227, 4
      %v3233 = vshrl.u32 %v3190, 16
      %v3235 = vrot.slane %v3233, 7
      %v3236 = vshll.u32 %v3190, 16
      %v3238 = vor.u32 %v3235, %v3236
      %v3239 = vsel %vm3223, %v3231, %v3238
      %v3240 = vrot.slane %v3235, 4
      %v3242 = vshrl.u32 %v3191, 16
      %v3244 = vrot.slane %v3242, 7
      %v3245 = vshll.u32 %v3191, 16
      %v3247 = vor.u32 %v3244, %v3245
      %v3248 = vrot.slane %v3244, 4
      %v3250 = vshrl.u32 %v3192, 16
      %v3252 = vrot.slane %v3250, 7
      %v3253 = vshll.u32 %v3192, 16
      %v3255 = vor.u32 %v3252, %v3253
      %v3256 = vsel %vm3223, %v3248, %v3255
      %v3257 = vrot.slane %v3252, 4
      %v3259 = vshrl.u32 %v3193, 16
      %v3261 = vrot.slane %v3259, 7
      %v3262 = vshll.u32 %v3193, 16
      %v3264 = vor.u32 %v3261, %v3262
      %v3265 = vrot.slane %v3261, 4
      %v3267 = vshrl.u32 %v3194, 16
      %v3269 = vrot.slane %v3267, 7
      %v3270 = vshll.u32 %v3194, 16
      %v3272 = vor.u32 %v3269, %v3270
      %v3273 = vsel %vm3223, %v3265, %v3272
      %v3274 = vrot.slane %v3269, 4
      %v3276 = vshrl.u32 %v3195, 16
      %v3278 = vrot.slane %v3276, 7
      %v3279 = vshll.u32 %v3195, 16
      %v3281 = vor.u32 %v3278, %v3279
      %v3282 = vrot.slane %v3278, 4
      %v3284 = vshrl.u32 %v3196, 16
      %v3286 = vrot.slane %v3284, 7
      %v3287 = vshll.u32 %v3196, 16
      %v3289 = vor.u32 %v3286, %v3287
      %v3290 = vsel %vm3223, %v3282, %v3289
      %v3291 = vrot.slane %v3286, 4
      %v3293 = vshrl.u32 %v3197, 16
      %v3295 = vrot.slane %v3293, 7
      %v3296 = vshll.u32 %v3197, 16
      %v3298 = vor.u32 %v3295, %v3296
      %v3299 = vrot.slane %v3295, 4
      %v3301 = vshrl.u32 %v3198, 16
      %v3303 = vrot.slane %v3301, 7
      %v3304 = vshll.u32 %v3198, 16
      %v3306 = vor.u32 %v3303, %v3304
      %v3307 = vsel %vm3223, %v3299, %v3306
      %v3308 = vrot.slane %v3303, 4
      %v3310 = vshrl.u32 %v3199, 16
      %v3312 = vrot.slane %v3310, 7
      %v3313 = vshll.u32 %v3199, 16
      %v3315 = vor.u32 %v3312, %v3313
      %v3316 = vrot.slane %v3312, 4
      %v3318 = vshrl.u32 %v3200, 16
      %v3320 = vrot.slane %v3318, 7
      %v3321 = vshll.u32 %v3200, 16
      %v3323 = vor.u32 %v3320, %v3321
      %v3324 = vsel %vm3223, %v3316, %v3323
      %v3325 = vrot.slane %v3320, 4
      %v3327 = vshrl.u32 %v3201, 16
      %v3329 = vrot.slane %v3327, 7
      %v3330 = vshll.u32 %v3201, 16
      %v3332 = vor.u32 %v3329, %v3330
      %v3333 = vrot.slane %v3329, 4
      %v3335 = vshrl.u32 %v3202, 16
      %v3337 = vrot.slane %v3335, 7
      %v3338 = vshll.u32 %v3202, 16
      %v3340 = vor.u32 %v3337, %v3338
      %v3341 = vsel %vm3223, %v3333, %v3340
      %v3342 = vrot.slane %v3337, 4
      %v3344 = vshrl.u32 %v3203, 16
      %v3346 = vrot.slane %v3344, 7
      %v3347 = vshll.u32 %v3203, 16
      %v3349 = vor.u32 %v3346, %v3347
      %v3350 = vrot.slane %v3346, 4
      %v3352 = vshrl.u32 %v3204, 16
      %v3354 = vrot.slane %v3352, 7
      %v3355 = vshll.u32 %v3204, 16
      %v3357 = vor.u32 %v3354, %v3355
      %v3358 = vsel %vm3223, %v3350, %v3357
      %v3359 = vrot.slane %v3354, 4
      %v3361 = vshrl.u32 %v3205, 16
      %v3363 = vrot.slane %v3361, 7
      %v3364 = vshll.u32 %v3205, 16
      %v3366 = vor.u32 %v3363, %v3364
      %v3367 = vrot.slane %v3363, 4
      %v3369 = vshrl.u32 %v3206, 16
      %v3371 = vrot.slane %v3369, 7
      %v3372 = vshll.u32 %v3206, 16
      %v3374 = vor.u32 %v3371, %v3372
      %v3375 = vsel %vm3223, %v3367, %v3374
      %v3376 = vrot.slane %v3371, 4
      %v3378 = vshrl.u32 %v3207, 16
      %v3380 = vrot.slane %v3378, 7
      %v3381 = vshll.u32 %v3207, 16
      %v3383 = vor.u32 %v3380, %v3381
      %v3384 = vrot.slane %v3380, 4
      %v3386 = vshrl.u32 %v3208, 16
      %v3388 = vrot.slane %v3386, 7
      %v3389 = vshll.u32 %v3208, 16
      %v3391 = vor.u32 %v3388, %v3389
      %v3392 = vsel %vm3223, %v3384, %v3391
      %v3393 = vrot.slane %v3388, 4
      %v3395 = vshrl.u32 %v3209, 16
      %v3397 = vrot.slane %v3395, 7
      %v3398 = vshll.u32 %v3209, 16
      %v3400 = vor.u32 %v3397, %v3398
      %v3401 = vrot.slane %v3397, 4
      %v3403 = vshrl.u32 %v3210, 16
      %v3405 = vrot.slane %v3403, 7
      %v3406 = vshll.u32 %v3210, 16
      %v3408 = vor.u32 %v3405, %v3406
      %v3409 = vsel %vm3223, %v3401, %v3408
      %v3410 = vrot.slane %v3405, 4
      %v3412 = vshrl.u32 %v3211, 16
      %v3414 = vrot.slane %v3412, 7
      %v3415 = vshll.u32 %v3211, 16
      %v3417 = vor.u32 %v3414, %v3415
      %v3418 = vrot.slane %v3414, 4
      %v3420 = vshrl.u32 %v3212, 16
      %v3422 = vrot.slane %v3420, 7
      %v3423 = vshll.u32 %v3212, 16
      %v3425 = vor.u32 %v3422, %v3423
      %v3426 = vsel %vm3223, %v3418, %v3425
      %v3427 = vrot.slane %v3422, 4
      %v3429 = vshrl.u32 %v3213, 16
      %v3431 = vrot.slane %v3429, 7
      %v3432 = vshll.u32 %v3213, 16
      %v3434 = vor.u32 %v3431, %v3432
      %v3435 = vrot.slane %v3431, 4
      %v3437 = vshrl.u32 %v3214, 16
      %v3439 = vrot.slane %v3437, 7
      %v3440 = vshll.u32 %v3214, 16
      %v3442 = vor.u32 %v3439, %v3440
      %v3443 = vsel %vm3223, %v3435, %v3442
      %v3444 = vrot.slane %v3439, 4
      %v3446 = vshrl.u32 %v3215, 16
      %v3448 = vrot.slane %v3446, 7
      %v3449 = vshll.u32 %v3215, 16
      %v3451 = vor.u32 %v3448, %v3449
      %v3452 = vrot.slane %v3448, 4
      %v3454 = vshrl.u32 %v3216, 16
      %v3456 = vrot.slane %v3454, 7
      %v3457 = vshll.u32 %v3216, 16
      %v3459 = vor.u32 %v3456, %v3457
      %v3460 = vsel %vm3223, %v3452, %v3459
      %v3461 = vrot.slane %v3456, 4
      %v3463 = vshrl.u32 %v3217, 16
      %v3465 = vrot.slane %v3463, 7
      %v3466 = vshll.u32 %v3217, 16
      %v3468 = vor.u32 %v3465, %v3466
      %v3469 = vrot.slane %v3465, 4
      %v3471 = vshrl.u32 %v3218, 16
      %v3473 = vrot.slane %v3471, 7
      %v3474 = vshll.u32 %v3218, 16
      %v3476 = vor.u32 %v3473, %v3474
      %v3477 = vsel %vm3223, %v3469, %v3476
      %v3478 = vrot.slane %v3473, 4
      %v3480 = vshrl.u32 %v3219, 16
      %v3482 = vrot.slane %v3480, 7
      %v3483 = vshll.u32 %v3219, 16
      %v3485 = vor.u32 %v3482, %v3483
      %v3486 = vrot.slane %v3482, 4
      %v3488 = vshrl.u32 %v3220, 16
      %v3490 = vrot.slane %v3488, 7
      %v3491 = vshll.u32 %v3220, 16
      %v3493 = vor.u32 %v3490, %v3491
      %v3494 = vsel %vm3223, %v3486, %v3493
      %v3495 = vrot.slane %v3490, 4
      %vm3544 = vcmask 1043456
      %vm3545 = vsmask.f32 7938
      %vm3546 = vmand %vm3544, %vm3545
      %v3547 = vld [vmem:[%s400] sm:$0xf]
      %v3548 = vsel %vm3546, %v3230, %v3547
      %3549 = vst [vmem:[%s400] sm:$0xf] %v3548
      %3550 = vst [vmem:[%s400 + $0x4] sm:$0xf] %v3239
      %vm3551 = vcmask 1040384
      %vm3552 = vmand %vm3551, %vm3221
      %v3553 = vld [vmem:[%s400 + $0x8] sm:$0x1]
      %v3554 = vsel %vm3552, %v3240, %v3553
      %3555 = vst [vmem:[%s400 + $0x8] sm:$0x1] %v3554
      %v3556 = vld [vmem:[%s400 + $0xc] sm:$0xf]
      %v3557 = vsel %vm3546, %v3247, %v3556
      %3558 = vst [vmem:[%s400 + $0xc] sm:$0xf] %v3557
      %3559 = vst [vmem:[%s400 + $0x10] sm:$0xf] %v3256
      %v3560 = vld [vmem:[%s400 + $0x14] sm:$0x1]
      %v3561 = vsel %vm3552, %v3257, %v3560
      %3562 = vst [vmem:[%s400 + $0x14] sm:$0x1] %v3561
      %v3563 = vld [vmem:[%s400 + $0x18] sm:$0xf]
      %v3564 = vsel %vm3546, %v3264, %v3563
      %3565 = vst [vmem:[%s400 + $0x18] sm:$0xf] %v3564
      %3566 = vst [vmem:[%s400 + $0x1c] sm:$0xf] %v3273
      %v3567 = vld [vmem:[%s400 + $0x20] sm:$0x1]
      %v3568 = vsel %vm3552, %v3274, %v3567
      %3569 = vst [vmem:[%s400 + $0x20] sm:$0x1] %v3568
      %v3570 = vld [vmem:[%s400 + $0x24] sm:$0xf]
      %v3571 = vsel %vm3546, %v3281, %v3570
      %3572 = vst [vmem:[%s400 + $0x24] sm:$0xf] %v3571
      %3573 = vst [vmem:[%s400 + $0x28] sm:$0xf] %v3290
      %v3574 = vld [vmem:[%s400 + $0x2c] sm:$0x1]
      %v3575 = vsel %vm3552, %v3291, %v3574
      %3576 = vst [vmem:[%s400 + $0x2c] sm:$0x1] %v3575
      %v3577 = vld [vmem:[%s400 + $0x30] sm:$0xf]
      %v3578 = vsel %vm3546, %v3298, %v3577
      %3579 = vst [vmem:[%s400 + $0x30] sm:$0xf] %v3578
      %3580 = vst [vmem:[%s400 + $0x34] sm:$0xf] %v3307
      %v3581 = vld [vmem:[%s400 + $0x38] sm:$0x1]
      %v3582 = vsel %vm3552, %v3308, %v3581
      %3583 = vst [vmem:[%s400 + $0x38] sm:$0x1] %v3582
      %v3584 = vld [vmem:[%s400 + $0x3c] sm:$0xf]
      %v3585 = vsel %vm3546, %v3315, %v3584
      %3586 = vst [vmem:[%s400 + $0x3c] sm:$0xf] %v3585
      %3587 = vst [vmem:[%s400 + $0x40] sm:$0xf] %v3324
      %v3588 = vld [vmem:[%s400 + $0x44] sm:$0x1]
      %v3589 = vsel %vm3552, %v3325, %v3588
      %3590 = vst [vmem:[%s400 + $0x44] sm:$0x1] %v3589
      %v3591 = vld [vmem:[%s400 + $0x48] sm:$0xf]
      %v3592 = vsel %vm3546, %v3332, %v3591
      %3593 = vst [vmem:[%s400 + $0x48] sm:$0xf] %v3592
      %3594 = vst [vmem:[%s400 + $0x4c] sm:$0xf] %v3341
      %v3595 = vld [vmem:[%s400 + $0x50] sm:$0x1]
      %v3596 = vsel %vm3552, %v3342, %v3595
      %3597 = vst [vmem:[%s400 + $0x50] sm:$0x1] %v3596
      %v3598 = vld [vmem:[%s400 + $0x54] sm:$0xf]
      %v3599 = vsel %vm3546, %v3349, %v3598
      %3600 = vst [vmem:[%s400 + $0x54] sm:$0xf] %v3599
      %3601 = vst [vmem:[%s400 + $0x58] sm:$0xf] %v3358
      %v3602 = vld [vmem:[%s400 + $0x5c] sm:$0x1]
      %v3603 = vsel %vm3552, %v3359, %v3602
      %3604 = vst [vmem:[%s400 + $0x5c] sm:$0x1] %v3603
      %v3605 = vld [vmem:[%s400 + $0x60] sm:$0xf]
      %v3606 = vsel %vm3546, %v3366, %v3605
      %3607 = vst [vmem:[%s400 + $0x60] sm:$0xf] %v3606
      %3608 = vst [vmem:[%s400 + $0x64] sm:$0xf] %v3375
      %v3609 = vld [vmem:[%s400 + $0x68] sm:$0x1]
      %v3610 = vsel %vm3552, %v3376, %v3609
      %3611 = vst [vmem:[%s400 + $0x68] sm:$0x1] %v3610
      %v3612 = vld [vmem:[%s400 + $0x6c] sm:$0xf]
      %v3613 = vsel %vm3546, %v3383, %v3612
      %3614 = vst [vmem:[%s400 + $0x6c] sm:$0xf] %v3613
      %3615 = vst [vmem:[%s400 + $0x70] sm:$0xf] %v3392
      %v3616 = vld [vmem:[%s400 + $0x74] sm:$0x1]
      %v3617 = vsel %vm3552, %v3393, %v3616
      %3618 = vst [vmem:[%s400 + $0x74] sm:$0x1] %v3617
      %v3619 = vld [vmem:[%s400 + $0x78] sm:$0xf]
      %v3620 = vsel %vm3546, %v3400, %v3619
      %3621 = vst [vmem:[%s400 + $0x78] sm:$0xf] %v3620
      %3622 = vst [vmem:[%s400 + $0x7c] sm:$0xf] %v3409
      %v3623 = vld [vmem:[%s400 + $0x80] sm:$0x1]
      %v3624 = vsel %vm3552, %v3410, %v3623
      %3625 = vst [vmem:[%s400 + $0x80] sm:$0x1] %v3624
      %v3626 = vld [vmem:[%s400 + $0x84] sm:$0xf]
      %v3627 = vsel %vm3546, %v3417, %v3626
      %3628 = vst [vmem:[%s400 + $0x84] sm:$0xf] %v3627
      %3629 = vst [vmem:[%s400 + $0x88] sm:$0xf] %v3426
      %v3630 = vld [vmem:[%s400 + $0x8c] sm:$0x1]
      %v3631 = vsel %vm3552, %v3427, %v3630
      %3632 = vst [vmem:[%s400 + $0x8c] sm:$0x1] %v3631
      %v3633 = vld [vmem:[%s400 + $0x90] sm:$0xf]
      %v3634 = vsel %vm3546, %v3434, %v3633
      %3635 = vst [vmem:[%s400 + $0x90] sm:$0xf] %v3634
      %3636 = vst [vmem:[%s400 + $0x94] sm:$0xf] %v3443
      %v3637 = vld [vmem:[%s400 + $0x98] sm:$0x1]
      %v3638 = vsel %vm3552, %v3444, %v3637
      %3639 = vst [vmem:[%s400 + $0x98] sm:$0x1] %v3638
      %v3640 = vld [vmem:[%s400 + $0x9c] sm:$0xf]
      %v3641 = vsel %vm3546, %v3451, %v3640
      %3642 = vst [vmem:[%s400 + $0x9c] sm:$0xf] %v3641
      %3643 = vst [vmem:[%s400 + $0xa0] sm:$0xf] %v3460
      %v3644 = vld [vmem:[%s400 + $0xa4] sm:$0x1]
      %v3645 = vsel %vm3552, %v3461, %v3644
      %3646 = vst [vmem:[%s400 + $0xa4] sm:$0x1] %v3645
      %v3647 = vld [vmem:[%s400 + $0xa8] sm:$0xf]
      %v3648 = vsel %vm3546, %v3468, %v3647
      %3649 = vst [vmem:[%s400 + $0xa8] sm:$0xf] %v3648
      %3650 = vst [vmem:[%s400 + $0xac] sm:$0xf] %v3477
      %v3651 = vld [vmem:[%s400 + $0xb0] sm:$0x1]
      %v3652 = vsel %vm3552, %v3478, %v3651
      %3653 = vst [vmem:[%s400 + $0xb0] sm:$0x1] %v3652
      %v3654 = vld [vmem:[%s400 + $0xb4] sm:$0xf]
      %v3655 = vsel %vm3546, %v3485, %v3654
      %3656 = vst [vmem:[%s400 + $0xb4] sm:$0xf] %v3655
      %3657 = vst [vmem:[%s400 + $0xb8] sm:$0xf] %v3494
      %v3658 = vld [vmem:[%s400 + $0xbc] sm:$0x1]
      %v3659 = vsel %vm3552, %v3495, %v3658
      %3660 = vst [vmem:[%s400 + $0xbc] sm:$0x1] %v3659
      %v3661 = vld [vmem:[%s400] sm:$0x1]
      %v3662 = vsel %vm3552, 0, %v3661
      %3663 = vst [vmem:[%s400] sm:$0x1] %v3662
      %v3664 = vld [vmem:[%s400 + $0xc] sm:$0x1]
      %v3665 = vsel %vm3552, 0, %v3664
      %3666 = vst [vmem:[%s400 + $0xc] sm:$0x1] %v3665
      %v3667 = vld [vmem:[%s400 + $0x18] sm:$0x1]
      %v3668 = vsel %vm3552, 0, %v3667
      %3669 = vst [vmem:[%s400 + $0x18] sm:$0x1] %v3668
      %v3670 = vld [vmem:[%s400 + $0x24] sm:$0x1]
      %v3671 = vsel %vm3552, 0, %v3670
      %3672 = vst [vmem:[%s400 + $0x24] sm:$0x1] %v3671
      %v3673 = vld [vmem:[%s400 + $0x30] sm:$0x1]
      %v3674 = vsel %vm3552, 0, %v3673
      %3675 = vst [vmem:[%s400 + $0x30] sm:$0x1] %v3674
      %v3676 = vld [vmem:[%s400 + $0x3c] sm:$0x1]
      %v3677 = vsel %vm3552, 0, %v3676
      %3678 = vst [vmem:[%s400 + $0x3c] sm:$0x1] %v3677
      %v3679 = vld [vmem:[%s400 + $0x48] sm:$0x1]
      %v3680 = vsel %vm3552, 0, %v3679
      %3681 = vst [vmem:[%s400 + $0x48] sm:$0x1] %v3680
      %v3682 = vld [vmem:[%s400 + $0x54] sm:$0x1]
      %v3683 = vsel %vm3552, 0, %v3682
      %3684 = vst [vmem:[%s400 + $0x54] sm:$0x1] %v3683
      %v3685 = vld [vmem:[%s400 + $0x60] sm:$0x1]
      %v3686 = vsel %vm3552, 0, %v3685
      %3687 = vst [vmem:[%s400 + $0x60] sm:$0x1] %v3686
      %v3688 = vld [vmem:[%s400 + $0x6c] sm:$0x1]
      %v3689 = vsel %vm3552, 0, %v3688
      %3690 = vst [vmem:[%s400 + $0x6c] sm:$0x1] %v3689
      %v3691 = vld [vmem:[%s400 + $0x78] sm:$0x1]
      %v3692 = vsel %vm3552, 0, %v3691
      %3693 = vst [vmem:[%s400 + $0x78] sm:$0x1] %v3692
      %v3694 = vld [vmem:[%s400 + $0x84] sm:$0x1]
      %v3695 = vsel %vm3552, 0, %v3694
      %3696 = vst [vmem:[%s400 + $0x84] sm:$0x1] %v3695
      %v3697 = vld [vmem:[%s400 + $0x90] sm:$0x1]
      %v3698 = vsel %vm3552, 0, %v3697
      %3699 = vst [vmem:[%s400 + $0x90] sm:$0x1] %v3698
      %v3700 = vld [vmem:[%s400 + $0x9c] sm:$0x1]
      %v3701 = vsel %vm3552, 0, %v3700
      %3702 = vst [vmem:[%s400 + $0x9c] sm:$0x1] %v3701
      %v3703 = vld [vmem:[%s400 + $0xa8] sm:$0x1]
      %v3704 = vsel %vm3552, 0, %v3703
      %3705 = vst [vmem:[%s400 + $0xa8] sm:$0x1] %v3704
      %v3706 = vld [vmem:[%s400 + $0xb4] sm:$0x1]
      %v3707 = vsel %vm3552, 0, %v3706
      %3708 = vst [vmem:[%s400 + $0xb4] sm:$0x1] %v3707
      %vm3709 = vmand %vm3551, %vm3545
      %v3710 = vld [vmem:[%s400 + $0x8] sm:$0x1]
      %v3711 = vsel %vm3709, 0, %v3710
      %3712 = vst [vmem:[%s400 + $0x8] sm:$0x1] %v3711
      %v3713 = vld [vmem:[%s400 + $0x14] sm:$0x1]
      %v3714 = vsel %vm3709, 0, %v3713
      %3715 = vst [vmem:[%s400 + $0x14] sm:$0x1] %v3714
      %v3716 = vld [vmem:[%s400 + $0x20] sm:$0x1]
      %v3717 = vsel %vm3709, 0, %v3716
      %3718 = vst [vmem:[%s400 + $0x20] sm:$0x1] %v3717
      %v3719 = vld [vmem:[%s400 + $0x2c] sm:$0x1]
      %v3720 = vsel %vm3709, 0, %v3719
      %3721 = vst [vmem:[%s400 + $0x2c] sm:$0x1] %v3720
      %v3722 = vld [vmem:[%s400 + $0x38] sm:$0x1]
      %v3723 = vsel %vm3709, 0, %v3722
      %3724 = vst [vmem:[%s400 + $0x38] sm:$0x1] %v3723
      %v3725 = vld [vmem:[%s400 + $0x44] sm:$0x1]
      %v3726 = vsel %vm3709, 0, %v3725
      %3727 = vst [vmem:[%s400 + $0x44] sm:$0x1] %v3726
      %v3728 = vld [vmem:[%s400 + $0x50] sm:$0x1]
      %v3729 = vsel %vm3709, 0, %v3728
      %3730 = vst [vmem:[%s400 + $0x50] sm:$0x1] %v3729
      %v3731 = vld [vmem:[%s400 + $0x5c] sm:$0x1]
      %v3732 = vsel %vm3709, 0, %v3731
      %3733 = vst [vmem:[%s400 + $0x5c] sm:$0x1] %v3732
      %v3734 = vld [vmem:[%s400 + $0x68] sm:$0x1]
      %v3735 = vsel %vm3709, 0, %v3734
      %3736 = vst [vmem:[%s400 + $0x68] sm:$0x1] %v3735
      %v3737 = vld [vmem:[%s400 + $0x74] sm:$0x1]
      %v3738 = vsel %vm3709, 0, %v3737
      %3739 = vst [vmem:[%s400 + $0x74] sm:$0x1] %v3738
      %v3740 = vld [vmem:[%s400 + $0x80] sm:$0x1]
      %v3741 = vsel %vm3709, 0, %v3740
      %3742 = vst [vmem:[%s400 + $0x80] sm:$0x1] %v3741
      %v3743 = vld [vmem:[%s400 + $0x8c] sm:$0x1]
      %v3744 = vsel %vm3709, 0, %v3743
      %3745 = vst [vmem:[%s400 + $0x8c] sm:$0x1] %v3744
      %v3746 = vld [vmem:[%s400 + $0x98] sm:$0x1]
      %v3747 = vsel %vm3709, 0, %v3746
      %3748 = vst [vmem:[%s400 + $0x98] sm:$0x1] %v3747
      %v3749 = vld [vmem:[%s400 + $0xa4] sm:$0x1]
      %v3750 = vsel %vm3709, 0, %v3749
      %3751 = vst [vmem:[%s400 + $0xa4] sm:$0x1] %v3750
      %v3752 = vld [vmem:[%s400 + $0xb0] sm:$0x1]
      %v3753 = vsel %vm3709, 0, %v3752
      %3754 = vst [vmem:[%s400 + $0xb0] sm:$0x1] %v3753
      %v3755 = vld [vmem:[%s400 + $0xbc] sm:$0x1]
      %v3756 = vsel %vm3709, 0, %v3755
      %3757 = vst [vmem:[%s400 + $0xbc] sm:$0x1] %v3756
      %v3758 = vadd.f32 %v3093, %v3094
      %v3759 = vadd.f32 %v3758, %v3095
      %v3760 = vadd.f32 %v3759, %v3096
      %v3761 = vadd.f32 %v3760, %v3097
      %v3762 = vadd.f32 %v3761, %v3098
      %v3763 = vadd.f32 %v3762, %v3099
      %v3764 = vadd.f32 %v3763, %v3100
      %v3765 = vadd.f32 %v3764, %v3101
      %v3766 = vadd.f32 %v3765, %v3102
      %v3767 = vadd.f32 %v3766, %v3103
      %v3768 = vadd.f32 %v3767, %v3104
      %v3769 = vadd.f32 %v3768, %v3105
      %v3770 = vadd.f32 %v3769, %v3106
      %v3771 = vadd.f32 %v3770, %v3107
      %v3772 = vadd.f32 %v3771, %v3108
      %v3773 = vadd.f32 %v3772, %v3109
      %v3774 = vadd.f32 %v3773, %v3110
      %v3775 = vadd.f32 %v3774, %v3111
      %v3776 = vadd.f32 %v3775, %v3112
      %v3777 = vadd.f32 %v3776, %v3113
      %v3778 = vadd.f32 %v3777, %v3114
      %v3779 = vadd.f32 %v3778, %v3115
      %v3780 = vadd.f32 %v3779, %v3116
      %v3781 = vadd.f32 %v3780, %v3117
      %v3782 = vadd.f32 %v3781, %v3118
      %v3783 = vadd.f32 %v3782, %v3119
      %v3784 = vadd.f32 %v3783, %v3120
      %v3785 = vadd.f32 %v3784, %v3121
      %v3786 = vadd.f32 %v3785, %v3122
      %v3787 = vadd.f32 %v3786, %v3123
      %v3788 = vadd.f32 %v3787, %v3124
      %v3789 = vrot.slane %v3788, 4
      %v3790 = vadd.f32 %v3788, %v3789
      %v3791 = vrot.slane %v3790, 2
      %v3792 = vadd.f32 %v3790, %v3791
      %v3793 = vrot.slane %v3792, 1
      %v3794 = vadd.f32 %v3792, %v3793
      %3795 = vst [vmem:[%s408] sm:$0x1] %v3794
      %v3796 = vmul.f32 %v3093, %v3093
      %v3797 = vmul.f32 %v3094, %v3094
      %v3798 = vmul.f32 %v3095, %v3095
      %v3799 = vmul.f32 %v3096, %v3096
      %v3800 = vmul.f32 %v3097, %v3097
      %v3801 = vmul.f32 %v3098, %v3098
      %v3802 = vmul.f32 %v3099, %v3099
      %v3803 = vmul.f32 %v3100, %v3100
      %v3804 = vmul.f32 %v3101, %v3101
      %v3805 = vmul.f32 %v3102, %v3102
      %v3806 = vmul.f32 %v3103, %v3103
      %v3807 = vmul.f32 %v3104, %v3104
      %v3808 = vmul.f32 %v3105, %v3105
      %v3809 = vmul.f32 %v3106, %v3106
      %v3810 = vmul.f32 %v3107, %v3107
      %v3811 = vmul.f32 %v3108, %v3108
      %v3812 = vmul.f32 %v3109, %v3109
      %v3813 = vmul.f32 %v3110, %v3110
      %v3814 = vmul.f32 %v3111, %v3111
      %v3815 = vmul.f32 %v3112, %v3112
      %v3816 = vmul.f32 %v3113, %v3113
      %v3817 = vmul.f32 %v3114, %v3114
      %v3818 = vmul.f32 %v3115, %v3115
      %v3819 = vmul.f32 %v3116, %v3116
      %v3820 = vmul.f32 %v3117, %v3117
      %v3821 = vmul.f32 %v3118, %v3118
      %v3822 = vmul.f32 %v3119, %v3119
      %v3823 = vmul.f32 %v3120, %v3120
      %v3824 = vmul.f32 %v3121, %v3121
      %v3825 = vmul.f32 %v3122, %v3122
      %v3826 = vmul.f32 %v3123, %v3123
      %v3827 = vmul.f32 %v3124, %v3124
      %v3828 = vadd.f32 %v3796, %v3797
      %v3829 = vadd.f32 %v3828, %v3798
      %v3830 = vadd.f32 %v3829, %v3799
      %v3831 = vadd.f32 %v3830, %v3800
      %v3832 = vadd.f32 %v3831, %v3801
      %v3833 = vadd.f32 %v3832, %v3802
      %v3834 = vadd.f32 %v3833, %v3803
      %v3835 = vadd.f32 %v3834, %v3804
      %v3836 = vadd.f32 %v3835, %v3805
      %v3837 = vadd.f32 %v3836, %v3806
      %v3838 = vadd.f32 %v3837, %v3807
      %v3839 = vadd.f32 %v3838, %v3808
      %v3840 = vadd.f32 %v3839, %v3809
      %v3841 = vadd.f32 %v3840, %v3810
      %v3842 = vadd.f32 %v3841, %v3811
      %v3843 = vadd.f32 %v3842, %v3812
      %v3844 = vadd.f32 %v3843, %v3813
      %v3845 = vadd.f32 %v3844, %v3814
      %v3846 = vadd.f32 %v3845, %v3815
      %v3847 = vadd.f32 %v3846, %v3816
      %v3848 = vadd.f32 %v3847, %v3817
      %v3849 = vadd.f32 %v3848, %v3818
      %v3850 = vadd.f32 %v3849, %v3819
      %v3851 = vadd.f32 %v3850, %v3820
      %v3852 = vadd.f32 %v3851, %v3821
      %v3853 = vadd.f32 %v3852, %v3822
      %v3854 = vadd.f32 %v3853, %v3823
      %v3855 = vadd.f32 %v3854, %v3824
      %v3856 = vadd.f32 %v3855, %v3825
      %v3857 = vadd.f32 %v3856, %v3826
      %v3858 = vadd.f32 %v3857, %v3827
      %v3859 = vrot.slane %v3858, 4
      %v3860 = vadd.f32 %v3858, %v3859
      %v3861 = vrot.slane %v3860, 2
      %v3862 = vadd.f32 %v3860, %v3861
      %v3863 = vrot.slane %v3862, 1
      %v3864 = vadd.f32 %v3862, %v3863
      %3865 = vst [vmem:[%s408 + $0x1] sm:$0x1] %v3864
      %s3866 = smul.u32 16, %s22
      %p3867 = scmp.lt.s32.totalorder %s21, 1
      %s3868 = scalar_select %p3867, %s21, 1
      %p3869 = scmp.lt.s32.totalorder %s3866, 15
      %s3870 = scalar_select %p3869, %s3866, 15
      %s3871 = smul.addr %s3870, 3
      %s3872 = smul.addr %s3868, 48
      %s3873 = sadd.s32 %s3871, %s3872
      %s3874 = smul.addr %s3873, 4
      %s3875 = scalar_lea.vmem %s4, %s3874
      %p3876 = scmp.lt.s32.totalorder %s21, 1
      %s3877 = scalar_select %p3876, %s21, 1
      %p3878 = scmp.lt.s32.totalorder %s22, 0
      %s3879 = scalar_select %p3878, %s22, 0
      %s3880 = sadd.s32 %s3879, %s3877
      %s3881 = smul.addr %s3880, 2
      %s3882 = scalar_lea.vmem %s5, %s3881
      // Predicated region
      $region37: #{downconv_forward.3} parent=35 // pred_check
        %p3883 = pneg %p162
      $region38: #{downconv_forward.3} parent=35 // pred_check_branch
        %3885 = sbr.rel (%p3883) target = $region40
      $region39: #{downconv_forward.3} parent=35 // pred_region
        %s3886 = smul.u32 16, %s22
      $region40: #{downconv_forward.3} parent=35 // pred_fallthru
        _
      // Predicated region
      $region41: #{downconv_forward.3} parent=35 // pred_check
        %p3887 = pneg %p190
      $region42: #{downconv_forward.3} parent=35 // pred_check_branch
        %3889 = sbr.rel (%p3887) target = $region44
      $region43: #{downconv_forward.3} parent=35 // pred_region
        _
      $region44: #{downconv_forward.3} parent=35 // pred_fallthru
        _
    $region36: #{downconv_forward.3} parent=5 // pred_fallthru
      _
    %p3890 = scmp.le.s32.totalorder 2, %s12
    // Predicated region
    $region45: #{downconv_forward.3} parent=5 // pred_check
      %p3891 = pneg %p3890
    $region46: #{downconv_forward.3} parent=5 // pred_check_branch
      %3893 = sbr.rel (%p3891) target = $region48
    $region47: #{downconv_forward.3} parent=5 // pred_region
      %s3894 = ssub.s32 %s12, 2
      // Predicated region
      $region49: #{downconv_forward.3} parent=47 // pred_check
        %p3895 = pneg %p168
      $region50: #{downconv_forward.3} parent=47 // pred_check_branch
        %3897 = sbr.rel (%p3895) target = $region52
      $region51: #{downconv_forward.3} parent=47 // pred_region
        %s3898 = smul.u32 16, %s24
        %p3899 = scmp.lt.s32.totalorder %s23, 1
        %s3900 = scalar_select %p3899, %s23, 1
        %p3901 = scmp.lt.s32.totalorder %s3898, 15
        %s3902 = scalar_select %p3901, %s3898, 15
        %s3903 = smul.addr %s3902, 3
        %s3904 = smul.addr %s3900, 48
        %s3905 = sadd.s32 %s3903, %s3904
        %s3906 = smul.addr %s3905, 4
        %s3907 = scalar_lea.vmem %s4, %s3906
      $region52: #{downconv_forward.3} parent=47 // pred_fallthru
        _
      // Predicated region
      $region53: #{downconv_forward.3} parent=47 // pred_check
        %p3908 = pneg %p196
      $region54: #{downconv_forward.3} parent=47 // pred_check_branch
        %3910 = sbr.rel (%p3908) target = $region56
      $region55: #{downconv_forward.3} parent=47 // pred_region
        %p3911 = scmp.lt.s32.totalorder %s23, 1
        %s3912 = scalar_select %p3911, %s23, 1
        %p3913 = scmp.lt.s32.totalorder %s24, 0
        %s3914 = scalar_select %p3913, %s24, 0
        %s3915 = sadd.s32 %s3914, %s3912
        %s3916 = smul.addr %s3915, 2
        %s3917 = scalar_lea.vmem %s5, %s3916
      $region56: #{downconv_forward.3} parent=47 // pred_fallthru
        _
    $region48: #{downconv_forward.3} parent=5 // pred_fallthru
      _
  $region6: #{downconv_forward.3} parent=0 // loop_footer
    %s16 = sadd.s32 1, %s12
  $region7: #{downconv_forward.3} parent=0 // loop_footer_branch
    %11 = sbr.rel target = $region3
  $region8: #{downconv_forward.3} parent=0 // loop_exit
    _

</llo_original>
